<compile_context>
chip_gen: v5e
topology: v5e:2x2
jax: 0.10.0
libtpu: 0.0.40
codegen_flags: <defaults>
</compile_context>

<pallas_src>
import functools

import jax
import jax.numpy as jnp
import numpy as np
from jax import lax
from jax.experimental import pallas as pl
from jax.experimental.pallas import tpu as pltpu

# ----------------------------- fixed sizes (pinned by Linear(32*7*7, 10)) ------------
H = W = 28
KS = 5
C1, C2 = 16, 32
NCLS = 10
NFEAT = C2 * 7 * 7            # 1568
NPAD = 128                    # lane-padded per-channel feature stride / logits width

# Over-computed, width-stride-flattened layouts:
#   conv1 output column index c = 32*y + x (y in [0,28), x in [0,32); x>=28 is garbage)
W_ROW = 32
PADIMG = 33 * W_ROW           # 1056 zero-padded image (2 top / 3 bottom / 2+2 lr pad)
N1 = 28 * W_ROW               # 896  conv1 over-computed width
P1W = N1 - 33                 # 863  pooled-1 width after the two shifted maxes
CPLACE = 256                  # 128-aligned placement of pooled-1 inside the conv2 canvas
TAP0 = CPLACE - (64 * 2 + 2 * 2)   # 124: conv2 tap base offset (pad=2 origin shift)
CANW = 1280                   # conv2 input canvas width (max read = 863 + 388 = 1251)
RZERO = 1024                  # 128-aligned start of the right-margin zero fill
N2 = 864                      # conv2 over-computed width (valid cols = 64*y2 + 2*x2)
P2W = N2 - 66                 # 798  pooled-2 width (valid cols = 128*y3 + 4*x3)
K2 = KS * KS * C1             # 400  conv2 contraction depth (25 taps x 16 channels)


# ----------------------------- the fused kernel (IMGS images per grid step) ----------
def _cnn_kernel(imgs, x_ref, w1_ref, b1_ref, w2_ref, b2_ref, sel_ref, wo_ref, bo_ref,
                out_ref, featp_ref, im1_ref, canvas_ref, k2_ref):
    f32 = jnp.float32
    bf16 = jnp.bfloat16

    # Garbage-column mask for pooled-1 (x >= 28 columns become conv2's zero padding).
    # Hoisted out of the image loop (broadcasts are not CSE'd by JAX).
    colmask = (lax.broadcasted_iota(jnp.int32, (1, P1W), 1) % W_ROW) < W

    for i in range(imgs):
        # ---- conv1 (1->16, 5x5, pad 2): build the (25, 896) im2col stack from 25
        #      shifted-row copies of the padded image, then ONE MXU GEMM (f32) ---------
        for dy in range(KS):
            for dx in range(KS):
                t = dy * KS + dx
                off = dy * W_ROW + dx
                im1_ref[t:t + 1, :] = x_ref[i:i + 1, off:off + N1]
        acc1 = jnp.dot(w1_ref[...], im1_ref[...],
                       preferred_element_type=f32)                   # (16, 896)
        acc1 = jnp.maximum(acc1 + b1_ref[...], 0.0)                   # bias + ReLU

        # ---- fused 2x2 max-pool #1 (shifted maxima, sparse layout), one bf16 cast ----
        h1 = jnp.maximum(acc1[:, 0:N1 - 1], acc1[:, 1:N1])
        v1 = jnp.maximum(h1[:, 0:P1W], h1[:, W_ROW:W_ROW + P1W])      # (16, 863)
        v1 = jnp.where(colmask, v1, 0.0).astype(bf16)                 # zero garbage cols

        # ---- bf16 conv2 canvas: zero only the margins, 128-aligned placement ---------
        canvas_ref[:, 0:CPLACE] = jnp.zeros((C1, CPLACE), bf16)
        canvas_ref[:, RZERO:CANW] = jnp.zeros((C1, CANW - RZERO), bf16)
        canvas_ref[:, CPLACE:CPLACE + P1W] = v1                       # overwrites overlap

        # ---- conv2 (16->32, 5x5, pad 2): sublane-stack the 25 bf16 tap slices and do
        #      ONE (32,400)@(400,864) bf16 MXU GEMM with f32 accumulation --------------
        for dy in range(KS):
            for dx in range(KS):
                t = dy * KS + dx
                start = TAP0 + 64 * dy + 2 * dx                       # even lane offset
                k2_ref[C1 * t:C1 * (t + 1), :] = canvas_ref[:, start:start + N2]
        acc2 = jnp.dot(w2_ref[...], k2_ref[...],
                       preferred_element_type=f32)                    # (32, 864) f32
        acc2 = jnp.maximum(acc2 + b2_ref[...], 0.0)                    # bias + ReLU

        # ---- fused 2x2 max-pool #2 (sparse strides: 2 horizontal, 64 vertical) -------
        h2 = jnp.maximum(acc2[:, 0:N2 - 2], acc2[:, 2:N2])
        v2 = jnp.maximum(h2[:, 0:P2W], h2[:, 64:64 + P2W])            # (32, 798)

        # ---- compact the 49 valid pooled columns into 128-lane-padded channel rows ----
        feat128 = jnp.dot(v2, sel_ref[...], preferred_element_type=f32)   # (32, 128)

        # ---- flatten channel-major at a 128-lane stride straight into the padded
        #      feature output block (aligned, lane-dense full-row stores) --------------
        for co in range(C2):
            featp_ref[i:i + 1, NPAD * co:NPAD * (co + 1)] = feat128[co:co + 1, :]

    # ---- Linear(1568 -> 10), padded to 128 output lanes; one GEMM for all IMGS images
    logits = jnp.dot(featp_ref[...], wo_ref[...],
                     preferred_element_type=jnp.float32) + bo_ref[...]    # (IMGS, 128)
    out_ref[...] = logits


def _cnn_pallas(x3d, w1k, b1c, w2m, b2c, sel, wo_pad, bo_pad, imgs):
    steps = x3d.shape[0]
    bp = steps * imgs
    flops = int(bp * 2 * (C1 * KS * KS * N1 + C2 * K2 * N2 + C2 * P2W * NPAD
                          + (C2 * NPAD) * NPAD))
    bytes_acc = int(bp * 4 * (PADIMG + NPAD + C2 * NPAD)
                    + 4 * (C1 * KS * KS + C1 + C2 + P2W * NPAD + C2 * NPAD * NPAD + NPAD)
                    + 2 * (C2 * K2))
    kernel = functools.partial(_cnn_kernel, imgs)
    return pl.pallas_call(
        kernel,
        out_shape=(jax.ShapeDtypeStruct((steps, imgs, NPAD), jnp.float32),
                   jax.ShapeDtypeStruct((steps, imgs, C2 * NPAD), jnp.float32)),
        grid=(steps,),
        in_specs=[
            pl.BlockSpec((None, imgs, PADIMG), lambda b: (b, 0, 0)),   # padded images
            pl.BlockSpec((C1, KS * KS), lambda b: (0, 0)),             # conv1 weights (16,25)
            pl.BlockSpec((C1, 1), lambda b: (0, 0)),                   # conv1 bias
            pl.BlockSpec((C2, K2), lambda b: (0, 0)),                  # conv2 weights (32,400) bf16
            pl.BlockSpec((C2, 1), lambda b: (0, 0)),                   # conv2 bias
            pl.BlockSpec((P2W, NPAD), lambda b: (0, 0)),               # pool-2 selection (798,128)
            pl.BlockSpec((C2 * NPAD, NPAD), lambda b: (0, 0)),         # fc weights (4096,128)
            pl.BlockSpec((1, NPAD), lambda b: (0, 0)),                 # fc bias (1,128)
        ],
        out_specs=(
            pl.BlockSpec((None, imgs, NPAD), lambda b: (b, 0, 0)),         # padded logits
            pl.BlockSpec((None, imgs, C2 * NPAD), lambda b: (b, 0, 0)),    # padded flat feats
        ),
        scratch_shapes=[
            pltpu.VMEM((KS * KS, N1), jnp.float32),                    # conv1 im2col stack
            pltpu.VMEM((C1, CANW), jnp.bfloat16),                      # conv2 input canvas
            pltpu.VMEM((K2, N2), jnp.bfloat16),                        # conv2 K=400 stack
        ],
        compiler_params=pltpu.CompilerParams(dimension_semantics=("parallel",)),
        cost_estimate=pl.CostEstimate(flops=flops, transcendentals=0,
                                      bytes_accessed=bytes_acc),
    )(x3d, w1k, b1c, w2m, b2c, sel, wo_pad, bo_pad)


def _choose_imgs(batch):
    # Amortise per-step overhead, but keep >= 2 grid steps so v7x can use both cores.
    for cand in (8, 4, 2):
        if batch >= 2 * cand:
            return cand
    return 1


# ----------------------------- forward pass (wrapper is only cheap layout glue) ------
@jax.jit
def cnn_forward(x_nchw, params):
    B = x_nchw.shape[0]
    f32 = jnp.float32
    imgs = _choose_imgs(B)
    steps = -(-B // imgs)
    Bp = steps * imgs

    # input: NCHW (Cin=1) -> zero-padded image flattened with row stride 32; one extra
    # zero row at the bottom keeps every conv1 tap slice in-bounds.  Batch padded to a
    # multiple of IMGS with zero images (sliced off below).
    x = x_nchw.reshape(B, H, W).astype(f32)
    xp = jnp.pad(x, ((0, Bp - B), (2, 3), (2, 2)))                   # (Bp, 33, 32)
    x3d = xp.reshape(steps, imgs, PADIMG)

    # PyTorch-layout parameters -> kernel layouts.
    w1k = params["w1"].reshape(C1, KS * KS).astype(f32)              # (16, 25)
    b1c = params["b1"].reshape(C1, 1).astype(f32)
    w2m = jnp.transpose(params["w2"], (0, 2, 3, 1)).reshape(
        C2, K2).astype(jnp.bfloat16)                                 # (32, 400) bf16
    b2c = params["b2"].reshape(C2, 1).astype(f32)

    # constant 0/1 selector compacting the 49 valid pooled-2 columns into a 128-lane row
    r = jnp.arange(P2W, dtype=jnp.int32)[:, None]
    k = jnp.arange(NPAD, dtype=jnp.int32)[None, :]
    sel = ((k < 49) & (r == 128 * (k // 7) + 4 * (k % 7))).astype(f32)   # (798, 128)

    # FC weights re-laid-out for the 128-stride flat features and 128 padded output lanes
    wo3 = jnp.transpose(params["w_out"].reshape(NCLS, C2, 49), (1, 2, 0)).astype(f32)
    wo_pad = jnp.zeros((C2, NPAD, NPAD), f32).at[:, :49, :NCLS].set(wo3)
    wo_pad = wo_pad.reshape(C2 * NPAD, NPAD)                         # (4096, 128)
    bo_pad = jnp.zeros((1, NPAD), f32).at[0, :NCLS].set(params["b_out"].astype(f32))

    logits_p, featp = _cnn_pallas(x3d, w1k, b1c, w2m, b2c, sel, wo_pad, bo_pad, imgs)

    logits = logits_p.reshape(Bp, NPAD)[:B, :NCLS]                   # (B, 10)
    feat = featp.reshape(Bp, C2, NPAD)[:B, :, :49].reshape(B, NFEAT) # (B, 1568)
    return logits, feat                                              # (output, x)


# ----------------------------- parameters (deterministic, torch-shaped) --------------
def init_params(key):
    ks = jax.random.split(key, 6)
    s = 0.05
    return {
        "w1": s * jax.random.normal(ks[0], (C1, 1, KS, KS), jnp.float32),
        "b1": s * jax.random.normal(ks[1], (C1,), jnp.float32),
        "w2": s * jax.random.normal(ks[2], (C2, C1, KS, KS), jnp.float32),
        "b2": s * jax.random.normal(ks[3], (C2,), jnp.float32),
        "w_out": s * jax.random.normal(ks[4], (NCLS, NFEAT), jnp.float32),
        "b_out": s * jax.random.normal(ks[5], (NCLS,), jnp.float32),
    }


# ----------------------------- pure-JAX reference (correctness check) ----------------
def reference_forward(x_nchw, params):
    dn = ("NCHW", "OIHW", "NCHW")
    prec = lax.Precision.HIGHEST
    h = lax.conv_general_dilated(x_nchw, params["w1"], (1, 1), ((2, 2), (2, 2)),
                                 dimension_numbers=dn, precision=prec)
    h = jnp.maximum(h + params["b1"].reshape(1, C1, 1, 1), 0.0)
    h = lax.reduce_window(h, -jnp.inf, lax.max, (1, 1, 2, 2), (1, 1, 2, 2), "VALID")
    h = lax.conv_general_dilated(h, params["w2"], (1, 1), ((2, 2), (2, 2)),
                                 dimension_numbers=dn, precision=prec)
    h = jnp.maximum(h + params["b2"].reshape(1, C2, 1, 1), 0.0)
    h = lax.reduce_window(h, -jnp.inf, lax.max, (1, 1, 2, 2), (1, 1, 2, 2), "VALID")
    feat = h.reshape(x_nchw.shape[0], -1)
    logits = jnp.dot(feat, params["w_out"].T, precision=prec) + params["b_out"]
    return logits, feat


if __name__ == "__main__":
    key = jax.random.PRNGKey(0)
    k_x, k_p = jax.random.split(key)
    params = init_params(k_p)

    # Linear(32*7*7, 10) pins the spatial size to 28x28.  Two small batches:
    #   B=2 -> 1 image/step, 2 grid steps;  B=7 -> 2 images/step, batch padded to 8.
    for B in (2, 7):
        x = jax.random.normal(jax.random.fold_in(k_x, B), (B, 1, 28, 28), jnp.float32)
        logits, feat = cnn_forward(x, params)
        jax.block_until_ready((logits, feat))
        assert logits.shape == (B, NCLS) and feat.shape == (B, NFEAT)

        ref_logits, ref_feat = jax.device_get(reference_forward(x, params))
        feat_err = float(np.max(np.abs(np.asarray(feat) - ref_feat)))
        logit_err = float(np.max(np.abs(np.asarray(logits) - ref_logits)))
        # conv2 uses bf16 MXU operands (f32 accumulation), so allow a small tolerance.
        assert feat_err < 5e-2 and logit_err < 5e-2, (B, feat_err, logit_err)

    print("KERNEL_OK")
</pallas_src>

<mosaic_0001>
module attributes {stable_mosaic.version = 11 : i64} {
  func.func @_cnn_kernel(%arg0: i32, %arg1: memref<1x1x1056xf32, #tpu.memory_space<vmem>>, %arg2: memref<16x25xf32, #tpu.memory_space<vmem>>, %arg3: memref<16x1xf32, #tpu.memory_space<vmem>>, %arg4: memref<32x400xbf16, #tpu.memory_space<vmem>>, %arg5: memref<32x1xf32, #tpu.memory_space<vmem>>, %arg6: memref<798x128xf32, #tpu.memory_space<vmem>>, %arg7: memref<4096x128xf32, #tpu.memory_space<vmem>>, %arg8: memref<1x128xf32, #tpu.memory_space<vmem>>, %arg9: memref<1x1x128xf32, #tpu.memory_space<vmem>>, %arg10: memref<1x1x4096xf32, #tpu.memory_space<vmem>>, %arg11: memref<25x896xf32, #tpu.memory_space<vmem>>, %arg12: memref<16x1280xbf16, #tpu.memory_space<vmem>>, %arg13: memref<400x864xbf16, #tpu.memory_space<vmem>>) attributes {dimension_semantics = [#tpu.dimension_semantics<parallel>], iteration_bounds = array<i64: 2>, scalar_prefetch = 0 : i64, scratch_operands = 3 : i64, tpu.core_type = #tpu.core_type<tc>, window_params = [{transform_indices = @transform_0, window_bounds = array<i64: 1, 1, 1056>}, {pipeline_mode = #tpu.pipeline_mode<synchronous>, transform_indices = @transform_1, window_bounds = array<i64: 16, 25>}, {pipeline_mode = #tpu.pipeline_mode<synchronous>, transform_indices = @transform_2, window_bounds = array<i64: 16, 1>}, {pipeline_mode = #tpu.pipeline_mode<synchronous>, transform_indices = @transform_3, window_bounds = array<i64: 32, 400>}, {pipeline_mode = #tpu.pipeline_mode<synchronous>, transform_indices = @transform_4, window_bounds = array<i64: 32, 1>}, {pipeline_mode = #tpu.pipeline_mode<synchronous>, transform_indices = @transform_5, window_bounds = array<i64: 798, 128>}, {pipeline_mode = #tpu.pipeline_mode<synchronous>, transform_indices = @transform_6, window_bounds = array<i64: 4096, 128>}, {pipeline_mode = #tpu.pipeline_mode<synchronous>, transform_indices = @transform_7, window_bounds = array<i64: 1, 128>}, {transform_indices = @transform_8, window_bounds = array<i64: 1, 1, 128>}, {transform_indices = @transform_9, window_bounds = array<i64: 1, 1, 4096>}]} {
    %0 = tpu.iota {dimensions = array<i32: 1>} : vector<1x863xi32>
    %c32_i32 = arith.constant 32 : i32
    %c0_i32 = arith.constant 0 : i32
    %1 = arith.cmpi eq, %c32_i32, %c0_i32 : i32
    %c1_i32 = arith.constant 1 : i32
    %2 = arith.select %1, %c1_i32, %c32_i32 : i32
    %3 = vector.broadcast %2 : i32 to vector<1x863xi32>
    %4 = arith.remsi %0, %3 : vector<1x863xi32>
    %c0_i32_0 = arith.constant 0 : i32
    %5 = vector.broadcast %c0_i32_0 : i32 to vector<1x863xi32>
    %6 = arith.cmpi ne, %4, %5 : vector<1x863xi32>
    %c0_i32_1 = arith.constant 0 : i32
    %7 = vector.broadcast %c0_i32_1 : i32 to vector<1x863xi32>
    %8 = arith.cmpi slt, %4, %7 : vector<1x863xi32>
    %c0_i32_2 = arith.constant 0 : i32
    %9 = arith.cmpi slt, %2, %c0_i32_2 : i32
    %10 = vector.broadcast %9 : i1 to vector<1x863xi1>
    %11 = vector.broadcast %10 : vector<1x863xi1> to vector<1x863xi1>
    %12 = arith.xori %8, %11 : vector<1x863xi1>
    %13 = arith.andi %12, %6 : vector<1x863xi1>
    %14 = vector.broadcast %2 : i32 to vector<1x863xi32>
    %15 = arith.addi %4, %14 : vector<1x863xi32>
    %16 = arith.select %13, %15, %4 : vector<1x863xi1>, vector<1x863xi32>
    %c28_i32 = arith.constant 28 : i32
    %17 = vector.broadcast %c28_i32 : i32 to vector<1x863xi32>
    %18 = arith.cmpi slt, %16, %17 : vector<1x863xi32>
    %c0 = arith.constant 0 : index
    %c0_3 = arith.constant 0 : index
    %c0_4 = arith.constant 0 : index
    %19 = vector.load %arg1[%c0, %c0_3, %c0_4] : memref<1x1x1056xf32, #tpu.memory_space<vmem>>, vector<1x1x896xf32>
    %20 = vector.shape_cast %19 : vector<1x1x896xf32> to vector<1x896xf32>
    %c0_5 = arith.constant 0 : index
    %c0_6 = arith.constant 0 : index
    %21 = vector.load %arg11[%c0_5, %c0_6] : memref<25x896xf32, #tpu.memory_space<vmem>>, vector<1x896xf32>
    tpu.vector_store %arg11[%c0_5, %c0_6], %20 {strides = array<i32>} : memref<25x896xf32, #tpu.memory_space<vmem>>, vector<1x896xf32>,
    %c0_7 = arith.constant 0 : index
    %c0_8 = arith.constant 0 : index
    %c1 = arith.constant 1 : index
    %22 = vector.load %arg1[%c0_7, %c0_8, %c1] : memref<1x1x1056xf32, #tpu.memory_space<vmem>>, vector<1x1x896xf32>
    %23 = vector.shape_cast %22 : vector<1x1x896xf32> to vector<1x896xf32>
    %c1_9 = arith.constant 1 : index
    %c0_10 = arith.constant 0 : index
    %24 = vector.load %arg11[%c1_9, %c0_10] : memref<25x896xf32, #tpu.memory_space<vmem>>, vector<1x896xf32>
    tpu.vector_store %arg11[%c1_9, %c0_10], %23 {strides = array<i32>} : memref<25x896xf32, #tpu.memory_space<vmem>>, vector<1x896xf32>,
    %c0_11 = arith.constant 0 : index
    %c0_12 = arith.constant 0 : index
    %c2 = arith.constant 2 : index
    %25 = vector.load %arg1[%c0_11, %c0_12, %c2] : memref<1x1x1056xf32, #tpu.memory_space<vmem>>, vector<1x1x896xf32>
    %26 = vector.shape_cast %25 : vector<1x1x896xf32> to vector<1x896xf32>
    %c2_13 = arith.constant 2 : index
    %c0_14 = arith.constant 0 : index
    %27 = vector.load %arg11[%c2_13, %c0_14] : memref<25x896xf32, #tpu.memory_space<vmem>>, vector<1x896xf32>
    tpu.vector_store %arg11[%c2_13, %c0_14], %26 {strides = array<i32>} : memref<25x896xf32, #tpu.memory_space<vmem>>, vector<1x896xf32>,
    %c0_15 = arith.constant 0 : index
    %c0_16 = arith.constant 0 : index
    %c3 = arith.constant 3 : index
    %28 = vector.load %arg1[%c0_15, %c0_16, %c3] : memref<1x1x1056xf32, #tpu.memory_space<vmem>>, vector<1x1x896xf32>
    %29 = vector.shape_cast %28 : vector<1x1x896xf32> to vector<1x896xf32>
    %c3_17 = arith.constant 3 : index
    %c0_18 = arith.constant 0 : index
    %30 = vector.load %arg11[%c3_17, %c0_18] : memref<25x896xf32, #tpu.memory_space<vmem>>, vector<1x896xf32>
    tpu.vector_store %arg11[%c3_17, %c0_18], %29 {strides = array<i32>} : memref<25x896xf32, #tpu.memory_space<vmem>>, vector<1x896xf32>,
    %c0_19 = arith.constant 0 : index
    %c0_20 = arith.constant 0 : index
    %c4 = arith.constant 4 : index
    %31 = vector.load %arg1[%c0_19, %c0_20, %c4] : memref<1x1x1056xf32, #tpu.memory_space<vmem>>, vector<1x1x896xf32>
    %32 = vector.shape_cast %31 : vector<1x1x896xf32> to vector<1x896xf32>
    %c4_21 = arith.constant 4 : index
    %c0_22 = arith.constant 0 : index
    %33 = vector.load %arg11[%c4_21, %c0_22] : memref<25x896xf32, #tpu.memory_space<vmem>>, vector<1x896xf32>
    tpu.vector_store %arg11[%c4_21, %c0_22], %32 {strides = array<i32>} : memref<25x896xf32, #tpu.memory_space<vmem>>, vector<1x896xf32>,
    %c0_23 = arith.constant 0 : index
    %c0_24 = arith.constant 0 : index
    %c32 = arith.constant 32 : index
    %34 = vector.load %arg1[%c0_23, %c0_24, %c32] : memref<1x1x1056xf32, #tpu.memory_space<vmem>>, vector<1x1x896xf32>
    %35 = vector.shape_cast %34 : vector<1x1x896xf32> to vector<1x896xf32>
    %c5 = arith.constant 5 : index
    %c0_25 = arith.constant 0 : index
    %36 = vector.load %arg11[%c5, %c0_25] : memref<25x896xf32, #tpu.memory_space<vmem>>, vector<1x896xf32>
    tpu.vector_store %arg11[%c5, %c0_25], %35 {strides = array<i32>} : memref<25x896xf32, #tpu.memory_space<vmem>>, vector<1x896xf32>,
    %c0_26 = arith.constant 0 : index
    %c0_27 = arith.constant 0 : index
    %c33 = arith.constant 33 : index
    %37 = vector.load %arg1[%c0_26, %c0_27, %c33] : memref<1x1x1056xf32, #tpu.memory_space<vmem>>, vector<1x1x896xf32>
    %38 = vector.shape_cast %37 : vector<1x1x896xf32> to vector<1x896xf32>
    %c6 = arith.constant 6 : index
    %c0_28 = arith.constant 0 : index
    %39 = vector.load %arg11[%c6, %c0_28] : memref<25x896xf32, #tpu.memory_space<vmem>>, vector<1x896xf32>
    tpu.vector_store %arg11[%c6, %c0_28], %38 {strides = array<i32>} : memref<25x896xf32, #tpu.memory_space<vmem>>, vector<1x896xf32>,
    %c0_29 = arith.constant 0 : index
    %c0_30 = arith.constant 0 : index
    %c34 = arith.constant 34 : index
    %40 = vector.load %arg1[%c0_29, %c0_30, %c34] : memref<1x1x1056xf32, #tpu.memory_space<vmem>>, vector<1x1x896xf32>
    %41 = vector.shape_cast %40 : vector<1x1x896xf32> to vector<1x896xf32>
    %c7 = arith.constant 7 : index
    %c0_31 = arith.constant 0 : index
    %42 = vector.load %arg11[%c7, %c0_31] : memref<25x896xf32, #tpu.memory_space<vmem>>, vector<1x896xf32>
    tpu.vector_store %arg11[%c7, %c0_31], %41 {strides = array<i32>} : memref<25x896xf32, #tpu.memory_space<vmem>>, vector<1x896xf32>,
    %c0_32 = arith.constant 0 : index
    %c0_33 = arith.constant 0 : index
    %c35 = arith.constant 35 : index
    %43 = vector.load %arg1[%c0_32, %c0_33, %c35] : memref<1x1x1056xf32, #tpu.memory_space<vmem>>, vector<1x1x896xf32>
    %44 = vector.shape_cast %43 : vector<1x1x896xf32> to vector<1x896xf32>
    %c8 = arith.constant 8 : index
    %c0_34 = arith.constant 0 : index
    %45 = vector.load %arg11[%c8, %c0_34] : memref<25x896xf32, #tpu.memory_space<vmem>>, vector<1x896xf32>
    tpu.vector_store %arg11[%c8, %c0_34], %44 {strides = array<i32>} : memref<25x896xf32, #tpu.memory_space<vmem>>, vector<1x896xf32>,
    %c0_35 = arith.constant 0 : index
    %c0_36 = arith.constant 0 : index
    %c36 = arith.constant 36 : index
    %46 = vector.load %arg1[%c0_35, %c0_36, %c36] : memref<1x1x1056xf32, #tpu.memory_space<vmem>>, vector<1x1x896xf32>
    %47 = vector.shape_cast %46 : vector<1x1x896xf32> to vector<1x896xf32>
    %c9 = arith.constant 9 : index
    %c0_37 = arith.constant 0 : index
    %48 = vector.load %arg11[%c9, %c0_37] : memref<25x896xf32, #tpu.memory_space<vmem>>, vector<1x896xf32>
    tpu.vector_store %arg11[%c9, %c0_37], %47 {strides = array<i32>} : memref<25x896xf32, #tpu.memory_space<vmem>>, vector<1x896xf32>,
    %c0_38 = arith.constant 0 : index
    %c0_39 = arith.constant 0 : index
    %c64 = arith.constant 64 : index
    %49 = vector.load %arg1[%c0_38, %c0_39, %c64] : memref<1x1x1056xf32, #tpu.memory_space<vmem>>, vector<1x1x896xf32>
    %50 = vector.shape_cast %49 : vector<1x1x896xf32> to vector<1x896xf32>
    %c10 = arith.constant 10 : index
    %c0_40 = arith.constant 0 : index
    %51 = vector.load %arg11[%c10, %c0_40] : memref<25x896xf32, #tpu.memory_space<vmem>>, vector<1x896xf32>
    tpu.vector_store %arg11[%c10, %c0_40], %50 {strides = array<i32>} : memref<25x896xf32, #tpu.memory_space<vmem>>, vector<1x896xf32>,
    %c0_41 = arith.constant 0 : index
    %c0_42 = arith.constant 0 : index
    %c65 = arith.constant 65 : index
    %52 = vector.load %arg1[%c0_41, %c0_42, %c65] : memref<1x1x1056xf32, #tpu.memory_space<vmem>>, vector<1x1x896xf32>
    %53 = vector.shape_cast %52 : vector<1x1x896xf32> to vector<1x896xf32>
    %c11 = arith.constant 11 : index
    %c0_43 = arith.constant 0 : index
    %54 = vector.load %arg11[%c11, %c0_43] : memref<25x896xf32, #tpu.memory_space<vmem>>, vector<1x896xf32>
    tpu.vector_store %arg11[%c11, %c0_43], %53 {strides = array<i32>} : memref<25x896xf32, #tpu.memory_space<vmem>>, vector<1x896xf32>,
    %c0_44 = arith.constant 0 : index
    %c0_45 = arith.constant 0 : index
    %c66 = arith.constant 66 : index
    %55 = vector.load %arg1[%c0_44, %c0_45, %c66] : memref<1x1x1056xf32, #tpu.memory_space<vmem>>, vector<1x1x896xf32>
    %56 = vector.shape_cast %55 : vector<1x1x896xf32> to vector<1x896xf32>
    %c12 = arith.constant 12 : index
    %c0_46 = arith.constant 0 : index
    %57 = vector.load %arg11[%c12, %c0_46] : memref<25x896xf32, #tpu.memory_space<vmem>>, vector<1x896xf32>
    tpu.vector_store %arg11[%c12, %c0_46], %56 {strides = array<i32>} : memref<25x896xf32, #tpu.memory_space<vmem>>, vector<1x896xf32>,
    %c0_47 = arith.constant 0 : index
    %c0_48 = arith.constant 0 : index
    %c67 = arith.constant 67 : index
    %58 = vector.load %arg1[%c0_47, %c0_48, %c67] : memref<1x1x1056xf32, #tpu.memory_space<vmem>>, vector<1x1x896xf32>
    %59 = vector.shape_cast %58 : vector<1x1x896xf32> to vector<1x896xf32>
    %c13 = arith.constant 13 : index
    %c0_49 = arith.constant 0 : index
    %60 = vector.load %arg11[%c13, %c0_49] : memref<25x896xf32, #tpu.memory_space<vmem>>, vector<1x896xf32>
    tpu.vector_store %arg11[%c13, %c0_49], %59 {strides = array<i32>} : memref<25x896xf32, #tpu.memory_space<vmem>>, vector<1x896xf32>,
    %c0_50 = arith.constant 0 : index
    %c0_51 = arith.constant 0 : index
    %c68 = arith.constant 68 : index
    %61 = vector.load %arg1[%c0_50, %c0_51, %c68] : memref<1x1x1056xf32, #tpu.memory_space<vmem>>, vector<1x1x896xf32>
    %62 = vector.shape_cast %61 : vector<1x1x896xf32> to vector<1x896xf32>
    %c14 = arith.constant 14 : index
    %c0_52 = arith.constant 0 : index
    %63 = vector.load %arg11[%c14, %c0_52] : memref<25x896xf32, #tpu.memory_space<vmem>>, vector<1x896xf32>
    tpu.vector_store %arg11[%c14, %c0_52], %62 {strides = array<i32>} : memref<25x896xf32, #tpu.memory_space<vmem>>, vector<1x896xf32>,
    %c0_53 = arith.constant 0 : index
    %c0_54 = arith.constant 0 : index
    %c96 = arith.constant 96 : index
    %64 = vector.load %arg1[%c0_53, %c0_54, %c96] : memref<1x1x1056xf32, #tpu.memory_space<vmem>>, vector<1x1x896xf32>
    %65 = vector.shape_cast %64 : vector<1x1x896xf32> to vector<1x896xf32>
    %c15 = arith.constant 15 : index
    %c0_55 = arith.constant 0 : index
    %66 = vector.load %arg11[%c15, %c0_55] : memref<25x896xf32, #tpu.memory_space<vmem>>, vector<1x896xf32>
    tpu.vector_store %arg11[%c15, %c0_55], %65 {strides = array<i32>} : memref<25x896xf32, #tpu.memory_space<vmem>>, vector<1x896xf32>,
    %c0_56 = arith.constant 0 : index
    %c0_57 = arith.constant 0 : index
    %c97 = arith.constant 97 : index
    %67 = vector.load %arg1[%c0_56, %c0_57, %c97] : memref<1x1x1056xf32, #tpu.memory_space<vmem>>, vector<1x1x896xf32>
    %68 = vector.shape_cast %67 : vector<1x1x896xf32> to vector<1x896xf32>
    %c16 = arith.constant 16 : index
    %c0_58 = arith.constant 0 : index
    %69 = vector.load %arg11[%c16, %c0_58] : memref<25x896xf32, #tpu.memory_space<vmem>>, vector<1x896xf32>
    tpu.vector_store %arg11[%c16, %c0_58], %68 {strides = array<i32>} : memref<25x896xf32, #tpu.memory_space<vmem>>, vector<1x896xf32>,
    %c0_59 = arith.constant 0 : index
    %c0_60 = arith.constant 0 : index
    %c98 = arith.constant 98 : index
    %70 = vector.load %arg1[%c0_59, %c0_60, %c98] : memref<1x1x1056xf32, #tpu.memory_space<vmem>>, vector<1x1x896xf32>
    %71 = vector.shape_cast %70 : vector<1x1x896xf32> to vector<1x896xf32>
    %c17 = arith.constant 17 : index
    %c0_61 = arith.constant 0 : index
    %72 = vector.load %arg11[%c17, %c0_61] : memref<25x896xf32, #tpu.memory_space<vmem>>, vector<1x896xf32>
    tpu.vector_store %arg11[%c17, %c0_61], %71 {strides = array<i32>} : memref<25x896xf32, #tpu.memory_space<vmem>>, vector<1x896xf32>,
    %c0_62 = arith.constant 0 : index
    %c0_63 = arith.constant 0 : index
    %c99 = arith.constant 99 : index
    %73 = vector.load %arg1[%c0_62, %c0_63, %c99] : memref<1x1x1056xf32, #tpu.memory_space<vmem>>, vector<1x1x896xf32>
    %74 = vector.shape_cast %73 : vector<1x1x896xf32> to vector<1x896xf32>
    %c18 = arith.constant 18 : index
    %c0_64 = arith.constant 0 : index
    %75 = vector.load %arg11[%c18, %c0_64] : memref<25x896xf32, #tpu.memory_space<vmem>>, vector<1x896xf32>
    tpu.vector_store %arg11[%c18, %c0_64], %74 {strides = array<i32>} : memref<25x896xf32, #tpu.memory_space<vmem>>, vector<1x896xf32>,
    %c0_65 = arith.constant 0 : index
    %c0_66 = arith.constant 0 : index
    %c100 = arith.constant 100 : index
    %76 = vector.load %arg1[%c0_65, %c0_66, %c100] : memref<1x1x1056xf32, #tpu.memory_space<vmem>>, vector<1x1x896xf32>
    %77 = vector.shape_cast %76 : vector<1x1x896xf32> to vector<1x896xf32>
    %c19 = arith.constant 19 : index
    %c0_67 = arith.constant 0 : index
    %78 = vector.load %arg11[%c19, %c0_67] : memref<25x896xf32, #tpu.memory_space<vmem>>, vector<1x896xf32>
    tpu.vector_store %arg11[%c19, %c0_67], %77 {strides = array<i32>} : memref<25x896xf32, #tpu.memory_space<vmem>>, vector<1x896xf32>,
    %c0_68 = arith.constant 0 : index
    %c0_69 = arith.constant 0 : index
    %c128 = arith.constant 128 : index
    %79 = vector.load %arg1[%c0_68, %c0_69, %c128] : memref<1x1x1056xf32, #tpu.memory_space<vmem>>, vector<1x1x896xf32>
    %80 = vector.shape_cast %79 : vector<1x1x896xf32> to vector<1x896xf32>
    %c20 = arith.constant 20 : index
    %c0_70 = arith.constant 0 : index
    %81 = vector.load %arg11[%c20, %c0_70] : memref<25x896xf32, #tpu.memory_space<vmem>>, vector<1x896xf32>
    tpu.vector_store %arg11[%c20, %c0_70], %80 {strides = array<i32>} : memref<25x896xf32, #tpu.memory_space<vmem>>, vector<1x896xf32>,
    %c0_71 = arith.constant 0 : index
    %c0_72 = arith.constant 0 : index
    %c129 = arith.constant 129 : index
    %82 = vector.load %arg1[%c0_71, %c0_72, %c129] : memref<1x1x1056xf32, #tpu.memory_space<vmem>>, vector<1x1x896xf32>
    %83 = vector.shape_cast %82 : vector<1x1x896xf32> to vector<1x896xf32>
    %c21 = arith.constant 21 : index
    %c0_73 = arith.constant 0 : index
    %84 = vector.load %arg11[%c21, %c0_73] : memref<25x896xf32, #tpu.memory_space<vmem>>, vector<1x896xf32>
    tpu.vector_store %arg11[%c21, %c0_73], %83 {strides = array<i32>} : memref<25x896xf32, #tpu.memory_space<vmem>>, vector<1x896xf32>,
    %c0_74 = arith.constant 0 : index
    %c0_75 = arith.constant 0 : index
    %c130 = arith.constant 130 : index
    %85 = vector.load %arg1[%c0_74, %c0_75, %c130] : memref<1x1x1056xf32, #tpu.memory_space<vmem>>, vector<1x1x896xf32>
    %86 = vector.shape_cast %85 : vector<1x1x896xf32> to vector<1x896xf32>
    %c22 = arith.constant 22 : index
    %c0_76 = arith.constant 0 : index
    %87 = vector.load %arg11[%c22, %c0_76] : memref<25x896xf32, #tpu.memory_space<vmem>>, vector<1x896xf32>
    tpu.vector_store %arg11[%c22, %c0_76], %86 {strides = array<i32>} : memref<25x896xf32, #tpu.memory_space<vmem>>, vector<1x896xf32>,
    %c0_77 = arith.constant 0 : index
    %c0_78 = arith.constant 0 : index
    %c131 = arith.constant 131 : index
    %88 = vector.load %arg1[%c0_77, %c0_78, %c131] : memref<1x1x1056xf32, #tpu.memory_space<vmem>>, vector<1x1x896xf32>
    %89 = vector.shape_cast %88 : vector<1x1x896xf32> to vector<1x896xf32>
    %c23 = arith.constant 23 : index
    %c0_79 = arith.constant 0 : index
    %90 = vector.load %arg11[%c23, %c0_79] : memref<25x896xf32, #tpu.memory_space<vmem>>, vector<1x896xf32>
    tpu.vector_store %arg11[%c23, %c0_79], %89 {strides = array<i32>} : memref<25x896xf32, #tpu.memory_space<vmem>>, vector<1x896xf32>,
    %c0_80 = arith.constant 0 : index
    %c0_81 = arith.constant 0 : index
    %c132 = arith.constant 132 : index
    %91 = vector.load %arg1[%c0_80, %c0_81, %c132] : memref<1x1x1056xf32, #tpu.memory_space<vmem>>, vector<1x1x896xf32>
    %92 = vector.shape_cast %91 : vector<1x1x896xf32> to vector<1x896xf32>
    %c24 = arith.constant 24 : index
    %c0_82 = arith.constant 0 : index
    %93 = vector.load %arg11[%c24, %c0_82] : memref<25x896xf32, #tpu.memory_space<vmem>>, vector<1x896xf32>
    tpu.vector_store %arg11[%c24, %c0_82], %92 {strides = array<i32>} : memref<25x896xf32, #tpu.memory_space<vmem>>, vector<1x896xf32>,
    %c0_83 = arith.constant 0 : index
    %c0_84 = arith.constant 0 : index
    %94 = vector.load %arg2[%c0_83, %c0_84] : memref<16x25xf32, #tpu.memory_space<vmem>>, vector<16x25xf32>
    %c0_85 = arith.constant 0 : index
    %c0_86 = arith.constant 0 : index
    %95 = vector.load %arg11[%c0_85, %c0_86] : memref<25x896xf32, #tpu.memory_space<vmem>>, vector<25x896xf32>
    %cst = arith.constant dense<0.000000e+00> : vector<16x896xf32>
    %96 = tpu.matmul %94, %95, %cst {dimension_numbers = #tpu.dot_dimension_numbers<[1], [0], [0], [1], [0, 0, 1, 1], [], []>} : vector<16x25xf32>, vector<25x896xf32>, vector<16x896xf32> -> vector<16x896xf32>
    %c0_87 = arith.constant 0 : index
    %c0_88 = arith.constant 0 : index
    %97 = vector.load %arg3[%c0_87, %c0_88] : memref<16x1xf32, #tpu.memory_space<vmem>>, vector<16x1xf32>
    %98 = vector.broadcast %97 : vector<16x1xf32> to vector<16x896xf32>
    %99 = arith.addf %96, %98 : vector<16x896xf32>
    %cst_89 = arith.constant 0.000000e+00 : f32
    %100 = vector.broadcast %cst_89 : f32 to vector<16x896xf32>
    %101 = arith.maximumf %99, %100 : vector<16x896xf32>
    %102 = vector.extract_strided_slice %101 {offsets = [0, 0], sizes = [16, 895], strides = [1, 1]} : vector<16x896xf32> to vector<16x895xf32>
    %103 = vector.extract_strided_slice %101 {offsets = [0, 1], sizes = [16, 895], strides = [1, 1]} : vector<16x896xf32> to vector<16x895xf32>
    %104 = arith.maximumf %102, %103 : vector<16x895xf32>
    %105 = vector.extract_strided_slice %104 {offsets = [0, 0], sizes = [16, 863], strides = [1, 1]} : vector<16x895xf32> to vector<16x863xf32>
    %106 = vector.extract_strided_slice %104 {offsets = [0, 32], sizes = [16, 863], strides = [1, 1]} : vector<16x895xf32> to vector<16x863xf32>
    %107 = arith.maximumf %105, %106 : vector<16x863xf32>
    %cst_90 = arith.constant 0.000000e+00 : f32
    %108 = vector.shape_cast %18 : vector<1x863xi1> to vector<1x863xi1>
    %109 = vector.broadcast %108 : vector<1x863xi1> to vector<16x863xi1>
    %110 = vector.broadcast %cst_90 : f32 to vector<16x863xf32>
    %111 = arith.select %109, %107, %110 : vector<16x863xi1>, vector<16x863xf32>
    %112 = arith.truncf %111 : vector<16x863xf32> to vector<16x863xbf16>
    %cst_91 = arith.constant 0.000000e+00 : bf16
    %113 = vector.broadcast %cst_91 : bf16 to vector<16x256xbf16>
    %c0_92 = arith.constant 0 : index
    %c0_93 = arith.constant 0 : index
    %114 = vector.load %arg12[%c0_92, %c0_93] : memref<16x1280xbf16, #tpu.memory_space<vmem>>, vector<16x256xbf16>
    tpu.vector_store %arg12[%c0_92, %c0_93], %113 {strides = array<i32>} : memref<16x1280xbf16, #tpu.memory_space<vmem>>, vector<16x256xbf16>,
    %cst_94 = arith.constant 0.000000e+00 : bf16
    %115 = vector.broadcast %cst_94 : bf16 to vector<16x256xbf16>
    %c0_95 = arith.constant 0 : index
    %c1024 = arith.constant 1024 : index
    %116 = vector.load %arg12[%c0_95, %c1024] : memref<16x1280xbf16, #tpu.memory_space<vmem>>, vector<16x256xbf16>
    tpu.vector_store %arg12[%c0_95, %c1024], %115 {strides = array<i32>} : memref<16x1280xbf16, #tpu.memory_space<vmem>>, vector<16x256xbf16>,
    %c0_96 = arith.constant 0 : index
    %c256 = arith.constant 256 : index
    %117 = vector.load %arg12[%c0_96, %c256] : memref<16x1280xbf16, #tpu.memory_space<vmem>>, vector<16x863xbf16>
    tpu.vector_store %arg12[%c0_96, %c256], %112 {strides = array<i32>} : memref<16x1280xbf16, #tpu.memory_space<vmem>>, vector<16x863xbf16>,
    %c0_97 = arith.constant 0 : index
    %c124 = arith.constant 124 : index
    %118 = vector.load %arg12[%c0_97, %c124] : memref<16x1280xbf16, #tpu.memory_space<vmem>>, vector<16x864xbf16>
    %c0_98 = arith.constant 0 : index
    %c0_99 = arith.constant 0 : index
    %119 = vector.load %arg13[%c0_98, %c0_99] : memref<400x864xbf16, #tpu.memory_space<vmem>>, vector<16x864xbf16>
    tpu.vector_store %arg13[%c0_98, %c0_99], %118 {strides = array<i32>} : memref<400x864xbf16, #tpu.memory_space<vmem>>, vector<16x864xbf16>,
    %c0_100 = arith.constant 0 : index
    %c126 = arith.constant 126 : index
    %120 = vector.load %arg12[%c0_100, %c126] : memref<16x1280xbf16, #tpu.memory_space<vmem>>, vector<16x864xbf16>
    %c16_101 = arith.constant 16 : index
    %c0_102 = arith.constant 0 : index
    %121 = vector.load %arg13[%c16_101, %c0_102] : memref<400x864xbf16, #tpu.memory_space<vmem>>, vector<16x864xbf16>
    tpu.vector_store %arg13[%c16_101, %c0_102], %120 {strides = array<i32>} : memref<400x864xbf16, #tpu.memory_space<vmem>>, vector<16x864xbf16>,
    %c0_103 = arith.constant 0 : index
    %c128_104 = arith.constant 128 : index
    %122 = vector.load %arg12[%c0_103, %c128_104] : memref<16x1280xbf16, #tpu.memory_space<vmem>>, vector<16x864xbf16>
    %c32_105 = arith.constant 32 : index
    %c0_106 = arith.constant 0 : index
    %123 = vector.load %arg13[%c32_105, %c0_106] : memref<400x864xbf16, #tpu.memory_space<vmem>>, vector<16x864xbf16>
    tpu.vector_store %arg13[%c32_105, %c0_106], %122 {strides = array<i32>} : memref<400x864xbf16, #tpu.memory_space<vmem>>, vector<16x864xbf16>,
    %c0_107 = arith.constant 0 : index
    %c130_108 = arith.constant 130 : index
    %124 = vector.load %arg12[%c0_107, %c130_108] : memref<16x1280xbf16, #tpu.memory_space<vmem>>, vector<16x864xbf16>
    %c48 = arith.constant 48 : index
    %c0_109 = arith.constant 0 : index
    %125 = vector.load %arg13[%c48, %c0_109] : memref<400x864xbf16, #tpu.memory_space<vmem>>, vector<16x864xbf16>
    tpu.vector_store %arg13[%c48, %c0_109], %124 {strides = array<i32>} : memref<400x864xbf16, #tpu.memory_space<vmem>>, vector<16x864xbf16>,
    %c0_110 = arith.constant 0 : index
    %c132_111 = arith.constant 132 : index
    %126 = vector.load %arg12[%c0_110, %c132_111] : memref<16x1280xbf16, #tpu.memory_space<vmem>>, vector<16x864xbf16>
    %c64_112 = arith.constant 64 : index
    %c0_113 = arith.constant 0 : index
    %127 = vector.load %arg13[%c64_112, %c0_113] : memref<400x864xbf16, #tpu.memory_space<vmem>>, vector<16x864xbf16>
    tpu.vector_store %arg13[%c64_112, %c0_113], %126 {strides = array<i32>} : memref<400x864xbf16, #tpu.memory_space<vmem>>, vector<16x864xbf16>,
    %c0_114 = arith.constant 0 : index
    %c188 = arith.constant 188 : index
    %128 = vector.load %arg12[%c0_114, %c188] : memref<16x1280xbf16, #tpu.memory_space<vmem>>, vector<16x864xbf16>
    %c80 = arith.constant 80 : index
    %c0_115 = arith.constant 0 : index
    %129 = vector.load %arg13[%c80, %c0_115] : memref<400x864xbf16, #tpu.memory_space<vmem>>, vector<16x864xbf16>
    tpu.vector_store %arg13[%c80, %c0_115], %128 {strides = array<i32>} : memref<400x864xbf16, #tpu.memory_space<vmem>>, vector<16x864xbf16>,
    %c0_116 = arith.constant 0 : index
    %c190 = arith.constant 190 : index
    %130 = vector.load %arg12[%c0_116, %c190] : memref<16x1280xbf16, #tpu.memory_space<vmem>>, vector<16x864xbf16>
    %c96_117 = arith.constant 96 : index
    %c0_118 = arith.constant 0 : index
    %131 = vector.load %arg13[%c96_117, %c0_118] : memref<400x864xbf16, #tpu.memory_space<vmem>>, vector<16x864xbf16>
    tpu.vector_store %arg13[%c96_117, %c0_118], %130 {strides = array<i32>} : memref<400x864xbf16, #tpu.memory_space<vmem>>, vector<16x864xbf16>,
    %c0_119 = arith.constant 0 : index
    %c192 = arith.constant 192 : index
    %132 = vector.load %arg12[%c0_119, %c192] : memref<16x1280xbf16, #tpu.memory_space<vmem>>, vector<16x864xbf16>
    %c112 = arith.constant 112 : index
    %c0_120 = arith.constant 0 : index
    %133 = vector.load %arg13[%c112, %c0_120] : memref<400x864xbf16, #tpu.memory_space<vmem>>, vector<16x864xbf16>
    tpu.vector_store %arg13[%c112, %c0_120], %132 {strides = array<i32>} : memref<400x864xbf16, #tpu.memory_space<vmem>>, vector<16x864xbf16>,
    %c0_121 = arith.constant 0 : index
    %c194 = arith.constant 194 : index
    %134 = vector.load %arg12[%c0_121, %c194] : memref<16x1280xbf16, #tpu.memory_space<vmem>>, vector<16x864xbf16>
    %c128_122 = arith.constant 128 : index
    %c0_123 = arith.constant 0 : index
    %135 = vector.load %arg13[%c128_122, %c0_123] : memref<400x864xbf16, #tpu.memory_space<vmem>>, vector<16x864xbf16>
    tpu.vector_store %arg13[%c128_122, %c0_123], %134 {strides = array<i32>} : memref<400x864xbf16, #tpu.memory_space<vmem>>, vector<16x864xbf16>,
    %c0_124 = arith.constant 0 : index
    %c196 = arith.constant 196 : index
    %136 = vector.load %arg12[%c0_124, %c196] : memref<16x1280xbf16, #tpu.memory_space<vmem>>, vector<16x864xbf16>
    %c144 = arith.constant 144 : index
    %c0_125 = arith.constant 0 : index
    %137 = vector.load %arg13[%c144, %c0_125] : memref<400x864xbf16, #tpu.memory_space<vmem>>, vector<16x864xbf16>
    tpu.vector_store %arg13[%c144, %c0_125], %136 {strides = array<i32>} : memref<400x864xbf16, #tpu.memory_space<vmem>>, vector<16x864xbf16>,
    %c0_126 = arith.constant 0 : index
    %c252 = arith.constant 252 : index
    %138 = vector.load %arg12[%c0_126, %c252] : memref<16x1280xbf16, #tpu.memory_space<vmem>>, vector<16x864xbf16>
    %c160 = arith.constant 160 : index
    %c0_127 = arith.constant 0 : index
    %139 = vector.load %arg13[%c160, %c0_127] : memref<400x864xbf16, #tpu.memory_space<vmem>>, vector<16x864xbf16>
    tpu.vector_store %arg13[%c160, %c0_127], %138 {strides = array<i32>} : memref<400x864xbf16, #tpu.memory_space<vmem>>, vector<16x864xbf16>,
    %c0_128 = arith.constant 0 : index
    %c254 = arith.constant 254 : index
    %140 = vector.load %arg12[%c0_128, %c254] : memref<16x1280xbf16, #tpu.memory_space<vmem>>, vector<16x864xbf16>
    %c176 = arith.constant 176 : index
    %c0_129 = arith.constant 0 : index
    %141 = vector.load %arg13[%c176, %c0_129] : memref<400x864xbf16, #tpu.memory_space<vmem>>, vector<16x864xbf16>
    tpu.vector_store %arg13[%c176, %c0_129], %140 {strides = array<i32>} : memref<400x864xbf16, #tpu.memory_space<vmem>>, vector<16x864xbf16>,
    %c0_130 = arith.constant 0 : index
    %c256_131 = arith.constant 256 : index
    %142 = vector.load %arg12[%c0_130, %c256_131] : memref<16x1280xbf16, #tpu.memory_space<vmem>>, vector<16x864xbf16>
    %c192_132 = arith.constant 192 : index
    %c0_133 = arith.constant 0 : index
    %143 = vector.load %arg13[%c192_132, %c0_133] : memref<400x864xbf16, #tpu.memory_space<vmem>>, vector<16x864xbf16>
    tpu.vector_store %arg13[%c192_132, %c0_133], %142 {strides = array<i32>} : memref<400x864xbf16, #tpu.memory_space<vmem>>, vector<16x864xbf16>,
    %c0_134 = arith.constant 0 : index
    %c258 = arith.constant 258 : index
    %144 = vector.load %arg12[%c0_134, %c258] : memref<16x1280xbf16, #tpu.memory_space<vmem>>, vector<16x864xbf16>
    %c208 = arith.constant 208 : index
    %c0_135 = arith.constant 0 : index
    %145 = vector.load %arg13[%c208, %c0_135] : memref<400x864xbf16, #tpu.memory_space<vmem>>, vector<16x864xbf16>
    tpu.vector_store %arg13[%c208, %c0_135], %144 {strides = array<i32>} : memref<400x864xbf16, #tpu.memory_space<vmem>>, vector<16x864xbf16>,
    %c0_136 = arith.constant 0 : index
    %c260 = arith.constant 260 : index
    %146 = vector.load %arg12[%c0_136, %c260] : memref<16x1280xbf16, #tpu.memory_space<vmem>>, vector<16x864xbf16>
    %c224 = arith.constant 224 : index
    %c0_137 = arith.constant 0 : index
    %147 = vector.load %arg13[%c224, %c0_137] : memref<400x864xbf16, #tpu.memory_space<vmem>>, vector<16x864xbf16>
    tpu.vector_store %arg13[%c224, %c0_137], %146 {strides = array<i32>} : memref<400x864xbf16, #tpu.memory_space<vmem>>, vector<16x864xbf16>,
    %c0_138 = arith.constant 0 : index
    %c316 = arith.constant 316 : index
    %148 = vector.load %arg12[%c0_138, %c316] : memref<16x1280xbf16, #tpu.memory_space<vmem>>, vector<16x864xbf16>
    %c240 = arith.constant 240 : index
    %c0_139 = arith.constant 0 : index
    %149 = vector.load %arg13[%c240, %c0_139] : memref<400x864xbf16, #tpu.memory_space<vmem>>, vector<16x864xbf16>
    tpu.vector_store %arg13[%c240, %c0_139], %148 {strides = array<i32>} : memref<400x864xbf16, #tpu.memory_space<vmem>>, vector<16x864xbf16>,
    %c0_140 = arith.constant 0 : index
    %c318 = arith.constant 318 : index
    %150 = vector.load %arg12[%c0_140, %c318] : memref<16x1280xbf16, #tpu.memory_space<vmem>>, vector<16x864xbf16>
    %c256_141 = arith.constant 256 : index
    %c0_142 = arith.constant 0 : index
    %151 = vector.load %arg13[%c256_141, %c0_142] : memref<400x864xbf16, #tpu.memory_space<vmem>>, vector<16x864xbf16>
    tpu.vector_store %arg13[%c256_141, %c0_142], %150 {strides = array<i32>} : memref<400x864xbf16, #tpu.memory_space<vmem>>, vector<16x864xbf16>,
    %c0_143 = arith.constant 0 : index
    %c320 = arith.constant 320 : index
    %152 = vector.load %arg12[%c0_143, %c320] : memref<16x1280xbf16, #tpu.memory_space<vmem>>, vector<16x864xbf16>
    %c272 = arith.constant 272 : index
    %c0_144 = arith.constant 0 : index
    %153 = vector.load %arg13[%c272, %c0_144] : memref<400x864xbf16, #tpu.memory_space<vmem>>, vector<16x864xbf16>
    tpu.vector_store %arg13[%c272, %c0_144], %152 {strides = array<i32>} : memref<400x864xbf16, #tpu.memory_space<vmem>>, vector<16x864xbf16>,
    %c0_145 = arith.constant 0 : index
    %c322 = arith.constant 322 : index
    %154 = vector.load %arg12[%c0_145, %c322] : memref<16x1280xbf16, #tpu.memory_space<vmem>>, vector<16x864xbf16>
    %c288 = arith.constant 288 : index
    %c0_146 = arith.constant 0 : index
    %155 = vector.load %arg13[%c288, %c0_146] : memref<400x864xbf16, #tpu.memory_space<vmem>>, vector<16x864xbf16>
    tpu.vector_store %arg13[%c288, %c0_146], %154 {strides = array<i32>} : memref<400x864xbf16, #tpu.memory_space<vmem>>, vector<16x864xbf16>,
    %c0_147 = arith.constant 0 : index
    %c324 = arith.constant 324 : index
    %156 = vector.load %arg12[%c0_147, %c324] : memref<16x1280xbf16, #tpu.memory_space<vmem>>, vector<16x864xbf16>
    %c304 = arith.constant 304 : index
    %c0_148 = arith.constant 0 : index
    %157 = vector.load %arg13[%c304, %c0_148] : memref<400x864xbf16, #tpu.memory_space<vmem>>, vector<16x864xbf16>
    tpu.vector_store %arg13[%c304, %c0_148], %156 {strides = array<i32>} : memref<400x864xbf16, #tpu.memory_space<vmem>>, vector<16x864xbf16>,
    %c0_149 = arith.constant 0 : index
    %c380 = arith.constant 380 : index
    %158 = vector.load %arg12[%c0_149, %c380] : memref<16x1280xbf16, #tpu.memory_space<vmem>>, vector<16x864xbf16>
    %c320_150 = arith.constant 320 : index
    %c0_151 = arith.constant 0 : index
    %159 = vector.load %arg13[%c320_150, %c0_151] : memref<400x864xbf16, #tpu.memory_space<vmem>>, vector<16x864xbf16>
    tpu.vector_store %arg13[%c320_150, %c0_151], %158 {strides = array<i32>} : memref<400x864xbf16, #tpu.memory_space<vmem>>, vector<16x864xbf16>,
    %c0_152 = arith.constant 0 : index
    %c382 = arith.constant 382 : index
    %160 = vector.load %arg12[%c0_152, %c382] : memref<16x1280xbf16, #tpu.memory_space<vmem>>, vector<16x864xbf16>
    %c336 = arith.constant 336 : index
    %c0_153 = arith.constant 0 : index
    %161 = vector.load %arg13[%c336, %c0_153] : memref<400x864xbf16, #tpu.memory_space<vmem>>, vector<16x864xbf16>
    tpu.vector_store %arg13[%c336, %c0_153], %160 {strides = array<i32>} : memref<400x864xbf16, #tpu.memory_space<vmem>>, vector<16x864xbf16>,
    %c0_154 = arith.constant 0 : index
    %c384 = arith.constant 384 : index
    %162 = vector.load %arg12[%c0_154, %c384] : memref<16x1280xbf16, #tpu.memory_space<vmem>>, vector<16x864xbf16>
    %c352 = arith.constant 352 : index
    %c0_155 = arith.constant 0 : index
    %163 = vector.load %arg13[%c352, %c0_155] : memref<400x864xbf16, #tpu.memory_space<vmem>>, vector<16x864xbf16>
    tpu.vector_store %arg13[%c352, %c0_155], %162 {strides = array<i32>} : memref<400x864xbf16, #tpu.memory_space<vmem>>, vector<16x864xbf16>,
    %c0_156 = arith.constant 0 : index
    %c386 = arith.constant 386 : index
    %164 = vector.load %arg12[%c0_156, %c386] : memref<16x1280xbf16, #tpu.memory_space<vmem>>, vector<16x864xbf16>
    %c368 = arith.constant 368 : index
    %c0_157 = arith.constant 0 : index
    %165 = vector.load %arg13[%c368, %c0_157] : memref<400x864xbf16, #tpu.memory_space<vmem>>, vector<16x864xbf16>
    tpu.vector_store %arg13[%c368, %c0_157], %164 {strides = array<i32>} : memref<400x864xbf16, #tpu.memory_space<vmem>>, vector<16x864xbf16>,
    %c0_158 = arith.constant 0 : index
    %c388 = arith.constant 388 : index
    %166 = vector.load %arg12[%c0_158, %c388] : memref<16x1280xbf16, #tpu.memory_space<vmem>>, vector<16x864xbf16>
    %c384_159 = arith.constant 384 : index
    %c0_160 = arith.constant 0 : index
    %167 = vector.load %arg13[%c384_159, %c0_160] : memref<400x864xbf16, #tpu.memory_space<vmem>>, vector<16x864xbf16>
    tpu.vector_store %arg13[%c384_159, %c0_160], %166 {strides = array<i32>} : memref<400x864xbf16, #tpu.memory_space<vmem>>, vector<16x864xbf16>,
    %c0_161 = arith.constant 0 : index
    %c0_162 = arith.constant 0 : index
    %168 = vector.load %arg4[%c0_161, %c0_162] : memref<32x400xbf16, #tpu.memory_space<vmem>>, vector<32x400xbf16>
    %c0_163 = arith.constant 0 : index
    %c0_164 = arith.constant 0 : index
    %169 = vector.load %arg13[%c0_163, %c0_164] : memref<400x864xbf16, #tpu.memory_space<vmem>>, vector<400x864xbf16>
    %cst_165 = arith.constant dense<0.000000e+00> : vector<32x864xf32>
    %170 = tpu.matmul %168, %169, %cst_165 {dimension_numbers = #tpu.dot_dimension_numbers<[1], [0], [0], [1], [0, 0, 1, 1], [], []>} : vector<32x400xbf16>, vector<400x864xbf16>, vector<32x864xf32> -> vector<32x864xf32>
    %c0_166 = arith.constant 0 : index
    %c0_167 = arith.constant 0 : index
    %171 = vector.load %arg5[%c0_166, %c0_167] : memref<32x1xf32, #tpu.memory_space<vmem>>, vector<32x1xf32>
    %172 = vector.broadcast %171 : vector<32x1xf32> to vector<32x864xf32>
    %173 = arith.addf %170, %172 : vector<32x864xf32>
    %cst_168 = arith.constant 0.000000e+00 : f32
    %174 = vector.broadcast %cst_168 : f32 to vector<32x864xf32>
    %175 = arith.maximumf %173, %174 : vector<32x864xf32>
    %176 = vector.extract_strided_slice %175 {offsets = [0, 0], sizes = [32, 862], strides = [1, 1]} : vector<32x864xf32> to vector<32x862xf32>
    %177 = vector.extract_strided_slice %175 {offsets = [0, 2], sizes = [32, 862], strides = [1, 1]} : vector<32x864xf32> to vector<32x862xf32>
    %178 = arith.maximumf %176, %177 : vector<32x862xf32>
    %179 = vector.extract_strided_slice %178 {offsets = [0, 0], sizes = [32, 798], strides = [1, 1]} : vector<32x862xf32> to vector<32x798xf32>
    %180 = vector.extract_strided_slice %178 {offsets = [0, 64], sizes = [32, 798], strides = [1, 1]} : vector<32x862xf32> to vector<32x798xf32>
    %181 = arith.maximumf %179, %180 : vector<32x798xf32>
    %c0_169 = arith.constant 0 : index
    %c0_170 = arith.constant 0 : index
    %182 = vector.load %arg6[%c0_169, %c0_170] : memref<798x128xf32, #tpu.memory_space<vmem>>, vector<798x128xf32>
    %cst_171 = arith.constant dense<0.000000e+00> : vector<32x128xf32>
    %183 = tpu.matmul %181, %182, %cst_171 {dimension_numbers = #tpu.dot_dimension_numbers<[1], [0], [0], [1], [0, 0, 1, 1], [], []>} : vector<32x798xf32>, vector<798x128xf32>, vector<32x128xf32> -> vector<32x128xf32>
    %184 = vector.extract_strided_slice %183 {offsets = [0, 0], sizes = [1, 128], strides = [1, 1]} : vector<32x128xf32> to vector<1x128xf32>
    %c0_172 = arith.constant 0 : index
    %c0_173 = arith.constant 0 : index
    %c0_174 = arith.constant 0 : index
    %185 = vector.load %arg10[%c0_172, %c0_173, %c0_174] : memref<1x1x4096xf32, #tpu.memory_space<vmem>>, vector<1x1x128xf32>
    %186 = vector.shape_cast %185 : vector<1x1x128xf32> to vector<1x128xf32>
    %187 = vector.shape_cast %184 : vector<1x128xf32> to vector<1x1x128xf32>
    tpu.vector_store %arg10[%c0_172, %c0_173, %c0_174], %187 {strides = array<i32>} : memref<1x1x4096xf32, #tpu.memory_space<vmem>>, vector<1x1x128xf32>,
    %188 = vector.extract_strided_slice %183 {offsets = [1, 0], sizes = [1, 128], strides = [1, 1]} : vector<32x128xf32> to vector<1x128xf32>
    %c0_175 = arith.constant 0 : index
    %c0_176 = arith.constant 0 : index
    %c128_177 = arith.constant 128 : index
    %189 = vector.load %arg10[%c0_175, %c0_176, %c128_177] : memref<1x1x4096xf32, #tpu.memory_space<vmem>>, vector<1x1x128xf32>
    %190 = vector.shape_cast %189 : vector<1x1x128xf32> to vector<1x128xf32>
    %191 = vector.shape_cast %188 : vector<1x128xf32> to vector<1x1x128xf32>
    tpu.vector_store %arg10[%c0_175, %c0_176, %c128_177], %191 {strides = array<i32>} : memref<1x1x4096xf32, #tpu.memory_space<vmem>>, vector<1x1x128xf32>,
    %192 = vector.extract_strided_slice %183 {offsets = [2, 0], sizes = [1, 128], strides = [1, 1]} : vector<32x128xf32> to vector<1x128xf32>
    %c0_178 = arith.constant 0 : index
    %c0_179 = arith.constant 0 : index
    %c256_180 = arith.constant 256 : index
    %193 = vector.load %arg10[%c0_178, %c0_179, %c256_180] : memref<1x1x4096xf32, #tpu.memory_space<vmem>>, vector<1x1x128xf32>
    %194 = vector.shape_cast %193 : vector<1x1x128xf32> to vector<1x128xf32>
    %195 = vector.shape_cast %192 : vector<1x128xf32> to vector<1x1x128xf32>
    tpu.vector_store %arg10[%c0_178, %c0_179, %c256_180], %195 {strides = array<i32>} : memref<1x1x4096xf32, #tpu.memory_space<vmem>>, vector<1x1x128xf32>,
    %196 = vector.extract_strided_slice %183 {offsets = [3, 0], sizes = [1, 128], strides = [1, 1]} : vector<32x128xf32> to vector<1x128xf32>
    %c0_181 = arith.constant 0 : index
    %c0_182 = arith.constant 0 : index
    %c384_183 = arith.constant 384 : index
    %197 = vector.load %arg10[%c0_181, %c0_182, %c384_183] : memref<1x1x4096xf32, #tpu.memory_space<vmem>>, vector<1x1x128xf32>
    %198 = vector.shape_cast %197 : vector<1x1x128xf32> to vector<1x128xf32>
    %199 = vector.shape_cast %196 : vector<1x128xf32> to vector<1x1x128xf32>
    tpu.vector_store %arg10[%c0_181, %c0_182, %c384_183], %199 {strides = array<i32>} : memref<1x1x4096xf32, #tpu.memory_space<vmem>>, vector<1x1x128xf32>,
    %200 = vector.extract_strided_slice %183 {offsets = [4, 0], sizes = [1, 128], strides = [1, 1]} : vector<32x128xf32> to vector<1x128xf32>
    %c0_184 = arith.constant 0 : index
    %c0_185 = arith.constant 0 : index
    %c512 = arith.constant 512 : index
    %201 = vector.load %arg10[%c0_184, %c0_185, %c512] : memref<1x1x4096xf32, #tpu.memory_space<vmem>>, vector<1x1x128xf32>
    %202 = vector.shape_cast %201 : vector<1x1x128xf32> to vector<1x128xf32>
    %203 = vector.shape_cast %200 : vector<1x128xf32> to vector<1x1x128xf32>
    tpu.vector_store %arg10[%c0_184, %c0_185, %c512], %203 {strides = array<i32>} : memref<1x1x4096xf32, #tpu.memory_space<vmem>>, vector<1x1x128xf32>,
    %204 = vector.extract_strided_slice %183 {offsets = [5, 0], sizes = [1, 128], strides = [1, 1]} : vector<32x128xf32> to vector<1x128xf32>
    %c0_186 = arith.constant 0 : index
    %c0_187 = arith.constant 0 : index
    %c640 = arith.constant 640 : index
    %205 = vector.load %arg10[%c0_186, %c0_187, %c640] : memref<1x1x4096xf32, #tpu.memory_space<vmem>>, vector<1x1x128xf32>
    %206 = vector.shape_cast %205 : vector<1x1x128xf32> to vector<1x128xf32>
    %207 = vector.shape_cast %204 : vector<1x128xf32> to vector<1x1x128xf32>
    tpu.vector_store %arg10[%c0_186, %c0_187, %c640], %207 {strides = array<i32>} : memref<1x1x4096xf32, #tpu.memory_space<vmem>>, vector<1x1x128xf32>,
    %208 = vector.extract_strided_slice %183 {offsets = [6, 0], sizes = [1, 128], strides = [1, 1]} : vector<32x128xf32> to vector<1x128xf32>
    %c0_188 = arith.constant 0 : index
    %c0_189 = arith.constant 0 : index
    %c768 = arith.constant 768 : index
    %209 = vector.load %arg10[%c0_188, %c0_189, %c768] : memref<1x1x4096xf32, #tpu.memory_space<vmem>>, vector<1x1x128xf32>
    %210 = vector.shape_cast %209 : vector<1x1x128xf32> to vector<1x128xf32>
    %211 = vector.shape_cast %208 : vector<1x128xf32> to vector<1x1x128xf32>
    tpu.vector_store %arg10[%c0_188, %c0_189, %c768], %211 {strides = array<i32>} : memref<1x1x4096xf32, #tpu.memory_space<vmem>>, vector<1x1x128xf32>,
    %212 = vector.extract_strided_slice %183 {offsets = [7, 0], sizes = [1, 128], strides = [1, 1]} : vector<32x128xf32> to vector<1x128xf32>
    %c0_190 = arith.constant 0 : index
    %c0_191 = arith.constant 0 : index
    %c896 = arith.constant 896 : index
    %213 = vector.load %arg10[%c0_190, %c0_191, %c896] : memref<1x1x4096xf32, #tpu.memory_space<vmem>>, vector<1x1x128xf32>
    %214 = vector.shape_cast %213 : vector<1x1x128xf32> to vector<1x128xf32>
    %215 = vector.shape_cast %212 : vector<1x128xf32> to vector<1x1x128xf32>
    tpu.vector_store %arg10[%c0_190, %c0_191, %c896], %215 {strides = array<i32>} : memref<1x1x4096xf32, #tpu.memory_space<vmem>>, vector<1x1x128xf32>,
    %216 = vector.extract_strided_slice %183 {offsets = [8, 0], sizes = [1, 128], strides = [1, 1]} : vector<32x128xf32> to vector<1x128xf32>
    %c0_192 = arith.constant 0 : index
    %c0_193 = arith.constant 0 : index
    %c1024_194 = arith.constant 1024 : index
    %217 = vector.load %arg10[%c0_192, %c0_193, %c1024_194] : memref<1x1x4096xf32, #tpu.memory_space<vmem>>, vector<1x1x128xf32>
    %218 = vector.shape_cast %217 : vector<1x1x128xf32> to vector<1x128xf32>
    %219 = vector.shape_cast %216 : vector<1x128xf32> to vector<1x1x128xf32>
    tpu.vector_store %arg10[%c0_192, %c0_193, %c1024_194], %219 {strides = array<i32>} : memref<1x1x4096xf32, #tpu.memory_space<vmem>>, vector<1x1x128xf32>,
    %220 = vector.extract_strided_slice %183 {offsets = [9, 0], sizes = [1, 128], strides = [1, 1]} : vector<32x128xf32> to vector<1x128xf32>
    %c0_195 = arith.constant 0 : index
    %c0_196 = arith.constant 0 : index
    %c1152 = arith.constant 1152 : index
    %221 = vector.load %arg10[%c0_195, %c0_196, %c1152] : memref<1x1x4096xf32, #tpu.memory_space<vmem>>, vector<1x1x128xf32>
    %222 = vector.shape_cast %221 : vector<1x1x128xf32> to vector<1x128xf32>
    %223 = vector.shape_cast %220 : vector<1x128xf32> to vector<1x1x128xf32>
    tpu.vector_store %arg10[%c0_195, %c0_196, %c1152], %223 {strides = array<i32>} : memref<1x1x4096xf32, #tpu.memory_space<vmem>>, vector<1x1x128xf32>,
    %224 = vector.extract_strided_slice %183 {offsets = [10, 0], sizes = [1, 128], strides = [1, 1]} : vector<32x128xf32> to vector<1x128xf32>
    %c0_197 = arith.constant 0 : index
    %c0_198 = arith.constant 0 : index
    %c1280 = arith.constant 1280 : index
    %225 = vector.load %arg10[%c0_197, %c0_198, %c1280] : memref<1x1x4096xf32, #tpu.memory_space<vmem>>, vector<1x1x128xf32>
    %226 = vector.shape_cast %225 : vector<1x1x128xf32> to vector<1x128xf32>
    %227 = vector.shape_cast %224 : vector<1x128xf32> to vector<1x1x128xf32>
    tpu.vector_store %arg10[%c0_197, %c0_198, %c1280], %227 {strides = array<i32>} : memref<1x1x4096xf32, #tpu.memory_space<vmem>>, vector<1x1x128xf32>,
    %228 = vector.extract_strided_slice %183 {offsets = [11, 0], sizes = [1, 128], strides = [1, 1]} : vector<32x128xf32> to vector<1x128xf32>
    %c0_199 = arith.constant 0 : index
    %c0_200 = arith.constant 0 : index
    %c1408 = arith.constant 1408 : index
    %229 = vector.load %arg10[%c0_199, %c0_200, %c1408] : memref<1x1x4096xf32, #tpu.memory_space<vmem>>, vector<1x1x128xf32>
    %230 = vector.shape_cast %229 : vector<1x1x128xf32> to vector<1x128xf32>
    %231 = vector.shape_cast %228 : vector<1x128xf32> to vector<1x1x128xf32>
    tpu.vector_store %arg10[%c0_199, %c0_200, %c1408], %231 {strides = array<i32>} : memref<1x1x4096xf32, #tpu.memory_space<vmem>>, vector<1x1x128xf32>,
    %232 = vector.extract_strided_slice %183 {offsets = [12, 0], sizes = [1, 128], strides = [1, 1]} : vector<32x128xf32> to vector<1x128xf32>
    %c0_201 = arith.constant 0 : index
    %c0_202 = arith.constant 0 : index
    %c1536 = arith.constant 1536 : index
    %233 = vector.load %arg10[%c0_201, %c0_202, %c1536] : memref<1x1x4096xf32, #tpu.memory_space<vmem>>, vector<1x1x128xf32>
    %234 = vector.shape_cast %233 : vector<1x1x128xf32> to vector<1x128xf32>
    %235 = vector.shape_cast %232 : vector<1x128xf32> to vector<1x1x128xf32>
    tpu.vector_store %arg10[%c0_201, %c0_202, %c1536], %235 {strides = array<i32>} : memref<1x1x4096xf32, #tpu.memory_space<vmem>>, vector<1x1x128xf32>,
    %236 = vector.extract_strided_slice %183 {offsets = [13, 0], sizes = [1, 128], strides = [1, 1]} : vector<32x128xf32> to vector<1x128xf32>
    %c0_203 = arith.constant 0 : index
    %c0_204 = arith.constant 0 : index
    %c1664 = arith.constant 1664 : index
    %237 = vector.load %arg10[%c0_203, %c0_204, %c1664] : memref<1x1x4096xf32, #tpu.memory_space<vmem>>, vector<1x1x128xf32>
    %238 = vector.shape_cast %237 : vector<1x1x128xf32> to vector<1x128xf32>
    %239 = vector.shape_cast %236 : vector<1x128xf32> to vector<1x1x128xf32>
    tpu.vector_store %arg10[%c0_203, %c0_204, %c1664], %239 {strides = array<i32>} : memref<1x1x4096xf32, #tpu.memory_space<vmem>>, vector<1x1x128xf32>,
    %240 = vector.extract_strided_slice %183 {offsets = [14, 0], sizes = [1, 128], strides = [1, 1]} : vector<32x128xf32> to vector<1x128xf32>
    %c0_205 = arith.constant 0 : index
    %c0_206 = arith.constant 0 : index
    %c1792 = arith.constant 1792 : index
    %241 = vector.load %arg10[%c0_205, %c0_206, %c1792] : memref<1x1x4096xf32, #tpu.memory_space<vmem>>, vector<1x1x128xf32>
    %242 = vector.shape_cast %241 : vector<1x1x128xf32> to vector<1x128xf32>
    %243 = vector.shape_cast %240 : vector<1x128xf32> to vector<1x1x128xf32>
    tpu.vector_store %arg10[%c0_205, %c0_206, %c1792], %243 {strides = array<i32>} : memref<1x1x4096xf32, #tpu.memory_space<vmem>>, vector<1x1x128xf32>,
    %244 = vector.extract_strided_slice %183 {offsets = [15, 0], sizes = [1, 128], strides = [1, 1]} : vector<32x128xf32> to vector<1x128xf32>
    %c0_207 = arith.constant 0 : index
    %c0_208 = arith.constant 0 : index
    %c1920 = arith.constant 1920 : index
    %245 = vector.load %arg10[%c0_207, %c0_208, %c1920] : memref<1x1x4096xf32, #tpu.memory_space<vmem>>, vector<1x1x128xf32>
    %246 = vector.shape_cast %245 : vector<1x1x128xf32> to vector<1x128xf32>
    %247 = vector.shape_cast %244 : vector<1x128xf32> to vector<1x1x128xf32>
    tpu.vector_store %arg10[%c0_207, %c0_208, %c1920], %247 {strides = array<i32>} : memref<1x1x4096xf32, #tpu.memory_space<vmem>>, vector<1x1x128xf32>,
    %248 = vector.extract_strided_slice %183 {offsets = [16, 0], sizes = [1, 128], strides = [1, 1]} : vector<32x128xf32> to vector<1x128xf32>
    %c0_209 = arith.constant 0 : index
    %c0_210 = arith.constant 0 : index
    %c2048 = arith.constant 2048 : index
    %249 = vector.load %arg10[%c0_209, %c0_210, %c2048] : memref<1x1x4096xf32, #tpu.memory_space<vmem>>, vector<1x1x128xf32>
    %250 = vector.shape_cast %249 : vector<1x1x128xf32> to vector<1x128xf32>
    %251 = vector.shape_cast %248 : vector<1x128xf32> to vector<1x1x128xf32>
    tpu.vector_store %arg10[%c0_209, %c0_210, %c2048], %251 {strides = array<i32>} : memref<1x1x4096xf32, #tpu.memory_space<vmem>>, vector<1x1x128xf32>,
    %252 = vector.extract_strided_slice %183 {offsets = [17, 0], sizes = [1, 128], strides = [1, 1]} : vector<32x128xf32> to vector<1x128xf32>
    %c0_211 = arith.constant 0 : index
    %c0_212 = arith.constant 0 : index
    %c2176 = arith.constant 2176 : index
    %253 = vector.load %arg10[%c0_211, %c0_212, %c2176] : memref<1x1x4096xf32, #tpu.memory_space<vmem>>, vector<1x1x128xf32>
    %254 = vector.shape_cast %253 : vector<1x1x128xf32> to vector<1x128xf32>
    %255 = vector.shape_cast %252 : vector<1x128xf32> to vector<1x1x128xf32>
    tpu.vector_store %arg10[%c0_211, %c0_212, %c2176], %255 {strides = array<i32>} : memref<1x1x4096xf32, #tpu.memory_space<vmem>>, vector<1x1x128xf32>,
    %256 = vector.extract_strided_slice %183 {offsets = [18, 0], sizes = [1, 128], strides = [1, 1]} : vector<32x128xf32> to vector<1x128xf32>
    %c0_213 = arith.constant 0 : index
    %c0_214 = arith.constant 0 : index
    %c2304 = arith.constant 2304 : index
    %257 = vector.load %arg10[%c0_213, %c0_214, %c2304] : memref<1x1x4096xf32, #tpu.memory_space<vmem>>, vector<1x1x128xf32>
    %258 = vector.shape_cast %257 : vector<1x1x128xf32> to vector<1x128xf32>
    %259 = vector.shape_cast %256 : vector<1x128xf32> to vector<1x1x128xf32>
    tpu.vector_store %arg10[%c0_213, %c0_214, %c2304], %259 {strides = array<i32>} : memref<1x1x4096xf32, #tpu.memory_space<vmem>>, vector<1x1x128xf32>,
    %260 = vector.extract_strided_slice %183 {offsets = [19, 0], sizes = [1, 128], strides = [1, 1]} : vector<32x128xf32> to vector<1x128xf32>
    %c0_215 = arith.constant 0 : index
    %c0_216 = arith.constant 0 : index
    %c2432 = arith.constant 2432 : index
    %261 = vector.load %arg10[%c0_215, %c0_216, %c2432] : memref<1x1x4096xf32, #tpu.memory_space<vmem>>, vector<1x1x128xf32>
    %262 = vector.shape_cast %261 : vector<1x1x128xf32> to vector<1x128xf32>
    %263 = vector.shape_cast %260 : vector<1x128xf32> to vector<1x1x128xf32>
    tpu.vector_store %arg10[%c0_215, %c0_216, %c2432], %263 {strides = array<i32>} : memref<1x1x4096xf32, #tpu.memory_space<vmem>>, vector<1x1x128xf32>,
    %264 = vector.extract_strided_slice %183 {offsets = [20, 0], sizes = [1, 128], strides = [1, 1]} : vector<32x128xf32> to vector<1x128xf32>
    %c0_217 = arith.constant 0 : index
    %c0_218 = arith.constant 0 : index
    %c2560 = arith.constant 2560 : index
    %265 = vector.load %arg10[%c0_217, %c0_218, %c2560] : memref<1x1x4096xf32, #tpu.memory_space<vmem>>, vector<1x1x128xf32>
    %266 = vector.shape_cast %265 : vector<1x1x128xf32> to vector<1x128xf32>
    %267 = vector.shape_cast %264 : vector<1x128xf32> to vector<1x1x128xf32>
    tpu.vector_store %arg10[%c0_217, %c0_218, %c2560], %267 {strides = array<i32>} : memref<1x1x4096xf32, #tpu.memory_space<vmem>>, vector<1x1x128xf32>,
    %268 = vector.extract_strided_slice %183 {offsets = [21, 0], sizes = [1, 128], strides = [1, 1]} : vector<32x128xf32> to vector<1x128xf32>
    %c0_219 = arith.constant 0 : index
    %c0_220 = arith.constant 0 : index
    %c2688 = arith.constant 2688 : index
    %269 = vector.load %arg10[%c0_219, %c0_220, %c2688] : memref<1x1x4096xf32, #tpu.memory_space<vmem>>, vector<1x1x128xf32>
    %270 = vector.shape_cast %269 : vector<1x1x128xf32> to vector<1x128xf32>
    %271 = vector.shape_cast %268 : vector<1x128xf32> to vector<1x1x128xf32>
    tpu.vector_store %arg10[%c0_219, %c0_220, %c2688], %271 {strides = array<i32>} : memref<1x1x4096xf32, #tpu.memory_space<vmem>>, vector<1x1x128xf32>,
    %272 = vector.extract_strided_slice %183 {offsets = [22, 0], sizes = [1, 128], strides = [1, 1]} : vector<32x128xf32> to vector<1x128xf32>
    %c0_221 = arith.constant 0 : index
    %c0_222 = arith.constant 0 : index
    %c2816 = arith.constant 2816 : index
    %273 = vector.load %arg10[%c0_221, %c0_222, %c2816] : memref<1x1x4096xf32, #tpu.memory_space<vmem>>, vector<1x1x128xf32>
    %274 = vector.shape_cast %273 : vector<1x1x128xf32> to vector<1x128xf32>
    %275 = vector.shape_cast %272 : vector<1x128xf32> to vector<1x1x128xf32>
    tpu.vector_store %arg10[%c0_221, %c0_222, %c2816], %275 {strides = array<i32>} : memref<1x1x4096xf32, #tpu.memory_space<vmem>>, vector<1x1x128xf32>,
    %276 = vector.extract_strided_slice %183 {offsets = [23, 0], sizes = [1, 128], strides = [1, 1]} : vector<32x128xf32> to vector<1x128xf32>
    %c0_223 = arith.constant 0 : index
    %c0_224 = arith.constant 0 : index
    %c2944 = arith.constant 2944 : index
    %277 = vector.load %arg10[%c0_223, %c0_224, %c2944] : memref<1x1x4096xf32, #tpu.memory_space<vmem>>, vector<1x1x128xf32>
    %278 = vector.shape_cast %277 : vector<1x1x128xf32> to vector<1x128xf32>
    %279 = vector.shape_cast %276 : vector<1x128xf32> to vector<1x1x128xf32>
    tpu.vector_store %arg10[%c0_223, %c0_224, %c2944], %279 {strides = array<i32>} : memref<1x1x4096xf32, #tpu.memory_space<vmem>>, vector<1x1x128xf32>,
    %280 = vector.extract_strided_slice %183 {offsets = [24, 0], sizes = [1, 128], strides = [1, 1]} : vector<32x128xf32> to vector<1x128xf32>
    %c0_225 = arith.constant 0 : index
    %c0_226 = arith.constant 0 : index
    %c3072 = arith.constant 3072 : index
    %281 = vector.load %arg10[%c0_225, %c0_226, %c3072] : memref<1x1x4096xf32, #tpu.memory_space<vmem>>, vector<1x1x128xf32>
    %282 = vector.shape_cast %281 : vector<1x1x128xf32> to vector<1x128xf32>
    %283 = vector.shape_cast %280 : vector<1x128xf32> to vector<1x1x128xf32>
    tpu.vector_store %arg10[%c0_225, %c0_226, %c3072], %283 {strides = array<i32>} : memref<1x1x4096xf32, #tpu.memory_space<vmem>>, vector<1x1x128xf32>,
    %284 = vector.extract_strided_slice %183 {offsets = [25, 0], sizes = [1, 128], strides = [1, 1]} : vector<32x128xf32> to vector<1x128xf32>
    %c0_227 = arith.constant 0 : index
    %c0_228 = arith.constant 0 : index
    %c3200 = arith.constant 3200 : index
    %285 = vector.load %arg10[%c0_227, %c0_228, %c3200] : memref<1x1x4096xf32, #tpu.memory_space<vmem>>, vector<1x1x128xf32>
    %286 = vector.shape_cast %285 : vector<1x1x128xf32> to vector<1x128xf32>
    %287 = vector.shape_cast %284 : vector<1x128xf32> to vector<1x1x128xf32>
    tpu.vector_store %arg10[%c0_227, %c0_228, %c3200], %287 {strides = array<i32>} : memref<1x1x4096xf32, #tpu.memory_space<vmem>>, vector<1x1x128xf32>,
    %288 = vector.extract_strided_slice %183 {offsets = [26, 0], sizes = [1, 128], strides = [1, 1]} : vector<32x128xf32> to vector<1x128xf32>
    %c0_229 = arith.constant 0 : index
    %c0_230 = arith.constant 0 : index
    %c3328 = arith.constant 3328 : index
    %289 = vector.load %arg10[%c0_229, %c0_230, %c3328] : memref<1x1x4096xf32, #tpu.memory_space<vmem>>, vector<1x1x128xf32>
    %290 = vector.shape_cast %289 : vector<1x1x128xf32> to vector<1x128xf32>
    %291 = vector.shape_cast %288 : vector<1x128xf32> to vector<1x1x128xf32>
    tpu.vector_store %arg10[%c0_229, %c0_230, %c3328], %291 {strides = array<i32>} : memref<1x1x4096xf32, #tpu.memory_space<vmem>>, vector<1x1x128xf32>,
    %292 = vector.extract_strided_slice %183 {offsets = [27, 0], sizes = [1, 128], strides = [1, 1]} : vector<32x128xf32> to vector<1x128xf32>
    %c0_231 = arith.constant 0 : index
    %c0_232 = arith.constant 0 : index
    %c3456 = arith.constant 3456 : index
    %293 = vector.load %arg10[%c0_231, %c0_232, %c3456] : memref<1x1x4096xf32, #tpu.memory_space<vmem>>, vector<1x1x128xf32>
    %294 = vector.shape_cast %293 : vector<1x1x128xf32> to vector<1x128xf32>
    %295 = vector.shape_cast %292 : vector<1x128xf32> to vector<1x1x128xf32>
    tpu.vector_store %arg10[%c0_231, %c0_232, %c3456], %295 {strides = array<i32>} : memref<1x1x4096xf32, #tpu.memory_space<vmem>>, vector<1x1x128xf32>,
    %296 = vector.extract_strided_slice %183 {offsets = [28, 0], sizes = [1, 128], strides = [1, 1]} : vector<32x128xf32> to vector<1x128xf32>
    %c0_233 = arith.constant 0 : index
    %c0_234 = arith.constant 0 : index
    %c3584 = arith.constant 3584 : index
    %297 = vector.load %arg10[%c0_233, %c0_234, %c3584] : memref<1x1x4096xf32, #tpu.memory_space<vmem>>, vector<1x1x128xf32>
    %298 = vector.shape_cast %297 : vector<1x1x128xf32> to vector<1x128xf32>
    %299 = vector.shape_cast %296 : vector<1x128xf32> to vector<1x1x128xf32>
    tpu.vector_store %arg10[%c0_233, %c0_234, %c3584], %299 {strides = array<i32>} : memref<1x1x4096xf32, #tpu.memory_space<vmem>>, vector<1x1x128xf32>,
    %300 = vector.extract_strided_slice %183 {offsets = [29, 0], sizes = [1, 128], strides = [1, 1]} : vector<32x128xf32> to vector<1x128xf32>
    %c0_235 = arith.constant 0 : index
    %c0_236 = arith.constant 0 : index
    %c3712 = arith.constant 3712 : index
    %301 = vector.load %arg10[%c0_235, %c0_236, %c3712] : memref<1x1x4096xf32, #tpu.memory_space<vmem>>, vector<1x1x128xf32>
    %302 = vector.shape_cast %301 : vector<1x1x128xf32> to vector<1x128xf32>
    %303 = vector.shape_cast %300 : vector<1x128xf32> to vector<1x1x128xf32>
    tpu.vector_store %arg10[%c0_235, %c0_236, %c3712], %303 {strides = array<i32>} : memref<1x1x4096xf32, #tpu.memory_space<vmem>>, vector<1x1x128xf32>,
    %304 = vector.extract_strided_slice %183 {offsets = [30, 0], sizes = [1, 128], strides = [1, 1]} : vector<32x128xf32> to vector<1x128xf32>
    %c0_237 = arith.constant 0 : index
    %c0_238 = arith.constant 0 : index
    %c3840 = arith.constant 3840 : index
    %305 = vector.load %arg10[%c0_237, %c0_238, %c3840] : memref<1x1x4096xf32, #tpu.memory_space<vmem>>, vector<1x1x128xf32>
    %306 = vector.shape_cast %305 : vector<1x1x128xf32> to vector<1x128xf32>
    %307 = vector.shape_cast %304 : vector<1x128xf32> to vector<1x1x128xf32>
    tpu.vector_store %arg10[%c0_237, %c0_238, %c3840], %307 {strides = array<i32>} : memref<1x1x4096xf32, #tpu.memory_space<vmem>>, vector<1x1x128xf32>,
    %308 = vector.extract_strided_slice %183 {offsets = [31, 0], sizes = [1, 128], strides = [1, 1]} : vector<32x128xf32> to vector<1x128xf32>
    %c0_239 = arith.constant 0 : index
    %c0_240 = arith.constant 0 : index
    %c3968 = arith.constant 3968 : index
    %309 = vector.load %arg10[%c0_239, %c0_240, %c3968] : memref<1x1x4096xf32, #tpu.memory_space<vmem>>, vector<1x1x128xf32>
    %310 = vector.shape_cast %309 : vector<1x1x128xf32> to vector<1x128xf32>
    %311 = vector.shape_cast %308 : vector<1x128xf32> to vector<1x1x128xf32>
    tpu.vector_store %arg10[%c0_239, %c0_240, %c3968], %311 {strides = array<i32>} : memref<1x1x4096xf32, #tpu.memory_space<vmem>>, vector<1x1x128xf32>,
    %c0_241 = arith.constant 0 : index
    %c0_242 = arith.constant 0 : index
    %c0_243 = arith.constant 0 : index
    %312 = vector.load %arg10[%c0_241, %c0_242, %c0_243] : memref<1x1x4096xf32, #tpu.memory_space<vmem>>, vector<1x1x4096xf32>
    %313 = vector.shape_cast %312 : vector<1x1x4096xf32> to vector<1x4096xf32>
    %c0_244 = arith.constant 0 : index
    %c0_245 = arith.constant 0 : index
    %314 = vector.load %arg7[%c0_244, %c0_245] : memref<4096x128xf32, #tpu.memory_space<vmem>>, vector<4096x128xf32>
    %cst_246 = arith.constant dense<0.000000e+00> : vector<1x128xf32>
    %315 = tpu.matmul %313, %314, %cst_246 {dimension_numbers = #tpu.dot_dimension_numbers<[1], [0], [0], [1], [0, 0, 1, 1], [], []>} : vector<1x4096xf32>, vector<4096x128xf32>, vector<1x128xf32> -> vector<1x128xf32>
    %c0_247 = arith.constant 0 : index
    %c0_248 = arith.constant 0 : index
    %316 = vector.load %arg8[%c0_247, %c0_248] : memref<1x128xf32, #tpu.memory_space<vmem>>, vector<1x128xf32>
    %317 = arith.addf %315, %316 : vector<1x128xf32>
    %c0_249 = arith.constant 0 : index
    %c0_250 = arith.constant 0 : index
    %c0_251 = arith.constant 0 : index
    %318 = vector.load %arg9[%c0_249, %c0_250, %c0_251] : memref<1x1x128xf32, #tpu.memory_space<vmem>>, vector<1x1x128xf32>
    %319 = vector.shape_cast %318 : vector<1x1x128xf32> to vector<1x128xf32>
    %320 = vector.shape_cast %317 : vector<1x128xf32> to vector<1x1x128xf32>
    tpu.vector_store %arg9[%c0_249, %c0_250, %c0_251], %320 {strides = array<i32>} : memref<1x1x128xf32, #tpu.memory_space<vmem>>, vector<1x1x128xf32>,
    return
  }
  func.func @transform_0(%arg0: i32) -> (i32, i32, i32) {
    %c0_i32 = arith.constant 0 : i32
    %c0_i32_0 = arith.constant 0 : i32
    %c0_i32_1 = arith.constant 0 : i32
    return %arg0, %c0_i32, %c0_i32_0 : i32, i32, i32
  }
  func.func @transform_1(%arg0: i32) -> (i32, i32) {
    %c0_i32 = arith.constant 0 : i32
    %c0_i32_0 = arith.constant 0 : i32
    %c0_i32_1 = arith.constant 0 : i32
    return %c0_i32, %c0_i32_0 : i32, i32
  }
  func.func @transform_2(%arg0: i32) -> (i32, i32) {
    %c0_i32 = arith.constant 0 : i32
    %c0_i32_0 = arith.constant 0 : i32
    %c0_i32_1 = arith.constant 0 : i32
    return %c0_i32, %c0_i32_0 : i32, i32
  }
  func.func @transform_3(%arg0: i32) -> (i32, i32) {
    %c0_i32 = arith.constant 0 : i32
    %c0_i32_0 = arith.constant 0 : i32
    %c0_i32_1 = arith.constant 0 : i32
    return %c0_i32, %c0_i32_0 : i32, i32
  }
  func.func @transform_4(%arg0: i32) -> (i32, i32) {
    %c0_i32 = arith.constant 0 : i32
    %c0_i32_0 = arith.constant 0 : i32
    %c0_i32_1 = arith.constant 0 : i32
    return %c0_i32, %c0_i32_0 : i32, i32
  }
  func.func @transform_5(%arg0: i32) -> (i32, i32) {
    %c0_i32 = arith.constant 0 : i32
    %c0_i32_0 = arith.constant 0 : i32
    %c0_i32_1 = arith.constant 0 : i32
    return %c0_i32, %c0_i32_0 : i32, i32
  }
  func.func @transform_6(%arg0: i32) -> (i32, i32) {
    %c0_i32 = arith.constant 0 : i32
    %c0_i32_0 = arith.constant 0 : i32
    %c0_i32_1 = arith.constant 0 : i32
    return %c0_i32, %c0_i32_0 : i32, i32
  }
  func.func @transform_7(%arg0: i32) -> (i32, i32) {
    %c0_i32 = arith.constant 0 : i32
    %c0_i32_0 = arith.constant 0 : i32
    %c0_i32_1 = arith.constant 0 : i32
    return %c0_i32, %c0_i32_0 : i32, i32
  }
  func.func @transform_8(%arg0: i32) -> (i32, i32, i32) {
    %c0_i32 = arith.constant 0 : i32
    %c0_i32_0 = arith.constant 0 : i32
    %c0_i32_1 = arith.constant 0 : i32
    return %arg0, %c0_i32, %c0_i32_0 : i32, i32, i32
  }
  func.func @transform_9(%arg0: i32) -> (i32, i32, i32) {
    %c0_i32 = arith.constant 0 : i32
    %c0_i32_0 = arith.constant 0 : i32
    %c0_i32_1 = arith.constant 0 : i32
    return %arg0, %c0_i32, %c0_i32_0 : i32, i32, i32
  }
}

</mosaic_0001>

<llo_original>
// kernel: cnn_forward.1
$region0: #{cnn_forward.1}
  #allocation0 [shape = 'u32[]', space=smem, size = 0x4, offset = 0x4, fixed_abs, tag = 'smem constant byte address 0x4 - core index']
  #allocation1 [shape = 'u32[72,128]{1,0:T(1,128)}', space=vmem, size = 0x9000, scoped, tag = 'internal scratch']
  #allocation2 [shape = 'f32[25,896]{1,0:T(8,128)}', space=vmem, size = 0x1c000, scoped, tag = 'scratch operand']
  #allocation3 [shape = 'bf16[16,1280]{1,0:T(8,128)(2,1)}', space=vmem, size = 0xa000, scoped, tag = 'scratch operand']
  #allocation4 [shape = 'bf16[400,864]{1,0:T(8,128)(2,1)}', space=vmem, size = 0xaf000, scoped, tag = 'scratch operand']
  %s0 = inlined_call_operand.vmem [shape: f32[2,1,1056], index: 0, kind: input, shape index: {}]
  %s1 = inlined_call_operand.vmem [shape: f32[16,25], index: 1, kind: input, shape index: {}]
  %s2 = inlined_call_operand.vmem [shape: f32[16,1], index: 2, kind: input, shape index: {}]
  %s3 = inlined_call_operand.vmem [shape: bf16[32,400], index: 3, kind: input, shape index: {}]
  %s4 = inlined_call_operand.vmem [shape: f32[32,1], index: 4, kind: input, shape index: {}]
  %s5 = inlined_call_operand.vmem [shape: f32[798,128], index: 5, kind: input, shape index: {}]
  %s6 = inlined_call_operand.vmem [shape: f32[4096,128], index: 6, kind: input, shape index: {}]
  %s7 = inlined_call_operand.vmem [shape: f32[1,128], index: 7, kind: input, shape index: {}]
  %s8 = inlined_call_operand.hbm [shape: f32[2,1,128], index: 8, kind: output, shape index: {0}]
  %s9 = inlined_call_operand.vmem [shape: f32[2,1,4096], index: 9, kind: output, shape index: {1}]
  %10 = xla_tuple %s8, %s9
  %s11 = sld [smem:[#allocation0]]
  $region73: #{cnn_forward.1} parent=0
    _
  %s13 = ssub.s32 1, %s11
  %s14 = scalar_select 0, %s13, %s11
  $region1: #{cnn_forward.1} parent=0
    #allocation5 [shape = 'u8[1024]{0}', space=vmem, size = 0x400, scoped, tag = 'output window, operand 0']
    #allocation6 [shape = 's32[2]{0}', space=sflag, size = 0x8, scoped, tag = 'scoped memory for cnn_forward.1']
    %15 = vsyncpa [#allocation6], 0
    %s16 = scalar_lea.sflag [#allocation6], 1
    %17 = vsyncpa %s16, 0
    loop: start=0, step=1, limit=4
    $region2: #{cnn_forward.1} parent=1 // loop_pre_header
      _
    $region3: #{cnn_forward.1} parent=1 // loop_header
      %s19 = sphi 0, %s23
      %p20 = scmp.ge.s32.totalorder %s19, 4
      %s29 = sphi 0, %s31
      %s32 = sphi 0, %s29
      %s33 = sphi 0, %s32
      %s49 = sphi 0, %s33
      %s53 = sphi 0, %s53
      %s55 = sphi 0, %s53
      %s56 = sphi 0, %s55
      %s70 = sphi 0, %s56
      %s74 = sphi 0, %s74
      %s76 = sphi 0, %s74
      %s77 = sphi 0, %s76
      %s91 = sphi 0, %s77
      %s95 = sphi 0, %s95
      %s97 = sphi 0, %s95
      %s98 = sphi 0, %s97
      %s112 = sphi 0, %s98
      %s116 = sphi 0, %s116
      %s118 = sphi 0, %s116
      %s119 = sphi 0, %s118
      %s133 = sphi 0, %s119
      %s137 = sphi 0, %s137
      %s139 = sphi 0, %s137
      %s140 = sphi 0, %s139
      %s154 = sphi 0, %s140
      %s158 = sphi 0, %s158
      %s160 = sphi 0, %s158
      %s161 = sphi 0, %s160
      %s175 = sphi 0, %s161
      %s179 = sphi 0, %s179
      %s181 = sphi 0, %s179
      %s182 = sphi 0, %s181
      %s196 = sphi 0, %s182
      %s202 = sphi 0, %s204
      %s205 = sphi 0, %s202
      %s206 = sphi 0, %s205
      %s222 = sphi 0, %s206
      %s228 = sphi 0, %s230
      %s231 = sphi 0, %s228
      %s232 = sphi 0, %s231
      %s248 = sphi 0, %s232
    $region4: #{cnn_forward.1} parent=1 // loop_header_branch
      %22 = sbr.rel (%p20) target = $region8
    $region5: #{cnn_forward.1} parent=1 // loop_body
      %s24 = ssub.s32 %s19, 1
      %s25 = ssub.s32 %s19, 2
      %s26 = sadd.s32 %s19, 1
      %s27 = ssub.s32 %s19, %s26
      %p28 = scmp.eq.s32.totalorder %s27, 0
      %s30 = sadd.s32 %s29, 1
      %s31 = scalar_select %p28, %s29, %s30
      %p34 = pneg %p28
      %p35 = scmp.eq.s32.totalorder %s19, 1
      %p36 = por %p34, %p35
      %p37 = scmp.ne.s32.totalorder %s29, %s32
      %p38 = scmp.eq.s32.totalorder %s19, 0
      %p39 = por %p37, %p38
      %p40 = scmp.ne.s32.totalorder %s29, %s32
      %p41 = scmp.eq.s32.totalorder %s24, 1
      %p42 = por %p40, %p41
      %p43 = scmp.ne.s32.totalorder %s32, %s33
      %p44 = scmp.eq.s32.totalorder %s24, 0
      %p45 = por %p43, %p44
      %p46 = scmp.ne.s32.totalorder %s32, %s33
      %p47 = scmp.eq.s32.totalorder %s25, 1
      %p48 = por %p46, %p47
      %p50 = scmp.ne.s32.totalorder %s33, %s49
      %p51 = scmp.eq.s32.totalorder %s25, 0
      %p52 = por %p50, %p51
      %s54 = sadd.s32 %s53, 1
      %p57 = scmp.eq.s32.totalorder %s19, 1
      %p58 = scmp.ne.s32.totalorder %s53, %s55
      %p59 = scmp.eq.s32.totalorder %s19, 0
      %p60 = por %p58, %p59
      %p61 = scmp.ne.s32.totalorder %s53, %s55
      %p62 = scmp.eq.s32.totalorder %s24, 1
      %p63 = por %p61, %p62
      %p64 = scmp.ne.s32.totalorder %s55, %s56
      %p65 = scmp.eq.s32.totalorder %s24, 0
      %p66 = por %p64, %p65
      %p67 = scmp.ne.s32.totalorder %s55, %s56
      %p68 = scmp.eq.s32.totalorder %s25, 1
      %p69 = por %p67, %p68
      %p71 = scmp.ne.s32.totalorder %s56, %s70
      %p72 = scmp.eq.s32.totalorder %s25, 0
      %p73 = por %p71, %p72
      %s75 = sadd.s32 %s74, 1
      %p78 = scmp.eq.s32.totalorder %s19, 1
      %p79 = scmp.ne.s32.totalorder %s74, %s76
      %p80 = scmp.eq.s32.totalorder %s19, 0
      %p81 = por %p79, %p80
      %p82 = scmp.ne.s32.totalorder %s74, %s76
      %p83 = scmp.eq.s32.totalorder %s24, 1
      %p84 = por %p82, %p83
      %p85 = scmp.ne.s32.totalorder %s76, %s77
      %p86 = scmp.eq.s32.totalorder %s24, 0
      %p87 = por %p85, %p86
      %p88 = scmp.ne.s32.totalorder %s76, %s77
      %p89 = scmp.eq.s32.totalorder %s25, 1
      %p90 = por %p88, %p89
      %p92 = scmp.ne.s32.totalorder %s77, %s91
      %p93 = scmp.eq.s32.totalorder %s25, 0
      %p94 = por %p92, %p93
      %s96 = sadd.s32 %s95, 1
      %p99 = scmp.eq.s32.totalorder %s19, 1
      %p100 = scmp.ne.s32.totalorder %s95, %s97
      %p101 = scmp.eq.s32.totalorder %s19, 0
      %p102 = por %p100, %p101
      %p103 = scmp.ne.s32.totalorder %s95, %s97
      %p104 = scmp.eq.s32.totalorder %s24, 1
      %p105 = por %p103, %p104
      %p106 = scmp.ne.s32.totalorder %s97, %s98
      %p107 = scmp.eq.s32.totalorder %s24, 0
      %p108 = por %p106, %p107
      %p109 = scmp.ne.s32.totalorder %s97, %s98
      %p110 = scmp.eq.s32.totalorder %s25, 1
      %p111 = por %p109, %p110
      %p113 = scmp.ne.s32.totalorder %s98, %s112
      %p114 = scmp.eq.s32.totalorder %s25, 0
      %p115 = por %p113, %p114
      %s117 = sadd.s32 %s116, 1
      %p120 = scmp.eq.s32.totalorder %s19, 1
      %p121 = scmp.ne.s32.totalorder %s116, %s118
      %p122 = scmp.eq.s32.totalorder %s19, 0
      %p123 = por %p121, %p122
      %p124 = scmp.ne.s32.totalorder %s116, %s118
      %p125 = scmp.eq.s32.totalorder %s24, 1
      %p126 = por %p124, %p125
      %p127 = scmp.ne.s32.totalorder %s118, %s119
      %p128 = scmp.eq.s32.totalorder %s24, 0
      %p129 = por %p127, %p128
      %p130 = scmp.ne.s32.totalorder %s118, %s119
      %p131 = scmp.eq.s32.totalorder %s25, 1
      %p132 = por %p130, %p131
      %p134 = scmp.ne.s32.totalorder %s119, %s133
      %p135 = scmp.eq.s32.totalorder %s25, 0
      %p136 = por %p134, %p135
      %s138 = sadd.s32 %s137, 1
      %p141 = scmp.eq.s32.totalorder %s19, 1
      %p142 = scmp.ne.s32.totalorder %s137, %s139
      %p143 = scmp.eq.s32.totalorder %s19, 0
      %p144 = por %p142, %p143
      %p145 = scmp.ne.s32.totalorder %s137, %s139
      %p146 = scmp.eq.s32.totalorder %s24, 1
      %p147 = por %p145, %p146
      %p148 = scmp.ne.s32.totalorder %s139, %s140
      %p149 = scmp.eq.s32.totalorder %s24, 0
      %p150 = por %p148, %p149
      %p151 = scmp.ne.s32.totalorder %s139, %s140
      %p152 = scmp.eq.s32.totalorder %s25, 1
      %p153 = por %p151, %p152
      %p155 = scmp.ne.s32.totalorder %s140, %s154
      %p156 = scmp.eq.s32.totalorder %s25, 0
      %p157 = por %p155, %p156
      %s159 = sadd.s32 %s158, 1
      %p162 = scmp.eq.s32.totalorder %s19, 1
      %p163 = scmp.ne.s32.totalorder %s158, %s160
      %p164 = scmp.eq.s32.totalorder %s19, 0
      %p165 = por %p163, %p164
      %p166 = scmp.ne.s32.totalorder %s158, %s160
      %p167 = scmp.eq.s32.totalorder %s24, 1
      %p168 = por %p166, %p167
      %p169 = scmp.ne.s32.totalorder %s160, %s161
      %p170 = scmp.eq.s32.totalorder %s24, 0
      %p171 = por %p169, %p170
      %p172 = scmp.ne.s32.totalorder %s160, %s161
      %p173 = scmp.eq.s32.totalorder %s25, 1
      %p174 = por %p172, %p173
      %p176 = scmp.ne.s32.totalorder %s161, %s175
      %p177 = scmp.eq.s32.totalorder %s25, 0
      %p178 = por %p176, %p177
      %s180 = sadd.s32 %s179, 1
      %p183 = scmp.eq.s32.totalorder %s19, 1
      %p184 = scmp.ne.s32.totalorder %s179, %s181
      %p185 = scmp.eq.s32.totalorder %s19, 0
      %p186 = por %p184, %p185
      %p187 = scmp.ne.s32.totalorder %s179, %s181
      %p188 = scmp.eq.s32.totalorder %s24, 1
      %p189 = por %p187, %p188
      %p190 = scmp.ne.s32.totalorder %s181, %s182
      %p191 = scmp.eq.s32.totalorder %s24, 0
      %p192 = por %p190, %p191
      %p193 = scmp.ne.s32.totalorder %s181, %s182
      %p194 = scmp.eq.s32.totalorder %s25, 1
      %p195 = por %p193, %p194
      %p197 = scmp.ne.s32.totalorder %s182, %s196
      %p198 = scmp.eq.s32.totalorder %s25, 0
      %p199 = por %p197, %p198
      %s200 = ssub.s32 %s19, %s26
      %p201 = scmp.eq.s32.totalorder %s200, 0
      %s203 = sadd.s32 %s202, 1
      %s204 = scalar_select %p201, %s202, %s203
      %p207 = pneg %p201
      %p208 = scmp.eq.s32.totalorder %s19, 1
      %p209 = por %p207, %p208
      %p210 = scmp.ne.s32.totalorder %s202, %s205
      %p211 = scmp.eq.s32.totalorder %s19, 0
      %p212 = por %p210, %p211
      %p213 = scmp.ne.s32.totalorder %s202, %s205
      %p214 = scmp.eq.s32.totalorder %s24, 1
      %p215 = por %p213, %p214
      %p216 = scmp.ne.s32.totalorder %s205, %s206
      %p217 = scmp.eq.s32.totalorder %s24, 0
      %p218 = por %p216, %p217
      %p219 = scmp.ne.s32.totalorder %s205, %s206
      %p220 = scmp.eq.s32.totalorder %s25, 1
      %p221 = por %p219, %p220
      %p223 = scmp.ne.s32.totalorder %s206, %s222
      %p224 = scmp.eq.s32.totalorder %s25, 0
      %p225 = por %p223, %p224
      %s226 = ssub.s32 %s19, %s26
      %p227 = scmp.eq.s32.totalorder %s226, 0
      %s229 = sadd.s32 %s228, 1
      %s230 = scalar_select %p227, %s228, %s229
      %p233 = pneg %p227
      %p234 = scmp.eq.s32.totalorder %s19, 1
      %p235 = por %p233, %p234
      %p236 = scmp.ne.s32.totalorder %s228, %s231
      %p237 = scmp.eq.s32.totalorder %s19, 0
      %p238 = por %p236, %p237
      %p239 = scmp.ne.s32.totalorder %s228, %s231
      %p240 = scmp.eq.s32.totalorder %s24, 1
      %p241 = por %p239, %p240
      %p242 = scmp.ne.s32.totalorder %s231, %s232
      %p243 = scmp.eq.s32.totalorder %s24, 0
      %p244 = por %p242, %p243
      %p245 = scmp.ne.s32.totalorder %s231, %s232
      %p246 = scmp.eq.s32.totalorder %s25, 1
      %p247 = por %p245, %p246
      %p249 = scmp.ne.s32.totalorder %s232, %s248
      %p250 = scmp.eq.s32.totalorder %s25, 0
      %p251 = por %p249, %p250
      %p252 = scmp.le.s32.totalorder 1, %s19
      %p253 = scmp.lt.s32.totalorder %s19, 3
      %p254 = pnand %p252, %p253
      %p255 = pneg %p254
      // Predicated region
      $region9: #{cnn_forward.1} parent=5 // pred_check
        _
      $region10: #{cnn_forward.1} parent=5 // pred_check_branch
        %257 = sbr.rel (%p254) target = $region12
      $region11: #{cnn_forward.1} parent=5 // pred_region
        %s258 = ssub.s32 %s19, 1
        // Predicated region
        $region13: #{cnn_forward.1} parent=11 // pred_check
          %p259 = pneg %p66
        $region14: #{cnn_forward.1} parent=11 // pred_check_branch
          %261 = sbr.rel (%p259) target = $region16
        $region15: #{cnn_forward.1} parent=11 // pred_region
          _
        $region16: #{cnn_forward.1} parent=11 // pred_fallthru
          _
        // Predicated region
        $region17: #{cnn_forward.1} parent=11 // pred_check
          %p262 = pneg %p87
        $region18: #{cnn_forward.1} parent=11 // pred_check_branch
          %264 = sbr.rel (%p262) target = $region20
        $region19: #{cnn_forward.1} parent=11 // pred_region
          _
        $region20: #{cnn_forward.1} parent=11 // pred_fallthru
          _
        // Predicated region
        $region21: #{cnn_forward.1} parent=11 // pred_check
          %p265 = pneg %p108
        $region22: #{cnn_forward.1} parent=11 // pred_check_branch
          %267 = sbr.rel (%p265) target = $region24
        $region23: #{cnn_forward.1} parent=11 // pred_region
          _
        $region24: #{cnn_forward.1} parent=11 // pred_fallthru
          _
        // Predicated region
        $region25: #{cnn_forward.1} parent=11 // pred_check
          %p268 = pneg %p129
        $region26: #{cnn_forward.1} parent=11 // pred_check_branch
          %270 = sbr.rel (%p268) target = $region28
        $region27: #{cnn_forward.1} parent=11 // pred_region
          _
        $region28: #{cnn_forward.1} parent=11 // pred_fallthru
          _
        // Predicated region
        $region29: #{cnn_forward.1} parent=11 // pred_check
          %p271 = pneg %p150
        $region30: #{cnn_forward.1} parent=11 // pred_check_branch
          %273 = sbr.rel (%p271) target = $region32
        $region31: #{cnn_forward.1} parent=11 // pred_region
          _
        $region32: #{cnn_forward.1} parent=11 // pred_fallthru
          _
        // Predicated region
        $region33: #{cnn_forward.1} parent=11 // pred_check
          %p274 = pneg %p171
        $region34: #{cnn_forward.1} parent=11 // pred_check_branch
          %276 = sbr.rel (%p274) target = $region36
        $region35: #{cnn_forward.1} parent=11 // pred_region
          _
        $region36: #{cnn_forward.1} parent=11 // pred_fallthru
          _
        // Predicated region
        $region37: #{cnn_forward.1} parent=11 // pred_check
          %p277 = pneg %p192
        $region38: #{cnn_forward.1} parent=11 // pred_check_branch
          %279 = sbr.rel (%p277) target = $region40
        $region39: #{cnn_forward.1} parent=11 // pred_region
          _
        $region40: #{cnn_forward.1} parent=11 // pred_fallthru
          _
      $region12: #{cnn_forward.1} parent=5 // pred_fallthru
        _
      %p280 = scmp.lt.s32.totalorder %s19, 2
      // Predicated region
      $region41: #{cnn_forward.1} parent=5 // pred_check
        %p281 = pneg %p280
      $region42: #{cnn_forward.1} parent=5 // pred_check_branch
        %283 = sbr.rel (%p281) target = $region44
      $region43: #{cnn_forward.1} parent=5 // pred_region
        // Predicated region
        $region45: #{cnn_forward.1} parent=43 // pred_check
          %p284 = pneg %p39
        $region46: #{cnn_forward.1} parent=43 // pred_check_branch
          %286 = sbr.rel (%p284) target = $region48
        $region47: #{cnn_forward.1} parent=43 // pred_region
          %p287 = scmp.lt.s32.totalorder %s19, 1
          %s288 = scalar_select %p287, %s19, 1
          %s289 = smul.addr %s288, 9
          %s290 = scalar_lea.vmem %s0, %s289
        $region48: #{cnn_forward.1} parent=43 // pred_fallthru
          _
      $region44: #{cnn_forward.1} parent=5 // pred_fallthru
        _
      %p291 = scmp.le.s32.totalorder 1, %s19
      %p292 = scmp.lt.s32.totalorder %s19, 3
      %p293 = pnand %p291, %p292
      %p294 = pneg %p293
      // Predicated region
      $region49: #{cnn_forward.1} parent=5 // pred_check
        _
      $region50: #{cnn_forward.1} parent=5 // pred_check_branch
        %296 = sbr.rel (%p293) target = $region52
      $region51: #{cnn_forward.1} parent=5 // pred_region
        %s297 = ssub.s32 %s19, 1
        %p298 = scmp.lt.s32.totalorder %s24, 1
        %s299 = scalar_select %p298, %s24, 1
        %s300 = smul.addr %s299, 9
        %s301 = scalar_lea.vmem %s0, %s300
        %p302 = pneg %p45
        %p303 = pneg %p42
        %p304 = pneg %p66
        %p305 = pneg %p63
        %p306 = pneg %p87
        %p307 = pneg %p84
        %p308 = pneg %p108
        %p309 = pneg %p105
        %p310 = pneg %p129
        %p311 = pneg %p126
        %p312 = pneg %p150
        %p313 = pneg %p147
        %p314 = pneg %p171
        %p315 = pneg %p168
        %p316 = pneg %p192
        %p317 = pneg %p189
        %p318 = pneg %p218
        %p319 = pneg %p215
        %s320 = sand.u32 %s205, 1
        %s321 = scalar_lea.sflag [#allocation6], %s320
        %s322 = sand.u32 %s205, 1
        %s323 = scalar_lea.vmem [#allocation5], %s322
        %p324 = pneg %p244
        %p325 = pneg %p241
        %p326 = scmp.lt.s32.totalorder %s24, 1
        %s327 = scalar_select %p326, %s24, 1
        %s328 = smul.addr %s327, 32
        %s329 = scalar_lea.vmem %s9, %s328
        %p330 = scmp.lt.s32.totalorder %s24, 1
        %s331 = scalar_select %p330, %s24, 1
        %s332 = smul.addr %s331, 9
        %s333 = scalar_lea.vmem %s0, %s332
        %p334 = scmp.lt.s32.totalorder %s24, 1
        %s335 = scalar_select %p334, %s24, 1
        %s336 = smul.addr %s335, 32
        %s337 = scalar_lea.vmem %s9, %s336
        %v339 = vlaneseq
        %v340 = vand.u32 %v339, 127
        %v341 = vadd.s32 %v340, 128
        %v342 = vadd.s32 %v340, 256
        %v343 = vadd.s32 %v340, 384
        %v344 = vadd.s32 %v340, 512
        %v345 = vadd.s32 %v340, 640
        %v346 = vadd.s32 %v340, 768
        %vm347 = vcmp.lt.s32.totalorder %v340, 0
        %v348 = vsub.s32 0, %v340
        %v349 = vsel %vm347, %v348, %v340
        %v350 = vshrl.u32 %v349, 5
        %v351 = vand.u32 %v349, 31
        %v352 = vsub.s32 0, %v351
        %v353 = vsel %vm347, %v352, %v351
        %vm354 = vcmp.lt.s32.totalorder %v341, 0
        %v355 = vsub.s32 0, %v341
        %v356 = vsel %vm354, %v355, %v341
        %v357 = vshrl.u32 %v356, 5
        %v358 = vand.u32 %v356, 31
        %v359 = vsub.s32 0, %v358
        %v360 = vsel %vm354, %v359, %v358
        %vm361 = vcmp.lt.s32.totalorder %v342, 0
        %v362 = vsub.s32 0, %v342
        %v363 = vsel %vm361, %v362, %v342
        %v364 = vshrl.u32 %v363, 5
        %v365 = vand.u32 %v363, 31
        %v366 = vsub.s32 0, %v365
        %v367 = vsel %vm361, %v366, %v365
        %vm368 = vcmp.lt.s32.totalorder %v343, 0
        %v369 = vsub.s32 0, %v343
        %v370 = vsel %vm368, %v369, %v343
        %v371 = vshrl.u32 %v370, 5
        %v372 = vand.u32 %v370, 31
        %v373 = vsub.s32 0, %v372
        %v374 = vsel %vm368, %v373, %v372
        %vm375 = vcmp.lt.s32.totalorder %v344, 0
        %v376 = vsub.s32 0, %v344
        %v377 = vsel %vm375, %v376, %v344
        %v378 = vshrl.u32 %v377, 5
        %v379 = vand.u32 %v377, 31
        %v380 = vsub.s32 0, %v379
        %v381 = vsel %vm375, %v380, %v379
        %vm382 = vcmp.lt.s32.totalorder %v345, 0
        %v383 = vsub.s32 0, %v345
        %v384 = vsel %vm382, %v383, %v345
        %v385 = vshrl.u32 %v384, 5
        %v386 = vand.u32 %v384, 31
        %v387 = vsub.s32 0, %v386
        %v388 = vsel %vm382, %v387, %v386
        %vm389 = vcmp.lt.s32.totalorder %v346, 0
        %v390 = vsub.s32 0, %v346
        %v391 = vsel %vm389, %v390, %v346
        %v392 = vshrl.u32 %v391, 5
        %v393 = vand.u32 %v391, 31
        %v394 = vsub.s32 0, %v393
        %v395 = vsel %vm389, %v394, %v393
        %vm396 = vcmp.ne.s32.totalorder %v353, 0
        %vm397 = vcmp.ne.s32.totalorder %v360, 0
        %vm398 = vcmp.ne.s32.totalorder %v367, 0
        %vm399 = vcmp.ne.s32.totalorder %v374, 0
        %vm400 = vcmp.ne.s32.totalorder %v381, 0
        %vm401 = vcmp.ne.s32.totalorder %v388, 0
        %vm402 = vcmp.ne.s32.totalorder %v395, 0
        %vm403 = vcmp.lt.s32.totalorder %v353, 0
        %vm404 = vcmp.lt.s32.totalorder %v360, 0
        %vm405 = vcmp.lt.s32.totalorder %v367, 0
        %vm406 = vcmp.lt.s32.totalorder %v374, 0
        %vm407 = vcmp.lt.s32.totalorder %v381, 0
        %vm408 = vcmp.lt.s32.totalorder %v388, 0
        %vm409 = vcmp.lt.s32.totalorder %v395, 0
        %vm410 = vmand %vm403, %vm396
        %vm411 = vmand %vm404, %vm397
        %vm412 = vmand %vm405, %vm398
        %vm413 = vmand %vm406, %vm399
        %vm414 = vmand %vm407, %vm400
        %vm415 = vmand %vm408, %vm401
        %vm416 = vmand %vm409, %vm402
        %v417 = vadd.s32 %v353, 32
        %v418 = vadd.s32 %v360, 32
        %v419 = vadd.s32 %v367, 32
        %v420 = vadd.s32 %v374, 32
        %v421 = vadd.s32 %v381, 32
        %v422 = vadd.s32 %v388, 32
        %v423 = vadd.s32 %v395, 32
        %v424 = vsel %vm410, %v417, %v353
        %v425 = vsel %vm411, %v418, %v360
        %v426 = vsel %vm412, %v419, %v367
        %v427 = vsel %vm413, %v420, %v374
        %v428 = vsel %vm414, %v421, %v381
        %v429 = vsel %vm415, %v422, %v388
        %v430 = vsel %vm416, %v423, %v395
        %vm431 = vcmp.lt.s32.totalorder %v424, 28
        %vm432 = vcmp.lt.s32.totalorder %v425, 28
        %vm433 = vcmp.lt.s32.totalorder %v426, 28
        %vm434 = vcmp.lt.s32.totalorder %v427, 28
        %vm435 = vcmp.lt.s32.totalorder %v428, 28
        %vm436 = vcmp.lt.s32.totalorder %v429, 28
        %vm437 = vcmp.lt.s32.totalorder %v430, 28
        %v438 = vld [vmem:[%s333] sm:$0xff]
        %v439 = vlaneseq
        %vm440 = vcmp.ge.s32.totalorder %v439, 0
        %vm441 = vcmp.lt.s32.totalorder %v439, 896
        %vm442 = vmand %vm440, %vm441
        %443 = vst.msk [vmem:[#allocation2] ss:$8 sm:$0xf] %vm442, %v438
        %444 = vst.msk [vmem:[#allocation2] ss:$8 sm:$0x70] %vm442, %v438
        %v445 = vld [vmem:[%s333] sm:$0xff]
        %447 = vrot.lane.b32.xlu0 %v445, 127
        %v448 = vpop.permute.xlu0 %447
        %v449 = vrot.slane %v448, 1
        %vm450 = vcmask 1039360
        %v451 = vsel %vm450, %v448, %v449
        %s453 = scalar_lea.vmem [#allocation2], 1
        %454 = vst.msk [vmem:[%s453] ss:$8 sm:$0xf] %vm442, %v451
        %455 = vst.msk [vmem:[%s453] ss:$8 sm:$0x70] %vm442, %v451
        %v456 = vld [vmem:[%s333] sm:$0xff]
        %458 = vrot.lane.b32.xlu0 %v456, 126
        %v459 = vpop.permute.xlu0 %458
        %v460 = vrot.slane %v459, 1
        %vm461 = vcmask 1031168
        %v462 = vsel %vm461, %v459, %v460
        %s464 = scalar_lea.vmem [#allocation2], 2
        %465 = vst.msk [vmem:[%s464] ss:$8 sm:$0xf] %vm442, %v462
        %466 = vst.msk [vmem:[%s464] ss:$8 sm:$0x70] %vm442, %v462
        %v467 = vld [vmem:[%s333] sm:$0xff]
        %469 = vrot.lane.b32.xlu0 %v467, 125
        %v470 = vpop.permute.xlu0 %469
        %v471 = vrot.slane %v470, 1
        %vm472 = vcmask 1022976
        %v473 = vsel %vm472, %v470, %v471
        %s475 = scalar_lea.vmem [#allocation2], 3
        %476 = vst.msk [vmem:[%s475] ss:$8 sm:$0xf] %vm442, %v473
        %477 = vst.msk [vmem:[%s475] ss:$8 sm:$0x70] %vm442, %v473
        %v478 = vld [vmem:[%s333] sm:$0xff]
        %480 = vrot.lane.b32.xlu0 %v478, 124
        %v481 = vpop.permute.xlu0 %480
        %v482 = vrot.slane %v481, 1
        %vm483 = vcmask 1014784
        %v484 = vsel %vm483, %v481, %v482
        %s486 = scalar_lea.vmem [#allocation2], 4
        %487 = vst.msk [vmem:[%s486] ss:$8 sm:$0xf] %vm442, %v484
        %488 = vst.msk [vmem:[%s486] ss:$8 sm:$0x70] %vm442, %v484
        %v489 = vld [vmem:[%s333] sm:$0xff]
        %491 = vrot.lane.b32.xlu0 %v489, 96
        %v492 = vpop.permute.xlu0 %491
        %v493 = vrot.slane %v492, 1
        %vm494 = vcmask 785408
        %v495 = vsel %vm494, %v492, %v493
        %s497 = scalar_lea.vmem [#allocation2], 5
        %498 = vst.msk [vmem:[%s497] ss:$8 sm:$0xf] %vm442, %v495
        %499 = vst.msk [vmem:[%s497] ss:$8 sm:$0x70] %vm442, %v495
        %v500 = vld [vmem:[%s333] sm:$0xff]
        %502 = vrot.lane.b32.xlu0 %v500, 95
        %v503 = vpop.permute.xlu0 %502
        %v504 = vrot.slane %v503, 1
        %vm505 = vcmask 777216
        %v506 = vsel %vm505, %v503, %v504
        %s508 = scalar_lea.vmem [#allocation2], 6
        %509 = vst.msk [vmem:[%s508] ss:$8 sm:$0xf] %vm442, %v506
        %510 = vst.msk [vmem:[%s508] ss:$8 sm:$0x70] %vm442, %v506
        %v511 = vld [vmem:[%s333] sm:$0xff]
        %513 = vrot.lane.b32.xlu0 %v511, 94
        %v514 = vpop.permute.xlu0 %513
        %v515 = vrot.slane %v514, 1
        %vm516 = vcmask 769024
        %v517 = vsel %vm516, %v514, %v515
        %s519 = scalar_lea.vmem [#allocation2], 7
        %520 = vst.msk [vmem:[%s519] ss:$8 sm:$0xf] %vm442, %v517
        %521 = vst.msk [vmem:[%s519] ss:$8 sm:$0x70] %vm442, %v517
        %v522 = vld [vmem:[%s333] sm:$0xff]
        %524 = vrot.lane.b32.xlu0 %v522, 93
        %v525 = vpop.permute.xlu0 %524
        %v526 = vrot.slane %v525, 1
        %vm527 = vcmask 760832
        %v528 = vsel %vm527, %v525, %v526
        %s530 = scalar_lea.vmem [#allocation2], 56
        %531 = vst.msk [vmem:[%s530] ss:$8 sm:$0xf] %vm442, %v528
        %532 = vst.msk [vmem:[%s530] ss:$8 sm:$0x70] %vm442, %v528
        %v533 = vld [vmem:[%s333] sm:$0xff]
        %535 = vrot.lane.b32.xlu0 %v533, 92
        %v536 = vpop.permute.xlu0 %535
        %v537 = vrot.slane %v536, 1
        %vm538 = vcmask 752640
        %v539 = vsel %vm538, %v536, %v537
        %s541 = scalar_lea.vmem [#allocation2], 57
        %542 = vst.msk [vmem:[%s541] ss:$8 sm:$0xf] %vm442, %v539
        %543 = vst.msk [vmem:[%s541] ss:$8 sm:$0x70] %vm442, %v539
        %v544 = vld [vmem:[%s333] sm:$0xff]
        %546 = vrot.lane.b32.xlu0 %v544, 64
        %v547 = vpop.permute.xlu0 %546
        %v548 = vrot.slane %v547, 1
        %vm549 = vcmask 523264
        %v550 = vsel %vm549, %v547, %v548
        %s552 = scalar_lea.vmem [#allocation2], 58
        %553 = vst.msk [vmem:[%s552] ss:$8 sm:$0xf] %vm442, %v550
        %554 = vst.msk [vmem:[%s552] ss:$8 sm:$0x70] %vm442, %v550
        %v555 = vld [vmem:[%s333] sm:$0xff]
        %557 = vrot.lane.b32.xlu0 %v555, 63
        %v558 = vpop.permute.xlu0 %557
        %v559 = vrot.slane %v558, 1
        %vm560 = vcmask 515072
        %v561 = vsel %vm560, %v558, %v559
        %s563 = scalar_lea.vmem [#allocation2], 59
        %564 = vst.msk [vmem:[%s563] ss:$8 sm:$0xf] %vm442, %v561
        %565 = vst.msk [vmem:[%s563] ss:$8 sm:$0x70] %vm442, %v561
        %v566 = vld [vmem:[%s333] sm:$0xff]
        %568 = vrot.lane.b32.xlu0 %v566, 62
        %v569 = vpop.permute.xlu0 %568
        %v570 = vrot.slane %v569, 1
        %vm571 = vcmask 506880
        %v572 = vsel %vm571, %v569, %v570
        %s574 = scalar_lea.vmem [#allocation2], 60
        %575 = vst.msk [vmem:[%s574] ss:$8 sm:$0xf] %vm442, %v572
        %576 = vst.msk [vmem:[%s574] ss:$8 sm:$0x70] %vm442, %v572
        %v577 = vld [vmem:[%s333] sm:$0xff]
        %579 = vrot.lane.b32.xlu0 %v577, 61
        %v580 = vpop.permute.xlu0 %579
        %v581 = vrot.slane %v580, 1
        %vm582 = vcmask 498688
        %v583 = vsel %vm582, %v580, %v581
        %s585 = scalar_lea.vmem [#allocation2], 61
        %586 = vst.msk [vmem:[%s585] ss:$8 sm:$0xf] %vm442, %v583
        %587 = vst.msk [vmem:[%s585] ss:$8 sm:$0x70] %vm442, %v583
        %v588 = vld [vmem:[%s333] sm:$0xff]
        %590 = vrot.lane.b32.xlu0 %v588, 60
        %v591 = vpop.permute.xlu0 %590
        %v592 = vrot.slane %v591, 1
        %vm593 = vcmask 490496
        %v594 = vsel %vm593, %v591, %v592
        %s596 = scalar_lea.vmem [#allocation2], 62
        %597 = vst.msk [vmem:[%s596] ss:$8 sm:$0xf] %vm442, %v594
        %598 = vst.msk [vmem:[%s596] ss:$8 sm:$0x70] %vm442, %v594
        %v599 = vld [vmem:[%s333] sm:$0xff]
        %601 = vrot.lane.b32.xlu0 %v599, 32
        %v602 = vpop.permute.xlu0 %601
        %v603 = vrot.slane %v602, 1
        %vm604 = vcmask 261120
        %v605 = vsel %vm604, %v602, %v603
        %s607 = scalar_lea.vmem [#allocation2], 63
        %608 = vst.msk [vmem:[%s607] ss:$8 sm:$0xf] %vm442, %v605
        %609 = vst.msk [vmem:[%s607] ss:$8 sm:$0x70] %vm442, %v605
        %v610 = vld [vmem:[%s333] sm:$0xff]
        %612 = vrot.lane.b32.xlu0 %v610, 31
        %v613 = vpop.permute.xlu0 %612
        %v614 = vrot.slane %v613, 1
        %vm615 = vcmask 252928
        %v616 = vsel %vm615, %v613, %v614
        %s618 = scalar_lea.vmem [#allocation2], 112
        %619 = vst.msk [vmem:[%s618] ss:$8 sm:$0xf] %vm442, %v616
        %620 = vst.msk [vmem:[%s618] ss:$8 sm:$0x70] %vm442, %v616
        %v621 = vld [vmem:[%s333] sm:$0xff]
        %623 = vrot.lane.b32.xlu0 %v621, 30
        %v624 = vpop.permute.xlu0 %623
        %v625 = vrot.slane %v624, 1
        %vm626 = vcmask 244736
        %v627 = vsel %vm626, %v624, %v625
        %s629 = scalar_lea.vmem [#allocation2], 113
        %630 = vst.msk [vmem:[%s629] ss:$8 sm:$0xf] %vm442, %v627
        %631 = vst.msk [vmem:[%s629] ss:$8 sm:$0x70] %vm442, %v627
        %v632 = vld [vmem:[%s333] sm:$0xff]
        %634 = vrot.lane.b32.xlu0 %v632, 29
        %v635 = vpop.permute.xlu0 %634
        %v636 = vrot.slane %v635, 1
        %vm637 = vcmask 236544
        %v638 = vsel %vm637, %v635, %v636
        %s640 = scalar_lea.vmem [#allocation2], 114
        %641 = vst.msk [vmem:[%s640] ss:$8 sm:$0xf] %vm442, %v638
        %642 = vst.msk [vmem:[%s640] ss:$8 sm:$0x70] %vm442, %v638
        %v643 = vld [vmem:[%s333] sm:$0xff]
        %645 = vrot.lane.b32.xlu0 %v643, 28
        %v646 = vpop.permute.xlu0 %645
        %v647 = vrot.slane %v646, 1
        %vm648 = vcmask 228352
        %v649 = vsel %vm648, %v646, %v647
        %s651 = scalar_lea.vmem [#allocation2], 115
        %652 = vst.msk [vmem:[%s651] ss:$8 sm:$0xf] %vm442, %v649
        %653 = vst.msk [vmem:[%s651] ss:$8 sm:$0x70] %vm442, %v649
        %v654 = vld [vmem:[%s333 + $0x1] sm:$0xff]
        %s655 = scalar_lea.vmem [#allocation2], 116
        %656 = vst.msk [vmem:[%s655] ss:$8 sm:$0xf] %vm442, %v654
        %657 = vst.msk [vmem:[%s655] ss:$8 sm:$0x70] %vm442, %v654
        %v658 = vld [vmem:[%s333 + $0x1] sm:$0xff]
        %660 = vrot.lane.b32.xlu0 %v658, 127
        %v661 = vpop.permute.xlu0 %660
        %v662 = vrot.slane %v661, 1
        %v663 = vsel %vm450, %v661, %v662
        %s665 = scalar_lea.vmem [#allocation2], 117
        %666 = vst.msk [vmem:[%s665] ss:$8 sm:$0xf] %vm442, %v663
        %667 = vst.msk [vmem:[%s665] ss:$8 sm:$0x70] %vm442, %v663
        %v668 = vld [vmem:[%s333 + $0x1] sm:$0xff]
        %670 = vrot.lane.b32.xlu0 %v668, 126
        %v671 = vpop.permute.xlu0 %670
        %v672 = vrot.slane %v671, 1
        %v673 = vsel %vm461, %v671, %v672
        %s675 = scalar_lea.vmem [#allocation2], 118
        %676 = vst.msk [vmem:[%s675] ss:$8 sm:$0xf] %vm442, %v673
        %677 = vst.msk [vmem:[%s675] ss:$8 sm:$0x70] %vm442, %v673
        %v678 = vld [vmem:[%s333 + $0x1] sm:$0xff]
        %680 = vrot.lane.b32.xlu0 %v678, 125
        %v681 = vpop.permute.xlu0 %680
        %v682 = vrot.slane %v681, 1
        %v683 = vsel %vm472, %v681, %v682
        %s685 = scalar_lea.vmem [#allocation2], 119
        %686 = vst.msk [vmem:[%s685] ss:$8 sm:$0xf] %vm442, %v683
        %687 = vst.msk [vmem:[%s685] ss:$8 sm:$0x70] %vm442, %v683
        %v688 = vld [vmem:[%s333 + $0x1] sm:$0xff]
        %690 = vrot.lane.b32.xlu0 %v688, 124
        %v691 = vpop.permute.xlu0 %690
        %v692 = vrot.slane %v691, 1
        %v693 = vsel %vm483, %v691, %v692
        %s695 = scalar_lea.vmem [#allocation2], 168
        %696 = vst.msk [vmem:[%s695] ss:$8 sm:$0xf] %vm442, %v693
        %697 = vst.msk [vmem:[%s695] ss:$8 sm:$0x70] %vm442, %v693
        %v698 = vld [vmem:[%s1] sm:$0xff]
        %v699 = vld [vmem:[%s1 + $0x8] sm:$0xff]
        %v700 = vld [vmem:[#allocation2] sm:$0xff]
        %v701 = vld [vmem:[#allocation2 + $0x8] sm:$0xff]
        %v702 = vld [vmem:[#allocation2 + $0x10] sm:$0xff]
        %v703 = vld [vmem:[#allocation2 + $0x18] sm:$0xff]
        %v704 = vld [vmem:[#allocation2 + $0x20] sm:$0xff]
        %v705 = vld [vmem:[#allocation2 + $0x28] sm:$0xff]
        %v706 = vld [vmem:[#allocation2 + $0x30] sm:$0xff]
        %v707 = vld [vmem:[#allocation2 + $0x38] sm:$0xff]
        %v708 = vld [vmem:[#allocation2 + $0x40] sm:$0xff]
        %v709 = vld [vmem:[#allocation2 + $0x48] sm:$0xff]
        %v710 = vld [vmem:[#allocation2 + $0x50] sm:$0xff]
        %v711 = vld [vmem:[#allocation2 + $0x58] sm:$0xff]
        %v712 = vld [vmem:[#allocation2 + $0x60] sm:$0xff]
        %v713 = vld [vmem:[#allocation2 + $0x68] sm:$0xff]
        %v714 = vld [vmem:[#allocation2 + $0x70] sm:$0xff]
        %v715 = vld [vmem:[#allocation2 + $0x78] sm:$0xff]
        %v716 = vld [vmem:[#allocation2 + $0x80] sm:$0xff]
        %v717 = vld [vmem:[#allocation2 + $0x88] sm:$0xff]
        %v718 = vld [vmem:[#allocation2 + $0x90] sm:$0xff]
        %v719 = vld [vmem:[#allocation2 + $0x98] sm:$0xff]
        %v720 = vld [vmem:[#allocation2 + $0xa0] sm:$0xff]
        %v721 = vld [vmem:[#allocation2 + $0xa8] sm:$0x1]
        %v722 = vld [vmem:[#allocation2 + $0xb0] sm:$0x1]
        %v723 = vld [vmem:[#allocation2 + $0xb8] sm:$0x1]
        %v724 = vld [vmem:[#allocation2 + $0xc0] sm:$0x1]
        %v725 = vld [vmem:[#allocation2 + $0xc8] sm:$0x1]
        %v726 = vld [vmem:[#allocation2 + $0xd0] sm:$0x1]
        %v727 = vld [vmem:[#allocation2 + $0xd8] sm:$0x1]
        %v728 = vld [vmem:[%s2] sm:$0xff]
        %v729 = vld [vmem:[%s2 + $0x8] sm:$0xff]
        %731 = vset.pattern.permute.xlu0 0
        %732 = vperm.xlu0 %731, %v728
        %v733 = vpop.permute.xlu0 %732
        %736 = vset.pattern.permute.xlu0 0
        %737 = vperm.xlu0 %736, %v729
        %v738 = vpop.permute.xlu0 %737
        %vm740 = vcmask 203776
        %v742 = vsel %vm740, %v698, 0
        %v745 = vsel %vm740, %v699, 0
        %vm747 = vcmask 1040384
        %v749 = vsel %vm747, %v721, 0
        %v752 = vsel %vm747, %v722, 0
        %v755 = vsel %vm747, %v723, 0
        %v758 = vsel %vm747, %v724, 0
        %v761 = vsel %vm747, %v725, 0
        %v764 = vsel %vm747, %v726, 0
        %v767 = vsel %vm747, %v727, 0
        %769 = vmatpush.msra.mxu0 0.0
        %770 = vmatpush.msra.mxu0 0.0
        %771 = vmatpush.msra.mxu0 0.0
        %772 = vmatpush.msra.mxu0 0.0
        %773 = vmatpush.msra.mxu0 0.0
        %774 = vmatpush.msra.mxu0 0.0
        %775 = vmatpush.msra.mxu0 0.0
        %776 = vmatpush.msra.mxu0 0.0
        %777 = vmatpush.msra.mxu0 0.0
        %778 = vmatpush.msra.mxu0 0.0
        %779 = vmatpush.msra.mxu0 0.0
        %780 = vmatpush.msra.mxu0 0.0
        %781 = vmatpush.msra.mxu0 %v749
        %782 = vmatpush.msra.mxu0 %v714
        %783 = vmatpush.msra.mxu0 %v707
        %784 = vmatpush.msra.mxu0 %v700
        %785 = vmatmul.f32.gmra.mxu0 %v742
        %v786 = vpop.f32.mrf.mxu0
        %v787 = vadd.f32 %v733, %v786
        %788 = vmatmul.f32.gmra.mxu0 %v745
        %v789 = vpop.f32.mrf.mxu0
        %v790 = vadd.f32 %v738, %v789
        %791 = vdwg.mxu0
        %792 = vmatpush.msra.mxu0 0.0
        %793 = vmatpush.msra.mxu0 0.0
        %794 = vmatpush.msra.mxu0 0.0
        %795 = vmatpush.msra.mxu0 0.0
        %796 = vmatpush.msra.mxu0 0.0
        %797 = vmatpush.msra.mxu0 0.0
        %798 = vmatpush.msra.mxu0 0.0
        %799 = vmatpush.msra.mxu0 0.0
        %800 = vmatpush.msra.mxu0 0.0
        %801 = vmatpush.msra.mxu0 0.0
        %802 = vmatpush.msra.mxu0 0.0
        %803 = vmatpush.msra.mxu0 0.0
        %804 = vmatpush.msra.mxu0 %v752
        %805 = vmatpush.msra.mxu0 %v715
        %806 = vmatpush.msra.mxu0 %v708
        %807 = vmatpush.msra.mxu0 %v701
        %808 = vmatmul.f32.gmra.mxu0 %v742
        %v809 = vpop.f32.mrf.mxu0
        %v810 = vadd.f32 %v733, %v809
        %811 = vmatmul.f32.gmra.mxu0 %v745
        %v812 = vpop.f32.mrf.mxu0
        %v813 = vadd.f32 %v738, %v812
        %814 = vdwg.mxu0
        %815 = vmatpush.msra.mxu0 0.0
        %816 = vmatpush.msra.mxu0 0.0
        %817 = vmatpush.msra.mxu0 0.0
        %818 = vmatpush.msra.mxu0 0.0
        %819 = vmatpush.msra.mxu0 0.0
        %820 = vmatpush.msra.mxu0 0.0
        %821 = vmatpush.msra.mxu0 0.0
        %822 = vmatpush.msra.mxu0 0.0
        %823 = vmatpush.msra.mxu0 0.0
        %824 = vmatpush.msra.mxu0 0.0
        %825 = vmatpush.msra.mxu0 0.0
        %826 = vmatpush.msra.mxu0 0.0
        %827 = vmatpush.msra.mxu0 %v755
        %828 = vmatpush.msra.mxu0 %v716
        %829 = vmatpush.msra.mxu0 %v709
        %830 = vmatpush.msra.mxu0 %v702
        %831 = vmatmul.f32.gmra.mxu0 %v742
        %v832 = vpop.f32.mrf.mxu0
        %v833 = vadd.f32 %v733, %v832
        %834 = vmatmul.f32.gmra.mxu0 %v745
        %v835 = vpop.f32.mrf.mxu0
        %v836 = vadd.f32 %v738, %v835
        %837 = vdwg.mxu0
        %838 = vmatpush.msra.mxu0 0.0
        %839 = vmatpush.msra.mxu0 0.0
        %840 = vmatpush.msra.mxu0 0.0
        %841 = vmatpush.msra.mxu0 0.0
        %842 = vmatpush.msra.mxu0 0.0
        %843 = vmatpush.msra.mxu0 0.0
        %844 = vmatpush.msra.mxu0 0.0
        %845 = vmatpush.msra.mxu0 0.0
        %846 = vmatpush.msra.mxu0 0.0
        %847 = vmatpush.msra.mxu0 0.0
        %848 = vmatpush.msra.mxu0 0.0
        %849 = vmatpush.msra.mxu0 0.0
        %850 = vmatpush.msra.mxu0 %v758
        %851 = vmatpush.msra.mxu0 %v717
        %852 = vmatpush.msra.mxu0 %v710
        %853 = vmatpush.msra.mxu0 %v703
        %854 = vmatmul.f32.gmra.mxu0 %v742
        %v855 = vpop.f32.mrf.mxu0
        %v856 = vadd.f32 %v733, %v855
        %857 = vmatmul.f32.gmra.mxu0 %v745
        %v858 = vpop.f32.mrf.mxu0
        %v859 = vadd.f32 %v738, %v858
        %860 = vdwg.mxu0
        %861 = vmatpush.msra.mxu0 0.0
        %862 = vmatpush.msra.mxu0 0.0
        %863 = vmatpush.msra.mxu0 0.0
        %864 = vmatpush.msra.mxu0 0.0
        %865 = vmatpush.msra.mxu0 0.0
        %866 = vmatpush.msra.mxu0 0.0
        %867 = vmatpush.msra.mxu0 0.0
        %868 = vmatpush.msra.mxu0 0.0
        %869 = vmatpush.msra.mxu0 0.0
        %870 = vmatpush.msra.mxu0 0.0
        %871 = vmatpush.msra.mxu0 0.0
        %872 = vmatpush.msra.mxu0 0.0
        %873 = vmatpush.msra.mxu0 %v761
        %874 = vmatpush.msra.mxu0 %v718
        %875 = vmatpush.msra.mxu0 %v711
        %876 = vmatpush.msra.mxu0 %v704
        %877 = vmatmul.f32.gmra.mxu0 %v742
        %v878 = vpop.f32.mrf.mxu0
        %v879 = vadd.f32 %v733, %v878
        %880 = vmatmul.f32.gmra.mxu0 %v745
        %v881 = vpop.f32.mrf.mxu0
        %v882 = vadd.f32 %v738, %v881
        %883 = vdwg.mxu0
        %884 = vmatpush.msra.mxu0 0.0
        %885 = vmatpush.msra.mxu0 0.0
        %886 = vmatpush.msra.mxu0 0.0
        %887 = vmatpush.msra.mxu0 0.0
        %888 = vmatpush.msra.mxu0 0.0
        %889 = vmatpush.msra.mxu0 0.0
        %890 = vmatpush.msra.mxu0 0.0
        %891 = vmatpush.msra.mxu0 0.0
        %892 = vmatpush.msra.mxu0 0.0
        %893 = vmatpush.msra.mxu0 0.0
        %894 = vmatpush.msra.mxu0 0.0
        %895 = vmatpush.msra.mxu0 0.0
        %896 = vmatpush.msra.mxu0 %v764
        %897 = vmatpush.msra.mxu0 %v719
        %898 = vmatpush.msra.mxu0 %v712
        %899 = vmatpush.msra.mxu0 %v705
        %900 = vmatmul.f32.gmra.mxu0 %v742
        %v901 = vpop.f32.mrf.mxu0
        %v902 = vadd.f32 %v733, %v901
        %903 = vmatmul.f32.gmra.mxu0 %v745
        %v904 = vpop.f32.mrf.mxu0
        %v905 = vadd.f32 %v738, %v904
        %906 = vdwg.mxu0
        %907 = vmatpush.msra.mxu0 0.0
        %908 = vmatpush.msra.mxu0 0.0
        %909 = vmatpush.msra.mxu0 0.0
        %910 = vmatpush.msra.mxu0 0.0
        %911 = vmatpush.msra.mxu0 0.0
        %912 = vmatpush.msra.mxu0 0.0
        %913 = vmatpush.msra.mxu0 0.0
        %914 = vmatpush.msra.mxu0 0.0
        %915 = vmatpush.msra.mxu0 0.0
        %916 = vmatpush.msra.mxu0 0.0
        %917 = vmatpush.msra.mxu0 0.0
        %918 = vmatpush.msra.mxu0 0.0
        %919 = vmatpush.msra.mxu0 %v767
        %920 = vmatpush.msra.mxu0 %v720
        %921 = vmatpush.msra.mxu0 %v713
        %922 = vmatpush.msra.mxu0 %v706
        %923 = vmatmul.f32.gmra.mxu0 %v742
        %v924 = vpop.f32.mrf.mxu0
        %v925 = vadd.f32 %v733, %v924
        %926 = vmatmul.f32.gmra.mxu0 %v745
        %v927 = vpop.f32.mrf.mxu0
        %v928 = vadd.f32 %v738, %v927
        %929 = vdwg.mxu0
        %v930 = vmax.f32 %v787, 0.0
        %v931 = vmax.f32 %v810, 0.0
        %v932 = vmax.f32 %v833, 0.0
        %v933 = vmax.f32 %v856, 0.0
        %v934 = vmax.f32 %v879, 0.0
        %v935 = vmax.f32 %v902, 0.0
        %v936 = vmax.f32 %v925, 0.0
        %v937 = vmax.f32 %v790, 0.0
        %v938 = vmax.f32 %v813, 0.0
        %v939 = vmax.f32 %v836, 0.0
        %v940 = vmax.f32 %v859, 0.0
        %v941 = vmax.f32 %v882, 0.0
        %v942 = vmax.f32 %v905, 0.0
        %v943 = vmax.f32 %v928, 0.0
        %958 = vrot.lane.b32.xlu0 %v930, 127
        %v959 = vpop.permute.xlu0 %958
        %960 = vrot.lane.b32.xlu0 %v931, 127
        %v961 = vpop.permute.xlu0 %960
        %962 = vrot.lane.b32.xlu0 %v932, 127
        %v963 = vpop.permute.xlu0 %962
        %964 = vrot.lane.b32.xlu0 %v933, 127
        %v965 = vpop.permute.xlu0 %964
        %966 = vrot.lane.b32.xlu0 %v934, 127
        %v967 = vpop.permute.xlu0 %966
        %968 = vrot.lane.b32.xlu0 %v935, 127
        %v969 = vpop.permute.xlu0 %968
        %970 = vrot.lane.b32.xlu0 %v936, 127
        %v971 = vpop.permute.xlu0 %970
        %972 = vrot.lane.b32.xlu0 %v937, 127
        %v973 = vpop.permute.xlu0 %972
        %974 = vrot.lane.b32.xlu0 %v938, 127
        %v975 = vpop.permute.xlu0 %974
        %976 = vrot.lane.b32.xlu0 %v939, 127
        %v977 = vpop.permute.xlu0 %976
        %978 = vrot.lane.b32.xlu0 %v940, 127
        %v979 = vpop.permute.xlu0 %978
        %980 = vrot.lane.b32.xlu0 %v941, 127
        %v981 = vpop.permute.xlu0 %980
        %982 = vrot.lane.b32.xlu0 %v942, 127
        %v983 = vpop.permute.xlu0 %982
        %984 = vrot.lane.b32.xlu0 %v943, 127
        %v985 = vpop.permute.xlu0 %984
        %v986 = vsel %vm450, %v959, %v961
        %v987 = vsel %vm450, %v961, %v963
        %v988 = vsel %vm450, %v963, %v965
        %v989 = vsel %vm450, %v965, %v967
        %v990 = vsel %vm450, %v967, %v969
        %v991 = vsel %vm450, %v969, %v971
        %v992 = vsel %vm450, %v973, %v975
        %v993 = vsel %vm450, %v975, %v977
        %v994 = vsel %vm450, %v977, %v979
        %v995 = vsel %vm450, %v979, %v981
        %v996 = vsel %vm450, %v981, %v983
        %v997 = vsel %vm450, %v983, %v985
        %v1012 = vmax.f32 %v930, %v986
        %v1013 = vmax.f32 %v931, %v987
        %v1014 = vmax.f32 %v932, %v988
        %v1015 = vmax.f32 %v933, %v989
        %v1016 = vmax.f32 %v934, %v990
        %v1017 = vmax.f32 %v935, %v991
        %v1018 = vmax.f32 %v936, %v971
        %v1019 = vmax.f32 %v937, %v992
        %v1020 = vmax.f32 %v938, %v993
        %v1021 = vmax.f32 %v939, %v994
        %v1022 = vmax.f32 %v940, %v995
        %v1023 = vmax.f32 %v941, %v996
        %v1024 = vmax.f32 %v942, %v997
        %v1025 = vmax.f32 %v943, %v985
        %1040 = vrot.lane.b32.xlu0 %v1012, 96
        %v1041 = vpop.permute.xlu0 %1040
        %1042 = vrot.lane.b32.xlu0 %v1013, 96
        %v1043 = vpop.permute.xlu0 %1042
        %1044 = vrot.lane.b32.xlu0 %v1014, 96
        %v1045 = vpop.permute.xlu0 %1044
        %1046 = vrot.lane.b32.xlu0 %v1015, 96
        %v1047 = vpop.permute.xlu0 %1046
        %1048 = vrot.lane.b32.xlu0 %v1016, 96
        %v1049 = vpop.permute.xlu0 %1048
        %1050 = vrot.lane.b32.xlu0 %v1017, 96
        %v1051 = vpop.permute.xlu0 %1050
        %1052 = vrot.lane.b32.xlu0 %v1018, 96
        %v1053 = vpop.permute.xlu0 %1052
        %1054 = vrot.lane.b32.xlu0 %v1019, 96
        %v1055 = vpop.permute.xlu0 %1054
        %1056 = vrot.lane.b32.xlu0 %v1020, 96
        %v1057 = vpop.permute.xlu0 %1056
        %1058 = vrot.lane.b32.xlu0 %v1021, 96
        %v1059 = vpop.permute.xlu0 %1058
        %1060 = vrot.lane.b32.xlu0 %v1022, 96
        %v1061 = vpop.permute.xlu0 %1060
        %1062 = vrot.lane.b32.xlu0 %v1023, 96
        %v1063 = vpop.permute.xlu0 %1062
        %1064 = vrot.lane.b32.xlu0 %v1024, 96
        %v1065 = vpop.permute.xlu0 %1064
        %1066 = vrot.lane.b32.xlu0 %v1025, 96
        %v1067 = vpop.permute.xlu0 %1066
        %v1068 = vsel %vm494, %v1041, %v1043
        %v1069 = vsel %vm494, %v1043, %v1045
        %v1070 = vsel %vm494, %v1045, %v1047
        %v1071 = vsel %vm494, %v1047, %v1049
        %v1072 = vsel %vm494, %v1049, %v1051
        %v1073 = vsel %vm494, %v1051, %v1053
        %v1074 = vsel %vm494, %v1055, %v1057
        %v1075 = vsel %vm494, %v1057, %v1059
        %v1076 = vsel %vm494, %v1059, %v1061
        %v1077 = vsel %vm494, %v1061, %v1063
        %v1078 = vsel %vm494, %v1063, %v1065
        %v1079 = vsel %vm494, %v1065, %v1067
        %v1094 = vmax.f32 %v1012, %v1068
        %v1095 = vmax.f32 %v1013, %v1069
        %v1096 = vmax.f32 %v1014, %v1070
        %v1097 = vmax.f32 %v1015, %v1071
        %v1098 = vmax.f32 %v1016, %v1072
        %v1099 = vmax.f32 %v1017, %v1073
        %v1100 = vmax.f32 %v1018, %v1053
        %v1101 = vmax.f32 %v1019, %v1074
        %v1102 = vmax.f32 %v1020, %v1075
        %v1103 = vmax.f32 %v1021, %v1076
        %v1104 = vmax.f32 %v1022, %v1077
        %v1105 = vmax.f32 %v1023, %v1078
        %v1106 = vmax.f32 %v1024, %v1079
        %v1107 = vmax.f32 %v1025, %v1067
        %v1108 = vsel %vm431, 1, 0
        %v1109 = vsel %vm432, 1, 0
        %v1110 = vsel %vm433, 1, 0
        %v1111 = vsel %vm434, 1, 0
        %v1112 = vsel %vm435, 1, 0
        %v1113 = vsel %vm436, 1, 0
        %v1114 = vsel %vm437, 1, 0
        %vm1115 = vcmp.eq.s32.totalorder %v1108, 1
        %vm1116 = vcmp.eq.s32.totalorder %v1109, 1
        %vm1117 = vcmp.eq.s32.totalorder %v1110, 1
        %vm1118 = vcmp.eq.s32.totalorder %v1111, 1
        %vm1119 = vcmp.eq.s32.totalorder %v1112, 1
        %vm1120 = vcmp.eq.s32.totalorder %v1113, 1
        %vm1121 = vcmp.eq.s32.totalorder %v1114, 1
        %v1122 = vsel %vm1115, %v1094, 0.0
        %v1123 = vsel %vm1116, %v1095, 0.0
        %v1124 = vsel %vm1117, %v1096, 0.0
        %v1125 = vsel %vm1118, %v1097, 0.0
        %v1126 = vsel %vm1119, %v1098, 0.0
        %v1127 = vsel %vm1120, %v1099, 0.0
        %v1128 = vsel %vm1121, %v1100, 0.0
        %v1129 = vsel %vm1115, %v1101, 0.0
        %v1130 = vsel %vm1116, %v1102, 0.0
        %v1131 = vsel %vm1117, %v1103, 0.0
        %v1132 = vsel %vm1118, %v1104, 0.0
        %v1133 = vsel %vm1119, %v1105, 0.0
        %v1134 = vsel %vm1120, %v1106, 0.0
        %v1135 = vsel %vm1121, %v1107, 0.0
        %v1136 = vpack.c.bf16 %v1123, %v1122
        %v1137 = vpack.c.bf16 %v1125, %v1124
        %v1138 = vpack.c.bf16 %v1127, %v1126
        %v1139 = vpack.c.bf16 %v1128, %v1128
        %v1140 = vpack.c.bf16 %v1130, %v1129
        %v1141 = vpack.c.bf16 %v1132, %v1131
        %v1142 = vpack.c.bf16 %v1134, %v1133
        %v1143 = vpack.c.bf16 %v1135, %v1135
        %1144 = vst [vmem:[#allocation3] sm:$0xff] 0
        %1145 = vst [vmem:[#allocation3 + $0x28] sm:$0xff] 0
        %1146 = vst [vmem:[#allocation3 + $0x20] sm:$0xff] 0
        %1147 = vst [vmem:[#allocation3 + $0x48] sm:$0xff] 0
        %1148 = vst [vmem:[#allocation3 + $0x8] sm:$0xff] %v1136
        %1149 = vst [vmem:[#allocation3 + $0x10] sm:$0xff] %v1137
        %1150 = vst [vmem:[#allocation3 + $0x18] sm:$0xff] %v1138
        %vm1151 = vcmask 773120
        %1152 = vst.msk [vmem:[#allocation3 + $0x20] sm:$0xf] %vm1151, %v1139
        %1153 = vst [vmem:[#allocation3 + $0x30] sm:$0xff] %v1140
        %1154 = vst [vmem:[#allocation3 + $0x38] sm:$0xff] %v1141
        %1155 = vst [vmem:[#allocation3 + $0x40] sm:$0xff] %v1142
        %1156 = vst.msk [vmem:[#allocation3 + $0x48] sm:$0xf] %vm1151, %v1143
        %v1157 = vld [vmem:[#allocation3] sm:$0xff]
        %v1158 = vld [vmem:[#allocation3 + $0x8] sm:$0xff]
        %v1159 = vld [vmem:[#allocation3 + $0x10] sm:$0xff]
        %v1160 = vld [vmem:[#allocation3 + $0x18] sm:$0xff]
        %v1161 = vld [vmem:[#allocation3 + $0x28] sm:$0xff]
        %v1162 = vld [vmem:[#allocation3 + $0x30] sm:$0xff]
        %v1163 = vld [vmem:[#allocation3 + $0x38] sm:$0xff]
        %v1164 = vld [vmem:[#allocation3 + $0x40] sm:$0xff]
        %1173 = vrot.lane.b32.xlu0 %v1157, 4
        %v1174 = vpop.permute.xlu0 %1173
        %1175 = vrot.lane.b32.xlu0 %v1158, 4
        %v1176 = vpop.permute.xlu0 %1175
        %1177 = vrot.lane.b32.xlu0 %v1159, 4
        %v1178 = vpop.permute.xlu0 %1177
        %1179 = vrot.lane.b32.xlu0 %v1160, 4
        %v1180 = vpop.permute.xlu0 %1179
        %1181 = vrot.lane.b32.xlu0 %v1161, 4
        %v1182 = vpop.permute.xlu0 %1181
        %1183 = vrot.lane.b32.xlu0 %v1162, 4
        %v1184 = vpop.permute.xlu0 %1183
        %1185 = vrot.lane.b32.xlu0 %v1163, 4
        %v1186 = vpop.permute.xlu0 %1185
        %1187 = vrot.lane.b32.xlu0 %v1164, 4
        %v1188 = vpop.permute.xlu0 %1187
        %v1189 = vrot.slane %v1174, 4
        %v1190 = vrot.slane %v1176, 4
        %v1191 = vrot.slane %v1178, 4
        %v1192 = vrot.slane %v1180, 4
        %v1193 = vrot.slane %v1182, 4
        %v1194 = vrot.slane %v1184, 4
        %v1195 = vrot.slane %v1186, 4
        %v1196 = vrot.slane %v1188, 4
        %vm1197 = vcmask 1043456
        %v1198 = vsel %vm1197, %v1189, %v1190
        %vm1199 = vcmask 31744
        %v1200 = vsel %vm1199, %v1174, %v1198
        %v1201 = vsel %vm1197, %v1190, %v1191
        %v1202 = vsel %vm1199, %v1176, %v1201
        %v1203 = vsel %vm1197, %v1191, %v1192
        %v1204 = vsel %vm1199, %v1178, %v1203
        %v1205 = vsel %vm1199, %v1180, %v1192
        %v1206 = vsel %vm1197, %v1193, %v1194
        %v1207 = vsel %vm1199, %v1182, %v1206
        %v1208 = vsel %vm1197, %v1194, %v1195
        %v1209 = vsel %vm1199, %v1184, %v1208
        %v1210 = vsel %vm1197, %v1195, %v1196
        %v1211 = vsel %vm1199, %v1186, %v1210
        %v1212 = vsel %vm1199, %v1188, %v1196
        %1221 = vst [vmem:[#allocation4] sm:$0xff] %v1200
        %1222 = vst [vmem:[#allocation4 + $0x8] sm:$0xff] %v1202
        %1223 = vst [vmem:[#allocation4 + $0x10] sm:$0xff] %v1204
        %vm1224 = vcmask 781312
        %1225 = vst.msk [vmem:[#allocation4 + $0x18] sm:$0xf] %vm1224, %v1205
        %1226 = vst [vmem:[#allocation4 + $0x1c] sm:$0xff] %v1207
        %1227 = vst [vmem:[#allocation4 + $0x24] sm:$0xff] %v1209
        %1228 = vst [vmem:[#allocation4 + $0x2c] sm:$0xff] %v1211
        %1229 = vst.msk [vmem:[#allocation4 + $0x34] sm:$0xf] %vm1224, %v1212
        %v1230 = vld [vmem:[#allocation3] sm:$0xff]
        %v1231 = vld [vmem:[#allocation3 + $0x8] sm:$0xff]
        %v1232 = vld [vmem:[#allocation3 + $0x10] sm:$0xff]
        %v1233 = vld [vmem:[#allocation3 + $0x18] sm:$0xff]
        %v1234 = vld [vmem:[#allocation3 + $0x28] sm:$0xff]
        %v1235 = vld [vmem:[#allocation3 + $0x30] sm:$0xff]
        %v1236 = vld [vmem:[#allocation3 + $0x38] sm:$0xff]
        %v1237 = vld [vmem:[#allocation3 + $0x40] sm:$0xff]
        %1246 = vrot.lane.b32.xlu0 %v1230, 2
        %v1247 = vpop.permute.xlu0 %1246
        %1248 = vrot.lane.b32.xlu0 %v1231, 2
        %v1249 = vpop.permute.xlu0 %1248
        %1250 = vrot.lane.b32.xlu0 %v1232, 2
        %v1251 = vpop.permute.xlu0 %1250
        %1252 = vrot.lane.b32.xlu0 %v1233, 2
        %v1253 = vpop.permute.xlu0 %1252
        %1254 = vrot.lane.b32.xlu0 %v1234, 2
        %v1255 = vpop.permute.xlu0 %1254
        %1256 = vrot.lane.b32.xlu0 %v1235, 2
        %v1257 = vpop.permute.xlu0 %1256
        %1258 = vrot.lane.b32.xlu0 %v1236, 2
        %v1259 = vpop.permute.xlu0 %1258
        %1260 = vrot.lane.b32.xlu0 %v1237, 2
        %v1261 = vpop.permute.xlu0 %1260
        %v1262 = vrot.slane %v1247, 4
        %v1263 = vrot.slane %v1249, 4
        %v1264 = vrot.slane %v1251, 4
        %v1265 = vrot.slane %v1253, 4
        %v1266 = vrot.slane %v1255, 4
        %v1267 = vrot.slane %v1257, 4
        %v1268 = vrot.slane %v1259, 4
        %v1269 = vrot.slane %v1261, 4
        %v1270 = vsel %vm1197, %v1262, %v1263
        %vm1271 = vcmask 15360
        %v1272 = vsel %vm1271, %v1247, %v1270
        %v1273 = vsel %vm1197, %v1263, %v1264
        %v1274 = vsel %vm1271, %v1249, %v1273
        %v1275 = vsel %vm1197, %v1264, %v1265
        %v1276 = vsel %vm1271, %v1251, %v1275
        %v1277 = vsel %vm1271, %v1253, %v1265
        %v1278 = vsel %vm1197, %v1266, %v1267
        %v1279 = vsel %vm1271, %v1255, %v1278
        %v1280 = vsel %vm1197, %v1267, %v1268
        %v1281 = vsel %vm1271, %v1257, %v1280
        %v1282 = vsel %vm1197, %v1268, %v1269
        %v1283 = vsel %vm1271, %v1259, %v1282
        %v1284 = vsel %vm1271, %v1261, %v1269
        %1293 = vst [vmem:[#allocation4 + $0x38] sm:$0xff] %v1272
        %1294 = vst [vmem:[#allocation4 + $0x40] sm:$0xff] %v1274
        %1295 = vst [vmem:[#allocation4 + $0x48] sm:$0xff] %v1276
        %1296 = vst.msk [vmem:[#allocation4 + $0x50] sm:$0xf] %vm1224, %v1277
        %1297 = vst [vmem:[#allocation4 + $0x54] sm:$0xff] %v1279
        %1298 = vst [vmem:[#allocation4 + $0x5c] sm:$0xff] %v1281
        %1299 = vst [vmem:[#allocation4 + $0x64] sm:$0xff] %v1283
        %1300 = vst.msk [vmem:[#allocation4 + $0x6c] sm:$0xf] %vm1224, %v1284
        %v1301 = vld [vmem:[#allocation3 + $0x4] sm:$0xff]
        %v1302 = vld [vmem:[#allocation3 + $0xc] sm:$0xff]
        %v1303 = vld [vmem:[#allocation3 + $0x14] sm:$0xff]
        %v1304 = vld [vmem:[#allocation3 + $0x1c] sm:$0xf]
        %v1305 = vld [vmem:[#allocation3 + $0x2c] sm:$0xff]
        %v1306 = vld [vmem:[#allocation3 + $0x34] sm:$0xff]
        %v1307 = vld [vmem:[#allocation3 + $0x3c] sm:$0xff]
        %v1308 = vld [vmem:[#allocation3 + $0x44] sm:$0xf]
        %1309 = vst [vmem:[#allocation4 + $0x70] sm:$0xff] %v1301
        %1310 = vst [vmem:[#allocation4 + $0x78] sm:$0xff] %v1302
        %1311 = vst [vmem:[#allocation4 + $0x80] sm:$0xff] %v1303
        %1312 = vst.msk [vmem:[#allocation4 + $0x88] sm:$0xf] %vm1224, %v1304
        %1313 = vst [vmem:[#allocation4 + $0x8c] sm:$0xff] %v1305
        %1314 = vst [vmem:[#allocation4 + $0x94] sm:$0xff] %v1306
        %1315 = vst [vmem:[#allocation4 + $0x9c] sm:$0xff] %v1307
        %1316 = vst.msk [vmem:[#allocation4 + $0xa4] sm:$0xf] %vm1224, %v1308
        %v1317 = vld [vmem:[#allocation3 + $0x4] sm:$0xff]
        %v1318 = vld [vmem:[#allocation3 + $0xc] sm:$0xff]
        %v1319 = vld [vmem:[#allocation3 + $0x14] sm:$0xff]
        %v1320 = vld [vmem:[#allocation3 + $0x1c] sm:$0xf]
        %v1321 = vld [vmem:[#allocation3 + $0x2c] sm:$0xff]
        %v1322 = vld [vmem:[#allocation3 + $0x34] sm:$0xff]
        %v1323 = vld [vmem:[#allocation3 + $0x3c] sm:$0xff]
        %v1324 = vld [vmem:[#allocation3 + $0x44] sm:$0xf]
        %1333 = vrot.lane.b32.xlu0 %v1317, 126
        %v1334 = vpop.permute.xlu0 %1333
        %1335 = vrot.lane.b32.xlu0 %v1318, 126
        %v1336 = vpop.permute.xlu0 %1335
        %1337 = vrot.lane.b32.xlu0 %v1319, 126
        %v1338 = vpop.permute.xlu0 %1337
        %1339 = vrot.lane.b32.xlu0 %v1320, 126
        %v1340 = vpop.permute.xlu0 %1339
        %1341 = vrot.lane.b32.xlu0 %v1321, 126
        %v1342 = vpop.permute.xlu0 %1341
        %1343 = vrot.lane.b32.xlu0 %v1322, 126
        %v1344 = vpop.permute.xlu0 %1343
        %1345 = vrot.lane.b32.xlu0 %v1323, 126
        %v1346 = vpop.permute.xlu0 %1345
        %1347 = vrot.lane.b32.xlu0 %v1324, 126
        %v1348 = vpop.permute.xlu0 %1347
        %v1349 = vrot.slane %v1334, 4
        %v1350 = vrot.slane %v1336, 4
        %v1351 = vrot.slane %v1338, 4
        %v1352 = vrot.slane %v1340, 4
        %v1353 = vrot.slane %v1342, 4
        %v1354 = vrot.slane %v1344, 4
        %v1355 = vrot.slane %v1346, 4
        %v1356 = vrot.slane %v1348, 4
        %v1357 = vsel %vm1197, %v1349, %v1350
        %vm1358 = vcmask 1031168
        %v1359 = vsel %vm1358, %v1334, %v1357
        %v1360 = vsel %vm1197, %v1350, %v1351
        %v1361 = vsel %vm1358, %v1336, %v1360
        %v1362 = vsel %vm1197, %v1351, %v1352
        %v1363 = vsel %vm1358, %v1338, %v1362
        %v1364 = vsel %vm1197, %v1353, %v1354
        %v1365 = vsel %vm1358, %v1342, %v1364
        %v1366 = vsel %vm1197, %v1354, %v1355
        %v1367 = vsel %vm1358, %v1344, %v1366
        %v1368 = vsel %vm1197, %v1355, %v1356
        %v1369 = vsel %vm1358, %v1346, %v1368
        %1378 = vst [vmem:[#allocation4 + $0xa8] sm:$0xff] %v1359
        %1379 = vst [vmem:[#allocation4 + $0xb0] sm:$0xff] %v1361
        %1380 = vst [vmem:[#allocation4 + $0xb8] sm:$0xff] %v1363
        %1381 = vst.msk [vmem:[#allocation4 + $0xc0] sm:$0xf] %vm1224, %v1340
        %1382 = vst [vmem:[#allocation4 + $0xc4] sm:$0xff] %v1365
        %1383 = vst [vmem:[#allocation4 + $0xcc] sm:$0xff] %v1367
        %1384 = vst [vmem:[#allocation4 + $0xd4] sm:$0xff] %v1369
        %1385 = vst.msk [vmem:[#allocation4 + $0xdc] sm:$0xf] %vm1224, %v1348
        %v1386 = vld [vmem:[#allocation3 + $0x4] sm:$0xff]
        %v1387 = vld [vmem:[#allocation3 + $0xc] sm:$0xff]
        %v1388 = vld [vmem:[#allocation3 + $0x14] sm:$0xff]
        %v1389 = vld [vmem:[#allocation3 + $0x1c] sm:$0xf]
        %v1390 = vld [vmem:[#allocation3 + $0x2c] sm:$0xff]
        %v1391 = vld [vmem:[#allocation3 + $0x34] sm:$0xff]
        %v1392 = vld [vmem:[#allocation3 + $0x3c] sm:$0xff]
        %v1393 = vld [vmem:[#allocation3 + $0x44] sm:$0xf]
        %1402 = vrot.lane.b32.xlu0 %v1386, 124
        %v1403 = vpop.permute.xlu0 %1402
        %1404 = vrot.lane.b32.xlu0 %v1387, 124
        %v1405 = vpop.permute.xlu0 %1404
        %1406 = vrot.lane.b32.xlu0 %v1388, 124
        %v1407 = vpop.permute.xlu0 %1406
        %1408 = vrot.lane.b32.xlu0 %v1389, 124
        %v1409 = vpop.permute.xlu0 %1408
        %1410 = vrot.lane.b32.xlu0 %v1390, 124
        %v1411 = vpop.permute.xlu0 %1410
        %1412 = vrot.lane.b32.xlu0 %v1391, 124
        %v1413 = vpop.permute.xlu0 %1412
        %1414 = vrot.lane.b32.xlu0 %v1392, 124
        %v1415 = vpop.permute.xlu0 %1414
        %1416 = vrot.lane.b32.xlu0 %v1393, 124
        %v1417 = vpop.permute.xlu0 %1416
        %v1418 = vrot.slane %v1403, 4
        %v1419 = vrot.slane %v1405, 4
        %v1420 = vrot.slane %v1407, 4
        %v1421 = vrot.slane %v1409, 4
        %v1422 = vrot.slane %v1411, 4
        %v1423 = vrot.slane %v1413, 4
        %v1424 = vrot.slane %v1415, 4
        %v1425 = vrot.slane %v1417, 4
        %v1426 = vsel %vm1197, %v1418, %v1419
        %vm1427 = vcmask 1014784
        %v1428 = vsel %vm1427, %v1403, %v1426
        %v1429 = vsel %vm1197, %v1419, %v1420
        %v1430 = vsel %vm1427, %v1405, %v1429
        %v1431 = vsel %vm1197, %v1420, %v1421
        %v1432 = vsel %vm1427, %v1407, %v1431
        %v1433 = vsel %vm1197, %v1422, %v1423
        %v1434 = vsel %vm1427, %v1411, %v1433
        %v1435 = vsel %vm1197, %v1423, %v1424
        %v1436 = vsel %vm1427, %v1413, %v1435
        %v1437 = vsel %vm1197, %v1424, %v1425
        %v1438 = vsel %vm1427, %v1415, %v1437
        %1447 = vst [vmem:[#allocation4 + $0xe0] sm:$0xff] %v1428
        %1448 = vst [vmem:[#allocation4 + $0xe8] sm:$0xff] %v1430
        %1449 = vst [vmem:[#allocation4 + $0xf0] sm:$0xff] %v1432
        %1450 = vst.msk [vmem:[#allocation4 + $0xf8] sm:$0xf] %vm1224, %v1409
        %1451 = vst [vmem:[#allocation4 + $0xfc] sm:$0xff] %v1434
        %1452 = vst [vmem:[#allocation4 + $0x104] sm:$0xff] %v1436
        %1453 = vst [vmem:[#allocation4 + $0x10c] sm:$0xff] %v1438
        %1454 = vst.msk [vmem:[#allocation4 + $0x114] sm:$0xf] %vm1224, %v1417
        %v1455 = vld [vmem:[#allocation3 + $0x4] sm:$0xff]
        %v1456 = vld [vmem:[#allocation3 + $0xc] sm:$0xff]
        %v1457 = vld [vmem:[#allocation3 + $0x14] sm:$0xff]
        %v1458 = vld [vmem:[#allocation3 + $0x1c] sm:$0xff]
        %v1459 = vld [vmem:[#allocation3 + $0x2c] sm:$0xff]
        %v1460 = vld [vmem:[#allocation3 + $0x34] sm:$0xff]
        %v1461 = vld [vmem:[#allocation3 + $0x3c] sm:$0xff]
        %v1462 = vld [vmem:[#allocation3 + $0x44] sm:$0xff]
        %1471 = vrot.lane.b32.xlu0 %v1455, 68
        %v1472 = vpop.permute.xlu0 %1471
        %1473 = vrot.lane.b32.xlu0 %v1456, 68
        %v1474 = vpop.permute.xlu0 %1473
        %1475 = vrot.lane.b32.xlu0 %v1457, 68
        %v1476 = vpop.permute.xlu0 %1475
        %1477 = vrot.lane.b32.xlu0 %v1458, 68
        %v1478 = vpop.permute.xlu0 %1477
        %1479 = vrot.lane.b32.xlu0 %v1459, 68
        %v1480 = vpop.permute.xlu0 %1479
        %1481 = vrot.lane.b32.xlu0 %v1460, 68
        %v1482 = vpop.permute.xlu0 %1481
        %1483 = vrot.lane.b32.xlu0 %v1461, 68
        %v1484 = vpop.permute.xlu0 %1483
        %1485 = vrot.lane.b32.xlu0 %v1462, 68
        %v1486 = vpop.permute.xlu0 %1485
        %v1487 = vrot.slane %v1472, 4
        %v1488 = vrot.slane %v1474, 4
        %v1489 = vrot.slane %v1476, 4
        %v1490 = vrot.slane %v1478, 4
        %v1491 = vrot.slane %v1480, 4
        %v1492 = vrot.slane %v1482, 4
        %v1493 = vrot.slane %v1484, 4
        %v1494 = vrot.slane %v1486, 4
        %v1495 = vsel %vm1197, %v1487, %v1488
        %vm1496 = vcmask 556032
        %v1497 = vsel %vm1496, %v1472, %v1495
        %v1498 = vsel %vm1197, %v1488, %v1489
        %v1499 = vsel %vm1496, %v1474, %v1498
        %v1500 = vsel %vm1197, %v1489, %v1490
        %v1501 = vsel %vm1496, %v1476, %v1500
        %v1502 = vsel %vm1496, %v1478, %v1490
        %v1503 = vsel %vm1197, %v1491, %v1492
        %v1504 = vsel %vm1496, %v1480, %v1503
        %v1505 = vsel %vm1197, %v1492, %v1493
        %v1506 = vsel %vm1496, %v1482, %v1505
        %v1507 = vsel %vm1197, %v1493, %v1494
        %v1508 = vsel %vm1496, %v1484, %v1507
        %v1509 = vsel %vm1496, %v1486, %v1494
        %1518 = vst [vmem:[#allocation4 + $0x118] sm:$0xff] %v1497
        %1519 = vst [vmem:[#allocation4 + $0x120] sm:$0xff] %v1499
        %1520 = vst [vmem:[#allocation4 + $0x128] sm:$0xff] %v1501
        %1521 = vst.msk [vmem:[#allocation4 + $0x130] sm:$0xf] %vm1224, %v1502
        %1522 = vst [vmem:[#allocation4 + $0x134] sm:$0xff] %v1504
        %1523 = vst [vmem:[#allocation4 + $0x13c] sm:$0xff] %v1506
        %1524 = vst [vmem:[#allocation4 + $0x144] sm:$0xff] %v1508
        %1525 = vst.msk [vmem:[#allocation4 + $0x14c] sm:$0xf] %vm1224, %v1509
        %v1526 = vld [vmem:[#allocation3 + $0x4] sm:$0xff]
        %v1527 = vld [vmem:[#allocation3 + $0xc] sm:$0xff]
        %v1528 = vld [vmem:[#allocation3 + $0x14] sm:$0xff]
        %v1529 = vld [vmem:[#allocation3 + $0x1c] sm:$0xff]
        %v1530 = vld [vmem:[#allocation3 + $0x2c] sm:$0xff]
        %v1531 = vld [vmem:[#allocation3 + $0x34] sm:$0xff]
        %v1532 = vld [vmem:[#allocation3 + $0x3c] sm:$0xff]
        %v1533 = vld [vmem:[#allocation3 + $0x44] sm:$0xff]
        %1542 = vrot.lane.b32.xlu0 %v1526, 66
        %v1543 = vpop.permute.xlu0 %1542
        %1544 = vrot.lane.b32.xlu0 %v1527, 66
        %v1545 = vpop.permute.xlu0 %1544
        %1546 = vrot.lane.b32.xlu0 %v1528, 66
        %v1547 = vpop.permute.xlu0 %1546
        %1548 = vrot.lane.b32.xlu0 %v1529, 66
        %v1549 = vpop.permute.xlu0 %1548
        %1550 = vrot.lane.b32.xlu0 %v1530, 66
        %v1551 = vpop.permute.xlu0 %1550
        %1552 = vrot.lane.b32.xlu0 %v1531, 66
        %v1553 = vpop.permute.xlu0 %1552
        %1554 = vrot.lane.b32.xlu0 %v1532, 66
        %v1555 = vpop.permute.xlu0 %1554
        %1556 = vrot.lane.b32.xlu0 %v1533, 66
        %v1557 = vpop.permute.xlu0 %1556
        %v1558 = vrot.slane %v1543, 4
        %v1559 = vrot.slane %v1545, 4
        %v1560 = vrot.slane %v1547, 4
        %v1561 = vrot.slane %v1549, 4
        %v1562 = vrot.slane %v1551, 4
        %v1563 = vrot.slane %v1553, 4
        %v1564 = vrot.slane %v1555, 4
        %v1565 = vrot.slane %v1557, 4
        %v1566 = vsel %vm1197, %v1558, %v1559
        %vm1567 = vcmask 539648
        %v1568 = vsel %vm1567, %v1543, %v1566
        %v1569 = vsel %vm1197, %v1559, %v1560
        %v1570 = vsel %vm1567, %v1545, %v1569
        %v1571 = vsel %vm1197, %v1560, %v1561
        %v1572 = vsel %vm1567, %v1547, %v1571
        %v1573 = vsel %vm1567, %v1549, %v1561
        %v1574 = vsel %vm1197, %v1562, %v1563
        %v1575 = vsel %vm1567, %v1551, %v1574
        %v1576 = vsel %vm1197, %v1563, %v1564
        %v1577 = vsel %vm1567, %v1553, %v1576
        %v1578 = vsel %vm1197, %v1564, %v1565
        %v1579 = vsel %vm1567, %v1555, %v1578
        %v1580 = vsel %vm1567, %v1557, %v1565
        %1589 = vst [vmem:[#allocation4 + $0x150] sm:$0xff] %v1568
        %1590 = vst [vmem:[#allocation4 + $0x158] sm:$0xff] %v1570
        %1591 = vst [vmem:[#allocation4 + $0x160] sm:$0xff] %v1572
        %1592 = vst.msk [vmem:[#allocation4 + $0x168] sm:$0xf] %vm1224, %v1573
        %1593 = vst [vmem:[#allocation4 + $0x16c] sm:$0xff] %v1575
        %1594 = vst [vmem:[#allocation4 + $0x174] sm:$0xff] %v1577
        %1595 = vst [vmem:[#allocation4 + $0x17c] sm:$0xff] %v1579
        %1596 = vst.msk [vmem:[#allocation4 + $0x184] sm:$0xf] %vm1224, %v1580
        %v1597 = vld [vmem:[#allocation3 + $0x4] sm:$0xff]
        %v1598 = vld [vmem:[#allocation3 + $0xc] sm:$0xff]
        %v1599 = vld [vmem:[#allocation3 + $0x14] sm:$0xff]
        %v1600 = vld [vmem:[#allocation3 + $0x1c] sm:$0xff]
        %v1601 = vld [vmem:[#allocation3 + $0x2c] sm:$0xff]
        %v1602 = vld [vmem:[#allocation3 + $0x34] sm:$0xff]
        %v1603 = vld [vmem:[#allocation3 + $0x3c] sm:$0xff]
        %v1604 = vld [vmem:[#allocation3 + $0x44] sm:$0xff]
        %1613 = vrot.lane.b32.xlu0 %v1597, 64
        %v1614 = vpop.permute.xlu0 %1613
        %1615 = vrot.lane.b32.xlu0 %v1598, 64
        %v1616 = vpop.permute.xlu0 %1615
        %1617 = vrot.lane.b32.xlu0 %v1599, 64
        %v1618 = vpop.permute.xlu0 %1617
        %1619 = vrot.lane.b32.xlu0 %v1600, 64
        %v1620 = vpop.permute.xlu0 %1619
        %1621 = vrot.lane.b32.xlu0 %v1601, 64
        %v1622 = vpop.permute.xlu0 %1621
        %1623 = vrot.lane.b32.xlu0 %v1602, 64
        %v1624 = vpop.permute.xlu0 %1623
        %1625 = vrot.lane.b32.xlu0 %v1603, 64
        %v1626 = vpop.permute.xlu0 %1625
        %1627 = vrot.lane.b32.xlu0 %v1604, 64
        %v1628 = vpop.permute.xlu0 %1627
        %v1629 = vrot.slane %v1614, 4
        %v1630 = vrot.slane %v1616, 4
        %v1631 = vrot.slane %v1618, 4
        %v1632 = vrot.slane %v1620, 4
        %v1633 = vrot.slane %v1622, 4
        %v1634 = vrot.slane %v1624, 4
        %v1635 = vrot.slane %v1626, 4
        %v1636 = vrot.slane %v1628, 4
        %v1637 = vsel %vm1197, %v1629, %v1630
        %vm1638 = vcmask 523264
        %v1639 = vsel %vm1638, %v1614, %v1637
        %v1640 = vsel %vm1197, %v1630, %v1631
        %v1641 = vsel %vm1638, %v1616, %v1640
        %v1642 = vsel %vm1197, %v1631, %v1632
        %v1643 = vsel %vm1638, %v1618, %v1642
        %v1644 = vsel %vm1638, %v1620, %v1632
        %v1645 = vsel %vm1197, %v1633, %v1634
        %v1646 = vsel %vm1638, %v1622, %v1645
        %v1647 = vsel %vm1197, %v1634, %v1635
        %v1648 = vsel %vm1638, %v1624, %v1647
        %v1649 = vsel %vm1197, %v1635, %v1636
        %v1650 = vsel %vm1638, %v1626, %v1649
        %v1651 = vsel %vm1638, %v1628, %v1636
        %1660 = vst [vmem:[#allocation4 + $0x188] sm:$0xff] %v1639
        %1661 = vst [vmem:[#allocation4 + $0x190] sm:$0xff] %v1641
        %1662 = vst [vmem:[#allocation4 + $0x198] sm:$0xff] %v1643
        %1663 = vst.msk [vmem:[#allocation4 + $0x1a0] sm:$0xf] %vm1224, %v1644
        %1664 = vst [vmem:[#allocation4 + $0x1a4] sm:$0xff] %v1646
        %1665 = vst [vmem:[#allocation4 + $0x1ac] sm:$0xff] %v1648
        %1666 = vst [vmem:[#allocation4 + $0x1b4] sm:$0xff] %v1650
        %1667 = vst.msk [vmem:[#allocation4 + $0x1bc] sm:$0xf] %vm1224, %v1651
        %v1668 = vld [vmem:[#allocation3 + $0x4] sm:$0xff]
        %v1669 = vld [vmem:[#allocation3 + $0xc] sm:$0xff]
        %v1670 = vld [vmem:[#allocation3 + $0x14] sm:$0xff]
        %v1671 = vld [vmem:[#allocation3 + $0x1c] sm:$0xff]
        %v1672 = vld [vmem:[#allocation3 + $0x2c] sm:$0xff]
        %v1673 = vld [vmem:[#allocation3 + $0x34] sm:$0xff]
        %v1674 = vld [vmem:[#allocation3 + $0x3c] sm:$0xff]
        %v1675 = vld [vmem:[#allocation3 + $0x44] sm:$0xff]
        %1684 = vrot.lane.b32.xlu0 %v1668, 62
        %v1685 = vpop.permute.xlu0 %1684
        %1686 = vrot.lane.b32.xlu0 %v1669, 62
        %v1687 = vpop.permute.xlu0 %1686
        %1688 = vrot.lane.b32.xlu0 %v1670, 62
        %v1689 = vpop.permute.xlu0 %1688
        %1690 = vrot.lane.b32.xlu0 %v1671, 62
        %v1691 = vpop.permute.xlu0 %1690
        %1692 = vrot.lane.b32.xlu0 %v1672, 62
        %v1693 = vpop.permute.xlu0 %1692
        %1694 = vrot.lane.b32.xlu0 %v1673, 62
        %v1695 = vpop.permute.xlu0 %1694
        %1696 = vrot.lane.b32.xlu0 %v1674, 62
        %v1697 = vpop.permute.xlu0 %1696
        %1698 = vrot.lane.b32.xlu0 %v1675, 62
        %v1699 = vpop.permute.xlu0 %1698
        %v1700 = vrot.slane %v1685, 4
        %v1701 = vrot.slane %v1687, 4
        %v1702 = vrot.slane %v1689, 4
        %v1703 = vrot.slane %v1691, 4
        %v1704 = vrot.slane %v1693, 4
        %v1705 = vrot.slane %v1695, 4
        %v1706 = vrot.slane %v1697, 4
        %v1707 = vrot.slane %v1699, 4
        %v1708 = vsel %vm1197, %v1700, %v1701
        %vm1709 = vcmask 506880
        %v1710 = vsel %vm1709, %v1685, %v1708
        %v1711 = vsel %vm1197, %v1701, %v1702
        %v1712 = vsel %vm1709, %v1687, %v1711
        %v1713 = vsel %vm1197, %v1702, %v1703
        %v1714 = vsel %vm1709, %v1689, %v1713
        %v1715 = vsel %vm1709, %v1691, %v1703
        %v1716 = vsel %vm1197, %v1704, %v1705
        %v1717 = vsel %vm1709, %v1693, %v1716
        %v1718 = vsel %vm1197, %v1705, %v1706
        %v1719 = vsel %vm1709, %v1695, %v1718
        %v1720 = vsel %vm1197, %v1706, %v1707
        %v1721 = vsel %vm1709, %v1697, %v1720
        %v1722 = vsel %vm1709, %v1699, %v1707
        %1731 = vst [vmem:[#allocation4 + $0x1c0] sm:$0xff] %v1710
        %1732 = vst [vmem:[#allocation4 + $0x1c8] sm:$0xff] %v1712
        %1733 = vst [vmem:[#allocation4 + $0x1d0] sm:$0xff] %v1714
        %1734 = vst.msk [vmem:[#allocation4 + $0x1d8] sm:$0xf] %vm1224, %v1715
        %1735 = vst [vmem:[#allocation4 + $0x1dc] sm:$0xff] %v1717
        %1736 = vst [vmem:[#allocation4 + $0x1e4] sm:$0xff] %v1719
        %1737 = vst [vmem:[#allocation4 + $0x1ec] sm:$0xff] %v1721
        %1738 = vst.msk [vmem:[#allocation4 + $0x1f4] sm:$0xf] %vm1224, %v1722
        %v1739 = vld [vmem:[#allocation3 + $0x4] sm:$0xff]
        %v1740 = vld [vmem:[#allocation3 + $0xc] sm:$0xff]
        %v1741 = vld [vmem:[#allocation3 + $0x14] sm:$0xff]
        %v1742 = vld [vmem:[#allocation3 + $0x1c] sm:$0xff]
        %v1743 = vld [vmem:[#allocation3 + $0x2c] sm:$0xff]
        %v1744 = vld [vmem:[#allocation3 + $0x34] sm:$0xff]
        %v1745 = vld [vmem:[#allocation3 + $0x3c] sm:$0xff]
        %v1746 = vld [vmem:[#allocation3 + $0x44] sm:$0xff]
        %1755 = vrot.lane.b32.xlu0 %v1739, 60
        %v1756 = vpop.permute.xlu0 %1755
        %1757 = vrot.lane.b32.xlu0 %v1740, 60
        %v1758 = vpop.permute.xlu0 %1757
        %1759 = vrot.lane.b32.xlu0 %v1741, 60
        %v1760 = vpop.permute.xlu0 %1759
        %1761 = vrot.lane.b32.xlu0 %v1742, 60
        %v1762 = vpop.permute.xlu0 %1761
        %1763 = vrot.lane.b32.xlu0 %v1743, 60
        %v1764 = vpop.permute.xlu0 %1763
        %1765 = vrot.lane.b32.xlu0 %v1744, 60
        %v1766 = vpop.permute.xlu0 %1765
        %1767 = vrot.lane.b32.xlu0 %v1745, 60
        %v1768 = vpop.permute.xlu0 %1767
        %1769 = vrot.lane.b32.xlu0 %v1746, 60
        %v1770 = vpop.permute.xlu0 %1769
        %v1771 = vrot.slane %v1756, 4
        %v1772 = vrot.slane %v1758, 4
        %v1773 = vrot.slane %v1760, 4
        %v1774 = vrot.slane %v1762, 4
        %v1775 = vrot.slane %v1764, 4
        %v1776 = vrot.slane %v1766, 4
        %v1777 = vrot.slane %v1768, 4
        %v1778 = vrot.slane %v1770, 4
        %v1779 = vsel %vm1197, %v1771, %v1772
        %vm1780 = vcmask 490496
        %v1781 = vsel %vm1780, %v1756, %v1779
        %v1782 = vsel %vm1197, %v1772, %v1773
        %v1783 = vsel %vm1780, %v1758, %v1782
        %v1784 = vsel %vm1197, %v1773, %v1774
        %v1785 = vsel %vm1780, %v1760, %v1784
        %v1786 = vsel %vm1780, %v1762, %v1774
        %v1787 = vsel %vm1197, %v1775, %v1776
        %v1788 = vsel %vm1780, %v1764, %v1787
        %v1789 = vsel %vm1197, %v1776, %v1777
        %v1790 = vsel %vm1780, %v1766, %v1789
        %v1791 = vsel %vm1197, %v1777, %v1778
        %v1792 = vsel %vm1780, %v1768, %v1791
        %v1793 = vsel %vm1780, %v1770, %v1778
        %1802 = vst [vmem:[#allocation4 + $0x1f8] sm:$0xff] %v1781
        %1803 = vst [vmem:[#allocation4 + $0x200] sm:$0xff] %v1783
        %1804 = vst [vmem:[#allocation4 + $0x208] sm:$0xff] %v1785
        %1805 = vst.msk [vmem:[#allocation4 + $0x210] sm:$0xf] %vm1224, %v1786
        %1806 = vst [vmem:[#allocation4 + $0x214] sm:$0xff] %v1788
        %1807 = vst [vmem:[#allocation4 + $0x21c] sm:$0xff] %v1790
        %1808 = vst [vmem:[#allocation4 + $0x224] sm:$0xff] %v1792
        %1809 = vst.msk [vmem:[#allocation4 + $0x22c] sm:$0xf] %vm1224, %v1793
        %v1810 = vld [vmem:[#allocation3 + $0x4] sm:$0xff]
        %v1811 = vld [vmem:[#allocation3 + $0xc] sm:$0xff]
        %v1812 = vld [vmem:[#allocation3 + $0x14] sm:$0xff]
        %v1813 = vld [vmem:[#allocation3 + $0x1c] sm:$0xff]
        %v1814 = vld [vmem:[#allocation3 + $0x2c] sm:$0xff]
        %v1815 = vld [vmem:[#allocation3 + $0x34] sm:$0xff]
        %v1816 = vld [vmem:[#allocation3 + $0x3c] sm:$0xff]
        %v1817 = vld [vmem:[#allocation3 + $0x44] sm:$0xff]
        %1826 = vrot.lane.b32.xlu0 %v1810, 4
        %v1827 = vpop.permute.xlu0 %1826
        %1828 = vrot.lane.b32.xlu0 %v1811, 4
        %v1829 = vpop.permute.xlu0 %1828
        %1830 = vrot.lane.b32.xlu0 %v1812, 4
        %v1831 = vpop.permute.xlu0 %1830
        %1832 = vrot.lane.b32.xlu0 %v1813, 4
        %v1833 = vpop.permute.xlu0 %1832
        %1834 = vrot.lane.b32.xlu0 %v1814, 4
        %v1835 = vpop.permute.xlu0 %1834
        %1836 = vrot.lane.b32.xlu0 %v1815, 4
        %v1837 = vpop.permute.xlu0 %1836
        %1838 = vrot.lane.b32.xlu0 %v1816, 4
        %v1839 = vpop.permute.xlu0 %1838
        %1840 = vrot.lane.b32.xlu0 %v1817, 4
        %v1841 = vpop.permute.xlu0 %1840
        %v1842 = vrot.slane %v1827, 4
        %v1843 = vrot.slane %v1829, 4
        %v1844 = vrot.slane %v1831, 4
        %v1845 = vrot.slane %v1833, 4
        %v1846 = vrot.slane %v1835, 4
        %v1847 = vrot.slane %v1837, 4
        %v1848 = vrot.slane %v1839, 4
        %v1849 = vrot.slane %v1841, 4
        %v1850 = vsel %vm1197, %v1842, %v1843
        %v1851 = vsel %vm1199, %v1827, %v1850
        %v1852 = vsel %vm1197, %v1843, %v1844
        %v1853 = vsel %vm1199, %v1829, %v1852
        %v1854 = vsel %vm1197, %v1844, %v1845
        %v1855 = vsel %vm1199, %v1831, %v1854
        %v1856 = vsel %vm1199, %v1833, %v1845
        %v1857 = vsel %vm1197, %v1846, %v1847
        %v1858 = vsel %vm1199, %v1835, %v1857
        %v1859 = vsel %vm1197, %v1847, %v1848
        %v1860 = vsel %vm1199, %v1837, %v1859
        %v1861 = vsel %vm1197, %v1848, %v1849
        %v1862 = vsel %vm1199, %v1839, %v1861
        %v1863 = vsel %vm1199, %v1841, %v1849
        %1872 = vst [vmem:[#allocation4 + $0x230] sm:$0xff] %v1851
        %1873 = vst [vmem:[#allocation4 + $0x238] sm:$0xff] %v1853
        %1874 = vst [vmem:[#allocation4 + $0x240] sm:$0xff] %v1855
        %1875 = vst.msk [vmem:[#allocation4 + $0x248] sm:$0xf] %vm1224, %v1856
        %1876 = vst [vmem:[#allocation4 + $0x24c] sm:$0xff] %v1858
        %1877 = vst [vmem:[#allocation4 + $0x254] sm:$0xff] %v1860
        %1878 = vst [vmem:[#allocation4 + $0x25c] sm:$0xff] %v1862
        %1879 = vst.msk [vmem:[#allocation4 + $0x264] sm:$0xf] %vm1224, %v1863
        %v1880 = vld [vmem:[#allocation3 + $0x4] sm:$0xff]
        %v1881 = vld [vmem:[#allocation3 + $0xc] sm:$0xff]
        %v1882 = vld [vmem:[#allocation3 + $0x14] sm:$0xff]
        %v1883 = vld [vmem:[#allocation3 + $0x1c] sm:$0xff]
        %v1884 = vld [vmem:[#allocation3 + $0x2c] sm:$0xff]
        %v1885 = vld [vmem:[#allocation3 + $0x34] sm:$0xff]
        %v1886 = vld [vmem:[#allocation3 + $0x3c] sm:$0xff]
        %v1887 = vld [vmem:[#allocation3 + $0x44] sm:$0xff]
        %1896 = vrot.lane.b32.xlu0 %v1880, 2
        %v1897 = vpop.permute.xlu0 %1896
        %1898 = vrot.lane.b32.xlu0 %v1881, 2
        %v1899 = vpop.permute.xlu0 %1898
        %1900 = vrot.lane.b32.xlu0 %v1882, 2
        %v1901 = vpop.permute.xlu0 %1900
        %1902 = vrot.lane.b32.xlu0 %v1883, 2
        %v1903 = vpop.permute.xlu0 %1902
        %1904 = vrot.lane.b32.xlu0 %v1884, 2
        %v1905 = vpop.permute.xlu0 %1904
        %1906 = vrot.lane.b32.xlu0 %v1885, 2
        %v1907 = vpop.permute.xlu0 %1906
        %1908 = vrot.lane.b32.xlu0 %v1886, 2
        %v1909 = vpop.permute.xlu0 %1908
        %1910 = vrot.lane.b32.xlu0 %v1887, 2
        %v1911 = vpop.permute.xlu0 %1910
        %v1912 = vrot.slane %v1897, 4
        %v1913 = vrot.slane %v1899, 4
        %v1914 = vrot.slane %v1901, 4
        %v1915 = vrot.slane %v1903, 4
        %v1916 = vrot.slane %v1905, 4
        %v1917 = vrot.slane %v1907, 4
        %v1918 = vrot.slane %v1909, 4
        %v1919 = vrot.slane %v1911, 4
        %v1920 = vsel %vm1197, %v1912, %v1913
        %v1921 = vsel %vm1271, %v1897, %v1920
        %v1922 = vsel %vm1197, %v1913, %v1914
        %v1923 = vsel %vm1271, %v1899, %v1922
        %v1924 = vsel %vm1197, %v1914, %v1915
        %v1925 = vsel %vm1271, %v1901, %v1924
        %v1926 = vsel %vm1271, %v1903, %v1915
        %v1927 = vsel %vm1197, %v1916, %v1917
        %v1928 = vsel %vm1271, %v1905, %v1927
        %v1929 = vsel %vm1197, %v1917, %v1918
        %v1930 = vsel %vm1271, %v1907, %v1929
        %v1931 = vsel %vm1197, %v1918, %v1919
        %v1932 = vsel %vm1271, %v1909, %v1931
        %v1933 = vsel %vm1271, %v1911, %v1919
        %1942 = vst [vmem:[#allocation4 + $0x268] sm:$0xff] %v1921
        %1943 = vst [vmem:[#allocation4 + $0x270] sm:$0xff] %v1923
        %1944 = vst [vmem:[#allocation4 + $0x278] sm:$0xff] %v1925
        %1945 = vst.msk [vmem:[#allocation4 + $0x280] sm:$0xf] %vm1224, %v1926
        %1946 = vst [vmem:[#allocation4 + $0x284] sm:$0xff] %v1928
        %1947 = vst [vmem:[#allocation4 + $0x28c] sm:$0xff] %v1930
        %1948 = vst [vmem:[#allocation4 + $0x294] sm:$0xff] %v1932
        %1949 = vst.msk [vmem:[#allocation4 + $0x29c] sm:$0xf] %vm1224, %v1933
        %v1950 = vld [vmem:[#allocation3 + $0x8] sm:$0xff]
        %v1951 = vld [vmem:[#allocation3 + $0x10] sm:$0xff]
        %v1952 = vld [vmem:[#allocation3 + $0x18] sm:$0xff]
        %v1953 = vld [vmem:[#allocation3 + $0x20] sm:$0xf]
        %v1954 = vld [vmem:[#allocation3 + $0x30] sm:$0xff]
        %v1955 = vld [vmem:[#allocation3 + $0x38] sm:$0xff]
        %v1956 = vld [vmem:[#allocation3 + $0x40] sm:$0xff]
        %v1957 = vld [vmem:[#allocation3 + $0x48] sm:$0xf]
        %1958 = vst [vmem:[#allocation4 + $0x2a0] sm:$0xff] %v1950
        %1959 = vst [vmem:[#allocation4 + $0x2a8] sm:$0xff] %v1951
        %1960 = vst [vmem:[#allocation4 + $0x2b0] sm:$0xff] %v1952
        %1961 = vst.msk [vmem:[#allocation4 + $0x2b8] sm:$0xf] %vm1224, %v1953
        %1962 = vst [vmem:[#allocation4 + $0x2bc] sm:$0xff] %v1954
        %1963 = vst [vmem:[#allocation4 + $0x2c4] sm:$0xff] %v1955
        %1964 = vst [vmem:[#allocation4 + $0x2cc] sm:$0xff] %v1956
        %1965 = vst.msk [vmem:[#allocation4 + $0x2d4] sm:$0xf] %vm1224, %v1957
        %v1966 = vld [vmem:[#allocation3 + $0x8] sm:$0xff]
        %v1967 = vld [vmem:[#allocation3 + $0x10] sm:$0xff]
        %v1968 = vld [vmem:[#allocation3 + $0x18] sm:$0xff]
        %v1969 = vld [vmem:[#allocation3 + $0x20] sm:$0xf]
        %v1970 = vld [vmem:[#allocation3 + $0x30] sm:$0xff]
        %v1971 = vld [vmem:[#allocation3 + $0x38] sm:$0xff]
        %v1972 = vld [vmem:[#allocation3 + $0x40] sm:$0xff]
        %v1973 = vld [vmem:[#allocation3 + $0x48] sm:$0xf]
        %1982 = vrot.lane.b32.xlu0 %v1966, 126
        %v1983 = vpop.permute.xlu0 %1982
        %1984 = vrot.lane.b32.xlu0 %v1967, 126
        %v1985 = vpop.permute.xlu0 %1984
        %1986 = vrot.lane.b32.xlu0 %v1968, 126
        %v1987 = vpop.permute.xlu0 %1986
        %1988 = vrot.lane.b32.xlu0 %v1969, 126
        %v1989 = vpop.permute.xlu0 %1988
        %1990 = vrot.lane.b32.xlu0 %v1970, 126
        %v1991 = vpop.permute.xlu0 %1990
        %1992 = vrot.lane.b32.xlu0 %v1971, 126
        %v1993 = vpop.permute.xlu0 %1992
        %1994 = vrot.lane.b32.xlu0 %v1972, 126
        %v1995 = vpop.permute.xlu0 %1994
        %1996 = vrot.lane.b32.xlu0 %v1973, 126
        %v1997 = vpop.permute.xlu0 %1996
        %v1998 = vrot.slane %v1983, 4
        %v1999 = vrot.slane %v1985, 4
        %v2000 = vrot.slane %v1987, 4
        %v2001 = vrot.slane %v1989, 4
        %v2002 = vrot.slane %v1991, 4
        %v2003 = vrot.slane %v1993, 4
        %v2004 = vrot.slane %v1995, 4
        %v2005 = vrot.slane %v1997, 4
        %v2006 = vsel %vm1197, %v1998, %v1999
        %v2007 = vsel %vm1358, %v1983, %v2006
        %v2008 = vsel %vm1197, %v1999, %v2000
        %v2009 = vsel %vm1358, %v1985, %v2008
        %v2010 = vsel %vm1197, %v2000, %v2001
        %v2011 = vsel %vm1358, %v1987, %v2010
        %v2012 = vsel %vm1197, %v2002, %v2003
        %v2013 = vsel %vm1358, %v1991, %v2012
        %v2014 = vsel %vm1197, %v2003, %v2004
        %v2015 = vsel %vm1358, %v1993, %v2014
        %v2016 = vsel %vm1197, %v2004, %v2005
        %v2017 = vsel %vm1358, %v1995, %v2016
        %2026 = vst [vmem:[#allocation4 + $0x2d8] sm:$0xff] %v2007
        %2027 = vst [vmem:[#allocation4 + $0x2e0] sm:$0xff] %v2009
        %2028 = vst [vmem:[#allocation4 + $0x2e8] sm:$0xff] %v2011
        %2029 = vst.msk [vmem:[#allocation4 + $0x2f0] sm:$0xf] %vm1224, %v1989
        %2030 = vst [vmem:[#allocation4 + $0x2f4] sm:$0xff] %v2013
        %2031 = vst [vmem:[#allocation4 + $0x2fc] sm:$0xff] %v2015
        %2032 = vst [vmem:[#allocation4 + $0x304] sm:$0xff] %v2017
        %2033 = vst.msk [vmem:[#allocation4 + $0x30c] sm:$0xf] %vm1224, %v1997
        %v2034 = vld [vmem:[#allocation3 + $0x8] sm:$0xff]
        %v2035 = vld [vmem:[#allocation3 + $0x10] sm:$0xff]
        %v2036 = vld [vmem:[#allocation3 + $0x18] sm:$0xff]
        %v2037 = vld [vmem:[#allocation3 + $0x20] sm:$0xf]
        %v2038 = vld [vmem:[#allocation3 + $0x30] sm:$0xff]
        %v2039 = vld [vmem:[#allocation3 + $0x38] sm:$0xff]
        %v2040 = vld [vmem:[#allocation3 + $0x40] sm:$0xff]
        %v2041 = vld [vmem:[#allocation3 + $0x48] sm:$0xf]
        %2050 = vrot.lane.b32.xlu0 %v2034, 124
        %v2051 = vpop.permute.xlu0 %2050
        %2052 = vrot.lane.b32.xlu0 %v2035, 124
        %v2053 = vpop.permute.xlu0 %2052
        %2054 = vrot.lane.b32.xlu0 %v2036, 124
        %v2055 = vpop.permute.xlu0 %2054
        %2056 = vrot.lane.b32.xlu0 %v2037, 124
        %v2057 = vpop.permute.xlu0 %2056
        %2058 = vrot.lane.b32.xlu0 %v2038, 124
        %v2059 = vpop.permute.xlu0 %2058
        %2060 = vrot.lane.b32.xlu0 %v2039, 124
        %v2061 = vpop.permute.xlu0 %2060
        %2062 = vrot.lane.b32.xlu0 %v2040, 124
        %v2063 = vpop.permute.xlu0 %2062
        %2064 = vrot.lane.b32.xlu0 %v2041, 124
        %v2065 = vpop.permute.xlu0 %2064
        %v2066 = vrot.slane %v2051, 4
        %v2067 = vrot.slane %v2053, 4
        %v2068 = vrot.slane %v2055, 4
        %v2069 = vrot.slane %v2057, 4
        %v2070 = vrot.slane %v2059, 4
        %v2071 = vrot.slane %v2061, 4
        %v2072 = vrot.slane %v2063, 4
        %v2073 = vrot.slane %v2065, 4
        %v2074 = vsel %vm1197, %v2066, %v2067
        %v2075 = vsel %vm1427, %v2051, %v2074
        %v2076 = vsel %vm1197, %v2067, %v2068
        %v2077 = vsel %vm1427, %v2053, %v2076
        %v2078 = vsel %vm1197, %v2068, %v2069
        %v2079 = vsel %vm1427, %v2055, %v2078
        %v2080 = vsel %vm1197, %v2070, %v2071
        %v2081 = vsel %vm1427, %v2059, %v2080
        %v2082 = vsel %vm1197, %v2071, %v2072
        %v2083 = vsel %vm1427, %v2061, %v2082
        %v2084 = vsel %vm1197, %v2072, %v2073
        %v2085 = vsel %vm1427, %v2063, %v2084
        %2094 = vst [vmem:[#allocation4 + $0x310] sm:$0xff] %v2075
        %2095 = vst [vmem:[#allocation4 + $0x318] sm:$0xff] %v2077
        %2096 = vst [vmem:[#allocation4 + $0x320] sm:$0xff] %v2079
        %2097 = vst.msk [vmem:[#allocation4 + $0x328] sm:$0xf] %vm1224, %v2057
        %2098 = vst [vmem:[#allocation4 + $0x32c] sm:$0xff] %v2081
        %2099 = vst [vmem:[#allocation4 + $0x334] sm:$0xff] %v2083
        %2100 = vst [vmem:[#allocation4 + $0x33c] sm:$0xff] %v2085
        %2101 = vst.msk [vmem:[#allocation4 + $0x344] sm:$0xf] %vm1224, %v2065
        %v2102 = vld [vmem:[#allocation3 + $0x8] sm:$0xff]
        %v2103 = vld [vmem:[#allocation3 + $0x10] sm:$0xff]
        %v2104 = vld [vmem:[#allocation3 + $0x18] sm:$0xff]
        %v2105 = vld [vmem:[#allocation3 + $0x20] sm:$0xff]
        %v2106 = vld [vmem:[#allocation3 + $0x30] sm:$0xff]
        %v2107 = vld [vmem:[#allocation3 + $0x38] sm:$0xff]
        %v2108 = vld [vmem:[#allocation3 + $0x40] sm:$0xff]
        %v2109 = vld [vmem:[#allocation3 + $0x48] sm:$0xff]
        %2118 = vrot.lane.b32.xlu0 %v2102, 68
        %v2119 = vpop.permute.xlu0 %2118
        %2120 = vrot.lane.b32.xlu0 %v2103, 68
        %v2121 = vpop.permute.xlu0 %2120
        %2122 = vrot.lane.b32.xlu0 %v2104, 68
        %v2123 = vpop.permute.xlu0 %2122
        %2124 = vrot.lane.b32.xlu0 %v2105, 68
        %v2125 = vpop.permute.xlu0 %2124
        %2126 = vrot.lane.b32.xlu0 %v2106, 68
        %v2127 = vpop.permute.xlu0 %2126
        %2128 = vrot.lane.b32.xlu0 %v2107, 68
        %v2129 = vpop.permute.xlu0 %2128
        %2130 = vrot.lane.b32.xlu0 %v2108, 68
        %v2131 = vpop.permute.xlu0 %2130
        %2132 = vrot.lane.b32.xlu0 %v2109, 68
        %v2133 = vpop.permute.xlu0 %2132
        %v2134 = vrot.slane %v2119, 4
        %v2135 = vrot.slane %v2121, 4
        %v2136 = vrot.slane %v2123, 4
        %v2137 = vrot.slane %v2125, 4
        %v2138 = vrot.slane %v2127, 4
        %v2139 = vrot.slane %v2129, 4
        %v2140 = vrot.slane %v2131, 4
        %v2141 = vrot.slane %v2133, 4
        %v2142 = vsel %vm1197, %v2134, %v2135
        %v2143 = vsel %vm1496, %v2119, %v2142
        %v2144 = vsel %vm1197, %v2135, %v2136
        %v2145 = vsel %vm1496, %v2121, %v2144
        %v2146 = vsel %vm1197, %v2136, %v2137
        %v2147 = vsel %vm1496, %v2123, %v2146
        %v2148 = vsel %vm1496, %v2125, %v2137
        %v2149 = vsel %vm1197, %v2138, %v2139
        %v2150 = vsel %vm1496, %v2127, %v2149
        %v2151 = vsel %vm1197, %v2139, %v2140
        %v2152 = vsel %vm1496, %v2129, %v2151
        %v2153 = vsel %vm1197, %v2140, %v2141
        %v2154 = vsel %vm1496, %v2131, %v2153
        %v2155 = vsel %vm1496, %v2133, %v2141
        %2164 = vst [vmem:[#allocation4 + $0x348] sm:$0xff] %v2143
        %2165 = vst [vmem:[#allocation4 + $0x350] sm:$0xff] %v2145
        %2166 = vst [vmem:[#allocation4 + $0x358] sm:$0xff] %v2147
        %2167 = vst.msk [vmem:[#allocation4 + $0x360] sm:$0xf] %vm1224, %v2148
        %2168 = vst [vmem:[#allocation4 + $0x364] sm:$0xff] %v2150
        %2169 = vst [vmem:[#allocation4 + $0x36c] sm:$0xff] %v2152
        %2170 = vst [vmem:[#allocation4 + $0x374] sm:$0xff] %v2154
        %2171 = vst.msk [vmem:[#allocation4 + $0x37c] sm:$0xf] %vm1224, %v2155
        %v2172 = vld [vmem:[#allocation3 + $0x8] sm:$0xff]
        %v2173 = vld [vmem:[#allocation3 + $0x10] sm:$0xff]
        %v2174 = vld [vmem:[#allocation3 + $0x18] sm:$0xff]
        %v2175 = vld [vmem:[#allocation3 + $0x20] sm:$0xff]
        %v2176 = vld [vmem:[#allocation3 + $0x30] sm:$0xff]
        %v2177 = vld [vmem:[#allocation3 + $0x38] sm:$0xff]
        %v2178 = vld [vmem:[#allocation3 + $0x40] sm:$0xff]
        %v2179 = vld [vmem:[#allocation3 + $0x48] sm:$0xff]
        %2188 = vrot.lane.b32.xlu0 %v2172, 66
        %v2189 = vpop.permute.xlu0 %2188
        %2190 = vrot.lane.b32.xlu0 %v2173, 66
        %v2191 = vpop.permute.xlu0 %2190
        %2192 = vrot.lane.b32.xlu0 %v2174, 66
        %v2193 = vpop.permute.xlu0 %2192
        %2194 = vrot.lane.b32.xlu0 %v2175, 66
        %v2195 = vpop.permute.xlu0 %2194
        %2196 = vrot.lane.b32.xlu0 %v2176, 66
        %v2197 = vpop.permute.xlu0 %2196
        %2198 = vrot.lane.b32.xlu0 %v2177, 66
        %v2199 = vpop.permute.xlu0 %2198
        %2200 = vrot.lane.b32.xlu0 %v2178, 66
        %v2201 = vpop.permute.xlu0 %2200
        %2202 = vrot.lane.b32.xlu0 %v2179, 66
        %v2203 = vpop.permute.xlu0 %2202
        %v2204 = vrot.slane %v2189, 4
        %v2205 = vrot.slane %v2191, 4
        %v2206 = vrot.slane %v2193, 4
        %v2207 = vrot.slane %v2195, 4
        %v2208 = vrot.slane %v2197, 4
        %v2209 = vrot.slane %v2199, 4
        %v2210 = vrot.slane %v2201, 4
        %v2211 = vrot.slane %v2203, 4
        %v2212 = vsel %vm1197, %v2204, %v2205
        %v2213 = vsel %vm1567, %v2189, %v2212
        %v2214 = vsel %vm1197, %v2205, %v2206
        %v2215 = vsel %vm1567, %v2191, %v2214
        %v2216 = vsel %vm1197, %v2206, %v2207
        %v2217 = vsel %vm1567, %v2193, %v2216
        %v2218 = vsel %vm1567, %v2195, %v2207
        %v2219 = vsel %vm1197, %v2208, %v2209
        %v2220 = vsel %vm1567, %v2197, %v2219
        %v2221 = vsel %vm1197, %v2209, %v2210
        %v2222 = vsel %vm1567, %v2199, %v2221
        %v2223 = vsel %vm1197, %v2210, %v2211
        %v2224 = vsel %vm1567, %v2201, %v2223
        %v2225 = vsel %vm1567, %v2203, %v2211
        %2234 = vst [vmem:[#allocation4 + $0x380] sm:$0xff] %v2213
        %2235 = vst [vmem:[#allocation4 + $0x388] sm:$0xff] %v2215
        %2236 = vst [vmem:[#allocation4 + $0x390] sm:$0xff] %v2217
        %2237 = vst.msk [vmem:[#allocation4 + $0x398] sm:$0xf] %vm1224, %v2218
        %2238 = vst [vmem:[#allocation4 + $0x39c] sm:$0xff] %v2220
        %2239 = vst [vmem:[#allocation4 + $0x3a4] sm:$0xff] %v2222
        %2240 = vst [vmem:[#allocation4 + $0x3ac] sm:$0xff] %v2224
        %2241 = vst.msk [vmem:[#allocation4 + $0x3b4] sm:$0xf] %vm1224, %v2225
        %v2242 = vld [vmem:[#allocation3 + $0x8] sm:$0xff]
        %v2243 = vld [vmem:[#allocation3 + $0x10] sm:$0xff]
        %v2244 = vld [vmem:[#allocation3 + $0x18] sm:$0xff]
        %v2245 = vld [vmem:[#allocation3 + $0x20] sm:$0xff]
        %v2246 = vld [vmem:[#allocation3 + $0x30] sm:$0xff]
        %v2247 = vld [vmem:[#allocation3 + $0x38] sm:$0xff]
        %v2248 = vld [vmem:[#allocation3 + $0x40] sm:$0xff]
        %v2249 = vld [vmem:[#allocation3 + $0x48] sm:$0xff]
        %2258 = vrot.lane.b32.xlu0 %v2242, 64
        %v2259 = vpop.permute.xlu0 %2258
        %2260 = vrot.lane.b32.xlu0 %v2243, 64
        %v2261 = vpop.permute.xlu0 %2260
        %2262 = vrot.lane.b32.xlu0 %v2244, 64
        %v2263 = vpop.permute.xlu0 %2262
        %2264 = vrot.lane.b32.xlu0 %v2245, 64
        %v2265 = vpop.permute.xlu0 %2264
        %2266 = vrot.lane.b32.xlu0 %v2246, 64
        %v2267 = vpop.permute.xlu0 %2266
        %2268 = vrot.lane.b32.xlu0 %v2247, 64
        %v2269 = vpop.permute.xlu0 %2268
        %2270 = vrot.lane.b32.xlu0 %v2248, 64
        %v2271 = vpop.permute.xlu0 %2270
        %2272 = vrot.lane.b32.xlu0 %v2249, 64
        %v2273 = vpop.permute.xlu0 %2272
        %v2274 = vrot.slane %v2259, 4
        %v2275 = vrot.slane %v2261, 4
        %v2276 = vrot.slane %v2263, 4
        %v2277 = vrot.slane %v2265, 4
        %v2278 = vrot.slane %v2267, 4
        %v2279 = vrot.slane %v2269, 4
        %v2280 = vrot.slane %v2271, 4
        %v2281 = vrot.slane %v2273, 4
        %v2282 = vsel %vm1197, %v2274, %v2275
        %v2283 = vsel %vm1638, %v2259, %v2282
        %v2284 = vsel %vm1197, %v2275, %v2276
        %v2285 = vsel %vm1638, %v2261, %v2284
        %v2286 = vsel %vm1197, %v2276, %v2277
        %v2287 = vsel %vm1638, %v2263, %v2286
        %v2288 = vsel %vm1638, %v2265, %v2277
        %v2289 = vsel %vm1197, %v2278, %v2279
        %v2290 = vsel %vm1638, %v2267, %v2289
        %v2291 = vsel %vm1197, %v2279, %v2280
        %v2292 = vsel %vm1638, %v2269, %v2291
        %v2293 = vsel %vm1197, %v2280, %v2281
        %v2294 = vsel %vm1638, %v2271, %v2293
        %v2295 = vsel %vm1638, %v2273, %v2281
        %2304 = vst [vmem:[#allocation4 + $0x3b8] sm:$0xff] %v2283
        %2305 = vst [vmem:[#allocation4 + $0x3c0] sm:$0xff] %v2285
        %2306 = vst [vmem:[#allocation4 + $0x3c8] sm:$0xff] %v2287
        %2307 = vst.msk [vmem:[#allocation4 + $0x3d0] sm:$0xf] %vm1224, %v2288
        %2308 = vst [vmem:[#allocation4 + $0x3d4] sm:$0xff] %v2290
        %2309 = vst [vmem:[#allocation4 + $0x3dc] sm:$0xff] %v2292
        %2310 = vst [vmem:[#allocation4 + $0x3e4] sm:$0xff] %v2294
        %2311 = vst.msk [vmem:[#allocation4 + $0x3ec] sm:$0xf] %vm1224, %v2295
        %v2312 = vld [vmem:[#allocation3 + $0x8] sm:$0xff]
        %v2313 = vld [vmem:[#allocation3 + $0x10] sm:$0xff]
        %v2314 = vld [vmem:[#allocation3 + $0x18] sm:$0xff]
        %v2315 = vld [vmem:[#allocation3 + $0x20] sm:$0xff]
        %v2316 = vld [vmem:[#allocation3 + $0x30] sm:$0xff]
        %v2317 = vld [vmem:[#allocation3 + $0x38] sm:$0xff]
        %v2318 = vld [vmem:[#allocation3 + $0x40] sm:$0xff]
        %v2319 = vld [vmem:[#allocation3 + $0x48] sm:$0xff]
        %2328 = vrot.lane.b32.xlu0 %v2312, 62
        %v2329 = vpop.permute.xlu0 %2328
        %2330 = vrot.lane.b32.xlu0 %v2313, 62
        %v2331 = vpop.permute.xlu0 %2330
        %2332 = vrot.lane.b32.xlu0 %v2314, 62
        %v2333 = vpop.permute.xlu0 %2332
        %2334 = vrot.lane.b32.xlu0 %v2315, 62
        %v2335 = vpop.permute.xlu0 %2334
        %2336 = vrot.lane.b32.xlu0 %v2316, 62
        %v2337 = vpop.permute.xlu0 %2336
        %2338 = vrot.lane.b32.xlu0 %v2317, 62
        %v2339 = vpop.permute.xlu0 %2338
        %2340 = vrot.lane.b32.xlu0 %v2318, 62
        %v2341 = vpop.permute.xlu0 %2340
        %2342 = vrot.lane.b32.xlu0 %v2319, 62
        %v2343 = vpop.permute.xlu0 %2342
        %v2344 = vrot.slane %v2329, 4
        %v2345 = vrot.slane %v2331, 4
        %v2346 = vrot.slane %v2333, 4
        %v2347 = vrot.slane %v2335, 4
        %v2348 = vrot.slane %v2337, 4
        %v2349 = vrot.slane %v2339, 4
        %v2350 = vrot.slane %v2341, 4
        %v2351 = vrot.slane %v2343, 4
        %v2352 = vsel %vm1197, %v2344, %v2345
        %v2353 = vsel %vm1709, %v2329, %v2352
        %v2354 = vsel %vm1197, %v2345, %v2346
        %v2355 = vsel %vm1709, %v2331, %v2354
        %v2356 = vsel %vm1197, %v2346, %v2347
        %v2357 = vsel %vm1709, %v2333, %v2356
        %v2358 = vsel %vm1709, %v2335, %v2347
        %v2359 = vsel %vm1197, %v2348, %v2349
        %v2360 = vsel %vm1709, %v2337, %v2359
        %v2361 = vsel %vm1197, %v2349, %v2350
        %v2362 = vsel %vm1709, %v2339, %v2361
        %v2363 = vsel %vm1197, %v2350, %v2351
        %v2364 = vsel %vm1709, %v2341, %v2363
        %v2365 = vsel %vm1709, %v2343, %v2351
        %2374 = vst [vmem:[#allocation4 + $0x3f0] sm:$0xff] %v2353
        %2375 = vst [vmem:[#allocation4 + $0x3f8] sm:$0xff] %v2355
        %2376 = vst [vmem:[#allocation4 + $0x400] sm:$0xff] %v2357
        %2377 = vst.msk [vmem:[#allocation4 + $0x408] sm:$0xf] %vm1224, %v2358
        %2378 = vst [vmem:[#allocation4 + $0x40c] sm:$0xff] %v2360
        %2379 = vst [vmem:[#allocation4 + $0x414] sm:$0xff] %v2362
        %2380 = vst [vmem:[#allocation4 + $0x41c] sm:$0xff] %v2364
        %2381 = vst.msk [vmem:[#allocation4 + $0x424] sm:$0xf] %vm1224, %v2365
        %v2382 = vld [vmem:[#allocation3 + $0x8] sm:$0xff]
        %v2383 = vld [vmem:[#allocation3 + $0x10] sm:$0xff]
        %v2384 = vld [vmem:[#allocation3 + $0x18] sm:$0xff]
        %v2385 = vld [vmem:[#allocation3 + $0x20] sm:$0xff]
        %v2386 = vld [vmem:[#allocation3 + $0x30] sm:$0xff]
        %v2387 = vld [vmem:[#allocation3 + $0x38] sm:$0xff]
        %v2388 = vld [vmem:[#allocation3 + $0x40] sm:$0xff]
        %v2389 = vld [vmem:[#allocation3 + $0x48] sm:$0xff]
        %2398 = vrot.lane.b32.xlu0 %v2382, 60
        %v2399 = vpop.permute.xlu0 %2398
        %2400 = vrot.lane.b32.xlu0 %v2383, 60
        %v2401 = vpop.permute.xlu0 %2400
        %2402 = vrot.lane.b32.xlu0 %v2384, 60
        %v2403 = vpop.permute.xlu0 %2402
        %2404 = vrot.lane.b32.xlu0 %v2385, 60
        %v2405 = vpop.permute.xlu0 %2404
        %2406 = vrot.lane.b32.xlu0 %v2386, 60
        %v2407 = vpop.permute.xlu0 %2406
        %2408 = vrot.lane.b32.xlu0 %v2387, 60
        %v2409 = vpop.permute.xlu0 %2408
        %2410 = vrot.lane.b32.xlu0 %v2388, 60
        %v2411 = vpop.permute.xlu0 %2410
        %2412 = vrot.lane.b32.xlu0 %v2389, 60
        %v2413 = vpop.permute.xlu0 %2412
        %v2414 = vrot.slane %v2399, 4
        %v2415 = vrot.slane %v2401, 4
        %v2416 = vrot.slane %v2403, 4
        %v2417 = vrot.slane %v2405, 4
        %v2418 = vrot.slane %v2407, 4
        %v2419 = vrot.slane %v2409, 4
        %v2420 = vrot.slane %v2411, 4
        %v2421 = vrot.slane %v2413, 4
        %v2422 = vsel %vm1197, %v2414, %v2415
        %v2423 = vsel %vm1780, %v2399, %v2422
        %v2424 = vsel %vm1197, %v2415, %v2416
        %v2425 = vsel %vm1780, %v2401, %v2424
        %v2426 = vsel %vm1197, %v2416, %v2417
        %v2427 = vsel %vm1780, %v2403, %v2426
        %v2428 = vsel %vm1780, %v2405, %v2417
        %v2429 = vsel %vm1197, %v2418, %v2419
        %v2430 = vsel %vm1780, %v2407, %v2429
        %v2431 = vsel %vm1197, %v2419, %v2420
        %v2432 = vsel %vm1780, %v2409, %v2431
        %v2433 = vsel %vm1197, %v2420, %v2421
        %v2434 = vsel %vm1780, %v2411, %v2433
        %v2435 = vsel %vm1780, %v2413, %v2421
        %2444 = vst [vmem:[#allocation4 + $0x428] sm:$0xff] %v2423
        %2445 = vst [vmem:[#allocation4 + $0x430] sm:$0xff] %v2425
        %2446 = vst [vmem:[#allocation4 + $0x438] sm:$0xff] %v2427
        %2447 = vst.msk [vmem:[#allocation4 + $0x440] sm:$0xf] %vm1224, %v2428
        %2448 = vst [vmem:[#allocation4 + $0x444] sm:$0xff] %v2430
        %2449 = vst [vmem:[#allocation4 + $0x44c] sm:$0xff] %v2432
        %2450 = vst [vmem:[#allocation4 + $0x454] sm:$0xff] %v2434
        %2451 = vst.msk [vmem:[#allocation4 + $0x45c] sm:$0xf] %vm1224, %v2435
        %v2452 = vld [vmem:[#allocation3 + $0x8] sm:$0xff]
        %v2453 = vld [vmem:[#allocation3 + $0x10] sm:$0xff]
        %v2454 = vld [vmem:[#allocation3 + $0x18] sm:$0xff]
        %v2455 = vld [vmem:[#allocation3 + $0x20] sm:$0xff]
        %v2456 = vld [vmem:[#allocation3 + $0x30] sm:$0xff]
        %v2457 = vld [vmem:[#allocation3 + $0x38] sm:$0xff]
        %v2458 = vld [vmem:[#allocation3 + $0x40] sm:$0xff]
        %v2459 = vld [vmem:[#allocation3 + $0x48] sm:$0xff]
        %2468 = vrot.lane.b32.xlu0 %v2452, 4
        %v2469 = vpop.permute.xlu0 %2468
        %2470 = vrot.lane.b32.xlu0 %v2453, 4
        %v2471 = vpop.permute.xlu0 %2470
        %2472 = vrot.lane.b32.xlu0 %v2454, 4
        %v2473 = vpop.permute.xlu0 %2472
        %2474 = vrot.lane.b32.xlu0 %v2455, 4
        %v2475 = vpop.permute.xlu0 %2474
        %2476 = vrot.lane.b32.xlu0 %v2456, 4
        %v2477 = vpop.permute.xlu0 %2476
        %2478 = vrot.lane.b32.xlu0 %v2457, 4
        %v2479 = vpop.permute.xlu0 %2478
        %2480 = vrot.lane.b32.xlu0 %v2458, 4
        %v2481 = vpop.permute.xlu0 %2480
        %2482 = vrot.lane.b32.xlu0 %v2459, 4
        %v2483 = vpop.permute.xlu0 %2482
        %v2484 = vrot.slane %v2469, 4
        %v2485 = vrot.slane %v2471, 4
        %v2486 = vrot.slane %v2473, 4
        %v2487 = vrot.slane %v2475, 4
        %v2488 = vrot.slane %v2477, 4
        %v2489 = vrot.slane %v2479, 4
        %v2490 = vrot.slane %v2481, 4
        %v2491 = vrot.slane %v2483, 4
        %v2492 = vsel %vm1197, %v2484, %v2485
        %v2493 = vsel %vm1199, %v2469, %v2492
        %v2494 = vsel %vm1197, %v2485, %v2486
        %v2495 = vsel %vm1199, %v2471, %v2494
        %v2496 = vsel %vm1197, %v2486, %v2487
        %v2497 = vsel %vm1199, %v2473, %v2496
        %v2498 = vsel %vm1199, %v2475, %v2487
        %v2499 = vsel %vm1197, %v2488, %v2489
        %v2500 = vsel %vm1199, %v2477, %v2499
        %v2501 = vsel %vm1197, %v2489, %v2490
        %v2502 = vsel %vm1199, %v2479, %v2501
        %v2503 = vsel %vm1197, %v2490, %v2491
        %v2504 = vsel %vm1199, %v2481, %v2503
        %v2505 = vsel %vm1199, %v2483, %v2491
        %2514 = vst [vmem:[#allocation4 + $0x460] sm:$0xff] %v2493
        %2515 = vst [vmem:[#allocation4 + $0x468] sm:$0xff] %v2495
        %2516 = vst [vmem:[#allocation4 + $0x470] sm:$0xff] %v2497
        %2517 = vst.msk [vmem:[#allocation4 + $0x478] sm:$0xf] %vm1224, %v2498
        %2518 = vst [vmem:[#allocation4 + $0x47c] sm:$0xff] %v2500
        %2519 = vst [vmem:[#allocation4 + $0x484] sm:$0xff] %v2502
        %2520 = vst [vmem:[#allocation4 + $0x48c] sm:$0xff] %v2504
        %2521 = vst.msk [vmem:[#allocation4 + $0x494] sm:$0xf] %vm1224, %v2505
        %v2522 = vld [vmem:[#allocation3 + $0x8] sm:$0xff]
        %v2523 = vld [vmem:[#allocation3 + $0x10] sm:$0xff]
        %v2524 = vld [vmem:[#allocation3 + $0x18] sm:$0xff]
        %v2525 = vld [vmem:[#allocation3 + $0x20] sm:$0xff]
        %v2526 = vld [vmem:[#allocation3 + $0x30] sm:$0xff]
        %v2527 = vld [vmem:[#allocation3 + $0x38] sm:$0xff]
        %v2528 = vld [vmem:[#allocation3 + $0x40] sm:$0xff]
        %v2529 = vld [vmem:[#allocation3 + $0x48] sm:$0xff]
        %2538 = vrot.lane.b32.xlu0 %v2522, 2
        %v2539 = vpop.permute.xlu0 %2538
        %2540 = vrot.lane.b32.xlu0 %v2523, 2
        %v2541 = vpop.permute.xlu0 %2540
        %2542 = vrot.lane.b32.xlu0 %v2524, 2
        %v2543 = vpop.permute.xlu0 %2542
        %2544 = vrot.lane.b32.xlu0 %v2525, 2
        %v2545 = vpop.permute.xlu0 %2544
        %2546 = vrot.lane.b32.xlu0 %v2526, 2
        %v2547 = vpop.permute.xlu0 %2546
        %2548 = vrot.lane.b32.xlu0 %v2527, 2
        %v2549 = vpop.permute.xlu0 %2548
        %2550 = vrot.lane.b32.xlu0 %v2528, 2
        %v2551 = vpop.permute.xlu0 %2550
        %2552 = vrot.lane.b32.xlu0 %v2529, 2
        %v2553 = vpop.permute.xlu0 %2552
        %v2554 = vrot.slane %v2539, 4
        %v2555 = vrot.slane %v2541, 4
        %v2556 = vrot.slane %v2543, 4
        %v2557 = vrot.slane %v2545, 4
        %v2558 = vrot.slane %v2547, 4
        %v2559 = vrot.slane %v2549, 4
        %v2560 = vrot.slane %v2551, 4
        %v2561 = vrot.slane %v2553, 4
        %v2562 = vsel %vm1197, %v2554, %v2555
        %v2563 = vsel %vm1271, %v2539, %v2562
        %v2564 = vsel %vm1197, %v2555, %v2556
        %v2565 = vsel %vm1271, %v2541, %v2564
        %v2566 = vsel %vm1197, %v2556, %v2557
        %v2567 = vsel %vm1271, %v2543, %v2566
        %v2568 = vsel %vm1271, %v2545, %v2557
        %v2569 = vsel %vm1197, %v2558, %v2559
        %v2570 = vsel %vm1271, %v2547, %v2569
        %v2571 = vsel %vm1197, %v2559, %v2560
        %v2572 = vsel %vm1271, %v2549, %v2571
        %v2573 = vsel %vm1197, %v2560, %v2561
        %v2574 = vsel %vm1271, %v2551, %v2573
        %v2575 = vsel %vm1271, %v2553, %v2561
        %2584 = vst [vmem:[#allocation4 + $0x498] sm:$0xff] %v2563
        %2585 = vst [vmem:[#allocation4 + $0x4a0] sm:$0xff] %v2565
        %2586 = vst [vmem:[#allocation4 + $0x4a8] sm:$0xff] %v2567
        %2587 = vst.msk [vmem:[#allocation4 + $0x4b0] sm:$0xf] %vm1224, %v2568
        %2588 = vst [vmem:[#allocation4 + $0x4b4] sm:$0xff] %v2570
        %2589 = vst [vmem:[#allocation4 + $0x4bc] sm:$0xff] %v2572
        %2590 = vst [vmem:[#allocation4 + $0x4c4] sm:$0xff] %v2574
        %2591 = vst.msk [vmem:[#allocation4 + $0x4cc] sm:$0xf] %vm1224, %v2575
        %v2592 = vld [vmem:[#allocation3 + $0xc] sm:$0xff]
        %v2593 = vld [vmem:[#allocation3 + $0x14] sm:$0xff]
        %v2594 = vld [vmem:[#allocation3 + $0x1c] sm:$0xff]
        %v2595 = vld [vmem:[#allocation3 + $0x24] sm:$0xf]
        %v2596 = vld [vmem:[#allocation3 + $0x34] sm:$0xff]
        %v2597 = vld [vmem:[#allocation3 + $0x3c] sm:$0xff]
        %v2598 = vld [vmem:[#allocation3 + $0x44] sm:$0xff]
        %v2599 = vld [vmem:[#allocation3 + $0x4c] sm:$0xf]
        %2600 = vst [vmem:[#allocation4 + $0x4d0] sm:$0xff] %v2592
        %2601 = vst [vmem:[#allocation4 + $0x4d8] sm:$0xff] %v2593
        %2602 = vst [vmem:[#allocation4 + $0x4e0] sm:$0xff] %v2594
        %2603 = vst.msk [vmem:[#allocation4 + $0x4e8] sm:$0xf] %vm1224, %v2595
        %2604 = vst [vmem:[#allocation4 + $0x4ec] sm:$0xff] %v2596
        %2605 = vst [vmem:[#allocation4 + $0x4f4] sm:$0xff] %v2597
        %2606 = vst [vmem:[#allocation4 + $0x4fc] sm:$0xff] %v2598
        %2607 = vst.msk [vmem:[#allocation4 + $0x504] sm:$0xf] %vm1224, %v2599
        %v2608 = vld [vmem:[#allocation3 + $0xc] sm:$0xff]
        %v2609 = vld [vmem:[#allocation3 + $0x14] sm:$0xff]
        %v2610 = vld [vmem:[#allocation3 + $0x1c] sm:$0xff]
        %v2611 = vld [vmem:[#allocation3 + $0x24] sm:$0xf]
        %v2612 = vld [vmem:[#allocation3 + $0x34] sm:$0xff]
        %v2613 = vld [vmem:[#allocation3 + $0x3c] sm:$0xff]
        %v2614 = vld [vmem:[#allocation3 + $0x44] sm:$0xff]
        %v2615 = vld [vmem:[#allocation3 + $0x4c] sm:$0xf]
        %2624 = vrot.lane.b32.xlu0 %v2608, 126
        %v2625 = vpop.permute.xlu0 %2624
        %2626 = vrot.lane.b32.xlu0 %v2609, 126
        %v2627 = vpop.permute.xlu0 %2626
        %2628 = vrot.lane.b32.xlu0 %v2610, 126
        %v2629 = vpop.permute.xlu0 %2628
        %2630 = vrot.lane.b32.xlu0 %v2611, 126
        %v2631 = vpop.permute.xlu0 %2630
        %2632 = vrot.lane.b32.xlu0 %v2612, 126
        %v2633 = vpop.permute.xlu0 %2632
        %2634 = vrot.lane.b32.xlu0 %v2613, 126
        %v2635 = vpop.permute.xlu0 %2634
        %2636 = vrot.lane.b32.xlu0 %v2614, 126
        %v2637 = vpop.permute.xlu0 %2636
        %2638 = vrot.lane.b32.xlu0 %v2615, 126
        %v2639 = vpop.permute.xlu0 %2638
        %v2640 = vrot.slane %v2625, 4
        %v2641 = vrot.slane %v2627, 4
        %v2642 = vrot.slane %v2629, 4
        %v2643 = vrot.slane %v2631, 4
        %v2644 = vrot.slane %v2633, 4
        %v2645 = vrot.slane %v2635, 4
        %v2646 = vrot.slane %v2637, 4
        %v2647 = vrot.slane %v2639, 4
        %v2648 = vsel %vm1197, %v2640, %v2641
        %v2649 = vsel %vm1358, %v2625, %v2648
        %v2650 = vsel %vm1197, %v2641, %v2642
        %v2651 = vsel %vm1358, %v2627, %v2650
        %v2652 = vsel %vm1197, %v2642, %v2643
        %v2653 = vsel %vm1358, %v2629, %v2652
        %v2654 = vsel %vm1197, %v2644, %v2645
        %v2655 = vsel %vm1358, %v2633, %v2654
        %v2656 = vsel %vm1197, %v2645, %v2646
        %v2657 = vsel %vm1358, %v2635, %v2656
        %v2658 = vsel %vm1197, %v2646, %v2647
        %v2659 = vsel %vm1358, %v2637, %v2658
        %2668 = vst [vmem:[#allocation4 + $0x508] sm:$0xff] %v2649
        %2669 = vst [vmem:[#allocation4 + $0x510] sm:$0xff] %v2651
        %2670 = vst [vmem:[#allocation4 + $0x518] sm:$0xff] %v2653
        %2671 = vst.msk [vmem:[#allocation4 + $0x520] sm:$0xf] %vm1224, %v2631
        %2672 = vst [vmem:[#allocation4 + $0x524] sm:$0xff] %v2655
        %2673 = vst [vmem:[#allocation4 + $0x52c] sm:$0xff] %v2657
        %2674 = vst [vmem:[#allocation4 + $0x534] sm:$0xff] %v2659
        %2675 = vst.msk [vmem:[#allocation4 + $0x53c] sm:$0xf] %vm1224, %v2639
        %v2676 = vld [vmem:[#allocation3 + $0xc] sm:$0xff]
        %v2677 = vld [vmem:[#allocation3 + $0x14] sm:$0xff]
        %v2678 = vld [vmem:[#allocation3 + $0x1c] sm:$0xff]
        %v2679 = vld [vmem:[#allocation3 + $0x24] sm:$0xf]
        %v2680 = vld [vmem:[#allocation3 + $0x34] sm:$0xff]
        %v2681 = vld [vmem:[#allocation3 + $0x3c] sm:$0xff]
        %v2682 = vld [vmem:[#allocation3 + $0x44] sm:$0xff]
        %v2683 = vld [vmem:[#allocation3 + $0x4c] sm:$0xf]
        %2692 = vrot.lane.b32.xlu0 %v2676, 124
        %v2693 = vpop.permute.xlu0 %2692
        %2694 = vrot.lane.b32.xlu0 %v2677, 124
        %v2695 = vpop.permute.xlu0 %2694
        %2696 = vrot.lane.b32.xlu0 %v2678, 124
        %v2697 = vpop.permute.xlu0 %2696
        %2698 = vrot.lane.b32.xlu0 %v2679, 124
        %v2699 = vpop.permute.xlu0 %2698
        %2700 = vrot.lane.b32.xlu0 %v2680, 124
        %v2701 = vpop.permute.xlu0 %2700
        %2702 = vrot.lane.b32.xlu0 %v2681, 124
        %v2703 = vpop.permute.xlu0 %2702
        %2704 = vrot.lane.b32.xlu0 %v2682, 124
        %v2705 = vpop.permute.xlu0 %2704
        %2706 = vrot.lane.b32.xlu0 %v2683, 124
        %v2707 = vpop.permute.xlu0 %2706
        %v2708 = vrot.slane %v2693, 4
        %v2709 = vrot.slane %v2695, 4
        %v2710 = vrot.slane %v2697, 4
        %v2711 = vrot.slane %v2699, 4
        %v2712 = vrot.slane %v2701, 4
        %v2713 = vrot.slane %v2703, 4
        %v2714 = vrot.slane %v2705, 4
        %v2715 = vrot.slane %v2707, 4
        %v2716 = vsel %vm1197, %v2708, %v2709
        %v2717 = vsel %vm1427, %v2693, %v2716
        %v2718 = vsel %vm1197, %v2709, %v2710
        %v2719 = vsel %vm1427, %v2695, %v2718
        %v2720 = vsel %vm1197, %v2710, %v2711
        %v2721 = vsel %vm1427, %v2697, %v2720
        %v2722 = vsel %vm1197, %v2712, %v2713
        %v2723 = vsel %vm1427, %v2701, %v2722
        %v2724 = vsel %vm1197, %v2713, %v2714
        %v2725 = vsel %vm1427, %v2703, %v2724
        %v2726 = vsel %vm1197, %v2714, %v2715
        %v2727 = vsel %vm1427, %v2705, %v2726
        %2736 = vst [vmem:[#allocation4 + $0x540] sm:$0xff] %v2717
        %2737 = vst [vmem:[#allocation4 + $0x548] sm:$0xff] %v2719
        %2738 = vst [vmem:[#allocation4 + $0x550] sm:$0xff] %v2721
        %2739 = vst.msk [vmem:[#allocation4 + $0x558] sm:$0xf] %vm1224, %v2699
        %2740 = vst [vmem:[#allocation4 + $0x55c] sm:$0xff] %v2723
        %2741 = vst [vmem:[#allocation4 + $0x564] sm:$0xff] %v2725
        %2742 = vst [vmem:[#allocation4 + $0x56c] sm:$0xff] %v2727
        %2743 = vst.msk [vmem:[#allocation4 + $0x574] sm:$0xf] %vm1224, %v2707
        %v2744 = vld [vmem:[%s3] sm:$0xff]
        %v2745 = vld [vmem:[%s3 + $0x8] sm:$0xff]
        %v2746 = vld [vmem:[%s3 + $0x10] sm:$0xff]
        %v2747 = vld [vmem:[%s3 + $0x18] sm:$0xff]
        %v2748 = vld [vmem:[%s3 + $0x20] sm:$0xff]
        %v2749 = vld [vmem:[%s3 + $0x28] sm:$0xff]
        %v2750 = vld [vmem:[%s3 + $0x30] sm:$0xff]
        %v2751 = vld [vmem:[%s3 + $0x38] sm:$0xff]
        %v2752 = vld [vmem:[#allocation4] sm:$0xff]
        %v2753 = vld [vmem:[#allocation4 + $0x8] sm:$0xff]
        %v2754 = vld [vmem:[#allocation4 + $0x10] sm:$0xff]
        %v2755 = vld [vmem:[#allocation4 + $0x18] sm:$0xf]
        %v2756 = vld [vmem:[#allocation4 + $0x1c] sm:$0xff]
        %v2757 = vld [vmem:[#allocation4 + $0x24] sm:$0xff]
        %v2758 = vld [vmem:[#allocation4 + $0x2c] sm:$0xff]
        %v2759 = vld [vmem:[#allocation4 + $0x34] sm:$0xf]
        %v2760 = vld [vmem:[#allocation4 + $0x38] sm:$0xff]
        %v2761 = vld [vmem:[#allocation4 + $0x40] sm:$0xff]
        %v2762 = vld [vmem:[#allocation4 + $0x48] sm:$0xff]
        %v2763 = vld [vmem:[#allocation4 + $0x50] sm:$0xf]
        %v2764 = vld [vmem:[#allocation4 + $0x54] sm:$0xff]
        %v2765 = vld [vmem:[#allocation4 + $0x5c] sm:$0xff]
        %v2766 = vld [vmem:[#allocation4 + $0x64] sm:$0xff]
        %v2767 = vld [vmem:[#allocation4 + $0x6c] sm:$0xf]
        %v2768 = vld [vmem:[#allocation4 + $0x70] sm:$0xff]
        %v2769 = vld [vmem:[#allocation4 + $0x78] sm:$0xff]
        %v2770 = vld [vmem:[#allocation4 + $0x80] sm:$0xff]
        %v2771 = vld [vmem:[#allocation4 + $0x88] sm:$0xf]
        %v2772 = vld [vmem:[#allocation4 + $0x8c] sm:$0xff]
        %v2773 = vld [vmem:[#allocation4 + $0x94] sm:$0xff]
        %v2774 = vld [vmem:[#allocation4 + $0x9c] sm:$0xff]
        %v2775 = vld [vmem:[#allocation4 + $0xa4] sm:$0xf]
        %v2776 = vld [vmem:[#allocation4 + $0xa8] sm:$0xff]
        %v2777 = vld [vmem:[#allocation4 + $0xb0] sm:$0xff]
        %v2778 = vld [vmem:[#allocation4 + $0xb8] sm:$0xff]
        %v2779 = vld [vmem:[#allocation4 + $0xc0] sm:$0xf]
        %v2780 = vld [vmem:[#allocation4 + $0xc4] sm:$0xff]
        %v2781 = vld [vmem:[#allocation4 + $0xcc] sm:$0xff]
        %v2782 = vld [vmem:[#allocation4 + $0xd4] sm:$0xff]
        %v2783 = vld [vmem:[#allocation4 + $0xdc] sm:$0xf]
        %v2784 = vld [vmem:[#allocation4 + $0xe0] sm:$0xff]
        %v2785 = vld [vmem:[#allocation4 + $0xe8] sm:$0xff]
        %v2786 = vld [vmem:[#allocation4 + $0xf0] sm:$0xff]
        %v2787 = vld [vmem:[#allocation4 + $0xf8] sm:$0xf]
        %v2788 = vld [vmem:[#allocation4 + $0xfc] sm:$0xff]
        %v2789 = vld [vmem:[#allocation4 + $0x104] sm:$0xff]
        %v2790 = vld [vmem:[#allocation4 + $0x10c] sm:$0xff]
        %v2791 = vld [vmem:[#allocation4 + $0x114] sm:$0xf]
        %v2792 = vld [vmem:[#allocation4 + $0x118] sm:$0xff]
        %v2793 = vld [vmem:[#allocation4 + $0x120] sm:$0xff]
        %v2794 = vld [vmem:[#allocation4 + $0x128] sm:$0xff]
        %v2795 = vld [vmem:[#allocation4 + $0x130] sm:$0xf]
        %v2796 = vld [vmem:[#allocation4 + $0x134] sm:$0xff]
        %v2797 = vld [vmem:[#allocation4 + $0x13c] sm:$0xff]
        %v2798 = vld [vmem:[#allocation4 + $0x144] sm:$0xff]
        %v2799 = vld [vmem:[#allocation4 + $0x14c] sm:$0xf]
        %v2800 = vld [vmem:[#allocation4 + $0x150] sm:$0xff]
        %v2801 = vld [vmem:[#allocation4 + $0x158] sm:$0xff]
        %v2802 = vld [vmem:[#allocation4 + $0x160] sm:$0xff]
        %v2803 = vld [vmem:[#allocation4 + $0x168] sm:$0xf]
        %v2804 = vld [vmem:[#allocation4 + $0x16c] sm:$0xff]
        %v2805 = vld [vmem:[#allocation4 + $0x174] sm:$0xff]
        %v2806 = vld [vmem:[#allocation4 + $0x17c] sm:$0xff]
        %v2807 = vld [vmem:[#allocation4 + $0x184] sm:$0xf]
        %v2808 = vld [vmem:[#allocation4 + $0x188] sm:$0xff]
        %v2809 = vld [vmem:[#allocation4 + $0x190] sm:$0xff]
        %v2810 = vld [vmem:[#allocation4 + $0x198] sm:$0xff]
        %v2811 = vld [vmem:[#allocation4 + $0x1a0] sm:$0xf]
        %v2812 = vld [vmem:[#allocation4 + $0x1a4] sm:$0xff]
        %v2813 = vld [vmem:[#allocation4 + $0x1ac] sm:$0xff]
        %v2814 = vld [vmem:[#allocation4 + $0x1b4] sm:$0xff]
        %v2815 = vld [vmem:[#allocation4 + $0x1bc] sm:$0xf]
        %v2816 = vld [vmem:[#allocation4 + $0x1c0] sm:$0xff]
        %v2817 = vld [vmem:[#allocation4 + $0x1c8] sm:$0xff]
        %v2818 = vld [vmem:[#allocation4 + $0x1d0] sm:$0xff]
        %v2819 = vld [vmem:[#allocation4 + $0x1d8] sm:$0xf]
        %v2820 = vld [vmem:[#allocation4 + $0x1dc] sm:$0xff]
        %v2821 = vld [vmem:[#allocation4 + $0x1e4] sm:$0xff]
        %v2822 = vld [vmem:[#allocation4 + $0x1ec] sm:$0xff]
        %v2823 = vld [vmem:[#allocation4 + $0x1f4] sm:$0xf]
        %v2824 = vld [vmem:[#allocation4 + $0x1f8] sm:$0xff]
        %v2825 = vld [vmem:[#allocation4 + $0x200] sm:$0xff]
        %v2826 = vld [vmem:[#allocation4 + $0x208] sm:$0xff]
        %v2827 = vld [vmem:[#allocation4 + $0x210] sm:$0xf]
        %v2828 = vld [vmem:[#allocation4 + $0x214] sm:$0xff]
        %v2829 = vld [vmem:[#allocation4 + $0x21c] sm:$0xff]
        %v2830 = vld [vmem:[#allocation4 + $0x224] sm:$0xff]
        %v2831 = vld [vmem:[#allocation4 + $0x22c] sm:$0xf]
        %v2832 = vld [vmem:[#allocation4 + $0x230] sm:$0xff]
        %v2833 = vld [vmem:[#allocation4 + $0x238] sm:$0xff]
        %v2834 = vld [vmem:[#allocation4 + $0x240] sm:$0xff]
        %v2835 = vld [vmem:[#allocation4 + $0x248] sm:$0xf]
        %v2836 = vld [vmem:[#allocation4 + $0x24c] sm:$0xff]
        %v2837 = vld [vmem:[#allocation4 + $0x254] sm:$0xff]
        %v2838 = vld [vmem:[#allocation4 + $0x25c] sm:$0xff]
        %v2839 = vld [vmem:[#allocation4 + $0x264] sm:$0xf]
        %v2840 = vld [vmem:[#allocation4 + $0x268] sm:$0xff]
        %v2841 = vld [vmem:[#allocation4 + $0x270] sm:$0xff]
        %v2842 = vld [vmem:[#allocation4 + $0x278] sm:$0xff]
        %v2843 = vld [vmem:[#allocation4 + $0x280] sm:$0xf]
        %v2844 = vld [vmem:[#allocation4 + $0x284] sm:$0xff]
        %v2845 = vld [vmem:[#allocation4 + $0x28c] sm:$0xff]
        %v2846 = vld [vmem:[#allocation4 + $0x294] sm:$0xff]
        %v2847 = vld [vmem:[#allocation4 + $0x29c] sm:$0xf]
        %v2848 = vld [vmem:[#allocation4 + $0x2a0] sm:$0xff]
        %v2849 = vld [vmem:[#allocation4 + $0x2a8] sm:$0xff]
        %v2850 = vld [vmem:[#allocation4 + $0x2b0] sm:$0xff]
        %v2851 = vld [vmem:[#allocation4 + $0x2b8] sm:$0xf]
        %v2852 = vld [vmem:[#allocation4 + $0x2bc] sm:$0xff]
        %v2853 = vld [vmem:[#allocation4 + $0x2c4] sm:$0xff]
        %v2854 = vld [vmem:[#allocation4 + $0x2cc] sm:$0xff]
        %v2855 = vld [vmem:[#allocation4 + $0x2d4] sm:$0xf]
        %v2856 = vld [vmem:[#allocation4 + $0x2d8] sm:$0xff]
        %v2857 = vld [vmem:[#allocation4 + $0x2e0] sm:$0xff]
        %v2858 = vld [vmem:[#allocation4 + $0x2e8] sm:$0xff]
        %v2859 = vld [vmem:[#allocation4 + $0x2f0] sm:$0xf]
        %v2860 = vld [vmem:[#allocation4 + $0x2f4] sm:$0xff]
        %v2861 = vld [vmem:[#allocation4 + $0x2fc] sm:$0xff]
        %v2862 = vld [vmem:[#allocation4 + $0x304] sm:$0xff]
        %v2863 = vld [vmem:[#allocation4 + $0x30c] sm:$0xf]
        %v2864 = vld [vmem:[#allocation4 + $0x310] sm:$0xff]
        %v2865 = vld [vmem:[#allocation4 + $0x318] sm:$0xff]
        %v2866 = vld [vmem:[#allocation4 + $0x320] sm:$0xff]
        %v2867 = vld [vmem:[#allocation4 + $0x328] sm:$0xf]
        %v2868 = vld [vmem:[#allocation4 + $0x32c] sm:$0xff]
        %v2869 = vld [vmem:[#allocation4 + $0x334] sm:$0xff]
        %v2870 = vld [vmem:[#allocation4 + $0x33c] sm:$0xff]
        %v2871 = vld [vmem:[#allocation4 + $0x344] sm:$0xf]
        %v2872 = vld [vmem:[#allocation4 + $0x348] sm:$0xff]
        %v2873 = vld [vmem:[#allocation4 + $0x350] sm:$0xff]
        %v2874 = vld [vmem:[#allocation4 + $0x358] sm:$0xff]
        %v2875 = vld [vmem:[#allocation4 + $0x360] sm:$0xf]
        %v2876 = vld [vmem:[#allocation4 + $0x364] sm:$0xff]
        %v2877 = vld [vmem:[#allocation4 + $0x36c] sm:$0xff]
        %v2878 = vld [vmem:[#allocation4 + $0x374] sm:$0xff]
        %v2879 = vld [vmem:[#allocation4 + $0x37c] sm:$0xf]
        %v2880 = vld [vmem:[#allocation4 + $0x380] sm:$0xff]
        %v2881 = vld [vmem:[#allocation4 + $0x388] sm:$0xff]
        %v2882 = vld [vmem:[#allocation4 + $0x390] sm:$0xff]
        %v2883 = vld [vmem:[#allocation4 + $0x398] sm:$0xf]
        %v2884 = vld [vmem:[#allocation4 + $0x39c] sm:$0xff]
        %v2885 = vld [vmem:[#allocation4 + $0x3a4] sm:$0xff]
        %v2886 = vld [vmem:[#allocation4 + $0x3ac] sm:$0xff]
        %v2887 = vld [vmem:[#allocation4 + $0x3b4] sm:$0xf]
        %v2888 = vld [vmem:[#allocation4 + $0x3b8] sm:$0xff]
        %v2889 = vld [vmem:[#allocation4 + $0x3c0] sm:$0xff]
        %v2890 = vld [vmem:[#allocation4 + $0x3c8] sm:$0xff]
        %v2891 = vld [vmem:[#allocation4 + $0x3d0] sm:$0xf]
        %v2892 = vld [vmem:[#allocation4 + $0x3d4] sm:$0xff]
        %v2893 = vld [vmem:[#allocation4 + $0x3dc] sm:$0xff]
        %v2894 = vld [vmem:[#allocation4 + $0x3e4] sm:$0xff]
        %v2895 = vld [vmem:[#allocation4 + $0x3ec] sm:$0xf]
        %v2896 = vld [vmem:[#allocation4 + $0x3f0] sm:$0xff]
        %v2897 = vld [vmem:[#allocation4 + $0x3f8] sm:$0xff]
        %v2898 = vld [vmem:[#allocation4 + $0x400] sm:$0xff]
        %v2899 = vld [vmem:[#allocation4 + $0x408] sm:$0xf]
        %v2900 = vld [vmem:[#allocation4 + $0x40c] sm:$0xff]
        %v2901 = vld [vmem:[#allocation4 + $0x414] sm:$0xff]
        %v2902 = vld [vmem:[#allocation4 + $0x41c] sm:$0xff]
        %v2903 = vld [vmem:[#allocation4 + $0x424] sm:$0xf]
        %v2904 = vld [vmem:[#allocation4 + $0x428] sm:$0xff]
        %v2905 = vld [vmem:[#allocation4 + $0x430] sm:$0xff]
        %v2906 = vld [vmem:[#allocation4 + $0x438] sm:$0xff]
        %v2907 = vld [vmem:[#allocation4 + $0x440] sm:$0xf]
        %v2908 = vld [vmem:[#allocation4 + $0x444] sm:$0xff]
        %v2909 = vld [vmem:[#allocation4 + $0x44c] sm:$0xff]
        %v2910 = vld [vmem:[#allocation4 + $0x454] sm:$0xff]
        %v2911 = vld [vmem:[#allocation4 + $0x45c] sm:$0xf]
        %v2912 = vld [vmem:[#allocation4 + $0x460] sm:$0xff]
        %v2913 = vld [vmem:[#allocation4 + $0x468] sm:$0xff]
        %v2914 = vld [vmem:[#allocation4 + $0x470] sm:$0xff]
        %v2915 = vld [vmem:[#allocation4 + $0x478] sm:$0xf]
        %v2916 = vld [vmem:[#allocation4 + $0x47c] sm:$0xff]
        %v2917 = vld [vmem:[#allocation4 + $0x484] sm:$0xff]
        %v2918 = vld [vmem:[#allocation4 + $0x48c] sm:$0xff]
        %v2919 = vld [vmem:[#allocation4 + $0x494] sm:$0xf]
        %v2920 = vld [vmem:[#allocation4 + $0x498] sm:$0xff]
        %v2921 = vld [vmem:[#allocation4 + $0x4a0] sm:$0xff]
        %v2922 = vld [vmem:[#allocation4 + $0x4a8] sm:$0xff]
        %v2923 = vld [vmem:[#allocation4 + $0x4b0] sm:$0xf]
        %v2924 = vld [vmem:[#allocation4 + $0x4b4] sm:$0xff]
        %v2925 = vld [vmem:[#allocation4 + $0x4bc] sm:$0xff]
        %v2926 = vld [vmem:[#allocation4 + $0x4c4] sm:$0xff]
        %v2927 = vld [vmem:[#allocation4 + $0x4cc] sm:$0xf]
        %v2928 = vld [vmem:[#allocation4 + $0x4d0] sm:$0xff]
        %v2929 = vld [vmem:[#allocation4 + $0x4d8] sm:$0xff]
        %v2930 = vld [vmem:[#allocation4 + $0x4e0] sm:$0xff]
        %v2931 = vld [vmem:[#allocation4 + $0x4e8] sm:$0xf]
        %v2932 = vld [vmem:[#allocation4 + $0x4ec] sm:$0xff]
        %v2933 = vld [vmem:[#allocation4 + $0x4f4] sm:$0xff]
        %v2934 = vld [vmem:[#allocation4 + $0x4fc] sm:$0xff]
        %v2935 = vld [vmem:[#allocation4 + $0x504] sm:$0xf]
        %v2936 = vld [vmem:[#allocation4 + $0x508] sm:$0xff]
        %v2937 = vld [vmem:[#allocation4 + $0x510] sm:$0xff]
        %v2938 = vld [vmem:[#allocation4 + $0x518] sm:$0xff]
        %v2939 = vld [vmem:[#allocation4 + $0x520] sm:$0xf]
        %v2940 = vld [vmem:[#allocation4 + $0x524] sm:$0xff]
        %v2941 = vld [vmem:[#allocation4 + $0x52c] sm:$0xff]
        %v2942 = vld [vmem:[#allocation4 + $0x534] sm:$0xff]
        %v2943 = vld [vmem:[#allocation4 + $0x53c] sm:$0xf]
        %v2944 = vld [vmem:[#allocation4 + $0x540] sm:$0xff]
        %v2945 = vld [vmem:[#allocation4 + $0x548] sm:$0xff]
        %v2946 = vld [vmem:[#allocation4 + $0x550] sm:$0xff]
        %v2947 = vld [vmem:[#allocation4 + $0x558] sm:$0xf]
        %v2948 = vld [vmem:[#allocation4 + $0x55c] sm:$0xff]
        %v2949 = vld [vmem:[#allocation4 + $0x564] sm:$0xff]
        %v2950 = vld [vmem:[#allocation4 + $0x56c] sm:$0xff]
        %v2951 = vld [vmem:[#allocation4 + $0x574] sm:$0xf]
        %v2952 = vld [vmem:[%s4] sm:$0xff]
        %v2953 = vld [vmem:[%s4 + $0x8] sm:$0xff]
        %v2954 = vld [vmem:[%s4 + $0x10] sm:$0xff]
        %v2955 = vld [vmem:[%s4 + $0x18] sm:$0xff]
        %2957 = vset.pattern.permute.xlu0 0
        %2958 = vperm.xlu0 %2957, %v2952
        %v2959 = vpop.permute.xlu0 %2958
        %2962 = vset.pattern.permute.xlu0 0
        %2963 = vperm.xlu0 %2962, %v2953
        %v2964 = vpop.permute.xlu0 %2963
        %2967 = vset.pattern.permute.xlu0 0
        %2968 = vperm.xlu0 %2967, %v2954
        %v2969 = vpop.permute.xlu0 %2968
        %2972 = vset.pattern.permute.xlu0 0
        %2973 = vperm.xlu0 %2972, %v2955
        %v2974 = vpop.permute.xlu0 %2973
        %v2984 = vunpack.c.l.b16 %v2744
        %v2985 = vunpack.c.h.b16 %v2744
        %v2986 = vunpack.c.l.b16 %v2745
        %v2987 = vunpack.c.h.b16 %v2745
        %v2988 = vunpack.c.l.b16 %v2746
        %v2989 = vunpack.c.h.b16 %v2746
        %v2990 = vunpack.c.l.b16 %v2747
        %v2991 = vunpack.c.h.b16 %v2747
        %v2992 = vunpack.c.l.b16 %v2748
        %v2993 = vunpack.c.h.b16 %v2748
        %v2994 = vunpack.c.l.b16 %v2749
        %v2995 = vunpack.c.h.b16 %v2749
        %v2996 = vunpack.c.l.b16 %v2750
        %v2997 = vunpack.c.h.b16 %v2750
        %v2998 = vunpack.c.l.b16 %v2751
        %v2999 = vunpack.c.h.b16 %v2751
        %v3000 = vpack.c.b16 %v2988, %v2984
        %v3001 = vpack.c.b16 %v2989, %v2985
        %v3002 = vpack.c.b16 %v2990, %v2986
        %v3003 = vpack.c.b16 %v2991, %v2987
        %v3004 = vpack.c.b16 %v2996, %v2992
        %v3005 = vpack.c.b16 %v2997, %v2993
        %v3006 = vpack.c.b16 %v2998, %v2994
        %v3007 = vpack.c.b16 %v2999, %v2995
        %v3214 = vunpack.c.l.b16 %v2752
        %v3215 = vunpack.c.h.b16 %v2752
        %v3216 = vunpack.c.l.b16 %v2753
        %v3217 = vunpack.c.h.b16 %v2753
        %v3218 = vunpack.c.l.b16 %v2754
        %v3219 = vunpack.c.h.b16 %v2754
        %v3220 = vunpack.c.l.b16 %v2755
        %v3221 = vunpack.c.l.b16 %v2756
        %v3222 = vunpack.c.h.b16 %v2756
        %v3223 = vunpack.c.l.b16 %v2757
        %v3224 = vunpack.c.h.b16 %v2757
        %v3225 = vunpack.c.l.b16 %v2758
        %v3226 = vunpack.c.h.b16 %v2758
        %v3227 = vunpack.c.l.b16 %v2759
        %v3228 = vunpack.c.l.b16 %v2760
        %v3229 = vunpack.c.h.b16 %v2760
        %v3230 = vunpack.c.l.b16 %v2761
        %v3231 = vunpack.c.h.b16 %v2761
        %v3232 = vunpack.c.l.b16 %v2762
        %v3233 = vunpack.c.h.b16 %v2762
        %v3234 = vunpack.c.l.b16 %v2763
        %v3235 = vunpack.c.l.b16 %v2764
        %v3236 = vunpack.c.h.b16 %v2764
        %v3237 = vunpack.c.l.b16 %v2765
        %v3238 = vunpack.c.h.b16 %v2765
        %v3239 = vunpack.c.l.b16 %v2766
        %v3240 = vunpack.c.h.b16 %v2766
        %v3241 = vunpack.c.l.b16 %v2767
        %v3242 = vunpack.c.l.b16 %v2768
        %v3243 = vunpack.c.h.b16 %v2768
        %v3244 = vunpack.c.l.b16 %v2769
        %v3245 = vunpack.c.h.b16 %v2769
        %v3246 = vunpack.c.l.b16 %v2770
        %v3247 = vunpack.c.h.b16 %v2770
        %v3248 = vunpack.c.l.b16 %v2771
        %v3249 = vunpack.c.l.b16 %v2772
        %v3250 = vunpack.c.h.b16 %v2772
        %v3251 = vunpack.c.l.b16 %v2773
        %v3252 = vunpack.c.h.b16 %v2773
        %v3253 = vunpack.c.l.b16 %v2774
        %v3254 = vunpack.c.h.b16 %v2774
        %v3255 = vunpack.c.l.b16 %v2775
        %v3256 = vunpack.c.l.b16 %v2776
        %v3257 = vunpack.c.h.b16 %v2776
        %v3258 = vunpack.c.l.b16 %v2777
        %v3259 = vunpack.c.h.b16 %v2777
        %v3260 = vunpack.c.l.b16 %v2778
        %v3261 = vunpack.c.h.b16 %v2778
        %v3262 = vunpack.c.l.b16 %v2779
        %v3263 = vunpack.c.l.b16 %v2780
        %v3264 = vunpack.c.h.b16 %v2780
        %v3265 = vunpack.c.l.b16 %v2781
        %v3266 = vunpack.c.h.b16 %v2781
        %v3267 = vunpack.c.l.b16 %v2782
        %v3268 = vunpack.c.h.b16 %v2782
        %v3269 = vunpack.c.l.b16 %v2783
        %v3270 = vunpack.c.l.b16 %v2784
        %v3271 = vunpack.c.h.b16 %v2784
        %v3272 = vunpack.c.l.b16 %v2785
        %v3273 = vunpack.c.h.b16 %v2785
        %v3274 = vunpack.c.l.b16 %v2786
        %v3275 = vunpack.c.h.b16 %v2786
        %v3276 = vunpack.c.l.b16 %v2787
        %v3277 = vunpack.c.l.b16 %v2788
        %v3278 = vunpack.c.h.b16 %v2788
        %v3279 = vunpack.c.l.b16 %v2789
        %v3280 = vunpack.c.h.b16 %v2789
        %v3281 = vunpack.c.l.b16 %v2790
        %v3282 = vunpack.c.h.b16 %v2790
        %v3283 = vunpack.c.l.b16 %v2791
        %v3284 = vunpack.c.l.b16 %v2792
        %v3285 = vunpack.c.h.b16 %v2792
        %v3286 = vunpack.c.l.b16 %v2793
        %v3287 = vunpack.c.h.b16 %v2793
        %v3288 = vunpack.c.l.b16 %v2794
        %v3289 = vunpack.c.h.b16 %v2794
        %v3290 = vunpack.c.l.b16 %v2795
        %v3291 = vunpack.c.l.b16 %v2796
        %v3292 = vunpack.c.h.b16 %v2796
        %v3293 = vunpack.c.l.b16 %v2797
        %v3294 = vunpack.c.h.b16 %v2797
        %v3295 = vunpack.c.l.b16 %v2798
        %v3296 = vunpack.c.h.b16 %v2798
        %v3297 = vunpack.c.l.b16 %v2799
        %v3298 = vunpack.c.l.b16 %v2800
        %v3299 = vunpack.c.h.b16 %v2800
        %v3300 = vunpack.c.l.b16 %v2801
        %v3301 = vunpack.c.h.b16 %v2801
        %v3302 = vunpack.c.l.b16 %v2802
        %v3303 = vunpack.c.h.b16 %v2802
        %v3304 = vunpack.c.l.b16 %v2803
        %v3305 = vunpack.c.l.b16 %v2804
        %v3306 = vunpack.c.h.b16 %v2804
        %v3307 = vunpack.c.l.b16 %v2805
        %v3308 = vunpack.c.h.b16 %v2805
        %v3309 = vunpack.c.l.b16 %v2806
        %v3310 = vunpack.c.h.b16 %v2806
        %v3311 = vunpack.c.l.b16 %v2807
        %v3312 = vunpack.c.l.b16 %v2808
        %v3313 = vunpack.c.h.b16 %v2808
        %v3314 = vunpack.c.l.b16 %v2809
        %v3315 = vunpack.c.h.b16 %v2809
        %v3316 = vunpack.c.l.b16 %v2810
        %v3317 = vunpack.c.h.b16 %v2810
        %v3318 = vunpack.c.l.b16 %v2811
        %v3319 = vunpack.c.l.b16 %v2812
        %v3320 = vunpack.c.h.b16 %v2812
        %v3321 = vunpack.c.l.b16 %v2813
        %v3322 = vunpack.c.h.b16 %v2813
        %v3323 = vunpack.c.l.b16 %v2814
        %v3324 = vunpack.c.h.b16 %v2814
        %v3325 = vunpack.c.l.b16 %v2815
        %v3326 = vunpack.c.l.b16 %v2816
        %v3327 = vunpack.c.h.b16 %v2816
        %v3328 = vunpack.c.l.b16 %v2817
        %v3329 = vunpack.c.h.b16 %v2817
        %v3330 = vunpack.c.l.b16 %v2818
        %v3331 = vunpack.c.h.b16 %v2818
        %v3332 = vunpack.c.l.b16 %v2819
        %v3333 = vunpack.c.l.b16 %v2820
        %v3334 = vunpack.c.h.b16 %v2820
        %v3335 = vunpack.c.l.b16 %v2821
        %v3336 = vunpack.c.h.b16 %v2821
        %v3337 = vunpack.c.l.b16 %v2822
        %v3338 = vunpack.c.h.b16 %v2822
        %v3339 = vunpack.c.l.b16 %v2823
        %v3340 = vunpack.c.l.b16 %v2824
        %v3341 = vunpack.c.h.b16 %v2824
        %v3342 = vunpack.c.l.b16 %v2825
        %v3343 = vunpack.c.h.b16 %v2825
        %v3344 = vunpack.c.l.b16 %v2826
        %v3345 = vunpack.c.h.b16 %v2826
        %v3346 = vunpack.c.l.b16 %v2827
        %v3347 = vunpack.c.l.b16 %v2828
        %v3348 = vunpack.c.h.b16 %v2828
        %v3349 = vunpack.c.l.b16 %v2829
        %v3350 = vunpack.c.h.b16 %v2829
        %v3351 = vunpack.c.l.b16 %v2830
        %v3352 = vunpack.c.h.b16 %v2830
        %v3353 = vunpack.c.l.b16 %v2831
        %v3354 = vunpack.c.l.b16 %v2832
        %v3355 = vunpack.c.h.b16 %v2832
        %v3356 = vunpack.c.l.b16 %v2833
        %v3357 = vunpack.c.h.b16 %v2833
        %v3358 = vunpack.c.l.b16 %v2834
        %v3359 = vunpack.c.h.b16 %v2834
        %v3360 = vunpack.c.l.b16 %v2835
        %v3361 = vunpack.c.l.b16 %v2836
        %v3362 = vunpack.c.h.b16 %v2836
        %v3363 = vunpack.c.l.b16 %v2837
        %v3364 = vunpack.c.h.b16 %v2837
        %v3365 = vunpack.c.l.b16 %v2838
        %v3366 = vunpack.c.h.b16 %v2838
        %v3367 = vunpack.c.l.b16 %v2839
        %v3368 = vunpack.c.l.b16 %v2840
        %v3369 = vunpack.c.h.b16 %v2840
        %v3370 = vunpack.c.l.b16 %v2841
        %v3371 = vunpack.c.h.b16 %v2841
        %v3372 = vunpack.c.l.b16 %v2842
        %v3373 = vunpack.c.h.b16 %v2842
        %v3374 = vunpack.c.l.b16 %v2843
        %v3375 = vunpack.c.l.b16 %v2844
        %v3376 = vunpack.c.h.b16 %v2844
        %v3377 = vunpack.c.l.b16 %v2845
        %v3378 = vunpack.c.h.b16 %v2845
        %v3379 = vunpack.c.l.b16 %v2846
        %v3380 = vunpack.c.h.b16 %v2846
        %v3381 = vunpack.c.l.b16 %v2847
        %v3382 = vunpack.c.l.b16 %v2848
        %v3383 = vunpack.c.h.b16 %v2848
        %v3384 = vunpack.c.l.b16 %v2849
        %v3385 = vunpack.c.h.b16 %v2849
        %v3386 = vunpack.c.l.b16 %v2850
        %v3387 = vunpack.c.h.b16 %v2850
        %v3388 = vunpack.c.l.b16 %v2851
        %v3389 = vunpack.c.l.b16 %v2852
        %v3390 = vunpack.c.h.b16 %v2852
        %v3391 = vunpack.c.l.b16 %v2853
        %v3392 = vunpack.c.h.b16 %v2853
        %v3393 = vunpack.c.l.b16 %v2854
        %v3394 = vunpack.c.h.b16 %v2854
        %v3395 = vunpack.c.l.b16 %v2855
        %v3396 = vunpack.c.l.b16 %v2856
        %v3397 = vunpack.c.h.b16 %v2856
        %v3398 = vunpack.c.l.b16 %v2857
        %v3399 = vunpack.c.h.b16 %v2857
        %v3400 = vunpack.c.l.b16 %v2858
        %v3401 = vunpack.c.h.b16 %v2858
        %v3402 = vunpack.c.l.b16 %v2859
        %v3403 = vunpack.c.l.b16 %v2860
        %v3404 = vunpack.c.h.b16 %v2860
        %v3405 = vunpack.c.l.b16 %v2861
        %v3406 = vunpack.c.h.b16 %v2861
        %v3407 = vunpack.c.l.b16 %v2862
        %v3408 = vunpack.c.h.b16 %v2862
        %v3409 = vunpack.c.l.b16 %v2863
        %v3410 = vunpack.c.l.b16 %v2864
        %v3411 = vunpack.c.h.b16 %v2864
        %v3412 = vunpack.c.l.b16 %v2865
        %v3413 = vunpack.c.h.b16 %v2865
        %v3414 = vunpack.c.l.b16 %v2866
        %v3415 = vunpack.c.h.b16 %v2866
        %v3416 = vunpack.c.l.b16 %v2867
        %v3417 = vunpack.c.l.b16 %v2868
        %v3418 = vunpack.c.h.b16 %v2868
        %v3419 = vunpack.c.l.b16 %v2869
        %v3420 = vunpack.c.h.b16 %v2869
        %v3421 = vunpack.c.l.b16 %v2870
        %v3422 = vunpack.c.h.b16 %v2870
        %v3423 = vunpack.c.l.b16 %v2871
        %v3424 = vunpack.c.l.b16 %v2872
        %v3425 = vunpack.c.h.b16 %v2872
        %v3426 = vunpack.c.l.b16 %v2873
        %v3427 = vunpack.c.h.b16 %v2873
        %v3428 = vunpack.c.l.b16 %v2874
        %v3429 = vunpack.c.h.b16 %v2874
        %v3430 = vunpack.c.l.b16 %v2875
        %v3431 = vunpack.c.l.b16 %v2876
        %v3432 = vunpack.c.h.b16 %v2876
        %v3433 = vunpack.c.l.b16 %v2877
        %v3434 = vunpack.c.h.b16 %v2877
        %v3435 = vunpack.c.l.b16 %v2878
        %v3436 = vunpack.c.h.b16 %v2878
        %v3437 = vunpack.c.l.b16 %v2879
        %v3438 = vunpack.c.l.b16 %v2880
        %v3439 = vunpack.c.h.b16 %v2880
        %v3440 = vunpack.c.l.b16 %v2881
        %v3441 = vunpack.c.h.b16 %v2881
        %v3442 = vunpack.c.l.b16 %v2882
        %v3443 = vunpack.c.h.b16 %v2882
        %v3444 = vunpack.c.l.b16 %v2883
        %v3445 = vunpack.c.l.b16 %v2884
        %v3446 = vunpack.c.h.b16 %v2884
        %v3447 = vunpack.c.l.b16 %v2885
        %v3448 = vunpack.c.h.b16 %v2885
        %v3449 = vunpack.c.l.b16 %v2886
        %v3450 = vunpack.c.h.b16 %v2886
        %v3451 = vunpack.c.l.b16 %v2887
        %v3452 = vunpack.c.l.b16 %v2888
        %v3453 = vunpack.c.h.b16 %v2888
        %v3454 = vunpack.c.l.b16 %v2889
        %v3455 = vunpack.c.h.b16 %v2889
        %v3456 = vunpack.c.l.b16 %v2890
        %v3457 = vunpack.c.h.b16 %v2890
        %v3458 = vunpack.c.l.b16 %v2891
        %v3459 = vunpack.c.l.b16 %v2892
        %v3460 = vunpack.c.h.b16 %v2892
        %v3461 = vunpack.c.l.b16 %v2893
        %v3462 = vunpack.c.h.b16 %v2893
        %v3463 = vunpack.c.l.b16 %v2894
        %v3464 = vunpack.c.h.b16 %v2894
        %v3465 = vunpack.c.l.b16 %v2895
        %v3466 = vunpack.c.l.b16 %v2896
        %v3467 = vunpack.c.h.b16 %v2896
        %v3468 = vunpack.c.l.b16 %v2897
        %v3469 = vunpack.c.h.b16 %v2897
        %v3470 = vunpack.c.l.b16 %v2898
        %v3471 = vunpack.c.h.b16 %v2898
        %v3472 = vunpack.c.l.b16 %v2899
        %v3473 = vunpack.c.l.b16 %v2900
        %v3474 = vunpack.c.h.b16 %v2900
        %v3475 = vunpack.c.l.b16 %v2901
        %v3476 = vunpack.c.h.b16 %v2901
        %v3477 = vunpack.c.l.b16 %v2902
        %v3478 = vunpack.c.h.b16 %v2902
        %v3479 = vunpack.c.l.b16 %v2903
        %v3480 = vunpack.c.l.b16 %v2904
        %v3481 = vunpack.c.h.b16 %v2904
        %v3482 = vunpack.c.l.b16 %v2905
        %v3483 = vunpack.c.h.b16 %v2905
        %v3484 = vunpack.c.l.b16 %v2906
        %v3485 = vunpack.c.h.b16 %v2906
        %v3486 = vunpack.c.l.b16 %v2907
        %v3487 = vunpack.c.l.b16 %v2908
        %v3488 = vunpack.c.h.b16 %v2908
        %v3489 = vunpack.c.l.b16 %v2909
        %v3490 = vunpack.c.h.b16 %v2909
        %v3491 = vunpack.c.l.b16 %v2910
        %v3492 = vunpack.c.h.b16 %v2910
        %v3493 = vunpack.c.l.b16 %v2911
        %v3494 = vunpack.c.l.b16 %v2912
        %v3495 = vunpack.c.h.b16 %v2912
        %v3496 = vunpack.c.l.b16 %v2913
        %v3497 = vunpack.c.h.b16 %v2913
        %v3498 = vunpack.c.l.b16 %v2914
        %v3499 = vunpack.c.h.b16 %v2914
        %v3500 = vunpack.c.l.b16 %v2915
        %v3501 = vunpack.c.l.b16 %v2916
        %v3502 = vunpack.c.h.b16 %v2916
        %v3503 = vunpack.c.l.b16 %v2917
        %v3504 = vunpack.c.h.b16 %v2917
        %v3505 = vunpack.c.l.b16 %v2918
        %v3506 = vunpack.c.h.b16 %v2918
        %v3507 = vunpack.c.l.b16 %v2919
        %v3508 = vunpack.c.l.b16 %v2920
        %v3509 = vunpack.c.h.b16 %v2920
        %v3510 = vunpack.c.l.b16 %v2921
        %v3511 = vunpack.c.h.b16 %v2921
        %v3512 = vunpack.c.l.b16 %v2922
        %v3513 = vunpack.c.h.b16 %v2922
        %v3514 = vunpack.c.l.b16 %v2923
        %v3515 = vunpack.c.l.b16 %v2924
        %v3516 = vunpack.c.h.b16 %v2924
        %v3517 = vunpack.c.l.b16 %v2925
        %v3518 = vunpack.c.h.b16 %v2925
        %v3519 = vunpack.c.l.b16 %v2926
        %v3520 = vunpack.c.h.b16 %v2926
        %v3521 = vunpack.c.l.b16 %v2927
        %v3522 = vunpack.c.l.b16 %v2928
        %v3523 = vunpack.c.h.b16 %v2928
        %v3524 = vunpack.c.l.b16 %v2929
        %v3525 = vunpack.c.h.b16 %v2929
        %v3526 = vunpack.c.l.b16 %v2930
        %v3527 = vunpack.c.h.b16 %v2930
        %v3528 = vunpack.c.l.b16 %v2931
        %v3529 = vunpack.c.l.b16 %v2932
        %v3530 = vunpack.c.h.b16 %v2932
        %v3531 = vunpack.c.l.b16 %v2933
        %v3532 = vunpack.c.h.b16 %v2933
        %v3533 = vunpack.c.l.b16 %v2934
        %v3534 = vunpack.c.h.b16 %v2934
        %v3535 = vunpack.c.l.b16 %v2935
        %v3536 = vunpack.c.l.b16 %v2936
        %v3537 = vunpack.c.h.b16 %v2936
        %v3538 = vunpack.c.l.b16 %v2937
        %v3539 = vunpack.c.h.b16 %v2937
        %v3540 = vunpack.c.l.b16 %v2938
        %v3541 = vunpack.c.h.b16 %v2938
        %v3542 = vunpack.c.l.b16 %v2939
        %v3543 = vunpack.c.l.b16 %v2940
        %v3544 = vunpack.c.h.b16 %v2940
        %v3545 = vunpack.c.l.b16 %v2941
        %v3546 = vunpack.c.h.b16 %v2941
        %v3547 = vunpack.c.l.b16 %v2942
        %v3548 = vunpack.c.h.b16 %v2942
        %v3549 = vunpack.c.l.b16 %v2943
        %v3550 = vunpack.c.l.b16 %v2944
        %v3551 = vunpack.c.h.b16 %v2944
        %v3552 = vunpack.c.l.b16 %v2945
        %v3553 = vunpack.c.h.b16 %v2945
        %v3554 = vunpack.c.l.b16 %v2946
        %v3555 = vunpack.c.h.b16 %v2946
        %v3556 = vunpack.c.l.b16 %v2947
        %v3557 = vunpack.c.l.b16 %v2948
        %v3558 = vunpack.c.h.b16 %v2948
        %v3559 = vunpack.c.l.b16 %v2949
        %v3560 = vunpack.c.h.b16 %v2949
        %v3561 = vunpack.c.l.b16 %v2950
        %v3562 = vunpack.c.h.b16 %v2950
        %v3563 = vunpack.c.l.b16 %v2951
        %v3564 = vpack.c.b16 %v3221, %v3214
        %v3565 = vpack.c.b16 %v3222, %v3215
        %v3566 = vpack.c.b16 %v3223, %v3216
        %v3567 = vpack.c.b16 %v3224, %v3217
        %v3568 = vpack.c.b16 %v3225, %v3218
        %v3569 = vpack.c.b16 %v3226, %v3219
        %v3570 = vpack.c.b16 %v3227, %v3220
        %v3571 = vpack.c.b16 %v3235, %v3228
        %v3572 = vpack.c.b16 %v3236, %v3229
        %v3573 = vpack.c.b16 %v3237, %v3230
        %v3574 = vpack.c.b16 %v3238, %v3231
        %v3575 = vpack.c.b16 %v3239, %v3232
        %v3576 = vpack.c.b16 %v3240, %v3233
        %v3577 = vpack.c.b16 %v3241, %v3234
        %v3578 = vpack.c.b16 %v3249, %v3242
        %v3579 = vpack.c.b16 %v3250, %v3243
        %v3580 = vpack.c.b16 %v3251, %v3244
        %v3581 = vpack.c.b16 %v3252, %v3245
        %v3582 = vpack.c.b16 %v3253, %v3246
        %v3583 = vpack.c.b16 %v3254, %v3247
        %v3584 = vpack.c.b16 %v3255, %v3248
        %v3585 = vpack.c.b16 %v3263, %v3256
        %v3586 = vpack.c.b16 %v3264, %v3257
        %v3587 = vpack.c.b16 %v3265, %v3258
        %v3588 = vpack.c.b16 %v3266, %v3259
        %v3589 = vpack.c.b16 %v3267, %v3260
        %v3590 = vpack.c.b16 %v3268, %v3261
        %v3591 = vpack.c.b16 %v3269, %v3262
        %v3592 = vpack.c.b16 %v3277, %v3270
        %v3593 = vpack.c.b16 %v3278, %v3271
        %v3594 = vpack.c.b16 %v3279, %v3272
        %v3595 = vpack.c.b16 %v3280, %v3273
        %v3596 = vpack.c.b16 %v3281, %v3274
        %v3597 = vpack.c.b16 %v3282, %v3275
        %v3598 = vpack.c.b16 %v3283, %v3276
        %v3599 = vpack.c.b16 %v3291, %v3284
        %v3600 = vpack.c.b16 %v3292, %v3285
        %v3601 = vpack.c.b16 %v3293, %v3286
        %v3602 = vpack.c.b16 %v3294, %v3287
        %v3603 = vpack.c.b16 %v3295, %v3288
        %v3604 = vpack.c.b16 %v3296, %v3289
        %v3605 = vpack.c.b16 %v3297, %v3290
        %v3606 = vpack.c.b16 %v3305, %v3298
        %v3607 = vpack.c.b16 %v3306, %v3299
        %v3608 = vpack.c.b16 %v3307, %v3300
        %v3609 = vpack.c.b16 %v3308, %v3301
        %v3610 = vpack.c.b16 %v3309, %v3302
        %v3611 = vpack.c.b16 %v3310, %v3303
        %v3612 = vpack.c.b16 %v3311, %v3304
        %v3613 = vpack.c.b16 %v3319, %v3312
        %v3614 = vpack.c.b16 %v3320, %v3313
        %v3615 = vpack.c.b16 %v3321, %v3314
        %v3616 = vpack.c.b16 %v3322, %v3315
        %v3617 = vpack.c.b16 %v3323, %v3316
        %v3618 = vpack.c.b16 %v3324, %v3317
        %v3619 = vpack.c.b16 %v3325, %v3318
        %v3620 = vpack.c.b16 %v3333, %v3326
        %v3621 = vpack.c.b16 %v3334, %v3327
        %v3622 = vpack.c.b16 %v3335, %v3328
        %v3623 = vpack.c.b16 %v3336, %v3329
        %v3624 = vpack.c.b16 %v3337, %v3330
        %v3625 = vpack.c.b16 %v3338, %v3331
        %v3626 = vpack.c.b16 %v3339, %v3332
        %v3627 = vpack.c.b16 %v3347, %v3340
        %v3628 = vpack.c.b16 %v3348, %v3341
        %v3629 = vpack.c.b16 %v3349, %v3342
        %v3630 = vpack.c.b16 %v3350, %v3343
        %v3631 = vpack.c.b16 %v3351, %v3344
        %v3632 = vpack.c.b16 %v3352, %v3345
        %v3633 = vpack.c.b16 %v3353, %v3346
        %v3634 = vpack.c.b16 %v3361, %v3354
        %v3635 = vpack.c.b16 %v3362, %v3355
        %v3636 = vpack.c.b16 %v3363, %v3356
        %v3637 = vpack.c.b16 %v3364, %v3357
        %v3638 = vpack.c.b16 %v3365, %v3358
        %v3639 = vpack.c.b16 %v3366, %v3359
        %v3640 = vpack.c.b16 %v3367, %v3360
        %v3641 = vpack.c.b16 %v3375, %v3368
        %v3642 = vpack.c.b16 %v3376, %v3369
        %v3643 = vpack.c.b16 %v3377, %v3370
        %v3644 = vpack.c.b16 %v3378, %v3371
        %v3645 = vpack.c.b16 %v3379, %v3372
        %v3646 = vpack.c.b16 %v3380, %v3373
        %v3647 = vpack.c.b16 %v3381, %v3374
        %v3648 = vpack.c.b16 %v3389, %v3382
        %v3649 = vpack.c.b16 %v3390, %v3383
        %v3650 = vpack.c.b16 %v3391, %v3384
        %v3651 = vpack.c.b16 %v3392, %v3385
        %v3652 = vpack.c.b16 %v3393, %v3386
        %v3653 = vpack.c.b16 %v3394, %v3387
        %v3654 = vpack.c.b16 %v3395, %v3388
        %v3655 = vpack.c.b16 %v3403, %v3396
        %v3656 = vpack.c.b16 %v3404, %v3397
        %v3657 = vpack.c.b16 %v3405, %v3398
        %v3658 = vpack.c.b16 %v3406, %v3399
        %v3659 = vpack.c.b16 %v3407, %v3400
        %v3660 = vpack.c.b16 %v3408, %v3401
        %v3661 = vpack.c.b16 %v3409, %v3402
        %v3662 = vpack.c.b16 %v3417, %v3410
        %v3663 = vpack.c.b16 %v3418, %v3411
        %v3664 = vpack.c.b16 %v3419, %v3412
        %v3665 = vpack.c.b16 %v3420, %v3413
        %v3666 = vpack.c.b16 %v3421, %v3414
        %v3667 = vpack.c.b16 %v3422, %v3415
        %v3668 = vpack.c.b16 %v3423, %v3416
        %v3669 = vpack.c.b16 %v3431, %v3424
        %v3670 = vpack.c.b16 %v3432, %v3425
        %v3671 = vpack.c.b16 %v3433, %v3426
        %v3672 = vpack.c.b16 %v3434, %v3427
        %v3673 = vpack.c.b16 %v3435, %v3428
        %v3674 = vpack.c.b16 %v3436, %v3429
        %v3675 = vpack.c.b16 %v3437, %v3430
        %v3676 = vpack.c.b16 %v3445, %v3438
        %v3677 = vpack.c.b16 %v3446, %v3439
        %v3678 = vpack.c.b16 %v3447, %v3440
        %v3679 = vpack.c.b16 %v3448, %v3441
        %v3680 = vpack.c.b16 %v3449, %v3442
        %v3681 = vpack.c.b16 %v3450, %v3443
        %v3682 = vpack.c.b16 %v3451, %v3444
        %v3683 = vpack.c.b16 %v3459, %v3452
        %v3684 = vpack.c.b16 %v3460, %v3453
        %v3685 = vpack.c.b16 %v3461, %v3454
        %v3686 = vpack.c.b16 %v3462, %v3455
        %v3687 = vpack.c.b16 %v3463, %v3456
        %v3688 = vpack.c.b16 %v3464, %v3457
        %v3689 = vpack.c.b16 %v3465, %v3458
        %v3690 = vpack.c.b16 %v3473, %v3466
        %v3691 = vpack.c.b16 %v3474, %v3467
        %v3692 = vpack.c.b16 %v3475, %v3468
        %v3693 = vpack.c.b16 %v3476, %v3469
        %v3694 = vpack.c.b16 %v3477, %v3470
        %v3695 = vpack.c.b16 %v3478, %v3471
        %v3696 = vpack.c.b16 %v3479, %v3472
        %v3697 = vpack.c.b16 %v3487, %v3480
        %v3698 = vpack.c.b16 %v3488, %v3481
        %v3699 = vpack.c.b16 %v3489, %v3482
        %v3700 = vpack.c.b16 %v3490, %v3483
        %v3701 = vpack.c.b16 %v3491, %v3484
        %v3702 = vpack.c.b16 %v3492, %v3485
        %v3703 = vpack.c.b16 %v3493, %v3486
        %v3704 = vpack.c.b16 %v3501, %v3494
        %v3705 = vpack.c.b16 %v3502, %v3495
        %v3706 = vpack.c.b16 %v3503, %v3496
        %v3707 = vpack.c.b16 %v3504, %v3497
        %v3708 = vpack.c.b16 %v3505, %v3498
        %v3709 = vpack.c.b16 %v3506, %v3499
        %v3710 = vpack.c.b16 %v3507, %v3500
        %v3711 = vpack.c.b16 %v3515, %v3508
        %v3712 = vpack.c.b16 %v3516, %v3509
        %v3713 = vpack.c.b16 %v3517, %v3510
        %v3714 = vpack.c.b16 %v3518, %v3511
        %v3715 = vpack.c.b16 %v3519, %v3512
        %v3716 = vpack.c.b16 %v3520, %v3513
        %v3717 = vpack.c.b16 %v3521, %v3514
        %v3718 = vpack.c.b16 %v3529, %v3522
        %v3719 = vpack.c.b16 %v3530, %v3523
        %v3720 = vpack.c.b16 %v3531, %v3524
        %v3721 = vpack.c.b16 %v3532, %v3525
        %v3722 = vpack.c.b16 %v3533, %v3526
        %v3723 = vpack.c.b16 %v3534, %v3527
        %v3724 = vpack.c.b16 %v3535, %v3528
        %v3725 = vpack.c.b16 %v3543, %v3536
        %v3726 = vpack.c.b16 %v3544, %v3537
        %v3727 = vpack.c.b16 %v3545, %v3538
        %v3728 = vpack.c.b16 %v3546, %v3539
        %v3729 = vpack.c.b16 %v3547, %v3540
        %v3730 = vpack.c.b16 %v3548, %v3541
        %v3731 = vpack.c.b16 %v3549, %v3542
        %v3732 = vpack.c.b16 %v3557, %v3550
        %v3733 = vpack.c.b16 %v3558, %v3551
        %v3734 = vpack.c.b16 %v3559, %v3552
        %v3735 = vpack.c.b16 %v3560, %v3553
        %v3736 = vpack.c.b16 %v3561, %v3554
        %v3737 = vpack.c.b16 %v3562, %v3555
        %v3738 = vpack.c.b16 %v3563, %v3556
        %vm3914 = vcmask 130048
        %v3916 = vsel %vm3914, %v3003, 0
        %v3919 = vsel %vm3914, %v3007, 0
        %3921 = vmatpush.bf16.msra.mxu0 %v3613
        %3922 = vmatpush.bf16.msra.mxu0 %v3606
        %3923 = vmatpush.bf16.msra.mxu0 %v3599
        %3924 = vmatpush.bf16.msra.mxu0 %v3592
        %3925 = vmatpush.bf16.msra.mxu0 %v3585
        %3926 = vmatpush.bf16.msra.mxu0 %v3578
        %3927 = vmatpush.bf16.msra.mxu0 %v3571
        %3928 = vmatpush.bf16.msra.mxu0 %v3564
        %3929 = vmatmul.bf16.gmra.mxu0 %v3000
        %v3930 = vpop.f32.mrf.mxu0
        %v3931 = vadd.f32 %v2959, %v3930
        %v3932 = vpop.f32.mrf.mxu0
        %v3933 = vadd.f32 %v2964, %v3932
        %3934 = vmatmul.bf16.gmra.mxu0 %v3004
        %v3935 = vpop.f32.mrf.mxu0
        %v3936 = vadd.f32 %v2969, %v3935
        %v3937 = vpop.f32.mrf.mxu0
        %v3938 = vadd.f32 %v2974, %v3937
        %3939 = vdwg.mxu0
        %3940 = vmatpush.bf16.msra.mxu0 %v3669
        %3941 = vmatpush.bf16.msra.mxu0 %v3662
        %3942 = vmatpush.bf16.msra.mxu0 %v3655
        %3943 = vmatpush.bf16.msra.mxu0 %v3648
        %3944 = vmatpush.bf16.msra.mxu0 %v3641
        %3945 = vmatpush.bf16.msra.mxu0 %v3634
        %3946 = vmatpush.bf16.msra.mxu0 %v3627
        %3947 = vmatpush.bf16.msra.mxu0 %v3620
        %3948 = vmatmul.bf16.gmra.mxu0 %v3001
        %v3949 = vpop.f32.mrf.mxu0
        %v3950 = vadd.f32 %v3931, %v3949
        %v3951 = vpop.f32.mrf.mxu0
        %v3952 = vadd.f32 %v3933, %v3951
        %3953 = vmatmul.bf16.gmra.mxu0 %v3005
        %v3954 = vpop.f32.mrf.mxu0
        %v3955 = vadd.f32 %v3936, %v3954
        %v3956 = vpop.f32.mrf.mxu0
        %v3957 = vadd.f32 %v3938, %v3956
        %3958 = vdwg.mxu0
        %3959 = vmatpush.bf16.msra.mxu0 %v3725
        %3960 = vmatpush.bf16.msra.mxu0 %v3718
        %3961 = vmatpush.bf16.msra.mxu0 %v3711
        %3962 = vmatpush.bf16.msra.mxu0 %v3704
        %3963 = vmatpush.bf16.msra.mxu0 %v3697
        %3964 = vmatpush.bf16.msra.mxu0 %v3690
        %3965 = vmatpush.bf16.msra.mxu0 %v3683
        %3966 = vmatpush.bf16.msra.mxu0 %v3676
        %3967 = vmatmul.bf16.gmra.mxu0 %v3002
        %v3968 = vpop.f32.mrf.mxu0
        %v3969 = vadd.f32 %v3950, %v3968
        %v3970 = vpop.f32.mrf.mxu0
        %v3971 = vadd.f32 %v3952, %v3970
        %3972 = vmatmul.bf16.gmra.mxu0 %v3006
        %v3973 = vpop.f32.mrf.mxu0
        %v3974 = vadd.f32 %v3955, %v3973
        %v3975 = vpop.f32.mrf.mxu0
        %v3976 = vadd.f32 %v3957, %v3975
        %3977 = vdwg.mxu0
        %3978 = vmatpush.bf16.msra.mxu0 0
        %3979 = vmatpush.bf16.msra.mxu0 0
        %3980 = vmatpush.bf16.msra.mxu0 0
        %3981 = vmatpush.bf16.msra.mxu0 0
        %3982 = vmatpush.bf16.msra.mxu0 0
        %3983 = vmatpush.bf16.msra.mxu0 0
        %3984 = vmatpush.bf16.msra.mxu0 0
        %3985 = vmatpush.bf16.msra.mxu0 %v3732
        %3986 = vmatmul.bf16.gmra.mxu0 %v3916
        %v3987 = vpop.f32.mrf.mxu0
        %v3988 = vadd.f32 %v3969, %v3987
        %v3989 = vpop.f32.mrf.mxu0
        %v3990 = vadd.f32 %v3971, %v3989
        %3991 = vmatmul.bf16.gmra.mxu0 %v3919
        %v3992 = vpop.f32.mrf.mxu0
        %v3993 = vadd.f32 %v3974, %v3992
        %v3994 = vpop.f32.mrf.mxu0
        %v3995 = vadd.f32 %v3976, %v3994
        %3996 = vdwg.mxu0
        %3997 = vmatpush.bf16.msra.mxu0 %v3614
        %3998 = vmatpush.bf16.msra.mxu0 %v3607
        %3999 = vmatpush.bf16.msra.mxu0 %v3600
        %4000 = vmatpush.bf16.msra.mxu0 %v3593
        %4001 = vmatpush.bf16.msra.mxu0 %v3586
        %4002 = vmatpush.bf16.msra.mxu0 %v3579
        %4003 = vmatpush.bf16.msra.mxu0 %v3572
        %4004 = vmatpush.bf16.msra.mxu0 %v3565
        %4005 = vmatmul.bf16.gmra.mxu0 %v3000
        %v4006 = vpop.f32.mrf.mxu0
        %v4007 = vadd.f32 %v2959, %v4006
        %v4008 = vpop.f32.mrf.mxu0
        %v4009 = vadd.f32 %v2964, %v4008
        %4010 = vmatmul.bf16.gmra.mxu0 %v3004
        %v4011 = vpop.f32.mrf.mxu0
        %v4012 = vadd.f32 %v2969, %v4011
        %v4013 = vpop.f32.mrf.mxu0
        %v4014 = vadd.f32 %v2974, %v4013
        %4015 = vdwg.mxu0
        %4016 = vmatpush.bf16.msra.mxu0 %v3670
        %4017 = vmatpush.bf16.msra.mxu0 %v3663
        %4018 = vmatpush.bf16.msra.mxu0 %v3656
        %4019 = vmatpush.bf16.msra.mxu0 %v3649
        %4020 = vmatpush.bf16.msra.mxu0 %v3642
        %4021 = vmatpush.bf16.msra.mxu0 %v3635
        %4022 = vmatpush.bf16.msra.mxu0 %v3628
        %4023 = vmatpush.bf16.msra.mxu0 %v3621
        %4024 = vmatmul.bf16.gmra.mxu0 %v3001
        %v4025 = vpop.f32.mrf.mxu0
        %v4026 = vadd.f32 %v4007, %v4025
        %v4027 = vpop.f32.mrf.mxu0
        %v4028 = vadd.f32 %v4009, %v4027
        %4029 = vmatmul.bf16.gmra.mxu0 %v3005
        %v4030 = vpop.f32.mrf.mxu0
        %v4031 = vadd.f32 %v4012, %v4030
        %v4032 = vpop.f32.mrf.mxu0
        %v4033 = vadd.f32 %v4014, %v4032
        %4034 = vdwg.mxu0
        %4035 = vmatpush.bf16.msra.mxu0 %v3726
        %4036 = vmatpush.bf16.msra.mxu0 %v3719
        %4037 = vmatpush.bf16.msra.mxu0 %v3712
        %4038 = vmatpush.bf16.msra.mxu0 %v3705
        %4039 = vmatpush.bf16.msra.mxu0 %v3698
        %4040 = vmatpush.bf16.msra.mxu0 %v3691
        %4041 = vmatpush.bf16.msra.mxu0 %v3684
        %4042 = vmatpush.bf16.msra.mxu0 %v3677
        %4043 = vmatmul.bf16.gmra.mxu0 %v3002
        %v4044 = vpop.f32.mrf.mxu0
        %v4045 = vadd.f32 %v4026, %v4044
        %v4046 = vpop.f32.mrf.mxu0
        %v4047 = vadd.f32 %v4028, %v4046
        %4048 = vmatmul.bf16.gmra.mxu0 %v3006
        %v4049 = vpop.f32.mrf.mxu0
        %v4050 = vadd.f32 %v4031, %v4049
        %v4051 = vpop.f32.mrf.mxu0
        %v4052 = vadd.f32 %v4033, %v4051
        %4053 = vdwg.mxu0
        %4054 = vmatpush.bf16.msra.mxu0 0
        %4055 = vmatpush.bf16.msra.mxu0 0
        %4056 = vmatpush.bf16.msra.mxu0 0
        %4057 = vmatpush.bf16.msra.mxu0 0
        %4058 = vmatpush.bf16.msra.mxu0 0
        %4059 = vmatpush.bf16.msra.mxu0 0
        %4060 = vmatpush.bf16.msra.mxu0 0
        %4061 = vmatpush.bf16.msra.mxu0 %v3733
        %4062 = vmatmul.bf16.gmra.mxu0 %v3916
        %v4063 = vpop.f32.mrf.mxu0
        %v4064 = vadd.f32 %v4045, %v4063
        %v4065 = vpop.f32.mrf.mxu0
        %v4066 = vadd.f32 %v4047, %v4065
        %4067 = vmatmul.bf16.gmra.mxu0 %v3919
        %v4068 = vpop.f32.mrf.mxu0
        %v4069 = vadd.f32 %v4050, %v4068
        %v4070 = vpop.f32.mrf.mxu0
        %v4071 = vadd.f32 %v4052, %v4070
        %4072 = vdwg.mxu0
        %4073 = vmatpush.bf16.msra.mxu0 %v3615
        %4074 = vmatpush.bf16.msra.mxu0 %v3608
        %4075 = vmatpush.bf16.msra.mxu0 %v3601
        %4076 = vmatpush.bf16.msra.mxu0 %v3594
        %4077 = vmatpush.bf16.msra.mxu0 %v3587
        %4078 = vmatpush.bf16.msra.mxu0 %v3580
        %4079 = vmatpush.bf16.msra.mxu0 %v3573
        %4080 = vmatpush.bf16.msra.mxu0 %v3566
        %4081 = vmatmul.bf16.gmra.mxu0 %v3000
        %v4082 = vpop.f32.mrf.mxu0
        %v4083 = vadd.f32 %v2959, %v4082
        %v4084 = vpop.f32.mrf.mxu0
        %v4085 = vadd.f32 %v2964, %v4084
        %4086 = vmatmul.bf16.gmra.mxu0 %v3004
        %v4087 = vpop.f32.mrf.mxu0
        %v4088 = vadd.f32 %v2969, %v4087
        %v4089 = vpop.f32.mrf.mxu0
        %v4090 = vadd.f32 %v2974, %v4089
        %4091 = vdwg.mxu0
        %4092 = vmatpush.bf16.msra.mxu0 %v3671
        %4093 = vmatpush.bf16.msra.mxu0 %v3664
        %4094 = vmatpush.bf16.msra.mxu0 %v3657
        %4095 = vmatpush.bf16.msra.mxu0 %v3650
        %4096 = vmatpush.bf16.msra.mxu0 %v3643
        %4097 = vmatpush.bf16.msra.mxu0 %v3636
        %4098 = vmatpush.bf16.msra.mxu0 %v3629
        %4099 = vmatpush.bf16.msra.mxu0 %v3622
        %4100 = vmatmul.bf16.gmra.mxu0 %v3001
        %v4101 = vpop.f32.mrf.mxu0
        %v4102 = vadd.f32 %v4083, %v4101
        %v4103 = vpop.f32.mrf.mxu0
        %v4104 = vadd.f32 %v4085, %v4103
        %4105 = vmatmul.bf16.gmra.mxu0 %v3005
        %v4106 = vpop.f32.mrf.mxu0
        %v4107 = vadd.f32 %v4088, %v4106
        %v4108 = vpop.f32.mrf.mxu0
        %v4109 = vadd.f32 %v4090, %v4108
        %4110 = vdwg.mxu0
        %4111 = vmatpush.bf16.msra.mxu0 %v3727
        %4112 = vmatpush.bf16.msra.mxu0 %v3720
        %4113 = vmatpush.bf16.msra.mxu0 %v3713
        %4114 = vmatpush.bf16.msra.mxu0 %v3706
        %4115 = vmatpush.bf16.msra.mxu0 %v3699
        %4116 = vmatpush.bf16.msra.mxu0 %v3692
        %4117 = vmatpush.bf16.msra.mxu0 %v3685
        %4118 = vmatpush.bf16.msra.mxu0 %v3678
        %4119 = vmatmul.bf16.gmra.mxu0 %v3002
        %v4120 = vpop.f32.mrf.mxu0
        %v4121 = vadd.f32 %v4102, %v4120
        %v4122 = vpop.f32.mrf.mxu0
        %v4123 = vadd.f32 %v4104, %v4122
        %4124 = vmatmul.bf16.gmra.mxu0 %v3006
        %v4125 = vpop.f32.mrf.mxu0
        %v4126 = vadd.f32 %v4107, %v4125
        %v4127 = vpop.f32.mrf.mxu0
        %v4128 = vadd.f32 %v4109, %v4127
        %4129 = vdwg.mxu0
        %4130 = vmatpush.bf16.msra.mxu0 0
        %4131 = vmatpush.bf16.msra.mxu0 0
        %4132 = vmatpush.bf16.msra.mxu0 0
        %4133 = vmatpush.bf16.msra.mxu0 0
        %4134 = vmatpush.bf16.msra.mxu0 0
        %4135 = vmatpush.bf16.msra.mxu0 0
        %4136 = vmatpush.bf16.msra.mxu0 0
        %4137 = vmatpush.bf16.msra.mxu0 %v3734
        %4138 = vmatmul.bf16.gmra.mxu0 %v3916
        %v4139 = vpop.f32.mrf.mxu0
        %v4140 = vadd.f32 %v4121, %v4139
        %v4141 = vpop.f32.mrf.mxu0
        %v4142 = vadd.f32 %v4123, %v4141
        %4143 = vmatmul.bf16.gmra.mxu0 %v3919
        %v4144 = vpop.f32.mrf.mxu0
        %v4145 = vadd.f32 %v4126, %v4144
        %v4146 = vpop.f32.mrf.mxu0
        %v4147 = vadd.f32 %v4128, %v4146
        %4148 = vdwg.mxu0
        %4149 = vmatpush.bf16.msra.mxu0 %v3616
        %4150 = vmatpush.bf16.msra.mxu0 %v3609
        %4151 = vmatpush.bf16.msra.mxu0 %v3602
        %4152 = vmatpush.bf16.msra.mxu0 %v3595
        %4153 = vmatpush.bf16.msra.mxu0 %v3588
        %4154 = vmatpush.bf16.msra.mxu0 %v3581
        %4155 = vmatpush.bf16.msra.mxu0 %v3574
        %4156 = vmatpush.bf16.msra.mxu0 %v3567
        %4157 = vmatmul.bf16.gmra.mxu0 %v3000
        %v4158 = vpop.f32.mrf.mxu0
        %v4159 = vadd.f32 %v2959, %v4158
        %v4160 = vpop.f32.mrf.mxu0
        %v4161 = vadd.f32 %v2964, %v4160
        %4162 = vmatmul.bf16.gmra.mxu0 %v3004
        %v4163 = vpop.f32.mrf.mxu0
        %v4164 = vadd.f32 %v2969, %v4163
        %v4165 = vpop.f32.mrf.mxu0
        %v4166 = vadd.f32 %v2974, %v4165
        %4167 = vdwg.mxu0
        %4168 = vmatpush.bf16.msra.mxu0 %v3672
        %4169 = vmatpush.bf16.msra.mxu0 %v3665
        %4170 = vmatpush.bf16.msra.mxu0 %v3658
        %4171 = vmatpush.bf16.msra.mxu0 %v3651
        %4172 = vmatpush.bf16.msra.mxu0 %v3644
        %4173 = vmatpush.bf16.msra.mxu0 %v3637
        %4174 = vmatpush.bf16.msra.mxu0 %v3630
        %4175 = vmatpush.bf16.msra.mxu0 %v3623
        %4176 = vmatmul.bf16.gmra.mxu0 %v3001
        %v4177 = vpop.f32.mrf.mxu0
        %v4178 = vadd.f32 %v4159, %v4177
        %v4179 = vpop.f32.mrf.mxu0
        %v4180 = vadd.f32 %v4161, %v4179
        %4181 = vmatmul.bf16.gmra.mxu0 %v3005
        %v4182 = vpop.f32.mrf.mxu0
        %v4183 = vadd.f32 %v4164, %v4182
        %v4184 = vpop.f32.mrf.mxu0
        %v4185 = vadd.f32 %v4166, %v4184
        %4186 = vdwg.mxu0
        %4187 = vmatpush.bf16.msra.mxu0 %v3728
        %4188 = vmatpush.bf16.msra.mxu0 %v3721
        %4189 = vmatpush.bf16.msra.mxu0 %v3714
        %4190 = vmatpush.bf16.msra.mxu0 %v3707
        %4191 = vmatpush.bf16.msra.mxu0 %v3700
        %4192 = vmatpush.bf16.msra.mxu0 %v3693
        %4193 = vmatpush.bf16.msra.mxu0 %v3686
        %4194 = vmatpush.bf16.msra.mxu0 %v3679
        %4195 = vmatmul.bf16.gmra.mxu0 %v3002
        %v4196 = vpop.f32.mrf.mxu0
        %v4197 = vadd.f32 %v4178, %v4196
        %v4198 = vpop.f32.mrf.mxu0
        %v4199 = vadd.f32 %v4180, %v4198
        %4200 = vmatmul.bf16.gmra.mxu0 %v3006
        %v4201 = vpop.f32.mrf.mxu0
        %v4202 = vadd.f32 %v4183, %v4201
        %v4203 = vpop.f32.mrf.mxu0
        %v4204 = vadd.f32 %v4185, %v4203
        %4205 = vdwg.mxu0
        %4206 = vmatpush.bf16.msra.mxu0 0
        %4207 = vmatpush.bf16.msra.mxu0 0
        %4208 = vmatpush.bf16.msra.mxu0 0
        %4209 = vmatpush.bf16.msra.mxu0 0
        %4210 = vmatpush.bf16.msra.mxu0 0
        %4211 = vmatpush.bf16.msra.mxu0 0
        %4212 = vmatpush.bf16.msra.mxu0 0
        %4213 = vmatpush.bf16.msra.mxu0 %v3735
        %4214 = vmatmul.bf16.gmra.mxu0 %v3916
        %v4215 = vpop.f32.mrf.mxu0
        %v4216 = vadd.f32 %v4197, %v4215
        %v4217 = vpop.f32.mrf.mxu0
        %v4218 = vadd.f32 %v4199, %v4217
        %4219 = vmatmul.bf16.gmra.mxu0 %v3919
        %v4220 = vpop.f32.mrf.mxu0
        %v4221 = vadd.f32 %v4202, %v4220
        %v4222 = vpop.f32.mrf.mxu0
        %v4223 = vadd.f32 %v4204, %v4222
        %4224 = vdwg.mxu0
        %4225 = vmatpush.bf16.msra.mxu0 %v3617
        %4226 = vmatpush.bf16.msra.mxu0 %v3610
        %4227 = vmatpush.bf16.msra.mxu0 %v3603
        %4228 = vmatpush.bf16.msra.mxu0 %v3596
        %4229 = vmatpush.bf16.msra.mxu0 %v3589
        %4230 = vmatpush.bf16.msra.mxu0 %v3582
        %4231 = vmatpush.bf16.msra.mxu0 %v3575
        %4232 = vmatpush.bf16.msra.mxu0 %v3568
        %4233 = vmatmul.bf16.gmra.mxu0 %v3000
        %v4234 = vpop.f32.mrf.mxu0
        %v4235 = vadd.f32 %v2959, %v4234
        %v4236 = vpop.f32.mrf.mxu0
        %v4237 = vadd.f32 %v2964, %v4236
        %4238 = vmatmul.bf16.gmra.mxu0 %v3004
        %v4239 = vpop.f32.mrf.mxu0
        %v4240 = vadd.f32 %v2969, %v4239
        %v4241 = vpop.f32.mrf.mxu0
        %v4242 = vadd.f32 %v2974, %v4241
        %4243 = vdwg.mxu0
        %4244 = vmatpush.bf16.msra.mxu0 %v3673
        %4245 = vmatpush.bf16.msra.mxu0 %v3666
        %4246 = vmatpush.bf16.msra.mxu0 %v3659
        %4247 = vmatpush.bf16.msra.mxu0 %v3652
        %4248 = vmatpush.bf16.msra.mxu0 %v3645
        %4249 = vmatpush.bf16.msra.mxu0 %v3638
        %4250 = vmatpush.bf16.msra.mxu0 %v3631
        %4251 = vmatpush.bf16.msra.mxu0 %v3624
        %4252 = vmatmul.bf16.gmra.mxu0 %v3001
        %v4253 = vpop.f32.mrf.mxu0
        %v4254 = vadd.f32 %v4235, %v4253
        %v4255 = vpop.f32.mrf.mxu0
        %v4256 = vadd.f32 %v4237, %v4255
        %4257 = vmatmul.bf16.gmra.mxu0 %v3005
        %v4258 = vpop.f32.mrf.mxu0
        %v4259 = vadd.f32 %v4240, %v4258
        %v4260 = vpop.f32.mrf.mxu0
        %v4261 = vadd.f32 %v4242, %v4260
        %4262 = vdwg.mxu0
        %4263 = vmatpush.bf16.msra.mxu0 %v3729
        %4264 = vmatpush.bf16.msra.mxu0 %v3722
        %4265 = vmatpush.bf16.msra.mxu0 %v3715
        %4266 = vmatpush.bf16.msra.mxu0 %v3708
        %4267 = vmatpush.bf16.msra.mxu0 %v3701
        %4268 = vmatpush.bf16.msra.mxu0 %v3694
        %4269 = vmatpush.bf16.msra.mxu0 %v3687
        %4270 = vmatpush.bf16.msra.mxu0 %v3680
        %4271 = vmatmul.bf16.gmra.mxu0 %v3002
        %v4272 = vpop.f32.mrf.mxu0
        %v4273 = vadd.f32 %v4254, %v4272
        %v4274 = vpop.f32.mrf.mxu0
        %v4275 = vadd.f32 %v4256, %v4274
        %4276 = vmatmul.bf16.gmra.mxu0 %v3006
        %v4277 = vpop.f32.mrf.mxu0
        %v4278 = vadd.f32 %v4259, %v4277
        %v4279 = vpop.f32.mrf.mxu0
        %v4280 = vadd.f32 %v4261, %v4279
        %4281 = vdwg.mxu0
        %4282 = vmatpush.bf16.msra.mxu0 0
        %4283 = vmatpush.bf16.msra.mxu0 0
        %4284 = vmatpush.bf16.msra.mxu0 0
        %4285 = vmatpush.bf16.msra.mxu0 0
        %4286 = vmatpush.bf16.msra.mxu0 0
        %4287 = vmatpush.bf16.msra.mxu0 0
        %4288 = vmatpush.bf16.msra.mxu0 0
        %4289 = vmatpush.bf16.msra.mxu0 %v3736
        %4290 = vmatmul.bf16.gmra.mxu0 %v3916
        %v4291 = vpop.f32.mrf.mxu0
        %v4292 = vadd.f32 %v4273, %v4291
        %v4293 = vpop.f32.mrf.mxu0
        %v4294 = vadd.f32 %v4275, %v4293
        %4295 = vmatmul.bf16.gmra.mxu0 %v3919
        %v4296 = vpop.f32.mrf.mxu0
        %v4297 = vadd.f32 %v4278, %v4296
        %v4298 = vpop.f32.mrf.mxu0
        %v4299 = vadd.f32 %v4280, %v4298
        %4300 = vdwg.mxu0
        %4301 = vmatpush.bf16.msra.mxu0 %v3618
        %4302 = vmatpush.bf16.msra.mxu0 %v3611
        %4303 = vmatpush.bf16.msra.mxu0 %v3604
        %4304 = vmatpush.bf16.msra.mxu0 %v3597
        %4305 = vmatpush.bf16.msra.mxu0 %v3590
        %4306 = vmatpush.bf16.msra.mxu0 %v3583
        %4307 = vmatpush.bf16.msra.mxu0 %v3576
        %4308 = vmatpush.bf16.msra.mxu0 %v3569
        %4309 = vmatmul.bf16.gmra.mxu0 %v3000
        %v4310 = vpop.f32.mrf.mxu0
        %v4311 = vadd.f32 %v2959, %v4310
        %v4312 = vpop.f32.mrf.mxu0
        %v4313 = vadd.f32 %v2964, %v4312
        %4314 = vmatmul.bf16.gmra.mxu0 %v3004
        %v4315 = vpop.f32.mrf.mxu0
        %v4316 = vadd.f32 %v2969, %v4315
        %v4317 = vpop.f32.mrf.mxu0
        %v4318 = vadd.f32 %v2974, %v4317
        %4319 = vdwg.mxu0
        %4320 = vmatpush.bf16.msra.mxu0 %v3674
        %4321 = vmatpush.bf16.msra.mxu0 %v3667
        %4322 = vmatpush.bf16.msra.mxu0 %v3660
        %4323 = vmatpush.bf16.msra.mxu0 %v3653
        %4324 = vmatpush.bf16.msra.mxu0 %v3646
        %4325 = vmatpush.bf16.msra.mxu0 %v3639
        %4326 = vmatpush.bf16.msra.mxu0 %v3632
        %4327 = vmatpush.bf16.msra.mxu0 %v3625
        %4328 = vmatmul.bf16.gmra.mxu0 %v3001
        %v4329 = vpop.f32.mrf.mxu0
        %v4330 = vadd.f32 %v4311, %v4329
        %v4331 = vpop.f32.mrf.mxu0
        %v4332 = vadd.f32 %v4313, %v4331
        %4333 = vmatmul.bf16.gmra.mxu0 %v3005
        %v4334 = vpop.f32.mrf.mxu0
        %v4335 = vadd.f32 %v4316, %v4334
        %v4336 = vpop.f32.mrf.mxu0
        %v4337 = vadd.f32 %v4318, %v4336
        %4338 = vdwg.mxu0
        %4339 = vmatpush.bf16.msra.mxu0 %v3730
        %4340 = vmatpush.bf16.msra.mxu0 %v3723
        %4341 = vmatpush.bf16.msra.mxu0 %v3716
        %4342 = vmatpush.bf16.msra.mxu0 %v3709
        %4343 = vmatpush.bf16.msra.mxu0 %v3702
        %4344 = vmatpush.bf16.msra.mxu0 %v3695
        %4345 = vmatpush.bf16.msra.mxu0 %v3688
        %4346 = vmatpush.bf16.msra.mxu0 %v3681
        %4347 = vmatmul.bf16.gmra.mxu0 %v3002
        %v4348 = vpop.f32.mrf.mxu0
        %v4349 = vadd.f32 %v4330, %v4348
        %v4350 = vpop.f32.mrf.mxu0
        %v4351 = vadd.f32 %v4332, %v4350
        %4352 = vmatmul.bf16.gmra.mxu0 %v3006
        %v4353 = vpop.f32.mrf.mxu0
        %v4354 = vadd.f32 %v4335, %v4353
        %v4355 = vpop.f32.mrf.mxu0
        %v4356 = vadd.f32 %v4337, %v4355
        %4357 = vdwg.mxu0
        %4358 = vmatpush.bf16.msra.mxu0 0
        %4359 = vmatpush.bf16.msra.mxu0 0
        %4360 = vmatpush.bf16.msra.mxu0 0
        %4361 = vmatpush.bf16.msra.mxu0 0
        %4362 = vmatpush.bf16.msra.mxu0 0
        %4363 = vmatpush.bf16.msra.mxu0 0
        %4364 = vmatpush.bf16.msra.mxu0 0
        %4365 = vmatpush.bf16.msra.mxu0 %v3737
        %4366 = vmatmul.bf16.gmra.mxu0 %v3916
        %v4367 = vpop.f32.mrf.mxu0
        %v4368 = vadd.f32 %v4349, %v4367
        %v4369 = vpop.f32.mrf.mxu0
        %v4370 = vadd.f32 %v4351, %v4369
        %4371 = vmatmul.bf16.gmra.mxu0 %v3919
        %v4372 = vpop.f32.mrf.mxu0
        %v4373 = vadd.f32 %v4354, %v4372
        %v4374 = vpop.f32.mrf.mxu0
        %v4375 = vadd.f32 %v4356, %v4374
        %4376 = vdwg.mxu0
        %4377 = vmatpush.bf16.msra.mxu0 %v3619
        %4378 = vmatpush.bf16.msra.mxu0 %v3612
        %4379 = vmatpush.bf16.msra.mxu0 %v3605
        %4380 = vmatpush.bf16.msra.mxu0 %v3598
        %4381 = vmatpush.bf16.msra.mxu0 %v3591
        %4382 = vmatpush.bf16.msra.mxu0 %v3584
        %4383 = vmatpush.bf16.msra.mxu0 %v3577
        %4384 = vmatpush.bf16.msra.mxu0 %v3570
        %4385 = vmatmul.bf16.gmra.mxu0 %v3000
        %v4386 = vpop.f32.mrf.mxu0
        %v4387 = vadd.f32 %v2959, %v4386
        %v4388 = vpop.f32.mrf.mxu0
        %v4389 = vadd.f32 %v2964, %v4388
        %4390 = vmatmul.bf16.gmra.mxu0 %v3004
        %v4391 = vpop.f32.mrf.mxu0
        %v4392 = vadd.f32 %v2969, %v4391
        %v4393 = vpop.f32.mrf.mxu0
        %v4394 = vadd.f32 %v2974, %v4393
        %4395 = vdwg.mxu0
        %4396 = vmatpush.bf16.msra.mxu0 %v3675
        %4397 = vmatpush.bf16.msra.mxu0 %v3668
        %4398 = vmatpush.bf16.msra.mxu0 %v3661
        %4399 = vmatpush.bf16.msra.mxu0 %v3654
        %4400 = vmatpush.bf16.msra.mxu0 %v3647
        %4401 = vmatpush.bf16.msra.mxu0 %v3640
        %4402 = vmatpush.bf16.msra.mxu0 %v3633
        %4403 = vmatpush.bf16.msra.mxu0 %v3626
        %4404 = vmatmul.bf16.gmra.mxu0 %v3001
        %v4405 = vpop.f32.mrf.mxu0
        %v4406 = vadd.f32 %v4387, %v4405
        %v4407 = vpop.f32.mrf.mxu0
        %v4408 = vadd.f32 %v4389, %v4407
        %4409 = vmatmul.bf16.gmra.mxu0 %v3005
        %v4410 = vpop.f32.mrf.mxu0
        %v4411 = vadd.f32 %v4392, %v4410
        %v4412 = vpop.f32.mrf.mxu0
        %v4413 = vadd.f32 %v4394, %v4412
        %4414 = vdwg.mxu0
        %4415 = vmatpush.bf16.msra.mxu0 %v3731
        %4416 = vmatpush.bf16.msra.mxu0 %v3724
        %4417 = vmatpush.bf16.msra.mxu0 %v3717
        %4418 = vmatpush.bf16.msra.mxu0 %v3710
        %4419 = vmatpush.bf16.msra.mxu0 %v3703
        %4420 = vmatpush.bf16.msra.mxu0 %v3696
        %4421 = vmatpush.bf16.msra.mxu0 %v3689
        %4422 = vmatpush.bf16.msra.mxu0 %v3682
        %4423 = vmatmul.bf16.gmra.mxu0 %v3002
        %v4424 = vpop.f32.mrf.mxu0
        %v4425 = vadd.f32 %v4406, %v4424
        %v4426 = vpop.f32.mrf.mxu0
        %v4427 = vadd.f32 %v4408, %v4426
        %4428 = vmatmul.bf16.gmra.mxu0 %v3006
        %v4429 = vpop.f32.mrf.mxu0
        %v4430 = vadd.f32 %v4411, %v4429
        %v4431 = vpop.f32.mrf.mxu0
        %v4432 = vadd.f32 %v4413, %v4431
        %4433 = vdwg.mxu0
        %4434 = vmatpush.bf16.msra.mxu0 0
        %4435 = vmatpush.bf16.msra.mxu0 0
        %4436 = vmatpush.bf16.msra.mxu0 0
        %4437 = vmatpush.bf16.msra.mxu0 0
        %4438 = vmatpush.bf16.msra.mxu0 0
        %4439 = vmatpush.bf16.msra.mxu0 0
        %4440 = vmatpush.bf16.msra.mxu0 0
        %4441 = vmatpush.bf16.msra.mxu0 %v3738
        %4442 = vmatmul.bf16.gmra.mxu0 %v3916
        %v4443 = vpop.f32.mrf.mxu0
        %v4444 = vadd.f32 %v4425, %v4443
        %v4445 = vpop.f32.mrf.mxu0
        %v4446 = vadd.f32 %v4427, %v4445
        %4447 = vmatmul.bf16.gmra.mxu0 %v3919
        %v4448 = vpop.f32.mrf.mxu0
        %v4449 = vadd.f32 %v4430, %v4448
        %v4450 = vpop.f32.mrf.mxu0
        %v4451 = vadd.f32 %v4432, %v4450
        %4452 = vdwg.mxu0
        %v4453 = vmax.f32 %v3988, 0.0
        %v4454 = vmax.f32 %v4064, 0.0
        %v4455 = vmax.f32 %v4140, 0.0
        %v4456 = vmax.f32 %v4216, 0.0
        %v4457 = vmax.f32 %v4292, 0.0
        %v4458 = vmax.f32 %v4368, 0.0
        %v4459 = vmax.f32 %v4444, 0.0
        %v4460 = vmax.f32 %v3990, 0.0
        %v4461 = vmax.f32 %v4066, 0.0
        %v4462 = vmax.f32 %v4142, 0.0
        %v4463 = vmax.f32 %v4218, 0.0
        %v4464 = vmax.f32 %v4294, 0.0
        %v4465 = vmax.f32 %v4370, 0.0
        %v4466 = vmax.f32 %v4446, 0.0
        %v4467 = vmax.f32 %v3993, 0.0
        %v4468 = vmax.f32 %v4069, 0.0
        %v4469 = vmax.f32 %v4145, 0.0
        %v4470 = vmax.f32 %v4221, 0.0
        %v4471 = vmax.f32 %v4297, 0.0
        %v4472 = vmax.f32 %v4373, 0.0
        %v4473 = vmax.f32 %v4449, 0.0
        %v4474 = vmax.f32 %v3995, 0.0
        %v4475 = vmax.f32 %v4071, 0.0
        %v4476 = vmax.f32 %v4147, 0.0
        %v4477 = vmax.f32 %v4223, 0.0
        %v4478 = vmax.f32 %v4299, 0.0
        %v4479 = vmax.f32 %v4375, 0.0
        %v4480 = vmax.f32 %v4451, 0.0
        %4509 = vrot.lane.b32.xlu0 %v4453, 126
        %v4510 = vpop.permute.xlu0 %4509
        %4511 = vrot.lane.b32.xlu0 %v4454, 126
        %v4512 = vpop.permute.xlu0 %4511
        %4513 = vrot.lane.b32.xlu0 %v4455, 126
        %v4514 = vpop.permute.xlu0 %4513
        %4515 = vrot.lane.b32.xlu0 %v4456, 126
        %v4516 = vpop.permute.xlu0 %4515
        %4517 = vrot.lane.b32.xlu0 %v4457, 126
        %v4518 = vpop.permute.xlu0 %4517
        %4519 = vrot.lane.b32.xlu0 %v4458, 126
        %v4520 = vpop.permute.xlu0 %4519
        %4521 = vrot.lane.b32.xlu0 %v4459, 126
        %v4522 = vpop.permute.xlu0 %4521
        %4523 = vrot.lane.b32.xlu0 %v4460, 126
        %v4524 = vpop.permute.xlu0 %4523
        %4525 = vrot.lane.b32.xlu0 %v4461, 126
        %v4526 = vpop.permute.xlu0 %4525
        %4527 = vrot.lane.b32.xlu0 %v4462, 126
        %v4528 = vpop.permute.xlu0 %4527
        %4529 = vrot.lane.b32.xlu0 %v4463, 126
        %v4530 = vpop.permute.xlu0 %4529
        %4531 = vrot.lane.b32.xlu0 %v4464, 126
        %v4532 = vpop.permute.xlu0 %4531
        %4533 = vrot.lane.b32.xlu0 %v4465, 126
        %v4534 = vpop.permute.xlu0 %4533
        %4535 = vrot.lane.b32.xlu0 %v4466, 126
        %v4536 = vpop.permute.xlu0 %4535
        %4537 = vrot.lane.b32.xlu0 %v4467, 126
        %v4538 = vpop.permute.xlu0 %4537
        %4539 = vrot.lane.b32.xlu0 %v4468, 126
        %v4540 = vpop.permute.xlu0 %4539
        %4541 = vrot.lane.b32.xlu0 %v4469, 126
        %v4542 = vpop.permute.xlu0 %4541
        %4543 = vrot.lane.b32.xlu0 %v4470, 126
        %v4544 = vpop.permute.xlu0 %4543
        %4545 = vrot.lane.b32.xlu0 %v4471, 126
        %v4546 = vpop.permute.xlu0 %4545
        %4547 = vrot.lane.b32.xlu0 %v4472, 126
        %v4548 = vpop.permute.xlu0 %4547
        %4549 = vrot.lane.b32.xlu0 %v4473, 126
        %v4550 = vpop.permute.xlu0 %4549
        %4551 = vrot.lane.b32.xlu0 %v4474, 126
        %v4552 = vpop.permute.xlu0 %4551
        %4553 = vrot.lane.b32.xlu0 %v4475, 126
        %v4554 = vpop.permute.xlu0 %4553
        %4555 = vrot.lane.b32.xlu0 %v4476, 126
        %v4556 = vpop.permute.xlu0 %4555
        %4557 = vrot.lane.b32.xlu0 %v4477, 126
        %v4558 = vpop.permute.xlu0 %4557
        %4559 = vrot.lane.b32.xlu0 %v4478, 126
        %v4560 = vpop.permute.xlu0 %4559
        %4561 = vrot.lane.b32.xlu0 %v4479, 126
        %v4562 = vpop.permute.xlu0 %4561
        %4563 = vrot.lane.b32.xlu0 %v4480, 126
        %v4564 = vpop.permute.xlu0 %4563
        %v4565 = vsel %vm461, %v4510, %v4512
        %v4566 = vsel %vm461, %v4512, %v4514
        %v4567 = vsel %vm461, %v4514, %v4516
        %v4568 = vsel %vm461, %v4516, %v4518
        %v4569 = vsel %vm461, %v4518, %v4520
        %v4570 = vsel %vm461, %v4520, %v4522
        %v4571 = vsel %vm461, %v4524, %v4526
        %v4572 = vsel %vm461, %v4526, %v4528
        %v4573 = vsel %vm461, %v4528, %v4530
        %v4574 = vsel %vm461, %v4530, %v4532
        %v4575 = vsel %vm461, %v4532, %v4534
        %v4576 = vsel %vm461, %v4534, %v4536
        %v4577 = vsel %vm461, %v4538, %v4540
        %v4578 = vsel %vm461, %v4540, %v4542
        %v4579 = vsel %vm461, %v4542, %v4544
        %v4580 = vsel %vm461, %v4544, %v4546
        %v4581 = vsel %vm461, %v4546, %v4548
        %v4582 = vsel %vm461, %v4548, %v4550
        %v4583 = vsel %vm461, %v4552, %v4554
        %v4584 = vsel %vm461, %v4554, %v4556
        %v4585 = vsel %vm461, %v4556, %v4558
        %v4586 = vsel %vm461, %v4558, %v4560
        %v4587 = vsel %vm461, %v4560, %v4562
        %v4588 = vsel %vm461, %v4562, %v4564
        %v4617 = vmax.f32 %v4453, %v4565
        %v4618 = vmax.f32 %v4454, %v4566
        %v4619 = vmax.f32 %v4455, %v4567
        %v4620 = vmax.f32 %v4456, %v4568
        %v4621 = vmax.f32 %v4457, %v4569
        %v4622 = vmax.f32 %v4458, %v4570
        %v4623 = vmax.f32 %v4459, %v4522
        %v4624 = vmax.f32 %v4460, %v4571
        %v4625 = vmax.f32 %v4461, %v4572
        %v4626 = vmax.f32 %v4462, %v4573
        %v4627 = vmax.f32 %v4463, %v4574
        %v4628 = vmax.f32 %v4464, %v4575
        %v4629 = vmax.f32 %v4465, %v4576
        %v4630 = vmax.f32 %v4466, %v4536
        %v4631 = vmax.f32 %v4467, %v4577
        %v4632 = vmax.f32 %v4468, %v4578
        %v4633 = vmax.f32 %v4469, %v4579
        %v4634 = vmax.f32 %v4470, %v4580
        %v4635 = vmax.f32 %v4471, %v4581
        %v4636 = vmax.f32 %v4472, %v4582
        %v4637 = vmax.f32 %v4473, %v4550
        %v4638 = vmax.f32 %v4474, %v4583
        %v4639 = vmax.f32 %v4475, %v4584
        %v4640 = vmax.f32 %v4476, %v4585
        %v4641 = vmax.f32 %v4477, %v4586
        %v4642 = vmax.f32 %v4478, %v4587
        %v4643 = vmax.f32 %v4479, %v4588
        %v4644 = vmax.f32 %v4480, %v4564
        %4673 = vrot.lane.b32.xlu0 %v4617, 64
        %v4674 = vpop.permute.xlu0 %4673
        %4675 = vrot.lane.b32.xlu0 %v4618, 64
        %v4676 = vpop.permute.xlu0 %4675
        %4677 = vrot.lane.b32.xlu0 %v4619, 64
        %v4678 = vpop.permute.xlu0 %4677
        %4679 = vrot.lane.b32.xlu0 %v4620, 64
        %v4680 = vpop.permute.xlu0 %4679
        %4681 = vrot.lane.b32.xlu0 %v4621, 64
        %v4682 = vpop.permute.xlu0 %4681
        %4683 = vrot.lane.b32.xlu0 %v4622, 64
        %v4684 = vpop.permute.xlu0 %4683
        %4685 = vrot.lane.b32.xlu0 %v4623, 64
        %v4686 = vpop.permute.xlu0 %4685
        %4687 = vrot.lane.b32.xlu0 %v4624, 64
        %v4688 = vpop.permute.xlu0 %4687
        %4689 = vrot.lane.b32.xlu0 %v4625, 64
        %v4690 = vpop.permute.xlu0 %4689
        %4691 = vrot.lane.b32.xlu0 %v4626, 64
        %v4692 = vpop.permute.xlu0 %4691
        %4693 = vrot.lane.b32.xlu0 %v4627, 64
        %v4694 = vpop.permute.xlu0 %4693
        %4695 = vrot.lane.b32.xlu0 %v4628, 64
        %v4696 = vpop.permute.xlu0 %4695
        %4697 = vrot.lane.b32.xlu0 %v4629, 64
        %v4698 = vpop.permute.xlu0 %4697
        %4699 = vrot.lane.b32.xlu0 %v4630, 64
        %v4700 = vpop.permute.xlu0 %4699
        %4701 = vrot.lane.b32.xlu0 %v4631, 64
        %v4702 = vpop.permute.xlu0 %4701
        %4703 = vrot.lane.b32.xlu0 %v4632, 64
        %v4704 = vpop.permute.xlu0 %4703
        %4705 = vrot.lane.b32.xlu0 %v4633, 64
        %v4706 = vpop.permute.xlu0 %4705
        %4707 = vrot.lane.b32.xlu0 %v4634, 64
        %v4708 = vpop.permute.xlu0 %4707
        %4709 = vrot.lane.b32.xlu0 %v4635, 64
        %v4710 = vpop.permute.xlu0 %4709
        %4711 = vrot.lane.b32.xlu0 %v4636, 64
        %v4712 = vpop.permute.xlu0 %4711
        %4713 = vrot.lane.b32.xlu0 %v4637, 64
        %v4714 = vpop.permute.xlu0 %4713
        %4715 = vrot.lane.b32.xlu0 %v4638, 64
        %v4716 = vpop.permute.xlu0 %4715
        %4717 = vrot.lane.b32.xlu0 %v4639, 64
        %v4718 = vpop.permute.xlu0 %4717
        %4719 = vrot.lane.b32.xlu0 %v4640, 64
        %v4720 = vpop.permute.xlu0 %4719
        %4721 = vrot.lane.b32.xlu0 %v4641, 64
        %v4722 = vpop.permute.xlu0 %4721
        %4723 = vrot.lane.b32.xlu0 %v4642, 64
        %v4724 = vpop.permute.xlu0 %4723
        %4725 = vrot.lane.b32.xlu0 %v4643, 64
        %v4726 = vpop.permute.xlu0 %4725
        %4727 = vrot.lane.b32.xlu0 %v4644, 64
        %v4728 = vpop.permute.xlu0 %4727
        %v4729 = vsel %vm549, %v4674, %v4676
        %v4730 = vsel %vm549, %v4676, %v4678
        %v4731 = vsel %vm549, %v4678, %v4680
        %v4732 = vsel %vm549, %v4680, %v4682
        %v4733 = vsel %vm549, %v4682, %v4684
        %v4734 = vsel %vm549, %v4684, %v4686
        %v4735 = vsel %vm549, %v4688, %v4690
        %v4736 = vsel %vm549, %v4690, %v4692
        %v4737 = vsel %vm549, %v4692, %v4694
        %v4738 = vsel %vm549, %v4694, %v4696
        %v4739 = vsel %vm549, %v4696, %v4698
        %v4740 = vsel %vm549, %v4698, %v4700
        %v4741 = vsel %vm549, %v4702, %v4704
        %v4742 = vsel %vm549, %v4704, %v4706
        %v4743 = vsel %vm549, %v4706, %v4708
        %v4744 = vsel %vm549, %v4708, %v4710
        %v4745 = vsel %vm549, %v4710, %v4712
        %v4746 = vsel %vm549, %v4712, %v4714
        %v4747 = vsel %vm549, %v4716, %v4718
        %v4748 = vsel %vm549, %v4718, %v4720
        %v4749 = vsel %vm549, %v4720, %v4722
        %v4750 = vsel %vm549, %v4722, %v4724
        %v4751 = vsel %vm549, %v4724, %v4726
        %v4752 = vsel %vm549, %v4726, %v4728
        %v4781 = vmax.f32 %v4617, %v4729
        %v4782 = vmax.f32 %v4618, %v4730
        %v4783 = vmax.f32 %v4619, %v4731
        %v4784 = vmax.f32 %v4620, %v4732
        %v4785 = vmax.f32 %v4621, %v4733
        %v4786 = vmax.f32 %v4622, %v4734
        %v4787 = vmax.f32 %v4623, %v4686
        %v4788 = vmax.f32 %v4624, %v4735
        %v4789 = vmax.f32 %v4625, %v4736
        %v4790 = vmax.f32 %v4626, %v4737
        %v4791 = vmax.f32 %v4627, %v4738
        %v4792 = vmax.f32 %v4628, %v4739
        %v4793 = vmax.f32 %v4629, %v4740
        %v4794 = vmax.f32 %v4630, %v4700
        %v4795 = vmax.f32 %v4631, %v4741
        %v4796 = vmax.f32 %v4632, %v4742
        %v4797 = vmax.f32 %v4633, %v4743
        %v4798 = vmax.f32 %v4634, %v4744
        %v4799 = vmax.f32 %v4635, %v4745
        %v4800 = vmax.f32 %v4636, %v4746
        %v4801 = vmax.f32 %v4637, %v4714
        %v4802 = vmax.f32 %v4638, %v4747
        %v4803 = vmax.f32 %v4639, %v4748
        %v4804 = vmax.f32 %v4640, %v4749
        %v4805 = vmax.f32 %v4641, %v4750
        %v4806 = vmax.f32 %v4642, %v4751
        %v4807 = vmax.f32 %v4643, %v4752
        %v4808 = vmax.f32 %v4644, %v4728
        %v4809 = vld [vmem:[%s5] sm:$0xff]
        %v4810 = vld [vmem:[%s5 + $0x8] sm:$0xff]
        %v4811 = vld [vmem:[%s5 + $0x10] sm:$0xff]
        %v4812 = vld [vmem:[%s5 + $0x18] sm:$0xff]
        %v4813 = vld [vmem:[%s5 + $0x20] sm:$0xff]
        %v4814 = vld [vmem:[%s5 + $0x28] sm:$0xff]
        %v4815 = vld [vmem:[%s5 + $0x30] sm:$0xff]
        %v4816 = vld [vmem:[%s5 + $0x38] sm:$0xff]
        %v4817 = vld [vmem:[%s5 + $0x40] sm:$0xff]
        %v4818 = vld [vmem:[%s5 + $0x48] sm:$0xff]
        %v4819 = vld [vmem:[%s5 + $0x50] sm:$0xff]
        %v4820 = vld [vmem:[%s5 + $0x58] sm:$0xff]
        %v4821 = vld [vmem:[%s5 + $0x60] sm:$0xff]
        %v4822 = vld [vmem:[%s5 + $0x68] sm:$0xff]
        %v4823 = vld [vmem:[%s5 + $0x70] sm:$0xff]
        %v4824 = vld [vmem:[%s5 + $0x78] sm:$0xff]
        %v4825 = vld [vmem:[%s5 + $0x80] sm:$0xff]
        %v4826 = vld [vmem:[%s5 + $0x88] sm:$0xff]
        %v4827 = vld [vmem:[%s5 + $0x90] sm:$0xff]
        %v4828 = vld [vmem:[%s5 + $0x98] sm:$0xff]
        %v4829 = vld [vmem:[%s5 + $0xa0] sm:$0xff]
        %v4830 = vld [vmem:[%s5 + $0xa8] sm:$0xff]
        %v4831 = vld [vmem:[%s5 + $0xb0] sm:$0xff]
        %v4832 = vld [vmem:[%s5 + $0xb8] sm:$0xff]
        %v4833 = vld [vmem:[%s5 + $0xc0] sm:$0xff]
        %v4834 = vld [vmem:[%s5 + $0xc8] sm:$0xff]
        %v4835 = vld [vmem:[%s5 + $0xd0] sm:$0xff]
        %v4836 = vld [vmem:[%s5 + $0xd8] sm:$0xff]
        %v4837 = vld [vmem:[%s5 + $0xe0] sm:$0xff]
        %v4838 = vld [vmem:[%s5 + $0xe8] sm:$0xff]
        %v4839 = vld [vmem:[%s5 + $0xf0] sm:$0xff]
        %v4840 = vld [vmem:[%s5 + $0xf8] sm:$0xff]
        %v4841 = vld [vmem:[%s5 + $0x100] sm:$0xff]
        %v4842 = vld [vmem:[%s5 + $0x108] sm:$0xff]
        %v4843 = vld [vmem:[%s5 + $0x110] sm:$0xff]
        %v4844 = vld [vmem:[%s5 + $0x118] sm:$0xff]
        %v4845 = vld [vmem:[%s5 + $0x120] sm:$0xff]
        %v4846 = vld [vmem:[%s5 + $0x128] sm:$0xff]
        %v4847 = vld [vmem:[%s5 + $0x130] sm:$0xff]
        %v4848 = vld [vmem:[%s5 + $0x138] sm:$0xff]
        %v4849 = vld [vmem:[%s5 + $0x140] sm:$0xff]
        %v4850 = vld [vmem:[%s5 + $0x148] sm:$0xff]
        %v4851 = vld [vmem:[%s5 + $0x150] sm:$0xff]
        %v4852 = vld [vmem:[%s5 + $0x158] sm:$0xff]
        %v4853 = vld [vmem:[%s5 + $0x160] sm:$0xff]
        %v4854 = vld [vmem:[%s5 + $0x168] sm:$0xff]
        %v4855 = vld [vmem:[%s5 + $0x170] sm:$0xff]
        %v4856 = vld [vmem:[%s5 + $0x178] sm:$0xff]
        %v4857 = vld [vmem:[%s5 + $0x180] sm:$0xff]
        %v4858 = vld [vmem:[%s5 + $0x188] sm:$0xff]
        %v4859 = vld [vmem:[%s5 + $0x190] sm:$0xff]
        %v4860 = vld [vmem:[%s5 + $0x198] sm:$0xff]
        %v4861 = vld [vmem:[%s5 + $0x1a0] sm:$0xff]
        %v4862 = vld [vmem:[%s5 + $0x1a8] sm:$0xff]
        %v4863 = vld [vmem:[%s5 + $0x1b0] sm:$0xff]
        %v4864 = vld [vmem:[%s5 + $0x1b8] sm:$0xff]
        %v4865 = vld [vmem:[%s5 + $0x1c0] sm:$0xff]
        %v4866 = vld [vmem:[%s5 + $0x1c8] sm:$0xff]
        %v4867 = vld [vmem:[%s5 + $0x1d0] sm:$0xff]
        %v4868 = vld [vmem:[%s5 + $0x1d8] sm:$0xff]
        %v4869 = vld [vmem:[%s5 + $0x1e0] sm:$0xff]
        %v4870 = vld [vmem:[%s5 + $0x1e8] sm:$0xff]
        %v4871 = vld [vmem:[%s5 + $0x1f0] sm:$0xff]
        %v4872 = vld [vmem:[%s5 + $0x1f8] sm:$0xff]
        %v4873 = vld [vmem:[%s5 + $0x200] sm:$0xff]
        %v4874 = vld [vmem:[%s5 + $0x208] sm:$0xff]
        %v4875 = vld [vmem:[%s5 + $0x210] sm:$0xff]
        %v4876 = vld [vmem:[%s5 + $0x218] sm:$0xff]
        %v4877 = vld [vmem:[%s5 + $0x220] sm:$0xff]
        %v4878 = vld [vmem:[%s5 + $0x228] sm:$0xff]
        %v4879 = vld [vmem:[%s5 + $0x230] sm:$0xff]
        %v4880 = vld [vmem:[%s5 + $0x238] sm:$0xff]
        %v4881 = vld [vmem:[%s5 + $0x240] sm:$0xff]
        %v4882 = vld [vmem:[%s5 + $0x248] sm:$0xff]
        %v4883 = vld [vmem:[%s5 + $0x250] sm:$0xff]
        %v4884 = vld [vmem:[%s5 + $0x258] sm:$0xff]
        %v4885 = vld [vmem:[%s5 + $0x260] sm:$0xff]
        %v4886 = vld [vmem:[%s5 + $0x268] sm:$0xff]
        %v4887 = vld [vmem:[%s5 + $0x270] sm:$0xff]
        %v4888 = vld [vmem:[%s5 + $0x278] sm:$0xff]
        %v4889 = vld [vmem:[%s5 + $0x280] sm:$0xff]
        %v4890 = vld [vmem:[%s5 + $0x288] sm:$0xff]
        %v4891 = vld [vmem:[%s5 + $0x290] sm:$0xff]
        %v4892 = vld [vmem:[%s5 + $0x298] sm:$0xff]
        %v4893 = vld [vmem:[%s5 + $0x2a0] sm:$0xff]
        %v4894 = vld [vmem:[%s5 + $0x2a8] sm:$0xff]
        %v4895 = vld [vmem:[%s5 + $0x2b0] sm:$0xff]
        %v4896 = vld [vmem:[%s5 + $0x2b8] sm:$0xff]
        %v4897 = vld [vmem:[%s5 + $0x2c0] sm:$0xff]
        %v4898 = vld [vmem:[%s5 + $0x2c8] sm:$0xff]
        %v4899 = vld [vmem:[%s5 + $0x2d0] sm:$0xff]
        %v4900 = vld [vmem:[%s5 + $0x2d8] sm:$0xff]
        %v4901 = vld [vmem:[%s5 + $0x2e0] sm:$0xff]
        %v4902 = vld [vmem:[%s5 + $0x2e8] sm:$0xff]
        %v4903 = vld [vmem:[%s5 + $0x2f0] sm:$0xff]
        %v4904 = vld [vmem:[%s5 + $0x2f8] sm:$0xff]
        %v4905 = vld [vmem:[%s5 + $0x300] sm:$0xff]
        %v4906 = vld [vmem:[%s5 + $0x308] sm:$0xff]
        %v4907 = vld [vmem:[%s5 + $0x310] sm:$0xff]
        %v4908 = vld [vmem:[%s5 + $0x318] sm:$0x3f]
        %v4910 = vsel %vm626, %v4787, 0
        %v4913 = vsel %vm626, %v4794, 0
        %v4916 = vsel %vm626, %v4801, 0
        %v4919 = vsel %vm626, %v4808, 0
        %vm4921 = vcmask 1045504
        %v4923 = vsel %vm4921, %v4908, 0
        %4925 = vmatpush.msra.mxu0 %v4824
        %4926 = vmatpush.msra.mxu0 %v4823
        %4927 = vmatpush.msra.mxu0 %v4822
        %4928 = vmatpush.msra.mxu0 %v4821
        %4929 = vmatpush.msra.mxu0 %v4820
        %4930 = vmatpush.msra.mxu0 %v4819
        %4931 = vmatpush.msra.mxu0 %v4818
        %4932 = vmatpush.msra.mxu0 %v4817
        %4933 = vmatpush.msra.mxu0 %v4816
        %4934 = vmatpush.msra.mxu0 %v4815
        %4935 = vmatpush.msra.mxu0 %v4814
        %4936 = vmatpush.msra.mxu0 %v4813
        %4937 = vmatpush.msra.mxu0 %v4812
        %4938 = vmatpush.msra.mxu0 %v4811
        %4939 = vmatpush.msra.mxu0 %v4810
        %4940 = vmatpush.msra.mxu0 %v4809
        %4941 = vmatmul.f32.gmra.mxu0 %v4781
        %v4942 = vpop.f32.mrf.mxu0
        %v4943 = vadd.f32 0.0, %v4942
        %4944 = vmatmul.f32.gmra.mxu0 %v4788
        %v4945 = vpop.f32.mrf.mxu0
        %v4946 = vadd.f32 0.0, %v4945
        %4947 = vmatmul.f32.gmra.mxu0 %v4795
        %v4948 = vpop.f32.mrf.mxu0
        %v4949 = vadd.f32 0.0, %v4948
        %4950 = vmatmul.f32.gmra.mxu0 %v4802
        %v4951 = vpop.f32.mrf.mxu0
        %v4952 = vadd.f32 0.0, %v4951
        %4953 = vdwg.mxu0
        %4954 = vmatpush.msra.mxu0 %v4840
        %4955 = vmatpush.msra.mxu0 %v4839
        %4956 = vmatpush.msra.mxu0 %v4838
        %4957 = vmatpush.msra.mxu0 %v4837
        %4958 = vmatpush.msra.mxu0 %v4836
        %4959 = vmatpush.msra.mxu0 %v4835
        %4960 = vmatpush.msra.mxu0 %v4834
        %4961 = vmatpush.msra.mxu0 %v4833
        %4962 = vmatpush.msra.mxu0 %v4832
        %4963 = vmatpush.msra.mxu0 %v4831
        %4964 = vmatpush.msra.mxu0 %v4830
        %4965 = vmatpush.msra.mxu0 %v4829
        %4966 = vmatpush.msra.mxu0 %v4828
        %4967 = vmatpush.msra.mxu0 %v4827
        %4968 = vmatpush.msra.mxu0 %v4826
        %4969 = vmatpush.msra.mxu0 %v4825
        %4970 = vmatmul.f32.gmra.mxu0 %v4782
        %v4971 = vpop.f32.mrf.mxu0
        %v4972 = vadd.f32 %v4943, %v4971
        %4973 = vmatmul.f32.gmra.mxu0 %v4789
        %v4974 = vpop.f32.mrf.mxu0
        %v4975 = vadd.f32 %v4946, %v4974
        %4976 = vmatmul.f32.gmra.mxu0 %v4796
        %v4977 = vpop.f32.mrf.mxu0
        %v4978 = vadd.f32 %v4949, %v4977
        %4979 = vmatmul.f32.gmra.mxu0 %v4803
        %v4980 = vpop.f32.mrf.mxu0
        %v4981 = vadd.f32 %v4952, %v4980
        %4982 = vdwg.mxu0
        %4983 = vmatpush.msra.mxu0 %v4856
        %4984 = vmatpush.msra.mxu0 %v4855
        %4985 = vmatpush.msra.mxu0 %v4854
        %4986 = vmatpush.msra.mxu0 %v4853
        %4987 = vmatpush.msra.mxu0 %v4852
        %4988 = vmatpush.msra.mxu0 %v4851
        %4989 = vmatpush.msra.mxu0 %v4850
        %4990 = vmatpush.msra.mxu0 %v4849
        %4991 = vmatpush.msra.mxu0 %v4848
        %4992 = vmatpush.msra.mxu0 %v4847
        %4993 = vmatpush.msra.mxu0 %v4846
        %4994 = vmatpush.msra.mxu0 %v4845
        %4995 = vmatpush.msra.mxu0 %v4844
        %4996 = vmatpush.msra.mxu0 %v4843
        %4997 = vmatpush.msra.mxu0 %v4842
        %4998 = vmatpush.msra.mxu0 %v4841
        %4999 = vmatmul.f32.gmra.mxu0 %v4783
        %v5000 = vpop.f32.mrf.mxu0
        %v5001 = vadd.f32 %v4972, %v5000
        %5002 = vmatmul.f32.gmra.mxu0 %v4790
        %v5003 = vpop.f32.mrf.mxu0
        %v5004 = vadd.f32 %v4975, %v5003
        %5005 = vmatmul.f32.gmra.mxu0 %v4797
        %v5006 = vpop.f32.mrf.mxu0
        %v5007 = vadd.f32 %v4978, %v5006
        %5008 = vmatmul.f32.gmra.mxu0 %v4804
        %v5009 = vpop.f32.mrf.mxu0
        %v5010 = vadd.f32 %v4981, %v5009
        %5011 = vdwg.mxu0
        %5012 = vmatpush.msra.mxu0 %v4872
        %5013 = vmatpush.msra.mxu0 %v4871
        %5014 = vmatpush.msra.mxu0 %v4870
        %5015 = vmatpush.msra.mxu0 %v4869
        %5016 = vmatpush.msra.mxu0 %v4868
        %5017 = vmatpush.msra.mxu0 %v4867
        %5018 = vmatpush.msra.mxu0 %v4866
        %5019 = vmatpush.msra.mxu0 %v4865
        %5020 = vmatpush.msra.mxu0 %v4864
        %5021 = vmatpush.msra.mxu0 %v4863
        %5022 = vmatpush.msra.mxu0 %v4862
        %5023 = vmatpush.msra.mxu0 %v4861
        %5024 = vmatpush.msra.mxu0 %v4860
        %5025 = vmatpush.msra.mxu0 %v4859
        %5026 = vmatpush.msra.mxu0 %v4858
        %5027 = vmatpush.msra.mxu0 %v4857
        %5028 = vmatmul.f32.gmra.mxu0 %v4784
        %v5029 = vpop.f32.mrf.mxu0
        %v5030 = vadd.f32 %v5001, %v5029
        %5031 = vmatmul.f32.gmra.mxu0 %v4791
        %v5032 = vpop.f32.mrf.mxu0
        %v5033 = vadd.f32 %v5004, %v5032
        %5034 = vmatmul.f32.gmra.mxu0 %v4798
        %v5035 = vpop.f32.mrf.mxu0
        %v5036 = vadd.f32 %v5007, %v5035
        %5037 = vmatmul.f32.gmra.mxu0 %v4805
        %v5038 = vpop.f32.mrf.mxu0
        %v5039 = vadd.f32 %v5010, %v5038
        %5040 = vdwg.mxu0
        %5041 = vmatpush.msra.mxu0 %v4888
        %5042 = vmatpush.msra.mxu0 %v4887
        %5043 = vmatpush.msra.mxu0 %v4886
        %5044 = vmatpush.msra.mxu0 %v4885
        %5045 = vmatpush.msra.mxu0 %v4884
        %5046 = vmatpush.msra.mxu0 %v4883
        %5047 = vmatpush.msra.mxu0 %v4882
        %5048 = vmatpush.msra.mxu0 %v4881
        %5049 = vmatpush.msra.mxu0 %v4880
        %5050 = vmatpush.msra.mxu0 %v4879
        %5051 = vmatpush.msra.mxu0 %v4878
        %5052 = vmatpush.msra.mxu0 %v4877
        %5053 = vmatpush.msra.mxu0 %v4876
        %5054 = vmatpush.msra.mxu0 %v4875
        %5055 = vmatpush.msra.mxu0 %v4874
        %5056 = vmatpush.msra.mxu0 %v4873
        %5057 = vmatmul.f32.gmra.mxu0 %v4785
        %v5058 = vpop.f32.mrf.mxu0
        %v5059 = vadd.f32 %v5030, %v5058
        %5060 = vmatmul.f32.gmra.mxu0 %v4792
        %v5061 = vpop.f32.mrf.mxu0
        %v5062 = vadd.f32 %v5033, %v5061
        %5063 = vmatmul.f32.gmra.mxu0 %v4799
        %v5064 = vpop.f32.mrf.mxu0
        %v5065 = vadd.f32 %v5036, %v5064
        %5066 = vmatmul.f32.gmra.mxu0 %v4806
        %v5067 = vpop.f32.mrf.mxu0
        %v5068 = vadd.f32 %v5039, %v5067
        %5069 = vdwg.mxu0
        %5070 = vmatpush.msra.mxu0 %v4904
        %5071 = vmatpush.msra.mxu0 %v4903
        %5072 = vmatpush.msra.mxu0 %v4902
        %5073 = vmatpush.msra.mxu0 %v4901
        %5074 = vmatpush.msra.mxu0 %v4900
        %5075 = vmatpush.msra.mxu0 %v4899
        %5076 = vmatpush.msra.mxu0 %v4898
        %5077 = vmatpush.msra.mxu0 %v4897
        %5078 = vmatpush.msra.mxu0 %v4896
        %5079 = vmatpush.msra.mxu0 %v4895
        %5080 = vmatpush.msra.mxu0 %v4894
        %5081 = vmatpush.msra.mxu0 %v4893
        %5082 = vmatpush.msra.mxu0 %v4892
        %5083 = vmatpush.msra.mxu0 %v4891
        %5084 = vmatpush.msra.mxu0 %v4890
        %5085 = vmatpush.msra.mxu0 %v4889
        %5086 = vmatmul.f32.gmra.mxu0 %v4786
        %v5087 = vpop.f32.mrf.mxu0
        %v5088 = vadd.f32 %v5059, %v5087
        %5089 = vmatmul.f32.gmra.mxu0 %v4793
        %v5090 = vpop.f32.mrf.mxu0
        %v5091 = vadd.f32 %v5062, %v5090
        %5092 = vmatmul.f32.gmra.mxu0 %v4800
        %v5093 = vpop.f32.mrf.mxu0
        %v5094 = vadd.f32 %v5065, %v5093
        %5095 = vmatmul.f32.gmra.mxu0 %v4807
        %v5096 = vpop.f32.mrf.mxu0
        %v5097 = vadd.f32 %v5068, %v5096
        %5098 = vdwg.mxu0
        %5099 = vmatpush.msra.mxu0 0.0
        %5100 = vmatpush.msra.mxu0 0.0
        %5101 = vmatpush.msra.mxu0 0.0
        %5102 = vmatpush.msra.mxu0 0.0
        %5103 = vmatpush.msra.mxu0 0.0
        %5104 = vmatpush.msra.mxu0 0.0
        %5105 = vmatpush.msra.mxu0 0.0
        %5106 = vmatpush.msra.mxu0 0.0
        %5107 = vmatpush.msra.mxu0 0.0
        %5108 = vmatpush.msra.mxu0 0.0
        %5109 = vmatpush.msra.mxu0 0.0
        %5110 = vmatpush.msra.mxu0 0.0
        %5111 = vmatpush.msra.mxu0 %v4923
        %5112 = vmatpush.msra.mxu0 %v4907
        %5113 = vmatpush.msra.mxu0 %v4906
        %5114 = vmatpush.msra.mxu0 %v4905
        %5115 = vmatmul.f32.gmra.mxu0 %v4910
        %v5116 = vpop.f32.mrf.mxu0
        %v5117 = vadd.f32 %v5088, %v5116
        %5118 = vmatmul.f32.gmra.mxu0 %v4913
        %v5119 = vpop.f32.mrf.mxu0
        %v5120 = vadd.f32 %v5091, %v5119
        %5121 = vmatmul.f32.gmra.mxu0 %v4916
        %v5122 = vpop.f32.mrf.mxu0
        %v5123 = vadd.f32 %v5094, %v5122
        %5124 = vmatmul.f32.gmra.mxu0 %v4919
        %v5125 = vpop.f32.mrf.mxu0
        %v5126 = vadd.f32 %v5097, %v5125
        %5127 = vdwg.mxu0
        %vm5128 = vcmp.lt.s32.totalorder %v439, 128
        %vm5129 = vmand %vm440, %vm5128
        %5130 = vst.msk [vmem:[%s337] sm:$0x1] %vm5129, %v5117
        %5132 = vst [vmem:[#allocation1] sm:$0xff] %v5117
        %s5133 = scalar_lea.vmem [#allocation1], 1
        %v5134 = vld [vmem:[%s5133] ss:$9 sm:$0xff]
        %5136 = vst.msk [vmem:[%s337 + $0x1] sm:$0x1] %vm5129, %v5134
        %5137 = vst [vmem:[#allocation1] sm:$0xff] %v5117
        %s5138 = scalar_lea.vmem [#allocation1], 2
        %v5139 = vld [vmem:[%s5138] ss:$9 sm:$0xff]
        %5141 = vst.msk [vmem:[%s337 + $0x2] sm:$0x1] %vm5129, %v5139
        %5142 = vst [vmem:[#allocation1] sm:$0xff] %v5117
        %s5143 = scalar_lea.vmem [#allocation1], 3
        %v5144 = vld [vmem:[%s5143] ss:$9 sm:$0xff]
        %5146 = vst.msk [vmem:[%s337 + $0x3] sm:$0x1] %vm5129, %v5144
        %5147 = vst [vmem:[#allocation1] sm:$0xff] %v5117
        %s5148 = scalar_lea.vmem [#allocation1], 4
        %v5149 = vld [vmem:[%s5148] ss:$9 sm:$0xff]
        %5151 = vst.msk [vmem:[%s337 + $0x4] sm:$0x1] %vm5129, %v5149
        %5152 = vst [vmem:[#allocation1] sm:$0xff] %v5117
        %s5153 = scalar_lea.vmem [#allocation1], 5
        %v5154 = vld [vmem:[%s5153] ss:$9 sm:$0xff]
        %5156 = vst.msk [vmem:[%s337 + $0x5] sm:$0x1] %vm5129, %v5154
        %5157 = vst [vmem:[#allocation1] sm:$0xff] %v5117
        %s5158 = scalar_lea.vmem [#allocation1], 6
        %v5159 = vld [vmem:[%s5158] ss:$9 sm:$0xff]
        %5161 = vst.msk [vmem:[%s337 + $0x6] sm:$0x1] %vm5129, %v5159
        %5162 = vst [vmem:[#allocation1] sm:$0xff] %v5117
        %s5163 = scalar_lea.vmem [#allocation1], 7
        %v5164 = vld [vmem:[%s5163] ss:$9 sm:$0xff]
        %5166 = vst.msk [vmem:[%s337 + $0x7] sm:$0x1] %vm5129, %v5164
        %5167 = vst.msk [vmem:[%s337 + $0x8] sm:$0x1] %vm5129, %v5120
        %5169 = vst [vmem:[#allocation1] sm:$0xff] %v5120
        %s5170 = scalar_lea.vmem [#allocation1], 1
        %v5171 = vld [vmem:[%s5170] ss:$9 sm:$0xff]
        %5173 = vst.msk [vmem:[%s337 + $0x9] sm:$0x1] %vm5129, %v5171
        %5174 = vst [vmem:[#allocation1] sm:$0xff] %v5120
        %s5175 = scalar_lea.vmem [#allocation1], 2
        %v5176 = vld [vmem:[%s5175] ss:$9 sm:$0xff]
        %5178 = vst.msk [vmem:[%s337 + $0xa] sm:$0x1] %vm5129, %v5176
        %5179 = vst [vmem:[#allocation1] sm:$0xff] %v5120
        %s5180 = scalar_lea.vmem [#allocation1], 3
        %v5181 = vld [vmem:[%s5180] ss:$9 sm:$0xff]
        %5183 = vst.msk [vmem:[%s337 + $0xb] sm:$0x1] %vm5129, %v5181
        %5184 = vst [vmem:[#allocation1] sm:$0xff] %v5120
        %s5185 = scalar_lea.vmem [#allocation1], 4
        %v5186 = vld [vmem:[%s5185] ss:$9 sm:$0xff]
        %5188 = vst.msk [vmem:[%s337 + $0xc] sm:$0x1] %vm5129, %v5186
        %5189 = vst [vmem:[#allocation1] sm:$0xff] %v5120
        %s5190 = scalar_lea.vmem [#allocation1], 5
        %v5191 = vld [vmem:[%s5190] ss:$9 sm:$0xff]
        %5193 = vst.msk [vmem:[%s337 + $0xd] sm:$0x1] %vm5129, %v5191
        %5194 = vst [vmem:[#allocation1] sm:$0xff] %v5120
        %s5195 = scalar_lea.vmem [#allocation1], 6
        %v5196 = vld [vmem:[%s5195] ss:$9 sm:$0xff]
        %5198 = vst.msk [vmem:[%s337 + $0xe] sm:$0x1] %vm5129, %v5196
        %5199 = vst [vmem:[#allocation1] sm:$0xff] %v5120
        %s5200 = scalar_lea.vmem [#allocation1], 7
        %v5201 = vld [vmem:[%s5200] ss:$9 sm:$0xff]
        %5203 = vst.msk [vmem:[%s337 + $0xf] sm:$0x1] %vm5129, %v5201
        %5204 = vst.msk [vmem:[%s337 + $0x10] sm:$0x1] %vm5129, %v5123
        %5206 = vst [vmem:[#allocation1] sm:$0xff] %v5123
        %s5207 = scalar_lea.vmem [#allocation1], 1
        %v5208 = vld [vmem:[%s5207] ss:$9 sm:$0xff]
        %5210 = vst.msk [vmem:[%s337 + $0x11] sm:$0x1] %vm5129, %v5208
        %5211 = vst [vmem:[#allocation1] sm:$0xff] %v5123
        %s5212 = scalar_lea.vmem [#allocation1], 2
        %v5213 = vld [vmem:[%s5212] ss:$9 sm:$0xff]
        %5215 = vst.msk [vmem:[%s337 + $0x12] sm:$0x1] %vm5129, %v5213
        %5216 = vst [vmem:[#allocation1] sm:$0xff] %v5123
        %s5217 = scalar_lea.vmem [#allocation1], 3
        %v5218 = vld [vmem:[%s5217] ss:$9 sm:$0xff]
        %5220 = vst.msk [vmem:[%s337 + $0x13] sm:$0x1] %vm5129, %v5218
        %5221 = vst [vmem:[#allocation1] sm:$0xff] %v5123
        %s5222 = scalar_lea.vmem [#allocation1], 4
        %v5223 = vld [vmem:[%s5222] ss:$9 sm:$0xff]
        %5225 = vst.msk [vmem:[%s337 + $0x14] sm:$0x1] %vm5129, %v5223
        %5226 = vst [vmem:[#allocation1] sm:$0xff] %v5123
        %s5227 = scalar_lea.vmem [#allocation1], 5
        %v5228 = vld [vmem:[%s5227] ss:$9 sm:$0xff]
        %5230 = vst.msk [vmem:[%s337 + $0x15] sm:$0x1] %vm5129, %v5228
        %5231 = vst [vmem:[#allocation1] sm:$0xff] %v5123
        %s5232 = scalar_lea.vmem [#allocation1], 6
        %v5233 = vld [vmem:[%s5232] ss:$9 sm:$0xff]
        %5235 = vst.msk [vmem:[%s337 + $0x16] sm:$0x1] %vm5129, %v5233
        %5236 = vst [vmem:[#allocation1] sm:$0xff] %v5123
        %s5237 = scalar_lea.vmem [#allocation1], 7
        %v5238 = vld [vmem:[%s5237] ss:$9 sm:$0xff]
        %5240 = vst.msk [vmem:[%s337 + $0x17] sm:$0x1] %vm5129, %v5238
        %5241 = vst.msk [vmem:[%s337 + $0x18] sm:$0x1] %vm5129, %v5126
        %5243 = vst [vmem:[#allocation1] sm:$0xff] %v5126
        %s5244 = scalar_lea.vmem [#allocation1], 1
        %v5245 = vld [vmem:[%s5244] ss:$9 sm:$0xff]
        %5247 = vst.msk [vmem:[%s337 + $0x19] sm:$0x1] %vm5129, %v5245
        %5248 = vst [vmem:[#allocation1] sm:$0xff] %v5126
        %s5249 = scalar_lea.vmem [#allocation1], 2
        %v5250 = vld [vmem:[%s5249] ss:$9 sm:$0xff]
        %5252 = vst.msk [vmem:[%s337 + $0x1a] sm:$0x1] %vm5129, %v5250
        %5253 = vst [vmem:[#allocation1] sm:$0xff] %v5126
        %s5254 = scalar_lea.vmem [#allocation1], 3
        %v5255 = vld [vmem:[%s5254] ss:$9 sm:$0xff]
        %5257 = vst.msk [vmem:[%s337 + $0x1b] sm:$0x1] %vm5129, %v5255
        %5258 = vst [vmem:[#allocation1] sm:$0xff] %v5126
        %s5259 = scalar_lea.vmem [#allocation1], 4
        %v5260 = vld [vmem:[%s5259] ss:$9 sm:$0xff]
        %5262 = vst.msk [vmem:[%s337 + $0x1c] sm:$0x1] %vm5129, %v5260
        %5263 = vst [vmem:[#allocation1] sm:$0xff] %v5126
        %s5264 = scalar_lea.vmem [#allocation1], 5
        %v5265 = vld [vmem:[%s5264] ss:$9 sm:$0xff]
        %5267 = vst.msk [vmem:[%s337 + $0x1d] sm:$0x1] %vm5129, %v5265
        %5268 = vst [vmem:[#allocation1] sm:$0xff] %v5126
        %s5269 = scalar_lea.vmem [#allocation1], 6
        %v5270 = vld [vmem:[%s5269] ss:$9 sm:$0xff]
        %5272 = vst.msk [vmem:[%s337 + $0x1e] sm:$0x1] %vm5129, %v5270
        %5273 = vst [vmem:[#allocation1] sm:$0xff] %v5126
        %s5274 = scalar_lea.vmem [#allocation1], 7
        %v5275 = vld [vmem:[%s5274] ss:$9 sm:$0xff]
        %5277 = vst.msk [vmem:[%s337 + $0x1f] sm:$0x1] %vm5129, %v5275
        %v5278 = vld [vmem:[%s337] sm:$0xff]
        %v5279 = vld [vmem:[%s337 + $0x8] sm:$0xff]
        %v5280 = vld [vmem:[%s337 + $0x10] sm:$0xff]
        %v5281 = vld [vmem:[%s337 + $0x18] sm:$0xff]
        %v5282 = vld [vmem:[%s6] sm:$0xff]
        %v5283 = vld [vmem:[%s6 + $0x8] sm:$0xff]
        %v5284 = vld [vmem:[%s6 + $0x10] sm:$0xff]
        %v5285 = vld [vmem:[%s6 + $0x18] sm:$0xff]
        %v5286 = vld [vmem:[%s6 + $0x20] sm:$0xff]
        %v5287 = vld [vmem:[%s6 + $0x28] sm:$0xff]
        %v5288 = vld [vmem:[%s6 + $0x30] sm:$0xff]
        %v5289 = vld [vmem:[%s6 + $0x38] sm:$0xff]
        %v5290 = vld [vmem:[%s6 + $0x40] sm:$0xff]
        %v5291 = vld [vmem:[%s6 + $0x48] sm:$0xff]
        %v5292 = vld [vmem:[%s6 + $0x50] sm:$0xff]
        %v5293 = vld [vmem:[%s6 + $0x58] sm:$0xff]
        %v5294 = vld [vmem:[%s6 + $0x60] sm:$0xff]
        %v5295 = vld [vmem:[%s6 + $0x68] sm:$0xff]
        %v5296 = vld [vmem:[%s6 + $0x70] sm:$0xff]
        %v5297 = vld [vmem:[%s6 + $0x78] sm:$0xff]
        %v5298 = vld [vmem:[%s6 + $0x80] sm:$0xff]
        %v5299 = vld [vmem:[%s6 + $0x88] sm:$0xff]
        %v5300 = vld [vmem:[%s6 + $0x90] sm:$0xff]
        %v5301 = vld [vmem:[%s6 + $0x98] sm:$0xff]
        %v5302 = vld [vmem:[%s6 + $0xa0] sm:$0xff]
        %v5303 = vld [vmem:[%s6 + $0xa8] sm:$0xff]
        %v5304 = vld [vmem:[%s6 + $0xb0] sm:$0xff]
        %v5305 = vld [vmem:[%s6 + $0xb8] sm:$0xff]
        %v5306 = vld [vmem:[%s6 + $0xc0] sm:$0xff]
        %v5307 = vld [vmem:[%s6 + $0xc8] sm:$0xff]
        %v5308 = vld [vmem:[%s6 + $0xd0] sm:$0xff]
        %v5309 = vld [vmem:[%s6 + $0xd8] sm:$0xff]
        %v5310 = vld [vmem:[%s6 + $0xe0] sm:$0xff]
        %v5311 = vld [vmem:[%s6 + $0xe8] sm:$0xff]
        %v5312 = vld [vmem:[%s6 + $0xf0] sm:$0xff]
        %v5313 = vld [vmem:[%s6 + $0xf8] sm:$0xff]
        %v5314 = vld [vmem:[%s6 + $0x100] sm:$0xff]
        %v5315 = vld [vmem:[%s6 + $0x108] sm:$0xff]
        %v5316 = vld [vmem:[%s6 + $0x110] sm:$0xff]
        %v5317 = vld [vmem:[%s6 + $0x118] sm:$0xff]
        %v5318 = vld [vmem:[%s6 + $0x120] sm:$0xff]
        %v5319 = vld [vmem:[%s6 + $0x128] sm:$0xff]
        %v5320 = vld [vmem:[%s6 + $0x130] sm:$0xff]
        %v5321 = vld [vmem:[%s6 + $0x138] sm:$0xff]
        %v5322 = vld [vmem:[%s6 + $0x140] sm:$0xff]
        %v5323 = vld [vmem:[%s6 + $0x148] sm:$0xff]
        %v5324 = vld [vmem:[%s6 + $0x150] sm:$0xff]
        %v5325 = vld [vmem:[%s6 + $0x158] sm:$0xff]
        %v5326 = vld [vmem:[%s6 + $0x160] sm:$0xff]
        %v5327 = vld [vmem:[%s6 + $0x168] sm:$0xff]
        %v5328 = vld [vmem:[%s6 + $0x170] sm:$0xff]
        %v5329 = vld [vmem:[%s6 + $0x178] sm:$0xff]
        %v5330 = vld [vmem:[%s6 + $0x180] sm:$0xff]
        %v5331 = vld [vmem:[%s6 + $0x188] sm:$0xff]
        %v5332 = vld [vmem:[%s6 + $0x190] sm:$0xff]
        %v5333 = vld [vmem:[%s6 + $0x198] sm:$0xff]
        %v5334 = vld [vmem:[%s6 + $0x1a0] sm:$0xff]
        %v5335 = vld [vmem:[%s6 + $0x1a8] sm:$0xff]
        %v5336 = vld [vmem:[%s6 + $0x1b0] sm:$0xff]
        %v5337 = vld [vmem:[%s6 + $0x1b8] sm:$0xff]
        %v5338 = vld [vmem:[%s6 + $0x1c0] sm:$0xff]
        %v5339 = vld [vmem:[%s6 + $0x1c8] sm:$0xff]
        %v5340 = vld [vmem:[%s6 + $0x1d0] sm:$0xff]
        %v5341 = vld [vmem:[%s6 + $0x1d8] sm:$0xff]
        %v5342 = vld [vmem:[%s6 + $0x1e0] sm:$0xff]
        %v5343 = vld [vmem:[%s6 + $0x1e8] sm:$0xff]
        %v5344 = vld [vmem:[%s6 + $0x1f0] sm:$0xff]
        %v5345 = vld [vmem:[%s6 + $0x1f8] sm:$0xff]
        %v5346 = vld [vmem:[%s6 + $0x200] sm:$0xff]
        %v5347 = vld [vmem:[%s6 + $0x208] sm:$0xff]
        %v5348 = vld [vmem:[%s6 + $0x210] sm:$0xff]
        %v5349 = vld [vmem:[%s6 + $0x218] sm:$0xff]
        %v5350 = vld [vmem:[%s6 + $0x220] sm:$0xff]
        %v5351 = vld [vmem:[%s6 + $0x228] sm:$0xff]
        %v5352 = vld [vmem:[%s6 + $0x230] sm:$0xff]
        %v5353 = vld [vmem:[%s6 + $0x238] sm:$0xff]
        %v5354 = vld [vmem:[%s6 + $0x240] sm:$0xff]
        %v5355 = vld [vmem:[%s6 + $0x248] sm:$0xff]
        %v5356 = vld [vmem:[%s6 + $0x250] sm:$0xff]
        %v5357 = vld [vmem:[%s6 + $0x258] sm:$0xff]
        %v5358 = vld [vmem:[%s6 + $0x260] sm:$0xff]
        %v5359 = vld [vmem:[%s6 + $0x268] sm:$0xff]
        %v5360 = vld [vmem:[%s6 + $0x270] sm:$0xff]
        %v5361 = vld [vmem:[%s6 + $0x278] sm:$0xff]
        %v5362 = vld [vmem:[%s6 + $0x280] sm:$0xff]
        %v5363 = vld [vmem:[%s6 + $0x288] sm:$0xff]
        %v5364 = vld [vmem:[%s6 + $0x290] sm:$0xff]
        %v5365 = vld [vmem:[%s6 + $0x298] sm:$0xff]
        %v5366 = vld [vmem:[%s6 + $0x2a0] sm:$0xff]
        %v5367 = vld [vmem:[%s6 + $0x2a8] sm:$0xff]
        %v5368 = vld [vmem:[%s6 + $0x2b0] sm:$0xff]
        %v5369 = vld [vmem:[%s6 + $0x2b8] sm:$0xff]
        %v5370 = vld [vmem:[%s6 + $0x2c0] sm:$0xff]
        %v5371 = vld [vmem:[%s6 + $0x2c8] sm:$0xff]
        %v5372 = vld [vmem:[%s6 + $0x2d0] sm:$0xff]
        %v5373 = vld [vmem:[%s6 + $0x2d8] sm:$0xff]
        %v5374 = vld [vmem:[%s6 + $0x2e0] sm:$0xff]
        %v5375 = vld [vmem:[%s6 + $0x2e8] sm:$0xff]
        %v5376 = vld [vmem:[%s6 + $0x2f0] sm:$0xff]
        %v5377 = vld [vmem:[%s6 + $0x2f8] sm:$0xff]
        %v5378 = vld [vmem:[%s6 + $0x300] sm:$0xff]
        %v5379 = vld [vmem:[%s6 + $0x308] sm:$0xff]
        %v5380 = vld [vmem:[%s6 + $0x310] sm:$0xff]
        %v5381 = vld [vmem:[%s6 + $0x318] sm:$0xff]
        %v5382 = vld [vmem:[%s6 + $0x320] sm:$0xff]
        %v5383 = vld [vmem:[%s6 + $0x328] sm:$0xff]
        %v5384 = vld [vmem:[%s6 + $0x330] sm:$0xff]
        %v5385 = vld [vmem:[%s6 + $0x338] sm:$0xff]
        %v5386 = vld [vmem:[%s6 + $0x340] sm:$0xff]
        %v5387 = vld [vmem:[%s6 + $0x348] sm:$0xff]
        %v5388 = vld [vmem:[%s6 + $0x350] sm:$0xff]
        %v5389 = vld [vmem:[%s6 + $0x358] sm:$0xff]
        %v5390 = vld [vmem:[%s6 + $0x360] sm:$0xff]
        %v5391 = vld [vmem:[%s6 + $0x368] sm:$0xff]
        %v5392 = vld [vmem:[%s6 + $0x370] sm:$0xff]
        %v5393 = vld [vmem:[%s6 + $0x378] sm:$0xff]
        %v5394 = vld [vmem:[%s6 + $0x380] sm:$0xff]
        %v5395 = vld [vmem:[%s6 + $0x388] sm:$0xff]
        %v5396 = vld [vmem:[%s6 + $0x390] sm:$0xff]
        %v5397 = vld [vmem:[%s6 + $0x398] sm:$0xff]
        %v5398 = vld [vmem:[%s6 + $0x3a0] sm:$0xff]
        %v5399 = vld [vmem:[%s6 + $0x3a8] sm:$0xff]
        %v5400 = vld [vmem:[%s6 + $0x3b0] sm:$0xff]
        %v5401 = vld [vmem:[%s6 + $0x3b8] sm:$0xff]
        %v5402 = vld [vmem:[%s6 + $0x3c0] sm:$0xff]
        %v5403 = vld [vmem:[%s6 + $0x3c8] sm:$0xff]
        %v5404 = vld [vmem:[%s6 + $0x3d0] sm:$0xff]
        %v5405 = vld [vmem:[%s6 + $0x3d8] sm:$0xff]
        %v5406 = vld [vmem:[%s6 + $0x3e0] sm:$0xff]
        %v5407 = vld [vmem:[%s6 + $0x3e8] sm:$0xff]
        %v5408 = vld [vmem:[%s6 + $0x3f0] sm:$0xff]
        %v5409 = vld [vmem:[%s6 + $0x3f8] sm:$0xff]
        %v5410 = vld [vmem:[%s6 + $0x400] sm:$0xff]
        %v5411 = vld [vmem:[%s6 + $0x408] sm:$0xff]
        %v5412 = vld [vmem:[%s6 + $0x410] sm:$0xff]
        %v5413 = vld [vmem:[%s6 + $0x418] sm:$0xff]
        %v5414 = vld [vmem:[%s6 + $0x420] sm:$0xff]
        %v5415 = vld [vmem:[%s6 + $0x428] sm:$0xff]
        %v5416 = vld [vmem:[%s6 + $0x430] sm:$0xff]
        %v5417 = vld [vmem:[%s6 + $0x438] sm:$0xff]
        %v5418 = vld [vmem:[%s6 + $0x440] sm:$0xff]
        %v5419 = vld [vmem:[%s6 + $0x448] sm:$0xff]
        %v5420 = vld [vmem:[%s6 + $0x450] sm:$0xff]
        %v5421 = vld [vmem:[%s6 + $0x458] sm:$0xff]
        %v5422 = vld [vmem:[%s6 + $0x460] sm:$0xff]
        %v5423 = vld [vmem:[%s6 + $0x468] sm:$0xff]
        %v5424 = vld [vmem:[%s6 + $0x470] sm:$0xff]
        %v5425 = vld [vmem:[%s6 + $0x478] sm:$0xff]
        %v5426 = vld [vmem:[%s6 + $0x480] sm:$0xff]
        %v5427 = vld [vmem:[%s6 + $0x488] sm:$0xff]
        %v5428 = vld [vmem:[%s6 + $0x490] sm:$0xff]
        %v5429 = vld [vmem:[%s6 + $0x498] sm:$0xff]
        %v5430 = vld [vmem:[%s6 + $0x4a0] sm:$0xff]
        %v5431 = vld [vmem:[%s6 + $0x4a8] sm:$0xff]
        %v5432 = vld [vmem:[%s6 + $0x4b0] sm:$0xff]
        %v5433 = vld [vmem:[%s6 + $0x4b8] sm:$0xff]
        %v5434 = vld [vmem:[%s6 + $0x4c0] sm:$0xff]
        %v5435 = vld [vmem:[%s6 + $0x4c8] sm:$0xff]
        %v5436 = vld [vmem:[%s6 + $0x4d0] sm:$0xff]
        %v5437 = vld [vmem:[%s6 + $0x4d8] sm:$0xff]
        %v5438 = vld [vmem:[%s6 + $0x4e0] sm:$0xff]
        %v5439 = vld [vmem:[%s6 + $0x4e8] sm:$0xff]
        %v5440 = vld [vmem:[%s6 + $0x4f0] sm:$0xff]
        %v5441 = vld [vmem:[%s6 + $0x4f8] sm:$0xff]
        %v5442 = vld [vmem:[%s6 + $0x500] sm:$0xff]
        %v5443 = vld [vmem:[%s6 + $0x508] sm:$0xff]
        %v5444 = vld [vmem:[%s6 + $0x510] sm:$0xff]
        %v5445 = vld [vmem:[%s6 + $0x518] sm:$0xff]
        %v5446 = vld [vmem:[%s6 + $0x520] sm:$0xff]
        %v5447 = vld [vmem:[%s6 + $0x528] sm:$0xff]
        %v5448 = vld [vmem:[%s6 + $0x530] sm:$0xff]
        %v5449 = vld [vmem:[%s6 + $0x538] sm:$0xff]
        %v5450 = vld [vmem:[%s6 + $0x540] sm:$0xff]
        %v5451 = vld [vmem:[%s6 + $0x548] sm:$0xff]
        %v5452 = vld [vmem:[%s6 + $0x550] sm:$0xff]
        %v5453 = vld [vmem:[%s6 + $0x558] sm:$0xff]
        %v5454 = vld [vmem:[%s6 + $0x560] sm:$0xff]
        %v5455 = vld [vmem:[%s6 + $0x568] sm:$0xff]
        %v5456 = vld [vmem:[%s6 + $0x570] sm:$0xff]
        %v5457 = vld [vmem:[%s6 + $0x578] sm:$0xff]
        %v5458 = vld [vmem:[%s6 + $0x580] sm:$0xff]
        %v5459 = vld [vmem:[%s6 + $0x588] sm:$0xff]
        %v5460 = vld [vmem:[%s6 + $0x590] sm:$0xff]
        %v5461 = vld [vmem:[%s6 + $0x598] sm:$0xff]
        %v5462 = vld [vmem:[%s6 + $0x5a0] sm:$0xff]
        %v5463 = vld [vmem:[%s6 + $0x5a8] sm:$0xff]
        %v5464 = vld [vmem:[%s6 + $0x5b0] sm:$0xff]
        %v5465 = vld [vmem:[%s6 + $0x5b8] sm:$0xff]
        %v5466 = vld [vmem:[%s6 + $0x5c0] sm:$0xff]
        %v5467 = vld [vmem:[%s6 + $0x5c8] sm:$0xff]
        %v5468 = vld [vmem:[%s6 + $0x5d0] sm:$0xff]
        %v5469 = vld [vmem:[%s6 + $0x5d8] sm:$0xff]
        %v5470 = vld [vmem:[%s6 + $0x5e0] sm:$0xff]
        %v5471 = vld [vmem:[%s6 + $0x5e8] sm:$0xff]
        %v5472 = vld [vmem:[%s6 + $0x5f0] sm:$0xff]
        %v5473 = vld [vmem:[%s6 + $0x5f8] sm:$0xff]
        %v5474 = vld [vmem:[%s6 + $0x600] sm:$0xff]
        %v5475 = vld [vmem:[%s6 + $0x608] sm:$0xff]
        %v5476 = vld [vmem:[%s6 + $0x610] sm:$0xff]
        %v5477 = vld [vmem:[%s6 + $0x618] sm:$0xff]
        %v5478 = vld [vmem:[%s6 + $0x620] sm:$0xff]
        %v5479 = vld [vmem:[%s6 + $0x628] sm:$0xff]
        %v5480 = vld [vmem:[%s6 + $0x630] sm:$0xff]
        %v5481 = vld [vmem:[%s6 + $0x638] sm:$0xff]
        %v5482 = vld [vmem:[%s6 + $0x640] sm:$0xff]
        %v5483 = vld [vmem:[%s6 + $0x648] sm:$0xff]
        %v5484 = vld [vmem:[%s6 + $0x650] sm:$0xff]
        %v5485 = vld [vmem:[%s6 + $0x658] sm:$0xff]
        %v5486 = vld [vmem:[%s6 + $0x660] sm:$0xff]
        %v5487 = vld [vmem:[%s6 + $0x668] sm:$0xff]
        %v5488 = vld [vmem:[%s6 + $0x670] sm:$0xff]
        %v5489 = vld [vmem:[%s6 + $0x678] sm:$0xff]
        %v5490 = vld [vmem:[%s6 + $0x680] sm:$0xff]
        %v5491 = vld [vmem:[%s6 + $0x688] sm:$0xff]
        %v5492 = vld [vmem:[%s6 + $0x690] sm:$0xff]
        %v5493 = vld [vmem:[%s6 + $0x698] sm:$0xff]
        %v5494 = vld [vmem:[%s6 + $0x6a0] sm:$0xff]
        %v5495 = vld [vmem:[%s6 + $0x6a8] sm:$0xff]
        %v5496 = vld [vmem:[%s6 + $0x6b0] sm:$0xff]
        %v5497 = vld [vmem:[%s6 + $0x6b8] sm:$0xff]
        %v5498 = vld [vmem:[%s6 + $0x6c0] sm:$0xff]
        %v5499 = vld [vmem:[%s6 + $0x6c8] sm:$0xff]
        %v5500 = vld [vmem:[%s6 + $0x6d0] sm:$0xff]
        %v5501 = vld [vmem:[%s6 + $0x6d8] sm:$0xff]
        %v5502 = vld [vmem:[%s6 + $0x6e0] sm:$0xff]
        %v5503 = vld [vmem:[%s6 + $0x6e8] sm:$0xff]
        %v5504 = vld [vmem:[%s6 + $0x6f0] sm:$0xff]
        %v5505 = vld [vmem:[%s6 + $0x6f8] sm:$0xff]
        %v5506 = vld [vmem:[%s6 + $0x700] sm:$0xff]
        %v5507 = vld [vmem:[%s6 + $0x708] sm:$0xff]
        %v5508 = vld [vmem:[%s6 + $0x710] sm:$0xff]
        %v5509 = vld [vmem:[%s6 + $0x718] sm:$0xff]
        %v5510 = vld [vmem:[%s6 + $0x720] sm:$0xff]
        %v5511 = vld [vmem:[%s6 + $0x728] sm:$0xff]
        %v5512 = vld [vmem:[%s6 + $0x730] sm:$0xff]
        %v5513 = vld [vmem:[%s6 + $0x738] sm:$0xff]
        %v5514 = vld [vmem:[%s6 + $0x740] sm:$0xff]
        %v5515 = vld [vmem:[%s6 + $0x748] sm:$0xff]
        %v5516 = vld [vmem:[%s6 + $0x750] sm:$0xff]
        %v5517 = vld [vmem:[%s6 + $0x758] sm:$0xff]
        %v5518 = vld [vmem:[%s6 + $0x760] sm:$0xff]
        %v5519 = vld [vmem:[%s6 + $0x768] sm:$0xff]
        %v5520 = vld [vmem:[%s6 + $0x770] sm:$0xff]
        %v5521 = vld [vmem:[%s6 + $0x778] sm:$0xff]
        %v5522 = vld [vmem:[%s6 + $0x780] sm:$0xff]
        %v5523 = vld [vmem:[%s6 + $0x788] sm:$0xff]
        %v5524 = vld [vmem:[%s6 + $0x790] sm:$0xff]
        %v5525 = vld [vmem:[%s6 + $0x798] sm:$0xff]
        %v5526 = vld [vmem:[%s6 + $0x7a0] sm:$0xff]
        %v5527 = vld [vmem:[%s6 + $0x7a8] sm:$0xff]
        %v5528 = vld [vmem:[%s6 + $0x7b0] sm:$0xff]
        %v5529 = vld [vmem:[%s6 + $0x7b8] sm:$0xff]
        %v5530 = vld [vmem:[%s6 + $0x7c0] sm:$0xff]
        %v5531 = vld [vmem:[%s6 + $0x7c8] sm:$0xff]
        %v5532 = vld [vmem:[%s6 + $0x7d0] sm:$0xff]
        %v5533 = vld [vmem:[%s6 + $0x7d8] sm:$0xff]
        %v5534 = vld [vmem:[%s6 + $0x7e0] sm:$0xff]
        %v5535 = vld [vmem:[%s6 + $0x7e8] sm:$0xff]
        %v5536 = vld [vmem:[%s6 + $0x7f0] sm:$0xff]
        %v5537 = vld [vmem:[%s6 + $0x7f8] sm:$0xff]
        %v5538 = vld [vmem:[%s6 + $0x800] sm:$0xff]
        %v5539 = vld [vmem:[%s6 + $0x808] sm:$0xff]
        %v5540 = vld [vmem:[%s6 + $0x810] sm:$0xff]
        %v5541 = vld [vmem:[%s6 + $0x818] sm:$0xff]
        %v5542 = vld [vmem:[%s6 + $0x820] sm:$0xff]
        %v5543 = vld [vmem:[%s6 + $0x828] sm:$0xff]
        %v5544 = vld [vmem:[%s6 + $0x830] sm:$0xff]
        %v5545 = vld [vmem:[%s6 + $0x838] sm:$0xff]
        %v5546 = vld [vmem:[%s6 + $0x840] sm:$0xff]
        %v5547 = vld [vmem:[%s6 + $0x848] sm:$0xff]
        %v5548 = vld [vmem:[%s6 + $0x850] sm:$0xff]
        %v5549 = vld [vmem:[%s6 + $0x858] sm:$0xff]
        %v5550 = vld [vmem:[%s6 + $0x860] sm:$0xff]
        %v5551 = vld [vmem:[%s6 + $0x868] sm:$0xff]
        %v5552 = vld [vmem:[%s6 + $0x870] sm:$0xff]
        %v5553 = vld [vmem:[%s6 + $0x878] sm:$0xff]
        %v5554 = vld [vmem:[%s6 + $0x880] sm:$0xff]
        %v5555 = vld [vmem:[%s6 + $0x888] sm:$0xff]
        %v5556 = vld [vmem:[%s6 + $0x890] sm:$0xff]
        %v5557 = vld [vmem:[%s6 + $0x898] sm:$0xff]
        %v5558 = vld [vmem:[%s6 + $0x8a0] sm:$0xff]
        %v5559 = vld [vmem:[%s6 + $0x8a8] sm:$0xff]
        %v5560 = vld [vmem:[%s6 + $0x8b0] sm:$0xff]
        %v5561 = vld [vmem:[%s6 + $0x8b8] sm:$0xff]
        %v5562 = vld [vmem:[%s6 + $0x8c0] sm:$0xff]
        %v5563 = vld [vmem:[%s6 + $0x8c8] sm:$0xff]
        %v5564 = vld [vmem:[%s6 + $0x8d0] sm:$0xff]
        %v5565 = vld [vmem:[%s6 + $0x8d8] sm:$0xff]
        %v5566 = vld [vmem:[%s6 + $0x8e0] sm:$0xff]
        %v5567 = vld [vmem:[%s6 + $0x8e8] sm:$0xff]
        %v5568 = vld [vmem:[%s6 + $0x8f0] sm:$0xff]
        %v5569 = vld [vmem:[%s6 + $0x8f8] sm:$0xff]
        %v5570 = vld [vmem:[%s6 + $0x900] sm:$0xff]
        %v5571 = vld [vmem:[%s6 + $0x908] sm:$0xff]
        %v5572 = vld [vmem:[%s6 + $0x910] sm:$0xff]
        %v5573 = vld [vmem:[%s6 + $0x918] sm:$0xff]
        %v5574 = vld [vmem:[%s6 + $0x920] sm:$0xff]
        %v5575 = vld [vmem:[%s6 + $0x928] sm:$0xff]
        %v5576 = vld [vmem:[%s6 + $0x930] sm:$0xff]
        %v5577 = vld [vmem:[%s6 + $0x938] sm:$0xff]
        %v5578 = vld [vmem:[%s6 + $0x940] sm:$0xff]
        %v5579 = vld [vmem:[%s6 + $0x948] sm:$0xff]
        %v5580 = vld [vmem:[%s6 + $0x950] sm:$0xff]
        %v5581 = vld [vmem:[%s6 + $0x958] sm:$0xff]
        %v5582 = vld [vmem:[%s6 + $0x960] sm:$0xff]
        %v5583 = vld [vmem:[%s6 + $0x968] sm:$0xff]
        %v5584 = vld [vmem:[%s6 + $0x970] sm:$0xff]
        %v5585 = vld [vmem:[%s6 + $0x978] sm:$0xff]
        %v5586 = vld [vmem:[%s6 + $0x980] sm:$0xff]
        %v5587 = vld [vmem:[%s6 + $0x988] sm:$0xff]
        %v5588 = vld [vmem:[%s6 + $0x990] sm:$0xff]
        %v5589 = vld [vmem:[%s6 + $0x998] sm:$0xff]
        %v5590 = vld [vmem:[%s6 + $0x9a0] sm:$0xff]
        %v5591 = vld [vmem:[%s6 + $0x9a8] sm:$0xff]
        %v5592 = vld [vmem:[%s6 + $0x9b0] sm:$0xff]
        %v5593 = vld [vmem:[%s6 + $0x9b8] sm:$0xff]
        %v5594 = vld [vmem:[%s6 + $0x9c0] sm:$0xff]
        %v5595 = vld [vmem:[%s6 + $0x9c8] sm:$0xff]
        %v5596 = vld [vmem:[%s6 + $0x9d0] sm:$0xff]
        %v5597 = vld [vmem:[%s6 + $0x9d8] sm:$0xff]
        %v5598 = vld [vmem:[%s6 + $0x9e0] sm:$0xff]
        %v5599 = vld [vmem:[%s6 + $0x9e8] sm:$0xff]
        %v5600 = vld [vmem:[%s6 + $0x9f0] sm:$0xff]
        %v5601 = vld [vmem:[%s6 + $0x9f8] sm:$0xff]
        %v5602 = vld [vmem:[%s6 + $0xa00] sm:$0xff]
        %v5603 = vld [vmem:[%s6 + $0xa08] sm:$0xff]
        %v5604 = vld [vmem:[%s6 + $0xa10] sm:$0xff]
        %v5605 = vld [vmem:[%s6 + $0xa18] sm:$0xff]
        %v5606 = vld [vmem:[%s6 + $0xa20] sm:$0xff]
        %v5607 = vld [vmem:[%s6 + $0xa28] sm:$0xff]
        %v5608 = vld [vmem:[%s6 + $0xa30] sm:$0xff]
        %v5609 = vld [vmem:[%s6 + $0xa38] sm:$0xff]
        %v5610 = vld [vmem:[%s6 + $0xa40] sm:$0xff]
        %v5611 = vld [vmem:[%s6 + $0xa48] sm:$0xff]
        %v5612 = vld [vmem:[%s6 + $0xa50] sm:$0xff]
        %v5613 = vld [vmem:[%s6 + $0xa58] sm:$0xff]
        %v5614 = vld [vmem:[%s6 + $0xa60] sm:$0xff]
        %v5615 = vld [vmem:[%s6 + $0xa68] sm:$0xff]
        %v5616 = vld [vmem:[%s6 + $0xa70] sm:$0xff]
        %v5617 = vld [vmem:[%s6 + $0xa78] sm:$0xff]
        %v5618 = vld [vmem:[%s6 + $0xa80] sm:$0xff]
        %v5619 = vld [vmem:[%s6 + $0xa88] sm:$0xff]
        %v5620 = vld [vmem:[%s6 + $0xa90] sm:$0xff]
        %v5621 = vld [vmem:[%s6 + $0xa98] sm:$0xff]
        %v5622 = vld [vmem:[%s6 + $0xaa0] sm:$0xff]
        %v5623 = vld [vmem:[%s6 + $0xaa8] sm:$0xff]
        %v5624 = vld [vmem:[%s6 + $0xab0] sm:$0xff]
        %v5625 = vld [vmem:[%s6 + $0xab8] sm:$0xff]
        %v5626 = vld [vmem:[%s6 + $0xac0] sm:$0xff]
        %v5627 = vld [vmem:[%s6 + $0xac8] sm:$0xff]
        %v5628 = vld [vmem:[%s6 + $0xad0] sm:$0xff]
        %v5629 = vld [vmem:[%s6 + $0xad8] sm:$0xff]
        %v5630 = vld [vmem:[%s6 + $0xae0] sm:$0xff]
        %v5631 = vld [vmem:[%s6 + $0xae8] sm:$0xff]
        %v5632 = vld [vmem:[%s6 + $0xaf0] sm:$0xff]
        %v5633 = vld [vmem:[%s6 + $0xaf8] sm:$0xff]
        %v5634 = vld [vmem:[%s6 + $0xb00] sm:$0xff]
        %v5635 = vld [vmem:[%s6 + $0xb08] sm:$0xff]
        %v5636 = vld [vmem:[%s6 + $0xb10] sm:$0xff]
        %v5637 = vld [vmem:[%s6 + $0xb18] sm:$0xff]
        %v5638 = vld [vmem:[%s6 + $0xb20] sm:$0xff]
        %v5639 = vld [vmem:[%s6 + $0xb28] sm:$0xff]
        %v5640 = vld [vmem:[%s6 + $0xb30] sm:$0xff]
        %v5641 = vld [vmem:[%s6 + $0xb38] sm:$0xff]
        %v5642 = vld [vmem:[%s6 + $0xb40] sm:$0xff]
        %v5643 = vld [vmem:[%s6 + $0xb48] sm:$0xff]
        %v5644 = vld [vmem:[%s6 + $0xb50] sm:$0xff]
        %v5645 = vld [vmem:[%s6 + $0xb58] sm:$0xff]
        %v5646 = vld [vmem:[%s6 + $0xb60] sm:$0xff]
        %v5647 = vld [vmem:[%s6 + $0xb68] sm:$0xff]
        %v5648 = vld [vmem:[%s6 + $0xb70] sm:$0xff]
        %v5649 = vld [vmem:[%s6 + $0xb78] sm:$0xff]
        %v5650 = vld [vmem:[%s6 + $0xb80] sm:$0xff]
        %v5651 = vld [vmem:[%s6 + $0xb88] sm:$0xff]
        %v5652 = vld [vmem:[%s6 + $0xb90] sm:$0xff]
        %v5653 = vld [vmem:[%s6 + $0xb98] sm:$0xff]
        %v5654 = vld [vmem:[%s6 + $0xba0] sm:$0xff]
        %v5655 = vld [vmem:[%s6 + $0xba8] sm:$0xff]
        %v5656 = vld [vmem:[%s6 + $0xbb0] sm:$0xff]
        %v5657 = vld [vmem:[%s6 + $0xbb8] sm:$0xff]
        %v5658 = vld [vmem:[%s6 + $0xbc0] sm:$0xff]
        %v5659 = vld [vmem:[%s6 + $0xbc8] sm:$0xff]
        %v5660 = vld [vmem:[%s6 + $0xbd0] sm:$0xff]
        %v5661 = vld [vmem:[%s6 + $0xbd8] sm:$0xff]
        %v5662 = vld [vmem:[%s6 + $0xbe0] sm:$0xff]
        %v5663 = vld [vmem:[%s6 + $0xbe8] sm:$0xff]
        %v5664 = vld [vmem:[%s6 + $0xbf0] sm:$0xff]
        %v5665 = vld [vmem:[%s6 + $0xbf8] sm:$0xff]
        %v5666 = vld [vmem:[%s6 + $0xc00] sm:$0xff]
        %v5667 = vld [vmem:[%s6 + $0xc08] sm:$0xff]
        %v5668 = vld [vmem:[%s6 + $0xc10] sm:$0xff]
        %v5669 = vld [vmem:[%s6 + $0xc18] sm:$0xff]
        %v5670 = vld [vmem:[%s6 + $0xc20] sm:$0xff]
        %v5671 = vld [vmem:[%s6 + $0xc28] sm:$0xff]
        %v5672 = vld [vmem:[%s6 + $0xc30] sm:$0xff]
        %v5673 = vld [vmem:[%s6 + $0xc38] sm:$0xff]
        %v5674 = vld [vmem:[%s6 + $0xc40] sm:$0xff]
        %v5675 = vld [vmem:[%s6 + $0xc48] sm:$0xff]
        %v5676 = vld [vmem:[%s6 + $0xc50] sm:$0xff]
        %v5677 = vld [vmem:[%s6 + $0xc58] sm:$0xff]
        %v5678 = vld [vmem:[%s6 + $0xc60] sm:$0xff]
        %v5679 = vld [vmem:[%s6 + $0xc68] sm:$0xff]
        %v5680 = vld [vmem:[%s6 + $0xc70] sm:$0xff]
        %v5681 = vld [vmem:[%s6 + $0xc78] sm:$0xff]
        %v5682 = vld [vmem:[%s6 + $0xc80] sm:$0xff]
        %v5683 = vld [vmem:[%s6 + $0xc88] sm:$0xff]
        %v5684 = vld [vmem:[%s6 + $0xc90] sm:$0xff]
        %v5685 = vld [vmem:[%s6 + $0xc98] sm:$0xff]
        %v5686 = vld [vmem:[%s6 + $0xca0] sm:$0xff]
        %v5687 = vld [vmem:[%s6 + $0xca8] sm:$0xff]
        %v5688 = vld [vmem:[%s6 + $0xcb0] sm:$0xff]
        %v5689 = vld [vmem:[%s6 + $0xcb8] sm:$0xff]
        %v5690 = vld [vmem:[%s6 + $0xcc0] sm:$0xff]
        %v5691 = vld [vmem:[%s6 + $0xcc8] sm:$0xff]
        %v5692 = vld [vmem:[%s6 + $0xcd0] sm:$0xff]
        %v5693 = vld [vmem:[%s6 + $0xcd8] sm:$0xff]
        %v5694 = vld [vmem:[%s6 + $0xce0] sm:$0xff]
        %v5695 = vld [vmem:[%s6 + $0xce8] sm:$0xff]
        %v5696 = vld [vmem:[%s6 + $0xcf0] sm:$0xff]
        %v5697 = vld [vmem:[%s6 + $0xcf8] sm:$0xff]
        %v5698 = vld [vmem:[%s6 + $0xd00] sm:$0xff]
        %v5699 = vld [vmem:[%s6 + $0xd08] sm:$0xff]
        %v5700 = vld [vmem:[%s6 + $0xd10] sm:$0xff]
        %v5701 = vld [vmem:[%s6 + $0xd18] sm:$0xff]
        %v5702 = vld [vmem:[%s6 + $0xd20] sm:$0xff]
        %v5703 = vld [vmem:[%s6 + $0xd28] sm:$0xff]
        %v5704 = vld [vmem:[%s6 + $0xd30] sm:$0xff]
        %v5705 = vld [vmem:[%s6 + $0xd38] sm:$0xff]
        %v5706 = vld [vmem:[%s6 + $0xd40] sm:$0xff]
        %v5707 = vld [vmem:[%s6 + $0xd48] sm:$0xff]
        %v5708 = vld [vmem:[%s6 + $0xd50] sm:$0xff]
        %v5709 = vld [vmem:[%s6 + $0xd58] sm:$0xff]
        %v5710 = vld [vmem:[%s6 + $0xd60] sm:$0xff]
        %v5711 = vld [vmem:[%s6 + $0xd68] sm:$0xff]
        %v5712 = vld [vmem:[%s6 + $0xd70] sm:$0xff]
        %v5713 = vld [vmem:[%s6 + $0xd78] sm:$0xff]
        %v5714 = vld [vmem:[%s6 + $0xd80] sm:$0xff]
        %v5715 = vld [vmem:[%s6 + $0xd88] sm:$0xff]
        %v5716 = vld [vmem:[%s6 + $0xd90] sm:$0xff]
        %v5717 = vld [vmem:[%s6 + $0xd98] sm:$0xff]
        %v5718 = vld [vmem:[%s6 + $0xda0] sm:$0xff]
        %v5719 = vld [vmem:[%s6 + $0xda8] sm:$0xff]
        %v5720 = vld [vmem:[%s6 + $0xdb0] sm:$0xff]
        %v5721 = vld [vmem:[%s6 + $0xdb8] sm:$0xff]
        %v5722 = vld [vmem:[%s6 + $0xdc0] sm:$0xff]
        %v5723 = vld [vmem:[%s6 + $0xdc8] sm:$0xff]
        %v5724 = vld [vmem:[%s6 + $0xdd0] sm:$0xff]
        %v5725 = vld [vmem:[%s6 + $0xdd8] sm:$0xff]
        %v5726 = vld [vmem:[%s6 + $0xde0] sm:$0xff]
        %v5727 = vld [vmem:[%s6 + $0xde8] sm:$0xff]
        %v5728 = vld [vmem:[%s6 + $0xdf0] sm:$0xff]
        %v5729 = vld [vmem:[%s6 + $0xdf8] sm:$0xff]
        %v5730 = vld [vmem:[%s6 + $0xe00] sm:$0xff]
        %v5731 = vld [vmem:[%s6 + $0xe08] sm:$0xff]
        %v5732 = vld [vmem:[%s6 + $0xe10] sm:$0xff]
        %v5733 = vld [vmem:[%s6 + $0xe18] sm:$0xff]
        %v5734 = vld [vmem:[%s6 + $0xe20] sm:$0xff]
        %v5735 = vld [vmem:[%s6 + $0xe28] sm:$0xff]
        %v5736 = vld [vmem:[%s6 + $0xe30] sm:$0xff]
        %v5737 = vld [vmem:[%s6 + $0xe38] sm:$0xff]
        %v5738 = vld [vmem:[%s6 + $0xe40] sm:$0xff]
        %v5739 = vld [vmem:[%s6 + $0xe48] sm:$0xff]
        %v5740 = vld [vmem:[%s6 + $0xe50] sm:$0xff]
        %v5741 = vld [vmem:[%s6 + $0xe58] sm:$0xff]
        %v5742 = vld [vmem:[%s6 + $0xe60] sm:$0xff]
        %v5743 = vld [vmem:[%s6 + $0xe68] sm:$0xff]
        %v5744 = vld [vmem:[%s6 + $0xe70] sm:$0xff]
        %v5745 = vld [vmem:[%s6 + $0xe78] sm:$0xff]
        %v5746 = vld [vmem:[%s6 + $0xe80] sm:$0xff]
        %v5747 = vld [vmem:[%s6 + $0xe88] sm:$0xff]
        %v5748 = vld [vmem:[%s6 + $0xe90] sm:$0xff]
        %v5749 = vld [vmem:[%s6 + $0xe98] sm:$0xff]
        %v5750 = vld [vmem:[%s6 + $0xea0] sm:$0xff]
        %v5751 = vld [vmem:[%s6 + $0xea8] sm:$0xff]
        %v5752 = vld [vmem:[%s6 + $0xeb0] sm:$0xff]
        %v5753 = vld [vmem:[%s6 + $0xeb8] sm:$0xff]
        %v5754 = vld [vmem:[%s6 + $0xec0] sm:$0xff]
        %v5755 = vld [vmem:[%s6 + $0xec8] sm:$0xff]
        %v5756 = vld [vmem:[%s6 + $0xed0] sm:$0xff]
        %v5757 = vld [vmem:[%s6 + $0xed8] sm:$0xff]
        %v5758 = vld [vmem:[%s6 + $0xee0] sm:$0xff]
        %v5759 = vld [vmem:[%s6 + $0xee8] sm:$0xff]
        %v5760 = vld [vmem:[%s6 + $0xef0] sm:$0xff]
        %v5761 = vld [vmem:[%s6 + $0xef8] sm:$0xff]
        %v5762 = vld [vmem:[%s6 + $0xf00] sm:$0xff]
        %v5763 = vld [vmem:[%s6 + $0xf08] sm:$0xff]
        %v5764 = vld [vmem:[%s6 + $0xf10] sm:$0xff]
        %v5765 = vld [vmem:[%s6 + $0xf18] sm:$0xff]
        %v5766 = vld [vmem:[%s6 + $0xf20] sm:$0xff]
        %v5767 = vld [vmem:[%s6 + $0xf28] sm:$0xff]
        %v5768 = vld [vmem:[%s6 + $0xf30] sm:$0xff]
        %v5769 = vld [vmem:[%s6 + $0xf38] sm:$0xff]
        %v5770 = vld [vmem:[%s6 + $0xf40] sm:$0xff]
        %v5771 = vld [vmem:[%s6 + $0xf48] sm:$0xff]
        %v5772 = vld [vmem:[%s6 + $0xf50] sm:$0xff]
        %v5773 = vld [vmem:[%s6 + $0xf58] sm:$0xff]
        %v5774 = vld [vmem:[%s6 + $0xf60] sm:$0xff]
        %v5775 = vld [vmem:[%s6 + $0xf68] sm:$0xff]
        %v5776 = vld [vmem:[%s6 + $0xf70] sm:$0xff]
        %v5777 = vld [vmem:[%s6 + $0xf78] sm:$0xff]
        %v5778 = vld [vmem:[%s6 + $0xf80] sm:$0xff]
        %v5779 = vld [vmem:[%s6 + $0xf88] sm:$0xff]
        %v5780 = vld [vmem:[%s6 + $0xf90] sm:$0xff]
        %v5781 = vld [vmem:[%s6 + $0xf98] sm:$0xff]
        %v5782 = vld [vmem:[%s6 + $0xfa0] sm:$0xff]
        %v5783 = vld [vmem:[%s6 + $0xfa8] sm:$0xff]
        %v5784 = vld [vmem:[%s6 + $0xfb0] sm:$0xff]
        %v5785 = vld [vmem:[%s6 + $0xfb8] sm:$0xff]
        %v5786 = vld [vmem:[%s6 + $0xfc0] sm:$0xff]
        %v5787 = vld [vmem:[%s6 + $0xfc8] sm:$0xff]
        %v5788 = vld [vmem:[%s6 + $0xfd0] sm:$0xff]
        %v5789 = vld [vmem:[%s6 + $0xfd8] sm:$0xff]
        %v5790 = vld [vmem:[%s6 + $0xfe0] sm:$0xff]
        %v5791 = vld [vmem:[%s6 + $0xfe8] sm:$0xff]
        %v5792 = vld [vmem:[%s6 + $0xff0] sm:$0xff]
        %v5793 = vld [vmem:[%s6 + $0xff8] sm:$0xff]
        %v5794 = vld [vmem:[%s7] sm:$0x1]
        %v5799 = vperm.slane %v5278, 0
        %v5800 = vperm.slane %v5278, 1
        %v5801 = vperm.slane %v5278, 2
        %v5802 = vperm.slane %v5278, 3
        %v5803 = vperm.slane %v5278, 4
        %v5804 = vperm.slane %v5278, 5
        %v5805 = vperm.slane %v5278, 6
        %v5806 = vperm.slane %v5278, 7
        %v5807 = vperm.slane %v5279, 0
        %v5808 = vperm.slane %v5279, 1
        %v5809 = vperm.slane %v5279, 2
        %v5810 = vperm.slane %v5279, 3
        %v5811 = vperm.slane %v5279, 4
        %v5812 = vperm.slane %v5279, 5
        %v5813 = vperm.slane %v5279, 6
        %v5814 = vperm.slane %v5279, 7
        %v5815 = vperm.slane %v5280, 0
        %v5816 = vperm.slane %v5280, 1
        %v5817 = vperm.slane %v5280, 2
        %v5818 = vperm.slane %v5280, 3
        %v5819 = vperm.slane %v5280, 4
        %v5820 = vperm.slane %v5280, 5
        %v5821 = vperm.slane %v5280, 6
        %v5822 = vperm.slane %v5280, 7
        %v5823 = vperm.slane %v5281, 0
        %v5824 = vperm.slane %v5281, 1
        %v5825 = vperm.slane %v5281, 2
        %v5826 = vperm.slane %v5281, 3
        %v5827 = vperm.slane %v5281, 4
        %v5828 = vperm.slane %v5281, 5
        %v5829 = vperm.slane %v5281, 6
        %v5830 = vperm.slane %v5281, 7
        %5863 = vmatpush.msra.mxu0 %v5297
        %5864 = vmatpush.msra.mxu0 %v5296
        %5865 = vmatpush.msra.mxu0 %v5295
        %5866 = vmatpush.msra.mxu0 %v5294
        %5867 = vmatpush.msra.mxu0 %v5293
        %5868 = vmatpush.msra.mxu0 %v5292
        %5869 = vmatpush.msra.mxu0 %v5291
        %5870 = vmatpush.msra.mxu0 %v5290
        %5871 = vmatpush.msra.mxu0 %v5289
        %5872 = vmatpush.msra.mxu0 %v5288
        %5873 = vmatpush.msra.mxu0 %v5287
        %5874 = vmatpush.msra.mxu0 %v5286
        %5875 = vmatpush.msra.mxu0 %v5285
        %5876 = vmatpush.msra.mxu0 %v5284
        %5877 = vmatpush.msra.mxu0 %v5283
        %5878 = vmatpush.msra.mxu0 %v5282
        %5879 = vmatmul.f32.gmra.mxu0 %v5799
        %v5880 = vpop.f32.mrf.mxu0
        %v5881 = vadd.f32 %v5794, %v5880
        %5882 = vdwg.mxu0
        %5883 = vmatpush.msra.mxu0 %v5313
        %5884 = vmatpush.msra.mxu0 %v5312
        %5885 = vmatpush.msra.mxu0 %v5311
        %5886 = vmatpush.msra.mxu0 %v5310
        %5887 = vmatpush.msra.mxu0 %v5309
        %5888 = vmatpush.msra.mxu0 %v5308
        %5889 = vmatpush.msra.mxu0 %v5307
        %5890 = vmatpush.msra.mxu0 %v5306
        %5891 = vmatpush.msra.mxu0 %v5305
        %5892 = vmatpush.msra.mxu0 %v5304
        %5893 = vmatpush.msra.mxu0 %v5303
        %5894 = vmatpush.msra.mxu0 %v5302
        %5895 = vmatpush.msra.mxu0 %v5301
        %5896 = vmatpush.msra.mxu0 %v5300
        %5897 = vmatpush.msra.mxu0 %v5299
        %5898 = vmatpush.msra.mxu0 %v5298
        %5899 = vmatmul.f32.gmra.mxu0 %v5800
        %v5900 = vpop.f32.mrf.mxu0
        %v5901 = vadd.f32 %v5881, %v5900
        %5902 = vdwg.mxu0
        %5903 = vmatpush.msra.mxu0 %v5329
        %5904 = vmatpush.msra.mxu0 %v5328
        %5905 = vmatpush.msra.mxu0 %v5327
        %5906 = vmatpush.msra.mxu0 %v5326
        %5907 = vmatpush.msra.mxu0 %v5325
        %5908 = vmatpush.msra.mxu0 %v5324
        %5909 = vmatpush.msra.mxu0 %v5323
        %5910 = vmatpush.msra.mxu0 %v5322
        %5911 = vmatpush.msra.mxu0 %v5321
        %5912 = vmatpush.msra.mxu0 %v5320
        %5913 = vmatpush.msra.mxu0 %v5319
        %5914 = vmatpush.msra.mxu0 %v5318
        %5915 = vmatpush.msra.mxu0 %v5317
        %5916 = vmatpush.msra.mxu0 %v5316
        %5917 = vmatpush.msra.mxu0 %v5315
        %5918 = vmatpush.msra.mxu0 %v5314
        %5919 = vmatmul.f32.gmra.mxu0 %v5801
        %v5920 = vpop.f32.mrf.mxu0
        %v5921 = vadd.f32 %v5901, %v5920
        %5922 = vdwg.mxu0
        %5923 = vmatpush.msra.mxu0 %v5345
        %5924 = vmatpush.msra.mxu0 %v5344
        %5925 = vmatpush.msra.mxu0 %v5343
        %5926 = vmatpush.msra.mxu0 %v5342
        %5927 = vmatpush.msra.mxu0 %v5341
        %5928 = vmatpush.msra.mxu0 %v5340
        %5929 = vmatpush.msra.mxu0 %v5339
        %5930 = vmatpush.msra.mxu0 %v5338
        %5931 = vmatpush.msra.mxu0 %v5337
        %5932 = vmatpush.msra.mxu0 %v5336
        %5933 = vmatpush.msra.mxu0 %v5335
        %5934 = vmatpush.msra.mxu0 %v5334
        %5935 = vmatpush.msra.mxu0 %v5333
        %5936 = vmatpush.msra.mxu0 %v5332
        %5937 = vmatpush.msra.mxu0 %v5331
        %5938 = vmatpush.msra.mxu0 %v5330
        %5939 = vmatmul.f32.gmra.mxu0 %v5802
        %v5940 = vpop.f32.mrf.mxu0
        %v5941 = vadd.f32 %v5921, %v5940
        %5942 = vdwg.mxu0
        %5943 = vmatpush.msra.mxu0 %v5361
        %5944 = vmatpush.msra.mxu0 %v5360
        %5945 = vmatpush.msra.mxu0 %v5359
        %5946 = vmatpush.msra.mxu0 %v5358
        %5947 = vmatpush.msra.mxu0 %v5357
        %5948 = vmatpush.msra.mxu0 %v5356
        %5949 = vmatpush.msra.mxu0 %v5355
        %5950 = vmatpush.msra.mxu0 %v5354
        %5951 = vmatpush.msra.mxu0 %v5353
        %5952 = vmatpush.msra.mxu0 %v5352
        %5953 = vmatpush.msra.mxu0 %v5351
        %5954 = vmatpush.msra.mxu0 %v5350
        %5955 = vmatpush.msra.mxu0 %v5349
        %5956 = vmatpush.msra.mxu0 %v5348
        %5957 = vmatpush.msra.mxu0 %v5347
        %5958 = vmatpush.msra.mxu0 %v5346
        %5959 = vmatmul.f32.gmra.mxu0 %v5803
        %v5960 = vpop.f32.mrf.mxu0
        %v5961 = vadd.f32 %v5941, %v5960
        %5962 = vdwg.mxu0
        %5963 = vmatpush.msra.mxu0 %v5377
        %5964 = vmatpush.msra.mxu0 %v5376
        %5965 = vmatpush.msra.mxu0 %v5375
        %5966 = vmatpush.msra.mxu0 %v5374
        %5967 = vmatpush.msra.mxu0 %v5373
        %5968 = vmatpush.msra.mxu0 %v5372
        %5969 = vmatpush.msra.mxu0 %v5371
        %5970 = vmatpush.msra.mxu0 %v5370
        %5971 = vmatpush.msra.mxu0 %v5369
        %5972 = vmatpush.msra.mxu0 %v5368
        %5973 = vmatpush.msra.mxu0 %v5367
        %5974 = vmatpush.msra.mxu0 %v5366
        %5975 = vmatpush.msra.mxu0 %v5365
        %5976 = vmatpush.msra.mxu0 %v5364
        %5977 = vmatpush.msra.mxu0 %v5363
        %5978 = vmatpush.msra.mxu0 %v5362
        %5979 = vmatmul.f32.gmra.mxu0 %v5804
        %v5980 = vpop.f32.mrf.mxu0
        %v5981 = vadd.f32 %v5961, %v5980
        %5982 = vdwg.mxu0
        %5983 = vmatpush.msra.mxu0 %v5393
        %5984 = vmatpush.msra.mxu0 %v5392
        %5985 = vmatpush.msra.mxu0 %v5391
        %5986 = vmatpush.msra.mxu0 %v5390
        %5987 = vmatpush.msra.mxu0 %v5389
        %5988 = vmatpush.msra.mxu0 %v5388
        %5989 = vmatpush.msra.mxu0 %v5387
        %5990 = vmatpush.msra.mxu0 %v5386
        %5991 = vmatpush.msra.mxu0 %v5385
        %5992 = vmatpush.msra.mxu0 %v5384
        %5993 = vmatpush.msra.mxu0 %v5383
        %5994 = vmatpush.msra.mxu0 %v5382
        %5995 = vmatpush.msra.mxu0 %v5381
        %5996 = vmatpush.msra.mxu0 %v5380
        %5997 = vmatpush.msra.mxu0 %v5379
        %5998 = vmatpush.msra.mxu0 %v5378
        %5999 = vmatmul.f32.gmra.mxu0 %v5805
        %v6000 = vpop.f32.mrf.mxu0
        %v6001 = vadd.f32 %v5981, %v6000
        %6002 = vdwg.mxu0
        %6003 = vmatpush.msra.mxu0 %v5409
        %6004 = vmatpush.msra.mxu0 %v5408
        %6005 = vmatpush.msra.mxu0 %v5407
        %6006 = vmatpush.msra.mxu0 %v5406
        %6007 = vmatpush.msra.mxu0 %v5405
        %6008 = vmatpush.msra.mxu0 %v5404
        %6009 = vmatpush.msra.mxu0 %v5403
        %6010 = vmatpush.msra.mxu0 %v5402
        %6011 = vmatpush.msra.mxu0 %v5401
        %6012 = vmatpush.msra.mxu0 %v5400
        %6013 = vmatpush.msra.mxu0 %v5399
        %6014 = vmatpush.msra.mxu0 %v5398
        %6015 = vmatpush.msra.mxu0 %v5397
        %6016 = vmatpush.msra.mxu0 %v5396
        %6017 = vmatpush.msra.mxu0 %v5395
        %6018 = vmatpush.msra.mxu0 %v5394
        %6019 = vmatmul.f32.gmra.mxu0 %v5806
        %v6020 = vpop.f32.mrf.mxu0
        %v6021 = vadd.f32 %v6001, %v6020
        %6022 = vdwg.mxu0
        %6023 = vmatpush.msra.mxu0 %v5425
        %6024 = vmatpush.msra.mxu0 %v5424
        %6025 = vmatpush.msra.mxu0 %v5423
        %6026 = vmatpush.msra.mxu0 %v5422
        %6027 = vmatpush.msra.mxu0 %v5421
        %6028 = vmatpush.msra.mxu0 %v5420
        %6029 = vmatpush.msra.mxu0 %v5419
        %6030 = vmatpush.msra.mxu0 %v5418
        %6031 = vmatpush.msra.mxu0 %v5417
        %6032 = vmatpush.msra.mxu0 %v5416
        %6033 = vmatpush.msra.mxu0 %v5415
        %6034 = vmatpush.msra.mxu0 %v5414
        %6035 = vmatpush.msra.mxu0 %v5413
        %6036 = vmatpush.msra.mxu0 %v5412
        %6037 = vmatpush.msra.mxu0 %v5411
        %6038 = vmatpush.msra.mxu0 %v5410
        %6039 = vmatmul.f32.gmra.mxu0 %v5807
        %v6040 = vpop.f32.mrf.mxu0
        %v6041 = vadd.f32 %v6021, %v6040
        %6042 = vdwg.mxu0
        %6043 = vmatpush.msra.mxu0 %v5441
        %6044 = vmatpush.msra.mxu0 %v5440
        %6045 = vmatpush.msra.mxu0 %v5439
        %6046 = vmatpush.msra.mxu0 %v5438
        %6047 = vmatpush.msra.mxu0 %v5437
        %6048 = vmatpush.msra.mxu0 %v5436
        %6049 = vmatpush.msra.mxu0 %v5435
        %6050 = vmatpush.msra.mxu0 %v5434
        %6051 = vmatpush.msra.mxu0 %v5433
        %6052 = vmatpush.msra.mxu0 %v5432
        %6053 = vmatpush.msra.mxu0 %v5431
        %6054 = vmatpush.msra.mxu0 %v5430
        %6055 = vmatpush.msra.mxu0 %v5429
        %6056 = vmatpush.msra.mxu0 %v5428
        %6057 = vmatpush.msra.mxu0 %v5427
        %6058 = vmatpush.msra.mxu0 %v5426
        %6059 = vmatmul.f32.gmra.mxu0 %v5808
        %v6060 = vpop.f32.mrf.mxu0
        %v6061 = vadd.f32 %v6041, %v6060
        %6062 = vdwg.mxu0
        %6063 = vmatpush.msra.mxu0 %v5457
        %6064 = vmatpush.msra.mxu0 %v5456
        %6065 = vmatpush.msra.mxu0 %v5455
        %6066 = vmatpush.msra.mxu0 %v5454
        %6067 = vmatpush.msra.mxu0 %v5453
        %6068 = vmatpush.msra.mxu0 %v5452
        %6069 = vmatpush.msra.mxu0 %v5451
        %6070 = vmatpush.msra.mxu0 %v5450
        %6071 = vmatpush.msra.mxu0 %v5449
        %6072 = vmatpush.msra.mxu0 %v5448
        %6073 = vmatpush.msra.mxu0 %v5447
        %6074 = vmatpush.msra.mxu0 %v5446
        %6075 = vmatpush.msra.mxu0 %v5445
        %6076 = vmatpush.msra.mxu0 %v5444
        %6077 = vmatpush.msra.mxu0 %v5443
        %6078 = vmatpush.msra.mxu0 %v5442
        %6079 = vmatmul.f32.gmra.mxu0 %v5809
        %v6080 = vpop.f32.mrf.mxu0
        %v6081 = vadd.f32 %v6061, %v6080
        %6082 = vdwg.mxu0
        %6083 = vmatpush.msra.mxu0 %v5473
        %6084 = vmatpush.msra.mxu0 %v5472
        %6085 = vmatpush.msra.mxu0 %v5471
        %6086 = vmatpush.msra.mxu0 %v5470
        %6087 = vmatpush.msra.mxu0 %v5469
        %6088 = vmatpush.msra.mxu0 %v5468
        %6089 = vmatpush.msra.mxu0 %v5467
        %6090 = vmatpush.msra.mxu0 %v5466
        %6091 = vmatpush.msra.mxu0 %v5465
        %6092 = vmatpush.msra.mxu0 %v5464
        %6093 = vmatpush.msra.mxu0 %v5463
        %6094 = vmatpush.msra.mxu0 %v5462
        %6095 = vmatpush.msra.mxu0 %v5461
        %6096 = vmatpush.msra.mxu0 %v5460
        %6097 = vmatpush.msra.mxu0 %v5459
        %6098 = vmatpush.msra.mxu0 %v5458
        %6099 = vmatmul.f32.gmra.mxu0 %v5810
        %v6100 = vpop.f32.mrf.mxu0
        %v6101 = vadd.f32 %v6081, %v6100
        %6102 = vdwg.mxu0
        %6103 = vmatpush.msra.mxu0 %v5489
        %6104 = vmatpush.msra.mxu0 %v5488
        %6105 = vmatpush.msra.mxu0 %v5487
        %6106 = vmatpush.msra.mxu0 %v5486
        %6107 = vmatpush.msra.mxu0 %v5485
        %6108 = vmatpush.msra.mxu0 %v5484
        %6109 = vmatpush.msra.mxu0 %v5483
        %6110 = vmatpush.msra.mxu0 %v5482
        %6111 = vmatpush.msra.mxu0 %v5481
        %6112 = vmatpush.msra.mxu0 %v5480
        %6113 = vmatpush.msra.mxu0 %v5479
        %6114 = vmatpush.msra.mxu0 %v5478
        %6115 = vmatpush.msra.mxu0 %v5477
        %6116 = vmatpush.msra.mxu0 %v5476
        %6117 = vmatpush.msra.mxu0 %v5475
        %6118 = vmatpush.msra.mxu0 %v5474
        %6119 = vmatmul.f32.gmra.mxu0 %v5811
        %v6120 = vpop.f32.mrf.mxu0
        %v6121 = vadd.f32 %v6101, %v6120
        %6122 = vdwg.mxu0
        %6123 = vmatpush.msra.mxu0 %v5505
        %6124 = vmatpush.msra.mxu0 %v5504
        %6125 = vmatpush.msra.mxu0 %v5503
        %6126 = vmatpush.msra.mxu0 %v5502
        %6127 = vmatpush.msra.mxu0 %v5501
        %6128 = vmatpush.msra.mxu0 %v5500
        %6129 = vmatpush.msra.mxu0 %v5499
        %6130 = vmatpush.msra.mxu0 %v5498
        %6131 = vmatpush.msra.mxu0 %v5497
        %6132 = vmatpush.msra.mxu0 %v5496
        %6133 = vmatpush.msra.mxu0 %v5495
        %6134 = vmatpush.msra.mxu0 %v5494
        %6135 = vmatpush.msra.mxu0 %v5493
        %6136 = vmatpush.msra.mxu0 %v5492
        %6137 = vmatpush.msra.mxu0 %v5491
        %6138 = vmatpush.msra.mxu0 %v5490
        %6139 = vmatmul.f32.gmra.mxu0 %v5812
        %v6140 = vpop.f32.mrf.mxu0
        %v6141 = vadd.f32 %v6121, %v6140
        %6142 = vdwg.mxu0
        %6143 = vmatpush.msra.mxu0 %v5521
        %6144 = vmatpush.msra.mxu0 %v5520
        %6145 = vmatpush.msra.mxu0 %v5519
        %6146 = vmatpush.msra.mxu0 %v5518
        %6147 = vmatpush.msra.mxu0 %v5517
        %6148 = vmatpush.msra.mxu0 %v5516
        %6149 = vmatpush.msra.mxu0 %v5515
        %6150 = vmatpush.msra.mxu0 %v5514
        %6151 = vmatpush.msra.mxu0 %v5513
        %6152 = vmatpush.msra.mxu0 %v5512
        %6153 = vmatpush.msra.mxu0 %v5511
        %6154 = vmatpush.msra.mxu0 %v5510
        %6155 = vmatpush.msra.mxu0 %v5509
        %6156 = vmatpush.msra.mxu0 %v5508
        %6157 = vmatpush.msra.mxu0 %v5507
        %6158 = vmatpush.msra.mxu0 %v5506
        %6159 = vmatmul.f32.gmra.mxu0 %v5813
        %v6160 = vpop.f32.mrf.mxu0
        %v6161 = vadd.f32 %v6141, %v6160
        %6162 = vdwg.mxu0
        %6163 = vmatpush.msra.mxu0 %v5537
        %6164 = vmatpush.msra.mxu0 %v5536
        %6165 = vmatpush.msra.mxu0 %v5535
        %6166 = vmatpush.msra.mxu0 %v5534
        %6167 = vmatpush.msra.mxu0 %v5533
        %6168 = vmatpush.msra.mxu0 %v5532
        %6169 = vmatpush.msra.mxu0 %v5531
        %6170 = vmatpush.msra.mxu0 %v5530
        %6171 = vmatpush.msra.mxu0 %v5529
        %6172 = vmatpush.msra.mxu0 %v5528
        %6173 = vmatpush.msra.mxu0 %v5527
        %6174 = vmatpush.msra.mxu0 %v5526
        %6175 = vmatpush.msra.mxu0 %v5525
        %6176 = vmatpush.msra.mxu0 %v5524
        %6177 = vmatpush.msra.mxu0 %v5523
        %6178 = vmatpush.msra.mxu0 %v5522
        %6179 = vmatmul.f32.gmra.mxu0 %v5814
        %v6180 = vpop.f32.mrf.mxu0
        %v6181 = vadd.f32 %v6161, %v6180
        %6182 = vdwg.mxu0
        %6183 = vmatpush.msra.mxu0 %v5553
        %6184 = vmatpush.msra.mxu0 %v5552
        %6185 = vmatpush.msra.mxu0 %v5551
        %6186 = vmatpush.msra.mxu0 %v5550
        %6187 = vmatpush.msra.mxu0 %v5549
        %6188 = vmatpush.msra.mxu0 %v5548
        %6189 = vmatpush.msra.mxu0 %v5547
        %6190 = vmatpush.msra.mxu0 %v5546
        %6191 = vmatpush.msra.mxu0 %v5545
        %6192 = vmatpush.msra.mxu0 %v5544
        %6193 = vmatpush.msra.mxu0 %v5543
        %6194 = vmatpush.msra.mxu0 %v5542
        %6195 = vmatpush.msra.mxu0 %v5541
        %6196 = vmatpush.msra.mxu0 %v5540
        %6197 = vmatpush.msra.mxu0 %v5539
        %6198 = vmatpush.msra.mxu0 %v5538
        %6199 = vmatmul.f32.gmra.mxu0 %v5815
        %v6200 = vpop.f32.mrf.mxu0
        %v6201 = vadd.f32 %v6181, %v6200
        %6202 = vdwg.mxu0
        %6203 = vmatpush.msra.mxu0 %v5569
        %6204 = vmatpush.msra.mxu0 %v5568
        %6205 = vmatpush.msra.mxu0 %v5567
        %6206 = vmatpush.msra.mxu0 %v5566
        %6207 = vmatpush.msra.mxu0 %v5565
        %6208 = vmatpush.msra.mxu0 %v5564
        %6209 = vmatpush.msra.mxu0 %v5563
        %6210 = vmatpush.msra.mxu0 %v5562
        %6211 = vmatpush.msra.mxu0 %v5561
        %6212 = vmatpush.msra.mxu0 %v5560
        %6213 = vmatpush.msra.mxu0 %v5559
        %6214 = vmatpush.msra.mxu0 %v5558
        %6215 = vmatpush.msra.mxu0 %v5557
        %6216 = vmatpush.msra.mxu0 %v5556
        %6217 = vmatpush.msra.mxu0 %v5555
        %6218 = vmatpush.msra.mxu0 %v5554
        %6219 = vmatmul.f32.gmra.mxu0 %v5816
        %v6220 = vpop.f32.mrf.mxu0
        %v6221 = vadd.f32 %v6201, %v6220
        %6222 = vdwg.mxu0
        %6223 = vmatpush.msra.mxu0 %v5585
        %6224 = vmatpush.msra.mxu0 %v5584
        %6225 = vmatpush.msra.mxu0 %v5583
        %6226 = vmatpush.msra.mxu0 %v5582
        %6227 = vmatpush.msra.mxu0 %v5581
        %6228 = vmatpush.msra.mxu0 %v5580
        %6229 = vmatpush.msra.mxu0 %v5579
        %6230 = vmatpush.msra.mxu0 %v5578
        %6231 = vmatpush.msra.mxu0 %v5577
        %6232 = vmatpush.msra.mxu0 %v5576
        %6233 = vmatpush.msra.mxu0 %v5575
        %6234 = vmatpush.msra.mxu0 %v5574
        %6235 = vmatpush.msra.mxu0 %v5573
        %6236 = vmatpush.msra.mxu0 %v5572
        %6237 = vmatpush.msra.mxu0 %v5571
        %6238 = vmatpush.msra.mxu0 %v5570
        %6239 = vmatmul.f32.gmra.mxu0 %v5817
        %v6240 = vpop.f32.mrf.mxu0
        %v6241 = vadd.f32 %v6221, %v6240
        %6242 = vdwg.mxu0
        %6243 = vmatpush.msra.mxu0 %v5601
        %6244 = vmatpush.msra.mxu0 %v5600
        %6245 = vmatpush.msra.mxu0 %v5599
        %6246 = vmatpush.msra.mxu0 %v5598
        %6247 = vmatpush.msra.mxu0 %v5597
        %6248 = vmatpush.msra.mxu0 %v5596
        %6249 = vmatpush.msra.mxu0 %v5595
        %6250 = vmatpush.msra.mxu0 %v5594
        %6251 = vmatpush.msra.mxu0 %v5593
        %6252 = vmatpush.msra.mxu0 %v5592
        %6253 = vmatpush.msra.mxu0 %v5591
        %6254 = vmatpush.msra.mxu0 %v5590
        %6255 = vmatpush.msra.mxu0 %v5589
        %6256 = vmatpush.msra.mxu0 %v5588
        %6257 = vmatpush.msra.mxu0 %v5587
        %6258 = vmatpush.msra.mxu0 %v5586
        %6259 = vmatmul.f32.gmra.mxu0 %v5818
        %v6260 = vpop.f32.mrf.mxu0
        %v6261 = vadd.f32 %v6241, %v6260
        %6262 = vdwg.mxu0
        %6263 = vmatpush.msra.mxu0 %v5617
        %6264 = vmatpush.msra.mxu0 %v5616
        %6265 = vmatpush.msra.mxu0 %v5615
        %6266 = vmatpush.msra.mxu0 %v5614
        %6267 = vmatpush.msra.mxu0 %v5613
        %6268 = vmatpush.msra.mxu0 %v5612
        %6269 = vmatpush.msra.mxu0 %v5611
        %6270 = vmatpush.msra.mxu0 %v5610
        %6271 = vmatpush.msra.mxu0 %v5609
        %6272 = vmatpush.msra.mxu0 %v5608
        %6273 = vmatpush.msra.mxu0 %v5607
        %6274 = vmatpush.msra.mxu0 %v5606
        %6275 = vmatpush.msra.mxu0 %v5605
        %6276 = vmatpush.msra.mxu0 %v5604
        %6277 = vmatpush.msra.mxu0 %v5603
        %6278 = vmatpush.msra.mxu0 %v5602
        %6279 = vmatmul.f32.gmra.mxu0 %v5819
        %v6280 = vpop.f32.mrf.mxu0
        %v6281 = vadd.f32 %v6261, %v6280
        %6282 = vdwg.mxu0
        %6283 = vmatpush.msra.mxu0 %v5633
        %6284 = vmatpush.msra.mxu0 %v5632
        %6285 = vmatpush.msra.mxu0 %v5631
        %6286 = vmatpush.msra.mxu0 %v5630
        %6287 = vmatpush.msra.mxu0 %v5629
        %6288 = vmatpush.msra.mxu0 %v5628
        %6289 = vmatpush.msra.mxu0 %v5627
        %6290 = vmatpush.msra.mxu0 %v5626
        %6291 = vmatpush.msra.mxu0 %v5625
        %6292 = vmatpush.msra.mxu0 %v5624
        %6293 = vmatpush.msra.mxu0 %v5623
        %6294 = vmatpush.msra.mxu0 %v5622
        %6295 = vmatpush.msra.mxu0 %v5621
        %6296 = vmatpush.msra.mxu0 %v5620
        %6297 = vmatpush.msra.mxu0 %v5619
        %6298 = vmatpush.msra.mxu0 %v5618
        %6299 = vmatmul.f32.gmra.mxu0 %v5820
        %v6300 = vpop.f32.mrf.mxu0
        %v6301 = vadd.f32 %v6281, %v6300
        %6302 = vdwg.mxu0
        %6303 = vmatpush.msra.mxu0 %v5649
        %6304 = vmatpush.msra.mxu0 %v5648
        %6305 = vmatpush.msra.mxu0 %v5647
        %6306 = vmatpush.msra.mxu0 %v5646
        %6307 = vmatpush.msra.mxu0 %v5645
        %6308 = vmatpush.msra.mxu0 %v5644
        %6309 = vmatpush.msra.mxu0 %v5643
        %6310 = vmatpush.msra.mxu0 %v5642
        %6311 = vmatpush.msra.mxu0 %v5641
        %6312 = vmatpush.msra.mxu0 %v5640
        %6313 = vmatpush.msra.mxu0 %v5639
        %6314 = vmatpush.msra.mxu0 %v5638
        %6315 = vmatpush.msra.mxu0 %v5637
        %6316 = vmatpush.msra.mxu0 %v5636
        %6317 = vmatpush.msra.mxu0 %v5635
        %6318 = vmatpush.msra.mxu0 %v5634
        %6319 = vmatmul.f32.gmra.mxu0 %v5821
        %v6320 = vpop.f32.mrf.mxu0
        %v6321 = vadd.f32 %v6301, %v6320
        %6322 = vdwg.mxu0
        %6323 = vmatpush.msra.mxu0 %v5665
        %6324 = vmatpush.msra.mxu0 %v5664
        %6325 = vmatpush.msra.mxu0 %v5663
        %6326 = vmatpush.msra.mxu0 %v5662
        %6327 = vmatpush.msra.mxu0 %v5661
        %6328 = vmatpush.msra.mxu0 %v5660
        %6329 = vmatpush.msra.mxu0 %v5659
        %6330 = vmatpush.msra.mxu0 %v5658
        %6331 = vmatpush.msra.mxu0 %v5657
        %6332 = vmatpush.msra.mxu0 %v5656
        %6333 = vmatpush.msra.mxu0 %v5655
        %6334 = vmatpush.msra.mxu0 %v5654
        %6335 = vmatpush.msra.mxu0 %v5653
        %6336 = vmatpush.msra.mxu0 %v5652
        %6337 = vmatpush.msra.mxu0 %v5651
        %6338 = vmatpush.msra.mxu0 %v5650
        %6339 = vmatmul.f32.gmra.mxu0 %v5822
        %v6340 = vpop.f32.mrf.mxu0
        %v6341 = vadd.f32 %v6321, %v6340
        %6342 = vdwg.mxu0
        %6343 = vmatpush.msra.mxu0 %v5681
        %6344 = vmatpush.msra.mxu0 %v5680
        %6345 = vmatpush.msra.mxu0 %v5679
        %6346 = vmatpush.msra.mxu0 %v5678
        %6347 = vmatpush.msra.mxu0 %v5677
        %6348 = vmatpush.msra.mxu0 %v5676
        %6349 = vmatpush.msra.mxu0 %v5675
        %6350 = vmatpush.msra.mxu0 %v5674
        %6351 = vmatpush.msra.mxu0 %v5673
        %6352 = vmatpush.msra.mxu0 %v5672
        %6353 = vmatpush.msra.mxu0 %v5671
        %6354 = vmatpush.msra.mxu0 %v5670
        %6355 = vmatpush.msra.mxu0 %v5669
        %6356 = vmatpush.msra.mxu0 %v5668
        %6357 = vmatpush.msra.mxu0 %v5667
        %6358 = vmatpush.msra.mxu0 %v5666
        %6359 = vmatmul.f32.gmra.mxu0 %v5823
        %v6360 = vpop.f32.mrf.mxu0
        %v6361 = vadd.f32 %v6341, %v6360
        %6362 = vdwg.mxu0
        %6363 = vmatpush.msra.mxu0 %v5697
        %6364 = vmatpush.msra.mxu0 %v5696
        %6365 = vmatpush.msra.mxu0 %v5695
        %6366 = vmatpush.msra.mxu0 %v5694
        %6367 = vmatpush.msra.mxu0 %v5693
        %6368 = vmatpush.msra.mxu0 %v5692
        %6369 = vmatpush.msra.mxu0 %v5691
        %6370 = vmatpush.msra.mxu0 %v5690
        %6371 = vmatpush.msra.mxu0 %v5689
        %6372 = vmatpush.msra.mxu0 %v5688
        %6373 = vmatpush.msra.mxu0 %v5687
        %6374 = vmatpush.msra.mxu0 %v5686
        %6375 = vmatpush.msra.mxu0 %v5685
        %6376 = vmatpush.msra.mxu0 %v5684
        %6377 = vmatpush.msra.mxu0 %v5683
        %6378 = vmatpush.msra.mxu0 %v5682
        %6379 = vmatmul.f32.gmra.mxu0 %v5824
        %v6380 = vpop.f32.mrf.mxu0
        %v6381 = vadd.f32 %v6361, %v6380
        %6382 = vdwg.mxu0
        %6383 = vmatpush.msra.mxu0 %v5713
        %6384 = vmatpush.msra.mxu0 %v5712
        %6385 = vmatpush.msra.mxu0 %v5711
        %6386 = vmatpush.msra.mxu0 %v5710
        %6387 = vmatpush.msra.mxu0 %v5709
        %6388 = vmatpush.msra.mxu0 %v5708
        %6389 = vmatpush.msra.mxu0 %v5707
        %6390 = vmatpush.msra.mxu0 %v5706
        %6391 = vmatpush.msra.mxu0 %v5705
        %6392 = vmatpush.msra.mxu0 %v5704
        %6393 = vmatpush.msra.mxu0 %v5703
        %6394 = vmatpush.msra.mxu0 %v5702
        %6395 = vmatpush.msra.mxu0 %v5701
        %6396 = vmatpush.msra.mxu0 %v5700
        %6397 = vmatpush.msra.mxu0 %v5699
        %6398 = vmatpush.msra.mxu0 %v5698
        %6399 = vmatmul.f32.gmra.mxu0 %v5825
        %v6400 = vpop.f32.mrf.mxu0
        %v6401 = vadd.f32 %v6381, %v6400
        %6402 = vdwg.mxu0
        %6403 = vmatpush.msra.mxu0 %v5729
        %6404 = vmatpush.msra.mxu0 %v5728
        %6405 = vmatpush.msra.mxu0 %v5727
        %6406 = vmatpush.msra.mxu0 %v5726
        %6407 = vmatpush.msra.mxu0 %v5725
        %6408 = vmatpush.msra.mxu0 %v5724
        %6409 = vmatpush.msra.mxu0 %v5723
        %6410 = vmatpush.msra.mxu0 %v5722
        %6411 = vmatpush.msra.mxu0 %v5721
        %6412 = vmatpush.msra.mxu0 %v5720
        %6413 = vmatpush.msra.mxu0 %v5719
        %6414 = vmatpush.msra.mxu0 %v5718
        %6415 = vmatpush.msra.mxu0 %v5717
        %6416 = vmatpush.msra.mxu0 %v5716
        %6417 = vmatpush.msra.mxu0 %v5715
        %6418 = vmatpush.msra.mxu0 %v5714
        %6419 = vmatmul.f32.gmra.mxu0 %v5826
        %v6420 = vpop.f32.mrf.mxu0
        %v6421 = vadd.f32 %v6401, %v6420
        %6422 = vdwg.mxu0
        %6423 = vmatpush.msra.mxu0 %v5745
        %6424 = vmatpush.msra.mxu0 %v5744
        %6425 = vmatpush.msra.mxu0 %v5743
        %6426 = vmatpush.msra.mxu0 %v5742
        %6427 = vmatpush.msra.mxu0 %v5741
        %6428 = vmatpush.msra.mxu0 %v5740
        %6429 = vmatpush.msra.mxu0 %v5739
        %6430 = vmatpush.msra.mxu0 %v5738
        %6431 = vmatpush.msra.mxu0 %v5737
        %6432 = vmatpush.msra.mxu0 %v5736
        %6433 = vmatpush.msra.mxu0 %v5735
        %6434 = vmatpush.msra.mxu0 %v5734
        %6435 = vmatpush.msra.mxu0 %v5733
        %6436 = vmatpush.msra.mxu0 %v5732
        %6437 = vmatpush.msra.mxu0 %v5731
        %6438 = vmatpush.msra.mxu0 %v5730
        %6439 = vmatmul.f32.gmra.mxu0 %v5827
        %v6440 = vpop.f32.mrf.mxu0
        %v6441 = vadd.f32 %v6421, %v6440
        %6442 = vdwg.mxu0
        %6443 = vmatpush.msra.mxu0 %v5761
        %6444 = vmatpush.msra.mxu0 %v5760
        %6445 = vmatpush.msra.mxu0 %v5759
        %6446 = vmatpush.msra.mxu0 %v5758
        %6447 = vmatpush.msra.mxu0 %v5757
        %6448 = vmatpush.msra.mxu0 %v5756
        %6449 = vmatpush.msra.mxu0 %v5755
        %6450 = vmatpush.msra.mxu0 %v5754
        %6451 = vmatpush.msra.mxu0 %v5753
        %6452 = vmatpush.msra.mxu0 %v5752
        %6453 = vmatpush.msra.mxu0 %v5751
        %6454 = vmatpush.msra.mxu0 %v5750
        %6455 = vmatpush.msra.mxu0 %v5749
        %6456 = vmatpush.msra.mxu0 %v5748
        %6457 = vmatpush.msra.mxu0 %v5747
        %6458 = vmatpush.msra.mxu0 %v5746
        %6459 = vmatmul.f32.gmra.mxu0 %v5828
        %v6460 = vpop.f32.mrf.mxu0
        %v6461 = vadd.f32 %v6441, %v6460
        %6462 = vdwg.mxu0
        %6463 = vmatpush.msra.mxu0 %v5777
        %6464 = vmatpush.msra.mxu0 %v5776
        %6465 = vmatpush.msra.mxu0 %v5775
        %6466 = vmatpush.msra.mxu0 %v5774
        %6467 = vmatpush.msra.mxu0 %v5773
        %6468 = vmatpush.msra.mxu0 %v5772
        %6469 = vmatpush.msra.mxu0 %v5771
        %6470 = vmatpush.msra.mxu0 %v5770
        %6471 = vmatpush.msra.mxu0 %v5769
        %6472 = vmatpush.msra.mxu0 %v5768
        %6473 = vmatpush.msra.mxu0 %v5767
        %6474 = vmatpush.msra.mxu0 %v5766
        %6475 = vmatpush.msra.mxu0 %v5765
        %6476 = vmatpush.msra.mxu0 %v5764
        %6477 = vmatpush.msra.mxu0 %v5763
        %6478 = vmatpush.msra.mxu0 %v5762
        %6479 = vmatmul.f32.gmra.mxu0 %v5829
        %v6480 = vpop.f32.mrf.mxu0
        %v6481 = vadd.f32 %v6461, %v6480
        %6482 = vdwg.mxu0
        %6483 = vmatpush.msra.mxu0 %v5793
        %6484 = vmatpush.msra.mxu0 %v5792
        %6485 = vmatpush.msra.mxu0 %v5791
        %6486 = vmatpush.msra.mxu0 %v5790
        %6487 = vmatpush.msra.mxu0 %v5789
        %6488 = vmatpush.msra.mxu0 %v5788
        %6489 = vmatpush.msra.mxu0 %v5787
        %6490 = vmatpush.msra.mxu0 %v5786
        %6491 = vmatpush.msra.mxu0 %v5785
        %6492 = vmatpush.msra.mxu0 %v5784
        %6493 = vmatpush.msra.mxu0 %v5783
        %6494 = vmatpush.msra.mxu0 %v5782
        %6495 = vmatpush.msra.mxu0 %v5781
        %6496 = vmatpush.msra.mxu0 %v5780
        %6497 = vmatpush.msra.mxu0 %v5779
        %6498 = vmatpush.msra.mxu0 %v5778
        %6499 = vmatmul.f32.gmra.mxu0 %v5830
        %v6500 = vpop.f32.mrf.mxu0
        %v6501 = vadd.f32 %v6481, %v6500
        %6502 = vdwg.mxu0
        %6503 = vst [vmem:[%s323] sm:$0x1] %v6501
        %s6504 = sand.u32 %s205, 1
        %s6505 = scalar_lea.sflag [#allocation6], %s6504
        %s6506 = sand.u32 %s205, 1
        %s6507 = scalar_lea.vmem [#allocation5], %s6506
        %p6508 = scmp.lt.s32.totalorder %s24, 1
        %s6509 = scalar_select %p6508, %s24, 1
        %s6510 = smul.addr %s6509, 32
        %s6511 = scalar_lea.vmem %s9, %s6510
        // Predicated region
        $region53: #{cnn_forward.1} parent=51 // pred_check
          %p6512 = pneg %p215
        $region54: #{cnn_forward.1} parent=51 // pred_check_branch
          %6514 = sbr.rel (%p6512) target = $region56
        $region55: #{cnn_forward.1} parent=51 // pred_region
          %6516 = vsyncadd %s6505, 0
          %s6517 = scalar_lea.hbm %s8, %s24
          %s6519 = sshll.u32 %s6507, 4
          %s6520 = int_to_ptr.vmem [resolvable:$true] %s6519
          %s6521 = sshll.u32 %s6517, 4
          %s6522 = int_to_ptr.hbm [resolvable:$true] %s6521
          %6524 = dma.vmem_to_hbm [thread:$0]  %s6520, 16, %s6522, %s6505
        $region56: #{cnn_forward.1} parent=51 // pred_fallthru
          _
        // Predicated region
        $region57: #{cnn_forward.1} parent=51 // pred_check
          %p6525 = pneg %p241
        $region58: #{cnn_forward.1} parent=51 // pred_check_branch
          %6527 = sbr.rel (%p6525) target = $region60
        $region59: #{cnn_forward.1} parent=51 // pred_region
          _
        $region60: #{cnn_forward.1} parent=51 // pred_fallthru
          _
      $region52: #{cnn_forward.1} parent=5 // pred_fallthru
        _
      %p6528 = scmp.le.s32.totalorder 2, %s19
      // Predicated region
      $region61: #{cnn_forward.1} parent=5 // pred_check
        %p6529 = pneg %p6528
      $region62: #{cnn_forward.1} parent=5 // pred_check_branch
        %6531 = sbr.rel (%p6529) target = $region64
      $region63: #{cnn_forward.1} parent=5 // pred_region
        %s6532 = ssub.s32 %s19, 2
        // Predicated region
        $region65: #{cnn_forward.1} parent=63 // pred_check
          %p6533 = pneg %p221
        $region66: #{cnn_forward.1} parent=63 // pred_check_branch
          %6535 = sbr.rel (%p6533) target = $region68
        $region67: #{cnn_forward.1} parent=63 // pred_region
          %s6536 = sand.u32 %s206, 1
          %s6537 = scalar_lea.sflag [#allocation6], %s6536
          %s6538 = sand.u32 %s206, 1
          %s6539 = scalar_lea.vmem [#allocation5], %s6538
          %6541 = dma.done %s6537, 16
        $region68: #{cnn_forward.1} parent=63 // pred_fallthru
          _
        // Predicated region
        $region69: #{cnn_forward.1} parent=63 // pred_check
          %p6542 = pneg %p247
        $region70: #{cnn_forward.1} parent=63 // pred_check_branch
          %6544 = sbr.rel (%p6542) target = $region72
        $region71: #{cnn_forward.1} parent=63 // pred_region
          %p6545 = scmp.lt.s32.totalorder %s25, 1
          %s6546 = scalar_select %p6545, %s25, 1
          %s6547 = smul.addr %s6546, 32
          %s6548 = scalar_lea.vmem %s9, %s6547
        $region72: #{cnn_forward.1} parent=63 // pred_fallthru
          _
      $region64: #{cnn_forward.1} parent=5 // pred_fallthru
        _
    $region6: #{cnn_forward.1} parent=1 // loop_footer
      %s23 = sadd.s32 1, %s19
    $region7: #{cnn_forward.1} parent=1 // loop_footer_branch
      %18 = sbr.rel target = $region3
    $region8: #{cnn_forward.1} parent=1 // loop_exit
      _
    %6549 = vsyncpa [#allocation6], 1
    %s6550 = scalar_lea.sflag [#allocation6], 1
    %6551 = vsyncpa %s6550, 1

</llo_original>
